<compile_context>
chip_gen: v5e
topology: v5e:2x2
jax: 0.10.0
libtpu: 0.0.40
codegen_flags: <defaults>
</compile_context>

<pallas_src>
import functools

import jax
import jax.numpy as jnp
from jax.experimental import pallas as pl
from jax.experimental.pallas import tpu as pltpu

LEAKY_SLOPE = 0.2
BN_EPS = 1e-5


def _correction_kernel(
    x_ref,                       # (N*Hp + 2, Wp*3)  zero-padded input + 1 margin row each side
    w1_ref, b1_ref,              # (3, Wp*3,  Wp*16), (1, Wp*16)
    w2_ref, b2_ref,              # (3, Wp*16, Wp*32), (1, Wp*32)
    w3_ref, b3_ref,              # (3, Wp*32, Wp*32), (1, Wp*32)
    w4_ref, b4_ref,              # (3, Wp*32, Wp*16), (1, Wp*16)
    w5_ref, b5_ref,              # (3, Wp*16, Wp*3),  (1, Wp*3)
    g1_ref, be1_ref,             # (1, 32)  BatchNorm2d(32) affine
    g2_ref, be2_ref,             # (1, 3)   BatchNorm2d(3) affine
    rmask_ref,                   # (N*Hp, 1)   1.0 at interior rows (1 <= y <= H) else 0
    lmask32_ref,                 # (1, Wp*32)  1.0 at interior x-blocks else 0
    s32_ref, s32t_ref,           # (Wp*32, 32), (32, Wp*32) channel selection matrices
    s3_ref, s3t_ref,             # (Wp*3, 3),  (3, Wp*3)
    out_ref,                     # (N*Hp, Wp*3)
    buf_a, buf_b,                # scratch ping-pong slabs (N*Hp + 2, Wp*32)
    *, n, h, w,
):
    hp, wp = h + 2, w + 2
    nhp = n * hp
    count = float(n * h * w)                 # BN statistics population (interior only)
    rmask = rmask_ref[...]                   # (nhp, 1)

    # Zero only the margin rows of the ping-pong slabs; every interior row is
    # fully overwritten before it is read.
    zrow = jnp.zeros((1, buf_a.shape[1]), jnp.float32)
    buf_a[pl.ds(0, 1), :] = zrow
    buf_a[pl.ds(nhp + 1, 1), :] = zrow
    buf_b[pl.ds(0, 1), :] = zrow
    buf_b[pl.ds(nhp + 1, 1), :] = zrow

    def conv(src_ref, w_ref, b_ref, width_in):
        # 3x3 conv as 3 lane-dense MXU matmuls (K = width_in = Wp*Cin).  The dx
        # taps and the zero 'SAME' padding along W live inside the
        # block-Toeplitz weight; dy is a constant sublane offset via pl.ds.
        acc = jnp.dot(src_ref[pl.ds(0, nhp), :width_in], w_ref[0],
                      preferred_element_type=jnp.float32)
        acc = acc + jnp.dot(src_ref[pl.ds(1, nhp), :width_in], w_ref[1],
                            preferred_element_type=jnp.float32)
        acc = acc + jnp.dot(src_ref[pl.ds(2, nhp), :width_in], w_ref[2],
                            preferred_element_type=jnp.float32)
        # Bias is already zero at border columns; zero the border rows so the
        # zero padding stays intact for the next layer.
        return (acc + b_ref[...]) * rmask

    def leaky(v):
        return jnp.where(v > 0, v, LEAKY_SLOPE * v)

    def batch_norm(v, g_ref, be_ref, s_ref, st_ref):
        # One-pass training-mode BatchNorm2d.  Border rows/cols of `v` are
        # exactly zero, so full-slab sums equal interior sums; normalize by the
        # interior population N*H*W (biased variance, like PyTorch).
        lane_sum = jnp.sum(v, axis=0, keepdims=True)              # (1, Wp*C)
        lane_sq = jnp.sum(v * v, axis=0, keepdims=True)           # (1, Wp*C)
        ch_sum = jnp.dot(lane_sum, s_ref[...], preferred_element_type=jnp.float32)
        ch_sq = jnp.dot(lane_sq, s_ref[...], preferred_element_type=jnp.float32)
        mean = ch_sum * (1.0 / count)                             # (1, C)
        var = ch_sq * (1.0 / count) - mean * mean                 # biased variance
        scale = g_ref[...] * jax.lax.rsqrt(var + BN_EPS)          # (1, C)
        shift = be_ref[...] - mean * scale                        # (1, C)
        scale_l = jnp.dot(scale, st_ref[...], preferred_element_type=jnp.float32)
        shift_l = jnp.dot(shift, st_ref[...], preferred_element_type=jnp.float32)
        return v * scale_l + shift_l

    w16, w32, w3c = wp * 16, wp * 32, wp * 3

    # conv1 (3 -> 16) + LeakyReLU
    a = leaky(conv(x_ref, w1_ref, b1_ref, w3c))
    buf_a[pl.ds(1, nhp), :w16] = a
    # conv2 (16 -> 32) + LeakyReLU
    a = leaky(conv(buf_a, w2_ref, b2_ref, w16))
    buf_b[pl.ds(1, nhp), :w32] = a
    # conv3 (32 -> 32) + BN(32) + LeakyReLU
    a = conv(buf_b, w3_ref, b3_ref, w32)
    a = leaky(batch_norm(a, g1_ref, be1_ref, s32_ref, s32t_ref))
    # BatchNorm shifted the zero padding; restore it before the next conv.
    a = a * rmask * lmask32_ref[...]
    buf_a[pl.ds(1, nhp), :w32] = a
    # conv4 (32 -> 16), no activation
    a = conv(buf_a, w4_ref, b4_ref, w32)
    buf_b[pl.ds(1, nhp), :w16] = a
    # conv5 (16 -> 3) + BN(3) + ReLU
    a = conv(buf_b, w5_ref, b5_ref, w16)
    a = batch_norm(a, g2_ref, be2_ref, s3_ref, s3t_ref)
    out_ref[...] = jnp.maximum(a, 0.0)


def _toeplitz_weight(wgt, bias, width, wp):
    """Pack a (3, 3, Cin, Cout) HWIO conv weight into per-dy block-Toeplitz
    matrices (3, Wp*Cin, Wp*Cout) plus a lane-bias (1, Wp*Cout).  Border output
    columns (x_out in {0, Wp-1}) get all-zero weight/bias so the conv output
    keeps its zero 'SAME' padding columns for the next layer."""
    cin, cout = wgt.shape[2], wgt.shape[3]
    x_in = jnp.arange(wp)
    x_out = jnp.arange(wp)
    dx = x_in[:, None] - (x_out[None, :] - 1)                         # (Wp, Wp)
    valid = (dx >= 0) & (dx <= 2) & (x_out[None, :] >= 1) & (x_out[None, :] <= width)
    blk = wgt[:, jnp.clip(dx, 0, 2), :, :]                            # (3, Wp, Wp, Cin, Cout)
    blk = blk * valid[None, :, :, None, None].astype(wgt.dtype)
    wt = jnp.transpose(blk, (0, 1, 3, 2, 4)).reshape(3, wp * cin, wp * cout)
    interior = ((x_out >= 1) & (x_out <= width)).astype(wgt.dtype)    # (Wp,)
    bias_lane = (interior[:, None] * bias[None, :]).reshape(1, wp * cout)
    return wt, bias_lane


def _channel_select(c, wp):
    """S[(x*C + ch), ch'] = 1 if ch == ch' else 0, plus its transpose."""
    s = jnp.tile(jnp.eye(c, dtype=jnp.float32), (wp, 1))              # (Wp*C, C)
    return s, s.T


@jax.jit
def correction_net_pallas(x_nchw, params):
    """Forward pass of CorrectionNet.  x_nchw: (N, 3, H, W) -> (N, 3, H, W)."""
    x = jnp.transpose(x_nchw, (0, 2, 3, 1)).astype(jnp.float32)       # NCHW -> NHWC
    n, h, w, _ = x.shape
    hp, wp = h + 2, w + 2
    nhp = n * hp

    # Lane-dense padded slab: rows = (n, padded y), lanes = (padded x, channel),
    # with one extra zero margin row on each side for the dy = 0/2 sublane taps.
    xp = jnp.pad(x, ((0, 0), (1, 1), (1, 1), (0, 0)))                 # (N, Hp, Wp, 3)
    x_slab = jnp.pad(xp.reshape(nhp, wp * 3), ((1, 1), (0, 0)))       # (N*Hp + 2, Wp*3)

    wts, biases = [], []
    for idx in range(1, 6):
        wt, bl = _toeplitz_weight(params[f"w{idx}"], params[f"b{idx}"], w, wp)
        wts.append(wt)
        biases.append(bl)

    y_idx = jnp.tile(jnp.arange(hp), n)
    rmask = ((y_idx >= 1) & (y_idx <= h)).astype(jnp.float32).reshape(nhp, 1)
    x_idx = jnp.repeat(jnp.arange(wp), 32)
    lmask32 = ((x_idx >= 1) & (x_idx <= w)).astype(jnp.float32).reshape(1, wp * 32)

    s32, s32t = _channel_select(32, wp)
    s3, s3t = _channel_select(3, wp)

    kernel = functools.partial(_correction_kernel, n=n, h=h, w=w)

    args = (
        x_slab,
        wts[0], biases[0], wts[1], biases[1], wts[2], biases[2],
        wts[3], biases[3], wts[4], biases[4],
        params["g1"].reshape(1, -1), params["be1"].reshape(1, -1),
        params["g2"].reshape(1, -1), params["be2"].reshape(1, -1),
        rmask, lmask32, s32, s32t, s3, s3t,
    )

    out_slab = pl.pallas_call(
        kernel,
        out_shape=jax.ShapeDtypeStruct((nhp, wp * 3), jnp.float32),
        in_specs=[pl.BlockSpec(memory_space=pltpu.MemorySpace.VMEM)] * len(args),
        out_specs=pl.BlockSpec(memory_space=pltpu.MemorySpace.VMEM),
        scratch_shapes=[
            pltpu.VMEM((nhp + 2, wp * 32), jnp.float32),
            pltpu.VMEM((nhp + 2, wp * 32), jnp.float32),
        ],
        compiler_params=pltpu.CompilerParams(vmem_limit_bytes=32 * 1024 * 1024),
    )(*args)

    out = out_slab.reshape(n, hp, wp, 3)[:, 1:h + 1, 1:w + 1, :]
    return jnp.transpose(out, (0, 3, 1, 2))                          # NHWC -> NCHW


def init_params(key):
    """Deterministic parameter init matching the shapes of CorrectionNet.__init__."""
    shapes = [(3, 16), (16, 32), (32, 32), (32, 16), (16, 3)]         # (Cin, Cout)
    params = {}
    keys = jax.random.split(key, 2 * len(shapes) + 4)
    ki = 0
    for idx, (cin, cout) in enumerate(shapes, start=1):
        params[f"w{idx}"] = 0.1 * jax.random.normal(keys[ki], (3, 3, cin, cout), jnp.float32)
        ki += 1
        params[f"b{idx}"] = 0.01 * jax.random.normal(keys[ki], (cout,), jnp.float32)
        ki += 1
    params["g1"] = 1.0 + 0.1 * jax.random.normal(keys[ki], (32,), jnp.float32); ki += 1
    params["be1"] = 0.01 * jax.random.normal(keys[ki], (32,), jnp.float32); ki += 1
    params["g2"] = 1.0 + 0.1 * jax.random.normal(keys[ki], (3,), jnp.float32); ki += 1
    params["be2"] = 0.01 * jax.random.normal(keys[ki], (3,), jnp.float32); ki += 1
    return params


def correction_net_reference(x_nchw, params):
    """Pure-JAX reference (lax conv) with identical semantics, for validation."""
    x = jnp.transpose(x_nchw, (0, 2, 3, 1)).astype(jnp.float32)

    def conv(x, w, b):
        y = jax.lax.conv_general_dilated(
            x, w, window_strides=(1, 1), padding="SAME",
            dimension_numbers=("NHWC", "HWIO", "NHWC"))
        return y + b

    def leaky(x):
        return jnp.where(x > 0, x, LEAKY_SLOPE * x)

    def bn(x, g, b):
        mean = jnp.mean(x, axis=(0, 1, 2), keepdims=True)
        var = jnp.mean((x - mean) ** 2, axis=(0, 1, 2), keepdims=True)
        return (x - mean) * jax.lax.rsqrt(var + BN_EPS) * g + b

    p = params
    h = leaky(conv(x, p["w1"], p["b1"]))
    h = leaky(conv(h, p["w2"], p["b2"]))
    h = leaky(bn(conv(h, p["w3"], p["b3"]), p["g1"], p["be1"]))
    h = conv(h, p["w4"], p["b4"])
    h = bn(conv(h, p["w5"], p["b5"]), p["g2"], p["be2"])
    h = jnp.maximum(h, 0.0)
    return jnp.transpose(h, (0, 3, 1, 2))


if __name__ == "__main__":
    key = jax.random.PRNGKey(0)
    k_x, k_p = jax.random.split(key)

    # Small deterministic input consistent with Conv2d(3, ...): N=2, C=3, H=W=16.
    x = jax.random.normal(k_x, (2, 3, 16, 16), jnp.float32)
    params = init_params(k_p)

    out = jax.block_until_ready(correction_net_pallas(x, params))
    ref = jax.block_until_ready(correction_net_reference(x, params))

    assert out.shape == (2, 3, 16, 16)
    assert bool(jnp.all(out >= 0.0))
    max_err = float(jnp.max(jnp.abs(out - ref)))
    assert jnp.allclose(out, ref, atol=2e-3, rtol=2e-3), max_err

    print("KERNEL_OK")
</pallas_src>

<mosaic_0001>
module attributes {stable_mosaic.version = 11 : i64} {
  func.func @_correction_kernel(%arg0: memref<38x54xf32, #tpu.memory_space<vmem>>, %arg1: memref<3x54x288xf32, #tpu.memory_space<vmem>>, %arg2: memref<1x288xf32, #tpu.memory_space<vmem>>, %arg3: memref<3x288x576xf32, #tpu.memory_space<vmem>>, %arg4: memref<1x576xf32, #tpu.memory_space<vmem>>, %arg5: memref<3x576x576xf32, #tpu.memory_space<vmem>>, %arg6: memref<1x576xf32, #tpu.memory_space<vmem>>, %arg7: memref<3x576x288xf32, #tpu.memory_space<vmem>>, %arg8: memref<1x288xf32, #tpu.memory_space<vmem>>, %arg9: memref<3x288x54xf32, #tpu.memory_space<vmem>>, %arg10: memref<1x54xf32, #tpu.memory_space<vmem>>, %arg11: memref<1x32xf32, #tpu.memory_space<vmem>>, %arg12: memref<1x32xf32, #tpu.memory_space<vmem>>, %arg13: memref<1x3xf32, #tpu.memory_space<vmem>>, %arg14: memref<1x3xf32, #tpu.memory_space<vmem>>, %arg15: memref<36x1xf32, #tpu.memory_space<vmem>>, %arg16: memref<1x576xf32, #tpu.memory_space<vmem>>, %arg17: memref<576x32xf32, #tpu.memory_space<vmem>>, %arg18: memref<32x576xf32, #tpu.memory_space<vmem>>, %arg19: memref<54x3xf32, #tpu.memory_space<vmem>>, %arg20: memref<3x54xf32, #tpu.memory_space<vmem>>, %arg21: memref<36x54xf32, #tpu.memory_space<vmem>>, %arg22: memref<38x576xf32, #tpu.memory_space<vmem>>, %arg23: memref<38x576xf32, #tpu.memory_space<vmem>>) attributes {dimension_semantics = [], scalar_prefetch = 0 : i64, scratch_operands = 2 : i64, tpu.core_type = #tpu.core_type<tc>} {
    %c0 = arith.constant 0 : index
    %c0_0 = arith.constant 0 : index
    %0 = vector.load %arg15[%c0, %c0_0] : memref<36x1xf32, #tpu.memory_space<vmem>>, vector<36x1xf32>
    %cst = arith.constant 0.000000e+00 : f32
    %1 = vector.broadcast %cst : f32 to vector<1x576xf32>
    %c0_1 = arith.constant 0 : index
    %c0_2 = arith.constant 0 : index
    %2 = vector.load %arg22[%c0_1, %c0_2] : memref<38x576xf32, #tpu.memory_space<vmem>>, vector<1x576xf32>
    tpu.vector_store %arg22[%c0_1, %c0_2], %1 {strides = array<i32>} : memref<38x576xf32, #tpu.memory_space<vmem>>, vector<1x576xf32>,
    %c37 = arith.constant 37 : index
    %c0_3 = arith.constant 0 : index
    %3 = vector.load %arg22[%c37, %c0_3] : memref<38x576xf32, #tpu.memory_space<vmem>>, vector<1x576xf32>
    tpu.vector_store %arg22[%c37, %c0_3], %1 {strides = array<i32>} : memref<38x576xf32, #tpu.memory_space<vmem>>, vector<1x576xf32>,
    %c0_4 = arith.constant 0 : index
    %c0_5 = arith.constant 0 : index
    %4 = vector.load %arg23[%c0_4, %c0_5] : memref<38x576xf32, #tpu.memory_space<vmem>>, vector<1x576xf32>
    tpu.vector_store %arg23[%c0_4, %c0_5], %1 {strides = array<i32>} : memref<38x576xf32, #tpu.memory_space<vmem>>, vector<1x576xf32>,
    %c37_6 = arith.constant 37 : index
    %c0_7 = arith.constant 0 : index
    %5 = vector.load %arg23[%c37_6, %c0_7] : memref<38x576xf32, #tpu.memory_space<vmem>>, vector<1x576xf32>
    tpu.vector_store %arg23[%c37_6, %c0_7], %1 {strides = array<i32>} : memref<38x576xf32, #tpu.memory_space<vmem>>, vector<1x576xf32>,
    %c0_8 = arith.constant 0 : index
    %c0_9 = arith.constant 0 : index
    %6 = vector.load %arg0[%c0_8, %c0_9] : memref<38x54xf32, #tpu.memory_space<vmem>>, vector<36x54xf32>
    %c0_10 = arith.constant 0 : index
    %c0_11 = arith.constant 0 : index
    %c0_12 = arith.constant 0 : index
    %7 = vector.load %arg1[%c0_10, %c0_11, %c0_12] : memref<3x54x288xf32, #tpu.memory_space<vmem>>, vector<1x54x288xf32>
    %8 = vector.shape_cast %7 : vector<1x54x288xf32> to vector<54x288xf32>
    %cst_13 = arith.constant dense<0.000000e+00> : vector<36x288xf32>
    %9 = tpu.matmul %6, %8, %cst_13 {dimension_numbers = #tpu.dot_dimension_numbers<[1], [0], [0], [1], [0, 0, 1, 1], [], []>} : vector<36x54xf32>, vector<54x288xf32>, vector<36x288xf32> -> vector<36x288xf32>
    %c1 = arith.constant 1 : index
    %c0_14 = arith.constant 0 : index
    %10 = vector.load %arg0[%c1, %c0_14] : memref<38x54xf32, #tpu.memory_space<vmem>>, vector<36x54xf32>
    %c1_15 = arith.constant 1 : index
    %c0_16 = arith.constant 0 : index
    %c0_17 = arith.constant 0 : index
    %11 = vector.load %arg1[%c1_15, %c0_16, %c0_17] : memref<3x54x288xf32, #tpu.memory_space<vmem>>, vector<1x54x288xf32>
    %12 = vector.shape_cast %11 : vector<1x54x288xf32> to vector<54x288xf32>
    %cst_18 = arith.constant dense<0.000000e+00> : vector<36x288xf32>
    %13 = tpu.matmul %10, %12, %cst_18 {dimension_numbers = #tpu.dot_dimension_numbers<[1], [0], [0], [1], [0, 0, 1, 1], [], []>} : vector<36x54xf32>, vector<54x288xf32>, vector<36x288xf32> -> vector<36x288xf32>
    %14 = arith.addf %9, %13 : vector<36x288xf32>
    %c2 = arith.constant 2 : index
    %c0_19 = arith.constant 0 : index
    %15 = vector.load %arg0[%c2, %c0_19] : memref<38x54xf32, #tpu.memory_space<vmem>>, vector<36x54xf32>
    %c2_20 = arith.constant 2 : index
    %c0_21 = arith.constant 0 : index
    %c0_22 = arith.constant 0 : index
    %16 = vector.load %arg1[%c2_20, %c0_21, %c0_22] : memref<3x54x288xf32, #tpu.memory_space<vmem>>, vector<1x54x288xf32>
    %17 = vector.shape_cast %16 : vector<1x54x288xf32> to vector<54x288xf32>
    %cst_23 = arith.constant dense<0.000000e+00> : vector<36x288xf32>
    %18 = tpu.matmul %15, %17, %cst_23 {dimension_numbers = #tpu.dot_dimension_numbers<[1], [0], [0], [1], [0, 0, 1, 1], [], []>} : vector<36x54xf32>, vector<54x288xf32>, vector<36x288xf32> -> vector<36x288xf32>
    %19 = arith.addf %14, %18 : vector<36x288xf32>
    %c0_24 = arith.constant 0 : index
    %c0_25 = arith.constant 0 : index
    %20 = vector.load %arg2[%c0_24, %c0_25] : memref<1x288xf32, #tpu.memory_space<vmem>>, vector<1x288xf32>
    %21 = vector.broadcast %20 : vector<1x288xf32> to vector<36x288xf32>
    %22 = arith.addf %19, %21 : vector<36x288xf32>
    %23 = vector.broadcast %0 : vector<36x1xf32> to vector<36x288xf32>
    %24 = arith.mulf %22, %23 : vector<36x288xf32>
    %cst_26 = arith.constant 0.000000e+00 : f32
    %25 = vector.broadcast %cst_26 : f32 to vector<36x288xf32>
    %26 = arith.cmpf ogt, %24, %25 : vector<36x288xf32>
    %cst_27 = arith.constant 2.000000e-01 : f32
    %27 = vector.broadcast %cst_27 : f32 to vector<36x288xf32>
    %28 = arith.mulf %27, %24 : vector<36x288xf32>
    %29 = arith.select %26, %24, %28 : vector<36x288xi1>, vector<36x288xf32>
    %c1_28 = arith.constant 1 : index
    %c0_29 = arith.constant 0 : index
    %30 = vector.load %arg22[%c1_28, %c0_29] : memref<38x576xf32, #tpu.memory_space<vmem>>, vector<36x288xf32>
    tpu.vector_store %arg22[%c1_28, %c0_29], %29 {strides = array<i32>} : memref<38x576xf32, #tpu.memory_space<vmem>>, vector<36x288xf32>,
    %c0_30 = arith.constant 0 : index
    %c0_31 = arith.constant 0 : index
    %31 = vector.load %arg22[%c0_30, %c0_31] : memref<38x576xf32, #tpu.memory_space<vmem>>, vector<36x288xf32>
    %c0_32 = arith.constant 0 : index
    %c0_33 = arith.constant 0 : index
    %c0_34 = arith.constant 0 : index
    %32 = vector.load %arg3[%c0_32, %c0_33, %c0_34] : memref<3x288x576xf32, #tpu.memory_space<vmem>>, vector<1x288x576xf32>
    %33 = vector.shape_cast %32 : vector<1x288x576xf32> to vector<288x576xf32>
    %cst_35 = arith.constant dense<0.000000e+00> : vector<36x576xf32>
    %34 = tpu.matmul %31, %33, %cst_35 {dimension_numbers = #tpu.dot_dimension_numbers<[1], [0], [0], [1], [0, 0, 1, 1], [], []>} : vector<36x288xf32>, vector<288x576xf32>, vector<36x576xf32> -> vector<36x576xf32>
    %c1_36 = arith.constant 1 : index
    %c0_37 = arith.constant 0 : index
    %35 = vector.load %arg22[%c1_36, %c0_37] : memref<38x576xf32, #tpu.memory_space<vmem>>, vector<36x288xf32>
    %c1_38 = arith.constant 1 : index
    %c0_39 = arith.constant 0 : index
    %c0_40 = arith.constant 0 : index
    %36 = vector.load %arg3[%c1_38, %c0_39, %c0_40] : memref<3x288x576xf32, #tpu.memory_space<vmem>>, vector<1x288x576xf32>
    %37 = vector.shape_cast %36 : vector<1x288x576xf32> to vector<288x576xf32>
    %cst_41 = arith.constant dense<0.000000e+00> : vector<36x576xf32>
    %38 = tpu.matmul %35, %37, %cst_41 {dimension_numbers = #tpu.dot_dimension_numbers<[1], [0], [0], [1], [0, 0, 1, 1], [], []>} : vector<36x288xf32>, vector<288x576xf32>, vector<36x576xf32> -> vector<36x576xf32>
    %39 = arith.addf %34, %38 : vector<36x576xf32>
    %c2_42 = arith.constant 2 : index
    %c0_43 = arith.constant 0 : index
    %40 = vector.load %arg22[%c2_42, %c0_43] : memref<38x576xf32, #tpu.memory_space<vmem>>, vector<36x288xf32>
    %c2_44 = arith.constant 2 : index
    %c0_45 = arith.constant 0 : index
    %c0_46 = arith.constant 0 : index
    %41 = vector.load %arg3[%c2_44, %c0_45, %c0_46] : memref<3x288x576xf32, #tpu.memory_space<vmem>>, vector<1x288x576xf32>
    %42 = vector.shape_cast %41 : vector<1x288x576xf32> to vector<288x576xf32>
    %cst_47 = arith.constant dense<0.000000e+00> : vector<36x576xf32>
    %43 = tpu.matmul %40, %42, %cst_47 {dimension_numbers = #tpu.dot_dimension_numbers<[1], [0], [0], [1], [0, 0, 1, 1], [], []>} : vector<36x288xf32>, vector<288x576xf32>, vector<36x576xf32> -> vector<36x576xf32>
    %44 = arith.addf %39, %43 : vector<36x576xf32>
    %c0_48 = arith.constant 0 : index
    %c0_49 = arith.constant 0 : index
    %45 = vector.load %arg4[%c0_48, %c0_49] : memref<1x576xf32, #tpu.memory_space<vmem>>, vector<1x576xf32>
    %46 = vector.broadcast %45 : vector<1x576xf32> to vector<36x576xf32>
    %47 = arith.addf %44, %46 : vector<36x576xf32>
    %48 = vector.broadcast %0 : vector<36x1xf32> to vector<36x576xf32>
    %49 = arith.mulf %47, %48 : vector<36x576xf32>
    %cst_50 = arith.constant 0.000000e+00 : f32
    %50 = vector.broadcast %cst_50 : f32 to vector<36x576xf32>
    %51 = arith.cmpf ogt, %49, %50 : vector<36x576xf32>
    %cst_51 = arith.constant 2.000000e-01 : f32
    %52 = vector.broadcast %cst_51 : f32 to vector<36x576xf32>
    %53 = arith.mulf %52, %49 : vector<36x576xf32>
    %54 = arith.select %51, %49, %53 : vector<36x576xi1>, vector<36x576xf32>
    %c1_52 = arith.constant 1 : index
    %c0_53 = arith.constant 0 : index
    %55 = vector.load %arg23[%c1_52, %c0_53] : memref<38x576xf32, #tpu.memory_space<vmem>>, vector<36x576xf32>
    tpu.vector_store %arg23[%c1_52, %c0_53], %54 {strides = array<i32>} : memref<38x576xf32, #tpu.memory_space<vmem>>, vector<36x576xf32>,
    %c0_54 = arith.constant 0 : index
    %c0_55 = arith.constant 0 : index
    %56 = vector.load %arg23[%c0_54, %c0_55] : memref<38x576xf32, #tpu.memory_space<vmem>>, vector<36x576xf32>
    %c0_56 = arith.constant 0 : index
    %c0_57 = arith.constant 0 : index
    %c0_58 = arith.constant 0 : index
    %57 = vector.load %arg5[%c0_56, %c0_57, %c0_58] : memref<3x576x576xf32, #tpu.memory_space<vmem>>, vector<1x576x576xf32>
    %58 = vector.shape_cast %57 : vector<1x576x576xf32> to vector<576x576xf32>
    %cst_59 = arith.constant dense<0.000000e+00> : vector<36x576xf32>
    %59 = tpu.matmul %56, %58, %cst_59 {dimension_numbers = #tpu.dot_dimension_numbers<[1], [0], [0], [1], [0, 0, 1, 1], [], []>} : vector<36x576xf32>, vector<576x576xf32>, vector<36x576xf32> -> vector<36x576xf32>
    %c1_60 = arith.constant 1 : index
    %c0_61 = arith.constant 0 : index
    %60 = vector.load %arg23[%c1_60, %c0_61] : memref<38x576xf32, #tpu.memory_space<vmem>>, vector<36x576xf32>
    %c1_62 = arith.constant 1 : index
    %c0_63 = arith.constant 0 : index
    %c0_64 = arith.constant 0 : index
    %61 = vector.load %arg5[%c1_62, %c0_63, %c0_64] : memref<3x576x576xf32, #tpu.memory_space<vmem>>, vector<1x576x576xf32>
    %62 = vector.shape_cast %61 : vector<1x576x576xf32> to vector<576x576xf32>
    %cst_65 = arith.constant dense<0.000000e+00> : vector<36x576xf32>
    %63 = tpu.matmul %60, %62, %cst_65 {dimension_numbers = #tpu.dot_dimension_numbers<[1], [0], [0], [1], [0, 0, 1, 1], [], []>} : vector<36x576xf32>, vector<576x576xf32>, vector<36x576xf32> -> vector<36x576xf32>
    %64 = arith.addf %59, %63 : vector<36x576xf32>
    %c2_66 = arith.constant 2 : index
    %c0_67 = arith.constant 0 : index
    %65 = vector.load %arg23[%c2_66, %c0_67] : memref<38x576xf32, #tpu.memory_space<vmem>>, vector<36x576xf32>
    %c2_68 = arith.constant 2 : index
    %c0_69 = arith.constant 0 : index
    %c0_70 = arith.constant 0 : index
    %66 = vector.load %arg5[%c2_68, %c0_69, %c0_70] : memref<3x576x576xf32, #tpu.memory_space<vmem>>, vector<1x576x576xf32>
    %67 = vector.shape_cast %66 : vector<1x576x576xf32> to vector<576x576xf32>
    %cst_71 = arith.constant dense<0.000000e+00> : vector<36x576xf32>
    %68 = tpu.matmul %65, %67, %cst_71 {dimension_numbers = #tpu.dot_dimension_numbers<[1], [0], [0], [1], [0, 0, 1, 1], [], []>} : vector<36x576xf32>, vector<576x576xf32>, vector<36x576xf32> -> vector<36x576xf32>
    %69 = arith.addf %64, %68 : vector<36x576xf32>
    %c0_72 = arith.constant 0 : index
    %c0_73 = arith.constant 0 : index
    %70 = vector.load %arg6[%c0_72, %c0_73] : memref<1x576xf32, #tpu.memory_space<vmem>>, vector<1x576xf32>
    %71 = vector.broadcast %70 : vector<1x576xf32> to vector<36x576xf32>
    %72 = arith.addf %69, %71 : vector<36x576xf32>
    %73 = vector.broadcast %0 : vector<36x1xf32> to vector<36x576xf32>
    %74 = arith.mulf %72, %73 : vector<36x576xf32>
    %cst_74 = arith.constant dense<0.000000e+00> : vector<576xf32>
    %75 = vector.multi_reduction <add>, %74, %cst_74 [0] : vector<36x576xf32> to vector<576xf32>
    %76 = vector.shape_cast %75 : vector<576xf32> to vector<1x576xf32>
    %77 = arith.mulf %74, %74 : vector<36x576xf32>
    %cst_75 = arith.constant dense<0.000000e+00> : vector<576xf32>
    %78 = vector.multi_reduction <add>, %77, %cst_75 [0] : vector<36x576xf32> to vector<576xf32>
    %79 = vector.shape_cast %78 : vector<576xf32> to vector<1x576xf32>
    %c0_76 = arith.constant 0 : index
    %c0_77 = arith.constant 0 : index
    %80 = vector.load %arg17[%c0_76, %c0_77] : memref<576x32xf32, #tpu.memory_space<vmem>>, vector<576x32xf32>
    %cst_78 = arith.constant dense<0.000000e+00> : vector<1x32xf32>
    %81 = tpu.matmul %76, %80, %cst_78 {dimension_numbers = #tpu.dot_dimension_numbers<[1], [0], [0], [1], [0, 0, 1, 1], [], []>} : vector<1x576xf32>, vector<576x32xf32>, vector<1x32xf32> -> vector<1x32xf32>
    %c0_79 = arith.constant 0 : index
    %c0_80 = arith.constant 0 : index
    %82 = vector.load %arg17[%c0_79, %c0_80] : memref<576x32xf32, #tpu.memory_space<vmem>>, vector<576x32xf32>
    %cst_81 = arith.constant dense<0.000000e+00> : vector<1x32xf32>
    %83 = tpu.matmul %79, %82, %cst_81 {dimension_numbers = #tpu.dot_dimension_numbers<[1], [0], [0], [1], [0, 0, 1, 1], [], []>} : vector<1x576xf32>, vector<576x32xf32>, vector<1x32xf32> -> vector<1x32xf32>
    %cst_82 = arith.constant 0.001953125 : f32
    %84 = vector.broadcast %cst_82 : f32 to vector<1x32xf32>
    %85 = arith.mulf %81, %84 : vector<1x32xf32>
    %cst_83 = arith.constant 0.001953125 : f32
    %86 = vector.broadcast %cst_83 : f32 to vector<1x32xf32>
    %87 = arith.mulf %83, %86 : vector<1x32xf32>
    %88 = arith.mulf %85, %85 : vector<1x32xf32>
    %89 = arith.subf %87, %88 : vector<1x32xf32>
    %c0_84 = arith.constant 0 : index
    %c0_85 = arith.constant 0 : index
    %90 = vector.load %arg11[%c0_84, %c0_85] : memref<1x32xf32, #tpu.memory_space<vmem>>, vector<1x32xf32>
    %cst_86 = arith.constant 9.99999974E-6 : f32
    %91 = vector.broadcast %cst_86 : f32 to vector<1x32xf32>
    %92 = arith.addf %89, %91 : vector<1x32xf32>
    %93 = math.rsqrt %92 : vector<1x32xf32>
    %94 = arith.mulf %90, %93 : vector<1x32xf32>
    %c0_87 = arith.constant 0 : index
    %c0_88 = arith.constant 0 : index
    %95 = vector.load %arg12[%c0_87, %c0_88] : memref<1x32xf32, #tpu.memory_space<vmem>>, vector<1x32xf32>
    %96 = arith.mulf %85, %94 : vector<1x32xf32>
    %97 = arith.subf %95, %96 : vector<1x32xf32>
    %c0_89 = arith.constant 0 : index
    %c0_90 = arith.constant 0 : index
    %98 = vector.load %arg18[%c0_89, %c0_90] : memref<32x576xf32, #tpu.memory_space<vmem>>, vector<32x576xf32>
    %cst_91 = arith.constant dense<0.000000e+00> : vector<1x576xf32>
    %99 = tpu.matmul %94, %98, %cst_91 {dimension_numbers = #tpu.dot_dimension_numbers<[1], [0], [0], [1], [0, 0, 1, 1], [], []>} : vector<1x32xf32>, vector<32x576xf32>, vector<1x576xf32> -> vector<1x576xf32>
    %c0_92 = arith.constant 0 : index
    %c0_93 = arith.constant 0 : index
    %100 = vector.load %arg18[%c0_92, %c0_93] : memref<32x576xf32, #tpu.memory_space<vmem>>, vector<32x576xf32>
    %cst_94 = arith.constant dense<0.000000e+00> : vector<1x576xf32>
    %101 = tpu.matmul %97, %100, %cst_94 {dimension_numbers = #tpu.dot_dimension_numbers<[1], [0], [0], [1], [0, 0, 1, 1], [], []>} : vector<1x32xf32>, vector<32x576xf32>, vector<1x576xf32> -> vector<1x576xf32>
    %102 = vector.broadcast %99 : vector<1x576xf32> to vector<36x576xf32>
    %103 = arith.mulf %74, %102 : vector<36x576xf32>
    %104 = vector.broadcast %101 : vector<1x576xf32> to vector<36x576xf32>
    %105 = arith.addf %103, %104 : vector<36x576xf32>
    %cst_95 = arith.constant 0.000000e+00 : f32
    %106 = vector.broadcast %cst_95 : f32 to vector<36x576xf32>
    %107 = arith.cmpf ogt, %105, %106 : vector<36x576xf32>
    %cst_96 = arith.constant 2.000000e-01 : f32
    %108 = vector.broadcast %cst_96 : f32 to vector<36x576xf32>
    %109 = arith.mulf %108, %105 : vector<36x576xf32>
    %110 = arith.select %107, %105, %109 : vector<36x576xi1>, vector<36x576xf32>
    %111 = vector.broadcast %0 : vector<36x1xf32> to vector<36x576xf32>
    %112 = arith.mulf %110, %111 : vector<36x576xf32>
    %c0_97 = arith.constant 0 : index
    %c0_98 = arith.constant 0 : index
    %113 = vector.load %arg16[%c0_97, %c0_98] : memref<1x576xf32, #tpu.memory_space<vmem>>, vector<1x576xf32>
    %114 = vector.broadcast %113 : vector<1x576xf32> to vector<36x576xf32>
    %115 = arith.mulf %112, %114 : vector<36x576xf32>
    %c1_99 = arith.constant 1 : index
    %c0_100 = arith.constant 0 : index
    %116 = vector.load %arg22[%c1_99, %c0_100] : memref<38x576xf32, #tpu.memory_space<vmem>>, vector<36x576xf32>
    tpu.vector_store %arg22[%c1_99, %c0_100], %115 {strides = array<i32>} : memref<38x576xf32, #tpu.memory_space<vmem>>, vector<36x576xf32>,
    %c0_101 = arith.constant 0 : index
    %c0_102 = arith.constant 0 : index
    %117 = vector.load %arg22[%c0_101, %c0_102] : memref<38x576xf32, #tpu.memory_space<vmem>>, vector<36x576xf32>
    %c0_103 = arith.constant 0 : index
    %c0_104 = arith.constant 0 : index
    %c0_105 = arith.constant 0 : index
    %118 = vector.load %arg7[%c0_103, %c0_104, %c0_105] : memref<3x576x288xf32, #tpu.memory_space<vmem>>, vector<1x576x288xf32>
    %119 = vector.shape_cast %118 : vector<1x576x288xf32> to vector<576x288xf32>
    %cst_106 = arith.constant dense<0.000000e+00> : vector<36x288xf32>
    %120 = tpu.matmul %117, %119, %cst_106 {dimension_numbers = #tpu.dot_dimension_numbers<[1], [0], [0], [1], [0, 0, 1, 1], [], []>} : vector<36x576xf32>, vector<576x288xf32>, vector<36x288xf32> -> vector<36x288xf32>
    %c1_107 = arith.constant 1 : index
    %c0_108 = arith.constant 0 : index
    %121 = vector.load %arg22[%c1_107, %c0_108] : memref<38x576xf32, #tpu.memory_space<vmem>>, vector<36x576xf32>
    %c1_109 = arith.constant 1 : index
    %c0_110 = arith.constant 0 : index
    %c0_111 = arith.constant 0 : index
    %122 = vector.load %arg7[%c1_109, %c0_110, %c0_111] : memref<3x576x288xf32, #tpu.memory_space<vmem>>, vector<1x576x288xf32>
    %123 = vector.shape_cast %122 : vector<1x576x288xf32> to vector<576x288xf32>
    %cst_112 = arith.constant dense<0.000000e+00> : vector<36x288xf32>
    %124 = tpu.matmul %121, %123, %cst_112 {dimension_numbers = #tpu.dot_dimension_numbers<[1], [0], [0], [1], [0, 0, 1, 1], [], []>} : vector<36x576xf32>, vector<576x288xf32>, vector<36x288xf32> -> vector<36x288xf32>
    %125 = arith.addf %120, %124 : vector<36x288xf32>
    %c2_113 = arith.constant 2 : index
    %c0_114 = arith.constant 0 : index
    %126 = vector.load %arg22[%c2_113, %c0_114] : memref<38x576xf32, #tpu.memory_space<vmem>>, vector<36x576xf32>
    %c2_115 = arith.constant 2 : index
    %c0_116 = arith.constant 0 : index
    %c0_117 = arith.constant 0 : index
    %127 = vector.load %arg7[%c2_115, %c0_116, %c0_117] : memref<3x576x288xf32, #tpu.memory_space<vmem>>, vector<1x576x288xf32>
    %128 = vector.shape_cast %127 : vector<1x576x288xf32> to vector<576x288xf32>
    %cst_118 = arith.constant dense<0.000000e+00> : vector<36x288xf32>
    %129 = tpu.matmul %126, %128, %cst_118 {dimension_numbers = #tpu.dot_dimension_numbers<[1], [0], [0], [1], [0, 0, 1, 1], [], []>} : vector<36x576xf32>, vector<576x288xf32>, vector<36x288xf32> -> vector<36x288xf32>
    %130 = arith.addf %125, %129 : vector<36x288xf32>
    %c0_119 = arith.constant 0 : index
    %c0_120 = arith.constant 0 : index
    %131 = vector.load %arg8[%c0_119, %c0_120] : memref<1x288xf32, #tpu.memory_space<vmem>>, vector<1x288xf32>
    %132 = vector.broadcast %131 : vector<1x288xf32> to vector<36x288xf32>
    %133 = arith.addf %130, %132 : vector<36x288xf32>
    %134 = vector.broadcast %0 : vector<36x1xf32> to vector<36x288xf32>
    %135 = arith.mulf %133, %134 : vector<36x288xf32>
    %c1_121 = arith.constant 1 : index
    %c0_122 = arith.constant 0 : index
    %136 = vector.load %arg23[%c1_121, %c0_122] : memref<38x576xf32, #tpu.memory_space<vmem>>, vector<36x288xf32>
    tpu.vector_store %arg23[%c1_121, %c0_122], %135 {strides = array<i32>} : memref<38x576xf32, #tpu.memory_space<vmem>>, vector<36x288xf32>,
    %c0_123 = arith.constant 0 : index
    %c0_124 = arith.constant 0 : index
    %137 = vector.load %arg23[%c0_123, %c0_124] : memref<38x576xf32, #tpu.memory_space<vmem>>, vector<36x288xf32>
    %c0_125 = arith.constant 0 : index
    %c0_126 = arith.constant 0 : index
    %c0_127 = arith.constant 0 : index
    %138 = vector.load %arg9[%c0_125, %c0_126, %c0_127] : memref<3x288x54xf32, #tpu.memory_space<vmem>>, vector<1x288x54xf32>
    %139 = vector.shape_cast %138 : vector<1x288x54xf32> to vector<288x54xf32>
    %cst_128 = arith.constant dense<0.000000e+00> : vector<36x54xf32>
    %140 = tpu.matmul %137, %139, %cst_128 {dimension_numbers = #tpu.dot_dimension_numbers<[1], [0], [0], [1], [0, 0, 1, 1], [], []>} : vector<36x288xf32>, vector<288x54xf32>, vector<36x54xf32> -> vector<36x54xf32>
    %c1_129 = arith.constant 1 : index
    %c0_130 = arith.constant 0 : index
    %141 = vector.load %arg23[%c1_129, %c0_130] : memref<38x576xf32, #tpu.memory_space<vmem>>, vector<36x288xf32>
    %c1_131 = arith.constant 1 : index
    %c0_132 = arith.constant 0 : index
    %c0_133 = arith.constant 0 : index
    %142 = vector.load %arg9[%c1_131, %c0_132, %c0_133] : memref<3x288x54xf32, #tpu.memory_space<vmem>>, vector<1x288x54xf32>
    %143 = vector.shape_cast %142 : vector<1x288x54xf32> to vector<288x54xf32>
    %cst_134 = arith.constant dense<0.000000e+00> : vector<36x54xf32>
    %144 = tpu.matmul %141, %143, %cst_134 {dimension_numbers = #tpu.dot_dimension_numbers<[1], [0], [0], [1], [0, 0, 1, 1], [], []>} : vector<36x288xf32>, vector<288x54xf32>, vector<36x54xf32> -> vector<36x54xf32>
    %145 = arith.addf %140, %144 : vector<36x54xf32>
    %c2_135 = arith.constant 2 : index
    %c0_136 = arith.constant 0 : index
    %146 = vector.load %arg23[%c2_135, %c0_136] : memref<38x576xf32, #tpu.memory_space<vmem>>, vector<36x288xf32>
    %c2_137 = arith.constant 2 : index
    %c0_138 = arith.constant 0 : index
    %c0_139 = arith.constant 0 : index
    %147 = vector.load %arg9[%c2_137, %c0_138, %c0_139] : memref<3x288x54xf32, #tpu.memory_space<vmem>>, vector<1x288x54xf32>
    %148 = vector.shape_cast %147 : vector<1x288x54xf32> to vector<288x54xf32>
    %cst_140 = arith.constant dense<0.000000e+00> : vector<36x54xf32>
    %149 = tpu.matmul %146, %148, %cst_140 {dimension_numbers = #tpu.dot_dimension_numbers<[1], [0], [0], [1], [0, 0, 1, 1], [], []>} : vector<36x288xf32>, vector<288x54xf32>, vector<36x54xf32> -> vector<36x54xf32>
    %150 = arith.addf %145, %149 : vector<36x54xf32>
    %c0_141 = arith.constant 0 : index
    %c0_142 = arith.constant 0 : index
    %151 = vector.load %arg10[%c0_141, %c0_142] : memref<1x54xf32, #tpu.memory_space<vmem>>, vector<1x54xf32>
    %152 = vector.broadcast %151 : vector<1x54xf32> to vector<36x54xf32>
    %153 = arith.addf %150, %152 : vector<36x54xf32>
    %154 = vector.broadcast %0 : vector<36x1xf32> to vector<36x54xf32>
    %155 = arith.mulf %153, %154 : vector<36x54xf32>
    %cst_143 = arith.constant dense<0.000000e+00> : vector<54xf32>
    %156 = vector.multi_reduction <add>, %155, %cst_143 [0] : vector<36x54xf32> to vector<54xf32>
    %157 = vector.shape_cast %156 : vector<54xf32> to vector<1x54xf32>
    %158 = arith.mulf %155, %155 : vector<36x54xf32>
    %cst_144 = arith.constant dense<0.000000e+00> : vector<54xf32>
    %159 = vector.multi_reduction <add>, %158, %cst_144 [0] : vector<36x54xf32> to vector<54xf32>
    %160 = vector.shape_cast %159 : vector<54xf32> to vector<1x54xf32>
    %c0_145 = arith.constant 0 : index
    %c0_146 = arith.constant 0 : index
    %161 = vector.load %arg19[%c0_145, %c0_146] : memref<54x3xf32, #tpu.memory_space<vmem>>, vector<54x3xf32>
    %cst_147 = arith.constant dense<0.000000e+00> : vector<1x3xf32>
    %162 = tpu.matmul %157, %161, %cst_147 {dimension_numbers = #tpu.dot_dimension_numbers<[1], [0], [0], [1], [0, 0, 1, 1], [], []>} : vector<1x54xf32>, vector<54x3xf32>, vector<1x3xf32> -> vector<1x3xf32>
    %c0_148 = arith.constant 0 : index
    %c0_149 = arith.constant 0 : index
    %163 = vector.load %arg19[%c0_148, %c0_149] : memref<54x3xf32, #tpu.memory_space<vmem>>, vector<54x3xf32>
    %cst_150 = arith.constant dense<0.000000e+00> : vector<1x3xf32>
    %164 = tpu.matmul %160, %163, %cst_150 {dimension_numbers = #tpu.dot_dimension_numbers<[1], [0], [0], [1], [0, 0, 1, 1], [], []>} : vector<1x54xf32>, vector<54x3xf32>, vector<1x3xf32> -> vector<1x3xf32>
    %cst_151 = arith.constant 0.001953125 : f32
    %165 = vector.broadcast %cst_151 : f32 to vector<1x3xf32>
    %166 = arith.mulf %162, %165 : vector<1x3xf32>
    %cst_152 = arith.constant 0.001953125 : f32
    %167 = vector.broadcast %cst_152 : f32 to vector<1x3xf32>
    %168 = arith.mulf %164, %167 : vector<1x3xf32>
    %169 = arith.mulf %166, %166 : vector<1x3xf32>
    %170 = arith.subf %168, %169 : vector<1x3xf32>
    %c0_153 = arith.constant 0 : index
    %c0_154 = arith.constant 0 : index
    %171 = vector.load %arg13[%c0_153, %c0_154] : memref<1x3xf32, #tpu.memory_space<vmem>>, vector<1x3xf32>
    %cst_155 = arith.constant 9.99999974E-6 : f32
    %172 = vector.broadcast %cst_155 : f32 to vector<1x3xf32>
    %173 = arith.addf %170, %172 : vector<1x3xf32>
    %174 = math.rsqrt %173 : vector<1x3xf32>
    %175 = arith.mulf %171, %174 : vector<1x3xf32>
    %c0_156 = arith.constant 0 : index
    %c0_157 = arith.constant 0 : index
    %176 = vector.load %arg14[%c0_156, %c0_157] : memref<1x3xf32, #tpu.memory_space<vmem>>, vector<1x3xf32>
    %177 = arith.mulf %166, %175 : vector<1x3xf32>
    %178 = arith.subf %176, %177 : vector<1x3xf32>
    %c0_158 = arith.constant 0 : index
    %c0_159 = arith.constant 0 : index
    %179 = vector.load %arg20[%c0_158, %c0_159] : memref<3x54xf32, #tpu.memory_space<vmem>>, vector<3x54xf32>
    %cst_160 = arith.constant dense<0.000000e+00> : vector<1x54xf32>
    %180 = tpu.matmul %175, %179, %cst_160 {dimension_numbers = #tpu.dot_dimension_numbers<[1], [0], [0], [1], [0, 0, 1, 1], [], []>} : vector<1x3xf32>, vector<3x54xf32>, vector<1x54xf32> -> vector<1x54xf32>
    %c0_161 = arith.constant 0 : index
    %c0_162 = arith.constant 0 : index
    %181 = vector.load %arg20[%c0_161, %c0_162] : memref<3x54xf32, #tpu.memory_space<vmem>>, vector<3x54xf32>
    %cst_163 = arith.constant dense<0.000000e+00> : vector<1x54xf32>
    %182 = tpu.matmul %178, %181, %cst_163 {dimension_numbers = #tpu.dot_dimension_numbers<[1], [0], [0], [1], [0, 0, 1, 1], [], []>} : vector<1x3xf32>, vector<3x54xf32>, vector<1x54xf32> -> vector<1x54xf32>
    %183 = vector.broadcast %180 : vector<1x54xf32> to vector<36x54xf32>
    %184 = arith.mulf %155, %183 : vector<36x54xf32>
    %185 = vector.broadcast %182 : vector<1x54xf32> to vector<36x54xf32>
    %186 = arith.addf %184, %185 : vector<36x54xf32>
    %cst_164 = arith.constant 0.000000e+00 : f32
    %187 = vector.broadcast %cst_164 : f32 to vector<36x54xf32>
    %188 = arith.maximumf %186, %187 : vector<36x54xf32>
    %c0_165 = arith.constant 0 : index
    %c0_166 = arith.constant 0 : index
    %189 = vector.load %arg21[%c0_165, %c0_166] : memref<36x54xf32, #tpu.memory_space<vmem>>, vector<36x54xf32>
    tpu.vector_store %arg21[%c0_165, %c0_166], %188 {strides = array<i32>} : memref<36x54xf32, #tpu.memory_space<vmem>>, vector<36x54xf32>,
    return
  }
}

</mosaic_0001>

<llo_original>
// kernel: tile.24
$region0: #{tile.24}
  %s0 = inlined_call_operand.vmem [shape: f32[18,32,32], index: 0, kind: input, shape index: {}]
  %s1 = inlined_call_operand.vmem [shape: f32[576,32], index: 1, kind: output, shape index: {}]
  %v2 = vld [vmem:[%s0] ss:$4 sm:$0x1f]
  %vm3 = vcmask 261120
  %4 = vst.msk [vmem:[%s1] ss:$8 sm:$0xf] %vm3, %v2
  %s5 = scalar_lea.vmem %s1, 28
  %6 = vst.msk [vmem:[%s5] sm:$0x10] %vm3, %v2
  %s7 = scalar_lea.vmem %s0, 24
  %v8 = vld [vmem:[%s7] ss:$4 sm:$0x1f]
  %vm9 = vcmask 261120
  %s10 = scalar_lea.vmem %s1, 1
  %11 = vst.msk [vmem:[%s10] ss:$8 sm:$0xf] %vm9, %v8
  %s12 = scalar_lea.vmem %s1, 29
  %13 = vst.msk [vmem:[%s12] sm:$0x10] %vm9, %v8
  %s14 = scalar_lea.vmem %s0, 48
  %v15 = vld [vmem:[%s14] ss:$4 sm:$0x1f]
  %vm16 = vcmask 261120
  %s17 = scalar_lea.vmem %s1, 2
  %18 = vst.msk [vmem:[%s17] ss:$8 sm:$0xf] %vm16, %v15
  %s19 = scalar_lea.vmem %s1, 30
  %20 = vst.msk [vmem:[%s19] sm:$0x10] %vm16, %v15
  %s21 = scalar_lea.vmem %s0, 72
  %v22 = vld [vmem:[%s21] ss:$4 sm:$0x1f]
  %vm23 = vcmask 261120
  %s24 = scalar_lea.vmem %s1, 3
  %25 = vst.msk [vmem:[%s24] ss:$8 sm:$0xf] %vm23, %v22
  %s26 = scalar_lea.vmem %s1, 31
  %27 = vst.msk [vmem:[%s26] sm:$0x10] %vm23, %v22
  %s28 = scalar_lea.vmem %s0, 96
  %v29 = vld [vmem:[%s28] ss:$4 sm:$0x1f]
  %vm30 = vcmask 261120
  %s31 = scalar_lea.vmem %s1, 4
  %32 = vst.msk [vmem:[%s31] ss:$8 sm:$0xf] %vm30, %v29
  %s33 = scalar_lea.vmem %s1, 32
  %34 = vst.msk [vmem:[%s33] sm:$0x10] %vm30, %v29
  %s35 = scalar_lea.vmem %s0, 120
  %v36 = vld [vmem:[%s35] ss:$4 sm:$0x1f]
  %vm37 = vcmask 261120
  %s38 = scalar_lea.vmem %s1, 5
  %39 = vst.msk [vmem:[%s38] ss:$8 sm:$0xf] %vm37, %v36
  %s40 = scalar_lea.vmem %s1, 33
  %41 = vst.msk [vmem:[%s40] sm:$0x10] %vm37, %v36
  %s42 = scalar_lea.vmem %s0, 144
  %v43 = vld [vmem:[%s42] ss:$4 sm:$0x1f]
  %vm44 = vcmask 261120
  %s45 = scalar_lea.vmem %s1, 6
  %46 = vst.msk [vmem:[%s45] ss:$8 sm:$0xf] %vm44, %v43
  %s47 = scalar_lea.vmem %s1, 34
  %48 = vst.msk [vmem:[%s47] sm:$0x10] %vm44, %v43
  %s49 = scalar_lea.vmem %s0, 168
  %v50 = vld [vmem:[%s49] ss:$4 sm:$0x1f]
  %vm51 = vcmask 261120
  %s52 = scalar_lea.vmem %s1, 7
  %53 = vst.msk [vmem:[%s52] ss:$8 sm:$0xf] %vm51, %v50
  %s54 = scalar_lea.vmem %s1, 35
  %55 = vst.msk [vmem:[%s54] sm:$0x10] %vm51, %v50
  %s56 = scalar_lea.vmem %s0, 192
  %v57 = vld [vmem:[%s56] ss:$4 sm:$0x1f]
  %vm58 = vcmask 261120
  %s59 = scalar_lea.vmem %s1, 40
  %60 = vst.msk [vmem:[%s59] ss:$8 sm:$0xf] %vm58, %v57
  %s61 = scalar_lea.vmem %s1, 68
  %62 = vst.msk [vmem:[%s61] sm:$0x10] %vm58, %v57
  %s63 = scalar_lea.vmem %s0, 216
  %v64 = vld [vmem:[%s63] ss:$4 sm:$0x1f]
  %vm65 = vcmask 261120
  %s66 = scalar_lea.vmem %s1, 41
  %67 = vst.msk [vmem:[%s66] ss:$8 sm:$0xf] %vm65, %v64
  %s68 = scalar_lea.vmem %s1, 69
  %69 = vst.msk [vmem:[%s68] sm:$0x10] %vm65, %v64
  %s70 = scalar_lea.vmem %s0, 240
  %v71 = vld [vmem:[%s70] ss:$4 sm:$0x1f]
  %vm72 = vcmask 261120
  %s73 = scalar_lea.vmem %s1, 42
  %74 = vst.msk [vmem:[%s73] ss:$8 sm:$0xf] %vm72, %v71
  %s75 = scalar_lea.vmem %s1, 70
  %76 = vst.msk [vmem:[%s75] sm:$0x10] %vm72, %v71
  %s77 = scalar_lea.vmem %s0, 264
  %v78 = vld [vmem:[%s77] ss:$4 sm:$0x1f]
  %vm79 = vcmask 261120
  %s80 = scalar_lea.vmem %s1, 43
  %81 = vst.msk [vmem:[%s80] ss:$8 sm:$0xf] %vm79, %v78
  %s82 = scalar_lea.vmem %s1, 71
  %83 = vst.msk [vmem:[%s82] sm:$0x10] %vm79, %v78
  %s84 = scalar_lea.vmem %s0, 288
  %v85 = vld [vmem:[%s84] ss:$4 sm:$0x1f]
  %vm86 = vcmask 261120
  %s87 = scalar_lea.vmem %s1, 44
  %88 = vst.msk [vmem:[%s87] ss:$8 sm:$0xf] %vm86, %v85
  %s89 = scalar_lea.vmem %s1, 72
  %90 = vst.msk [vmem:[%s89] sm:$0x10] %vm86, %v85
  %s91 = scalar_lea.vmem %s0, 312
  %v92 = vld [vmem:[%s91] ss:$4 sm:$0x1f]
  %vm93 = vcmask 261120
  %s94 = scalar_lea.vmem %s1, 45
  %95 = vst.msk [vmem:[%s94] ss:$8 sm:$0xf] %vm93, %v92
  %s96 = scalar_lea.vmem %s1, 73
  %97 = vst.msk [vmem:[%s96] sm:$0x10] %vm93, %v92
  %s98 = scalar_lea.vmem %s0, 336
  %v99 = vld [vmem:[%s98] ss:$4 sm:$0x1f]
  %vm100 = vcmask 261120
  %s101 = scalar_lea.vmem %s1, 46
  %102 = vst.msk [vmem:[%s101] ss:$8 sm:$0xf] %vm100, %v99
  %s103 = scalar_lea.vmem %s1, 74
  %104 = vst.msk [vmem:[%s103] sm:$0x10] %vm100, %v99
  %s105 = scalar_lea.vmem %s0, 360
  %v106 = vld [vmem:[%s105] ss:$4 sm:$0x1f]
  %vm107 = vcmask 261120
  %s108 = scalar_lea.vmem %s1, 47
  %109 = vst.msk [vmem:[%s108] ss:$8 sm:$0xf] %vm107, %v106
  %s110 = scalar_lea.vmem %s1, 75
  %111 = vst.msk [vmem:[%s110] sm:$0x10] %vm107, %v106
  %s112 = scalar_lea.vmem %s0, 384
  %v113 = vld [vmem:[%s112] ss:$4 sm:$0x1f]
  %vm114 = vcmask 261120
  %s115 = scalar_lea.vmem %s1, 80
  %116 = vst.msk [vmem:[%s115] ss:$8 sm:$0xf] %vm114, %v113
  %s117 = scalar_lea.vmem %s1, 108
  %118 = vst.msk [vmem:[%s117] sm:$0x10] %vm114, %v113
  %s119 = scalar_lea.vmem %s0, 408
  %v120 = vld [vmem:[%s119] ss:$4 sm:$0x1f]
  %vm121 = vcmask 261120
  %s122 = scalar_lea.vmem %s1, 81
  %123 = vst.msk [vmem:[%s122] ss:$8 sm:$0xf] %vm121, %v120
  %s124 = scalar_lea.vmem %s1, 109
  %125 = vst.msk [vmem:[%s124] sm:$0x10] %vm121, %v120
  %s126 = scalar_lea.vmem %s0, 432
  %v127 = vld [vmem:[%s126] ss:$4 sm:$0x1f]
  %vm128 = vcmask 261120
  %s129 = scalar_lea.vmem %s1, 82
  %130 = vst.msk [vmem:[%s129] ss:$8 sm:$0xf] %vm128, %v127
  %s131 = scalar_lea.vmem %s1, 110
  %132 = vst.msk [vmem:[%s131] sm:$0x10] %vm128, %v127
  %s133 = scalar_lea.vmem %s0, 456
  %v134 = vld [vmem:[%s133] ss:$4 sm:$0x1f]
  %vm135 = vcmask 261120
  %s136 = scalar_lea.vmem %s1, 83
  %137 = vst.msk [vmem:[%s136] ss:$8 sm:$0xf] %vm135, %v134
  %s138 = scalar_lea.vmem %s1, 111
  %139 = vst.msk [vmem:[%s138] sm:$0x10] %vm135, %v134
  %s140 = scalar_lea.vmem %s0, 480
  %v141 = vld [vmem:[%s140] ss:$4 sm:$0x1f]
  %vm142 = vcmask 261120
  %s143 = scalar_lea.vmem %s1, 84
  %144 = vst.msk [vmem:[%s143] ss:$8 sm:$0xf] %vm142, %v141
  %s145 = scalar_lea.vmem %s1, 112
  %146 = vst.msk [vmem:[%s145] sm:$0x10] %vm142, %v141
  %s147 = scalar_lea.vmem %s0, 504
  %v148 = vld [vmem:[%s147] ss:$4 sm:$0x1f]
  %vm149 = vcmask 261120
  %s150 = scalar_lea.vmem %s1, 85
  %151 = vst.msk [vmem:[%s150] ss:$8 sm:$0xf] %vm149, %v148
  %s152 = scalar_lea.vmem %s1, 113
  %153 = vst.msk [vmem:[%s152] sm:$0x10] %vm149, %v148
  %s154 = scalar_lea.vmem %s0, 528
  %v155 = vld [vmem:[%s154] ss:$4 sm:$0x1f]
  %vm156 = vcmask 261120
  %s157 = scalar_lea.vmem %s1, 86
  %158 = vst.msk [vmem:[%s157] ss:$8 sm:$0xf] %vm156, %v155
  %s159 = scalar_lea.vmem %s1, 114
  %160 = vst.msk [vmem:[%s159] sm:$0x10] %vm156, %v155
  %s161 = scalar_lea.vmem %s0, 552
  %v162 = vld [vmem:[%s161] ss:$4 sm:$0x1f]
  %vm163 = vcmask 261120
  %s164 = scalar_lea.vmem %s1, 87
  %165 = vst.msk [vmem:[%s164] ss:$8 sm:$0xf] %vm163, %v162
  %s166 = scalar_lea.vmem %s1, 115
  %167 = vst.msk [vmem:[%s166] sm:$0x10] %vm163, %v162
  %s168 = scalar_lea.vmem %s0, 576
  %v169 = vld [vmem:[%s168] ss:$4 sm:$0x1f]
  %vm170 = vcmask 261120
  %s171 = scalar_lea.vmem %s1, 120
  %172 = vst.msk [vmem:[%s171] ss:$8 sm:$0xf] %vm170, %v169
  %s173 = scalar_lea.vmem %s1, 148
  %174 = vst.msk [vmem:[%s173] sm:$0x10] %vm170, %v169
  %s175 = scalar_lea.vmem %s0, 600
  %v176 = vld [vmem:[%s175] ss:$4 sm:$0x1f]
  %vm177 = vcmask 261120
  %s178 = scalar_lea.vmem %s1, 121
  %179 = vst.msk [vmem:[%s178] ss:$8 sm:$0xf] %vm177, %v176
  %s180 = scalar_lea.vmem %s1, 149
  %181 = vst.msk [vmem:[%s180] sm:$0x10] %vm177, %v176
  %s182 = scalar_lea.vmem %s0, 624
  %v183 = vld [vmem:[%s182] ss:$4 sm:$0x1f]
  %vm184 = vcmask 261120
  %s185 = scalar_lea.vmem %s1, 122
  %186 = vst.msk [vmem:[%s185] ss:$8 sm:$0xf] %vm184, %v183
  %s187 = scalar_lea.vmem %s1, 150
  %188 = vst.msk [vmem:[%s187] sm:$0x10] %vm184, %v183
  %s189 = scalar_lea.vmem %s0, 648
  %v190 = vld [vmem:[%s189] ss:$4 sm:$0x1f]
  %vm191 = vcmask 261120
  %s192 = scalar_lea.vmem %s1, 123
  %193 = vst.msk [vmem:[%s192] ss:$8 sm:$0xf] %vm191, %v190
  %s194 = scalar_lea.vmem %s1, 151
  %195 = vst.msk [vmem:[%s194] sm:$0x10] %vm191, %v190
  %s196 = scalar_lea.vmem %s0, 672
  %v197 = vld [vmem:[%s196] ss:$4 sm:$0x1f]
  %vm198 = vcmask 261120
  %s199 = scalar_lea.vmem %s1, 124
  %200 = vst.msk [vmem:[%s199] ss:$8 sm:$0xf] %vm198, %v197
  %s201 = scalar_lea.vmem %s1, 152
  %202 = vst.msk [vmem:[%s201] sm:$0x10] %vm198, %v197
  %s203 = scalar_lea.vmem %s0, 696
  %v204 = vld [vmem:[%s203] ss:$4 sm:$0x1f]
  %vm205 = vcmask 261120
  %s206 = scalar_lea.vmem %s1, 125
  %207 = vst.msk [vmem:[%s206] ss:$8 sm:$0xf] %vm205, %v204
  %s208 = scalar_lea.vmem %s1, 153
  %209 = vst.msk [vmem:[%s208] sm:$0x10] %vm205, %v204
  %s210 = scalar_lea.vmem %s0, 720
  %v211 = vld [vmem:[%s210] ss:$4 sm:$0x1f]
  %vm212 = vcmask 261120
  %s213 = scalar_lea.vmem %s1, 126
  %214 = vst.msk [vmem:[%s213] ss:$8 sm:$0xf] %vm212, %v211
  %s215 = scalar_lea.vmem %s1, 154
  %216 = vst.msk [vmem:[%s215] sm:$0x10] %vm212, %v211
  %s217 = scalar_lea.vmem %s0, 744
  %v218 = vld [vmem:[%s217] ss:$4 sm:$0x1f]
  %vm219 = vcmask 261120
  %s220 = scalar_lea.vmem %s1, 127
  %221 = vst.msk [vmem:[%s220] ss:$8 sm:$0xf] %vm219, %v218
  %s222 = scalar_lea.vmem %s1, 155
  %223 = vst.msk [vmem:[%s222] sm:$0x10] %vm219, %v218
  %s224 = scalar_lea.vmem %s0, 3
  %v225 = vld [vmem:[%s224] ss:$24 sm:$0xf]
  %s226 = scalar_lea.vmem %s0, 3
  %v227 = vld [vmem:[%s226] ss:$24 sm:$0xf0]
  %vm228 = vcmask 1047556
  %v229 = vsel %vm228, %v227, %v225
  %230 = vrot.lane.b32.xlu0 %v229, 96
  %v231 = vpop.permute.xlu0 %230
  %vm232 = vcmask 1048320
  %233 = vst.msk [vmem:[%s1] sm:$0xff] %vm232, %v231
  %s234 = scalar_lea.vmem %s0, 207
  %v235 = vld [vmem:[%s234] ss:$24 sm:$0xf]
  %s236 = scalar_lea.vmem %s0, 207
  %v237 = vld [vmem:[%s236] ss:$24 sm:$0xf0]
  %vm238 = vcmask 1047556
  %v239 = vsel %vm238, %v237, %v235
  %240 = vrot.lane.b32.xlu0 %v239, 96
  %v241 = vpop.permute.xlu0 %240
  %vm242 = vcmask 1048320
  %s243 = scalar_lea.vmem %s1, 64
  %244 = vst.msk [vmem:[%s243] sm:$0xff] %vm242, %v241
  %s245 = scalar_lea.vmem %s0, 395
  %v246 = vld [vmem:[%s245] ss:$24 sm:$0xf]
  %s247 = scalar_lea.vmem %s0, 395
  %v248 = vld [vmem:[%s247] ss:$24 sm:$0xf0]
  %vm249 = vcmask 1047556
  %v250 = vsel %vm249, %v248, %v246
  %251 = vrot.lane.b32.xlu0 %v250, 96
  %v252 = vpop.permute.xlu0 %251
  %vm253 = vcmask 1048320
  %s254 = scalar_lea.vmem %s1, 96
  %255 = vst.msk [vmem:[%s254] sm:$0xff] %vm253, %v252
  %s256 = scalar_lea.vmem %s0, 583
  %v257 = vld [vmem:[%s256] ss:$24 sm:$0xf]
  %s258 = scalar_lea.vmem %s0, 583
  %v259 = vld [vmem:[%s258] ss:$24 sm:$0xf0]
  %vm260 = vcmask 1047556
  %v261 = vsel %vm260, %v259, %v257
  %262 = vrot.lane.b32.xlu0 %v261, 96
  %v263 = vpop.permute.xlu0 %262
  %vm264 = vcmask 1048320
  %s265 = scalar_lea.vmem %s1, 128
  %266 = vst.msk [vmem:[%s265] sm:$0xff] %vm264, %v263
  %s267 = scalar_lea.vmem %s0, 7
  %v268 = vld [vmem:[%s267] ss:$24 sm:$0xf]
  %s269 = scalar_lea.vmem %s0, 7
  %v270 = vld [vmem:[%s269] ss:$24 sm:$0xf0]
  %vm271 = vcmask 1047556
  %v272 = vsel %vm271, %v270, %v268
  %273 = vrot.lane.b32.xlu0 %v272, 96
  %v274 = vpop.permute.xlu0 %273
  %vm275 = vcmask 1048320
  %s276 = scalar_lea.vmem %s1, 8
  %277 = vst.msk [vmem:[%s276] sm:$0xff] %vm275, %v274
  %s278 = scalar_lea.vmem %s0, 195
  %v279 = vld [vmem:[%s278] ss:$24 sm:$0xf]
  %s280 = scalar_lea.vmem %s0, 195
  %v281 = vld [vmem:[%s280] ss:$24 sm:$0xf0]
  %vm282 = vcmask 1047556
  %v283 = vsel %vm282, %v281, %v279
  %284 = vrot.lane.b32.xlu0 %v283, 96
  %v285 = vpop.permute.xlu0 %284
  %vm286 = vcmask 1048320
  %s287 = scalar_lea.vmem %s1, 40
  %288 = vst.msk [vmem:[%s287] sm:$0xff] %vm286, %v285
  %s289 = scalar_lea.vmem %s0, 399
  %v290 = vld [vmem:[%s289] ss:$24 sm:$0xf]
  %s291 = scalar_lea.vmem %s0, 399
  %v292 = vld [vmem:[%s291] ss:$24 sm:$0xf0]
  %vm293 = vcmask 1047556
  %v294 = vsel %vm293, %v292, %v290
  %295 = vrot.lane.b32.xlu0 %v294, 96
  %v296 = vpop.permute.xlu0 %295
  %vm297 = vcmask 1048320
  %s298 = scalar_lea.vmem %s1, 104
  %299 = vst.msk [vmem:[%s298] sm:$0xff] %vm297, %v296
  %s300 = scalar_lea.vmem %s0, 587
  %v301 = vld [vmem:[%s300] ss:$24 sm:$0xf]
  %s302 = scalar_lea.vmem %s0, 587
  %v303 = vld [vmem:[%s302] ss:$24 sm:$0xf0]
  %vm304 = vcmask 1047556
  %v305 = vsel %vm304, %v303, %v301
  %306 = vrot.lane.b32.xlu0 %v305, 96
  %v307 = vpop.permute.xlu0 %306
  %vm308 = vcmask 1048320
  %s309 = scalar_lea.vmem %s1, 136
  %310 = vst.msk [vmem:[%s309] sm:$0xff] %vm308, %v307
  %s311 = scalar_lea.vmem %s0, 11
  %v312 = vld [vmem:[%s311] ss:$24 sm:$0xf]
  %s313 = scalar_lea.vmem %s0, 11
  %v314 = vld [vmem:[%s313] ss:$24 sm:$0xf0]
  %vm315 = vcmask 1047556
  %v316 = vsel %vm315, %v314, %v312
  %317 = vrot.lane.b32.xlu0 %v316, 96
  %v318 = vpop.permute.xlu0 %317
  %vm319 = vcmask 1048320
  %s320 = scalar_lea.vmem %s1, 16
  %321 = vst.msk [vmem:[%s320] sm:$0xff] %vm319, %v318
  %s322 = scalar_lea.vmem %s0, 199
  %v323 = vld [vmem:[%s322] ss:$24 sm:$0xf]
  %s324 = scalar_lea.vmem %s0, 199
  %v325 = vld [vmem:[%s324] ss:$24 sm:$0xf0]
  %vm326 = vcmask 1047556
  %v327 = vsel %vm326, %v325, %v323
  %328 = vrot.lane.b32.xlu0 %v327, 96
  %v329 = vpop.permute.xlu0 %328
  %vm330 = vcmask 1048320
  %s331 = scalar_lea.vmem %s1, 48
  %332 = vst.msk [vmem:[%s331] sm:$0xff] %vm330, %v329
  %s333 = scalar_lea.vmem %s0, 387
  %v334 = vld [vmem:[%s333] ss:$24 sm:$0xf]
  %s335 = scalar_lea.vmem %s0, 387
  %v336 = vld [vmem:[%s335] ss:$24 sm:$0xf0]
  %vm337 = vcmask 1047556
  %v338 = vsel %vm337, %v336, %v334
  %339 = vrot.lane.b32.xlu0 %v338, 96
  %v340 = vpop.permute.xlu0 %339
  %vm341 = vcmask 1048320
  %s342 = scalar_lea.vmem %s1, 80
  %343 = vst.msk [vmem:[%s342] sm:$0xff] %vm341, %v340
  %s344 = scalar_lea.vmem %s0, 591
  %v345 = vld [vmem:[%s344] ss:$24 sm:$0xf]
  %s346 = scalar_lea.vmem %s0, 591
  %v347 = vld [vmem:[%s346] ss:$24 sm:$0xf0]
  %vm348 = vcmask 1047556
  %v349 = vsel %vm348, %v347, %v345
  %350 = vrot.lane.b32.xlu0 %v349, 96
  %v351 = vpop.permute.xlu0 %350
  %vm352 = vcmask 1048320
  %s353 = scalar_lea.vmem %s1, 144
  %354 = vst.msk [vmem:[%s353] sm:$0xff] %vm352, %v351
  %s355 = scalar_lea.vmem %s0, 15
  %v356 = vld [vmem:[%s355] ss:$24 sm:$0xf]
  %s357 = scalar_lea.vmem %s0, 15
  %v358 = vld [vmem:[%s357] ss:$24 sm:$0xf0]
  %vm359 = vcmask 1047556
  %v360 = vsel %vm359, %v358, %v356
  %361 = vrot.lane.b32.xlu0 %v360, 96
  %v362 = vpop.permute.xlu0 %361
  %vm363 = vcmask 1048320
  %s364 = scalar_lea.vmem %s1, 24
  %365 = vst.msk [vmem:[%s364] sm:$0xff] %vm363, %v362
  %s366 = scalar_lea.vmem %s0, 203
  %v367 = vld [vmem:[%s366] ss:$24 sm:$0xf]
  %s368 = scalar_lea.vmem %s0, 203
  %v369 = vld [vmem:[%s368] ss:$24 sm:$0xf0]
  %vm370 = vcmask 1047556
  %v371 = vsel %vm370, %v369, %v367
  %372 = vrot.lane.b32.xlu0 %v371, 96
  %v373 = vpop.permute.xlu0 %372
  %vm374 = vcmask 1048320
  %s375 = scalar_lea.vmem %s1, 56
  %376 = vst.msk [vmem:[%s375] sm:$0xff] %vm374, %v373
  %s377 = scalar_lea.vmem %s0, 391
  %v378 = vld [vmem:[%s377] ss:$24 sm:$0xf]
  %s379 = scalar_lea.vmem %s0, 391
  %v380 = vld [vmem:[%s379] ss:$24 sm:$0xf0]
  %vm381 = vcmask 1047556
  %v382 = vsel %vm381, %v380, %v378
  %383 = vrot.lane.b32.xlu0 %v382, 96
  %v384 = vpop.permute.xlu0 %383
  %vm385 = vcmask 1048320
  %s386 = scalar_lea.vmem %s1, 88
  %387 = vst.msk [vmem:[%s386] sm:$0xff] %vm385, %v384
  %s388 = scalar_lea.vmem %s0, 579
  %v389 = vld [vmem:[%s388] ss:$24 sm:$0xf]
  %s390 = scalar_lea.vmem %s0, 579
  %v391 = vld [vmem:[%s390] ss:$24 sm:$0xf0]
  %vm392 = vcmask 1047556
  %v393 = vsel %vm392, %v391, %v389
  %394 = vrot.lane.b32.xlu0 %v393, 96
  %v395 = vpop.permute.xlu0 %394
  %vm396 = vcmask 1048320
  %s397 = scalar_lea.vmem %s1, 120
  %398 = vst.msk [vmem:[%s397] sm:$0xff] %vm396, %v395
  %s399 = scalar_lea.vmem %s0, 2
  %v400 = vld [vmem:[%s399] ss:$24 sm:$0xf]
  %s401 = scalar_lea.vmem %s0, 2
  %v402 = vld [vmem:[%s401] ss:$24 sm:$0xf0]
  %vm403 = vcmask 1047556
  %v404 = vsel %vm403, %v402, %v400
  %405 = vrot.lane.b32.xlu0 %v404, 64
  %v406 = vpop.permute.xlu0 %405
  %vm407 = vcmask 785920
  %408 = vst.msk [vmem:[%s1] sm:$0xff] %vm407, %v406
  %s409 = scalar_lea.vmem %s0, 206
  %v410 = vld [vmem:[%s409] ss:$24 sm:$0xf]
  %s411 = scalar_lea.vmem %s0, 206
  %v412 = vld [vmem:[%s411] ss:$24 sm:$0xf0]
  %vm413 = vcmask 1047556
  %v414 = vsel %vm413, %v412, %v410
  %415 = vrot.lane.b32.xlu0 %v414, 64
  %v416 = vpop.permute.xlu0 %415
  %vm417 = vcmask 785920
  %s418 = scalar_lea.vmem %s1, 64
  %419 = vst.msk [vmem:[%s418] sm:$0xff] %vm417, %v416
  %s420 = scalar_lea.vmem %s0, 394
  %v421 = vld [vmem:[%s420] ss:$24 sm:$0xf]
  %s422 = scalar_lea.vmem %s0, 394
  %v423 = vld [vmem:[%s422] ss:$24 sm:$0xf0]
  %vm424 = vcmask 1047556
  %v425 = vsel %vm424, %v423, %v421
  %426 = vrot.lane.b32.xlu0 %v425, 64
  %v427 = vpop.permute.xlu0 %426
  %vm428 = vcmask 785920
  %s429 = scalar_lea.vmem %s1, 96
  %430 = vst.msk [vmem:[%s429] sm:$0xff] %vm428, %v427
  %s431 = scalar_lea.vmem %s0, 582
  %v432 = vld [vmem:[%s431] ss:$24 sm:$0xf]
  %s433 = scalar_lea.vmem %s0, 582
  %v434 = vld [vmem:[%s433] ss:$24 sm:$0xf0]
  %vm435 = vcmask 1047556
  %v436 = vsel %vm435, %v434, %v432
  %437 = vrot.lane.b32.xlu0 %v436, 64
  %v438 = vpop.permute.xlu0 %437
  %vm439 = vcmask 785920
  %s440 = scalar_lea.vmem %s1, 128
  %441 = vst.msk [vmem:[%s440] sm:$0xff] %vm439, %v438
  %s442 = scalar_lea.vmem %s0, 6
  %v443 = vld [vmem:[%s442] ss:$24 sm:$0xf]
  %s444 = scalar_lea.vmem %s0, 6
  %v445 = vld [vmem:[%s444] ss:$24 sm:$0xf0]
  %vm446 = vcmask 1047556
  %v447 = vsel %vm446, %v445, %v443
  %448 = vrot.lane.b32.xlu0 %v447, 64
  %v449 = vpop.permute.xlu0 %448
  %vm450 = vcmask 785920
  %s451 = scalar_lea.vmem %s1, 8
  %452 = vst.msk [vmem:[%s451] sm:$0xff] %vm450, %v449
  %s453 = scalar_lea.vmem %s0, 194
  %v454 = vld [vmem:[%s453] ss:$24 sm:$0xf]
  %s455 = scalar_lea.vmem %s0, 194
  %v456 = vld [vmem:[%s455] ss:$24 sm:$0xf0]
  %vm457 = vcmask 1047556
  %v458 = vsel %vm457, %v456, %v454
  %459 = vrot.lane.b32.xlu0 %v458, 64
  %v460 = vpop.permute.xlu0 %459
  %vm461 = vcmask 785920
  %s462 = scalar_lea.vmem %s1, 40
  %463 = vst.msk [vmem:[%s462] sm:$0xff] %vm461, %v460
  %s464 = scalar_lea.vmem %s0, 398
  %v465 = vld [vmem:[%s464] ss:$24 sm:$0xf]
  %s466 = scalar_lea.vmem %s0, 398
  %v467 = vld [vmem:[%s466] ss:$24 sm:$0xf0]
  %vm468 = vcmask 1047556
  %v469 = vsel %vm468, %v467, %v465
  %470 = vrot.lane.b32.xlu0 %v469, 64
  %v471 = vpop.permute.xlu0 %470
  %vm472 = vcmask 785920
  %s473 = scalar_lea.vmem %s1, 104
  %474 = vst.msk [vmem:[%s473] sm:$0xff] %vm472, %v471
  %s475 = scalar_lea.vmem %s0, 586
  %v476 = vld [vmem:[%s475] ss:$24 sm:$0xf]
  %s477 = scalar_lea.vmem %s0, 586
  %v478 = vld [vmem:[%s477] ss:$24 sm:$0xf0]
  %vm479 = vcmask 1047556
  %v480 = vsel %vm479, %v478, %v476
  %481 = vrot.lane.b32.xlu0 %v480, 64
  %v482 = vpop.permute.xlu0 %481
  %vm483 = vcmask 785920
  %s484 = scalar_lea.vmem %s1, 136
  %485 = vst.msk [vmem:[%s484] sm:$0xff] %vm483, %v482
  %s486 = scalar_lea.vmem %s0, 10
  %v487 = vld [vmem:[%s486] ss:$24 sm:$0xf]
  %s488 = scalar_lea.vmem %s0, 10
  %v489 = vld [vmem:[%s488] ss:$24 sm:$0xf0]
  %vm490 = vcmask 1047556
  %v491 = vsel %vm490, %v489, %v487
  %492 = vrot.lane.b32.xlu0 %v491, 64
  %v493 = vpop.permute.xlu0 %492
  %vm494 = vcmask 785920
  %s495 = scalar_lea.vmem %s1, 16
  %496 = vst.msk [vmem:[%s495] sm:$0xff] %vm494, %v493
  %s497 = scalar_lea.vmem %s0, 198
  %v498 = vld [vmem:[%s497] ss:$24 sm:$0xf]
  %s499 = scalar_lea.vmem %s0, 198
  %v500 = vld [vmem:[%s499] ss:$24 sm:$0xf0]
  %vm501 = vcmask 1047556
  %v502 = vsel %vm501, %v500, %v498
  %503 = vrot.lane.b32.xlu0 %v502, 64
  %v504 = vpop.permute.xlu0 %503
  %vm505 = vcmask 785920
  %s506 = scalar_lea.vmem %s1, 48
  %507 = vst.msk [vmem:[%s506] sm:$0xff] %vm505, %v504
  %s508 = scalar_lea.vmem %s0, 386
  %v509 = vld [vmem:[%s508] ss:$24 sm:$0xf]
  %s510 = scalar_lea.vmem %s0, 386
  %v511 = vld [vmem:[%s510] ss:$24 sm:$0xf0]
  %vm512 = vcmask 1047556
  %v513 = vsel %vm512, %v511, %v509
  %514 = vrot.lane.b32.xlu0 %v513, 64
  %v515 = vpop.permute.xlu0 %514
  %vm516 = vcmask 785920
  %s517 = scalar_lea.vmem %s1, 80
  %518 = vst.msk [vmem:[%s517] sm:$0xff] %vm516, %v515
  %s519 = scalar_lea.vmem %s0, 590
  %v520 = vld [vmem:[%s519] ss:$24 sm:$0xf]
  %s521 = scalar_lea.vmem %s0, 590
  %v522 = vld [vmem:[%s521] ss:$24 sm:$0xf0]
  %vm523 = vcmask 1047556
  %v524 = vsel %vm523, %v522, %v520
  %525 = vrot.lane.b32.xlu0 %v524, 64
  %v526 = vpop.permute.xlu0 %525
  %vm527 = vcmask 785920
  %s528 = scalar_lea.vmem %s1, 144
  %529 = vst.msk [vmem:[%s528] sm:$0xff] %vm527, %v526
  %s530 = scalar_lea.vmem %s0, 14
  %v531 = vld [vmem:[%s530] ss:$24 sm:$0xf]
  %s532 = scalar_lea.vmem %s0, 14
  %v533 = vld [vmem:[%s532] ss:$24 sm:$0xf0]
  %vm534 = vcmask 1047556
  %v535 = vsel %vm534, %v533, %v531
  %536 = vrot.lane.b32.xlu0 %v535, 64
  %v537 = vpop.permute.xlu0 %536
  %vm538 = vcmask 785920
  %s539 = scalar_lea.vmem %s1, 24
  %540 = vst.msk [vmem:[%s539] sm:$0xff] %vm538, %v537
  %s541 = scalar_lea.vmem %s0, 202
  %v542 = vld [vmem:[%s541] ss:$24 sm:$0xf]
  %s543 = scalar_lea.vmem %s0, 202
  %v544 = vld [vmem:[%s543] ss:$24 sm:$0xf0]
  %vm545 = vcmask 1047556
  %v546 = vsel %vm545, %v544, %v542
  %547 = vrot.lane.b32.xlu0 %v546, 64
  %v548 = vpop.permute.xlu0 %547
  %vm549 = vcmask 785920
  %s550 = scalar_lea.vmem %s1, 56
  %551 = vst.msk [vmem:[%s550] sm:$0xff] %vm549, %v548
  %s552 = scalar_lea.vmem %s0, 390
  %v553 = vld [vmem:[%s552] ss:$24 sm:$0xf]
  %s554 = scalar_lea.vmem %s0, 390
  %v555 = vld [vmem:[%s554] ss:$24 sm:$0xf0]
  %vm556 = vcmask 1047556
  %v557 = vsel %vm556, %v555, %v553
  %558 = vrot.lane.b32.xlu0 %v557, 64
  %v559 = vpop.permute.xlu0 %558
  %vm560 = vcmask 785920
  %s561 = scalar_lea.vmem %s1, 88
  %562 = vst.msk [vmem:[%s561] sm:$0xff] %vm560, %v559
  %s563 = scalar_lea.vmem %s0, 578
  %v564 = vld [vmem:[%s563] ss:$24 sm:$0xf]
  %s565 = scalar_lea.vmem %s0, 578
  %v566 = vld [vmem:[%s565] ss:$24 sm:$0xf0]
  %vm567 = vcmask 1047556
  %v568 = vsel %vm567, %v566, %v564
  %569 = vrot.lane.b32.xlu0 %v568, 64
  %v570 = vpop.permute.xlu0 %569
  %vm571 = vcmask 785920
  %s572 = scalar_lea.vmem %s1, 120
  %573 = vst.msk [vmem:[%s572] sm:$0xff] %vm571, %v570
  %s574 = scalar_lea.vmem %s0, 1
  %v575 = vld [vmem:[%s574] ss:$24 sm:$0xf]
  %s576 = scalar_lea.vmem %s0, 1
  %v577 = vld [vmem:[%s576] ss:$24 sm:$0xf0]
  %vm578 = vcmask 1047556
  %v579 = vsel %vm578, %v577, %v575
  %580 = vrot.lane.b32.xlu0 %v579, 32
  %v581 = vpop.permute.xlu0 %580
  %vm582 = vcmask 523520
  %583 = vst.msk [vmem:[%s1] sm:$0xff] %vm582, %v581
  %s584 = scalar_lea.vmem %s0, 17
  %v585 = vld [vmem:[%s584] ss:$24 sm:$0xf]
  %s586 = scalar_lea.vmem %s0, 17
  %v587 = vld [vmem:[%s586] ss:$24 sm:$0xf0]
  %vm588 = vcmask 1047556
  %v589 = vsel %vm588, %v587, %v585
  %590 = vrot.lane.b32.xlu0 %v589, 32
  %v591 = vpop.permute.xlu0 %590
  %vm592 = vcmask 523520
  %s593 = scalar_lea.vmem %s1, 32
  %594 = vst.msk [vmem:[%s593] sm:$0xff] %vm592, %v591
  %s595 = scalar_lea.vmem %s0, 205
  %v596 = vld [vmem:[%s595] ss:$24 sm:$0xf]
  %s597 = scalar_lea.vmem %s0, 205
  %v598 = vld [vmem:[%s597] ss:$24 sm:$0xf0]
  %vm599 = vcmask 1047556
  %v600 = vsel %vm599, %v598, %v596
  %601 = vrot.lane.b32.xlu0 %v600, 32
  %v602 = vpop.permute.xlu0 %601
  %vm603 = vcmask 523520
  %s604 = scalar_lea.vmem %s1, 64
  %605 = vst.msk [vmem:[%s604] sm:$0xff] %vm603, %v602
  %s606 = scalar_lea.vmem %s0, 393
  %v607 = vld [vmem:[%s606] ss:$24 sm:$0xf]
  %s608 = scalar_lea.vmem %s0, 393
  %v609 = vld [vmem:[%s608] ss:$24 sm:$0xf0]
  %vm610 = vcmask 1047556
  %v611 = vsel %vm610, %v609, %v607
  %612 = vrot.lane.b32.xlu0 %v611, 32
  %v613 = vpop.permute.xlu0 %612
  %vm614 = vcmask 523520
  %s615 = scalar_lea.vmem %s1, 96
  %616 = vst.msk [vmem:[%s615] sm:$0xff] %vm614, %v613
  %s617 = scalar_lea.vmem %s0, 581
  %v618 = vld [vmem:[%s617] ss:$24 sm:$0xf]
  %s619 = scalar_lea.vmem %s0, 581
  %v620 = vld [vmem:[%s619] ss:$24 sm:$0xf0]
  %vm621 = vcmask 1047556
  %v622 = vsel %vm621, %v620, %v618
  %623 = vrot.lane.b32.xlu0 %v622, 32
  %v624 = vpop.permute.xlu0 %623
  %vm625 = vcmask 523520
  %s626 = scalar_lea.vmem %s1, 128
  %627 = vst.msk [vmem:[%s626] sm:$0xff] %vm625, %v624
  %s628 = scalar_lea.vmem %s0, 5
  %v629 = vld [vmem:[%s628] ss:$24 sm:$0xf]
  %s630 = scalar_lea.vmem %s0, 5
  %v631 = vld [vmem:[%s630] ss:$24 sm:$0xf0]
  %vm632 = vcmask 1047556
  %v633 = vsel %vm632, %v631, %v629
  %634 = vrot.lane.b32.xlu0 %v633, 32
  %v635 = vpop.permute.xlu0 %634
  %vm636 = vcmask 523520
  %s637 = scalar_lea.vmem %s1, 8
  %638 = vst.msk [vmem:[%s637] sm:$0xff] %vm636, %v635
  %s639 = scalar_lea.vmem %s0, 193
  %v640 = vld [vmem:[%s639] ss:$24 sm:$0xf]
  %s641 = scalar_lea.vmem %s0, 193
  %v642 = vld [vmem:[%s641] ss:$24 sm:$0xf0]
  %vm643 = vcmask 1047556
  %v644 = vsel %vm643, %v642, %v640
  %645 = vrot.lane.b32.xlu0 %v644, 32
  %v646 = vpop.permute.xlu0 %645
  %vm647 = vcmask 523520
  %s648 = scalar_lea.vmem %s1, 40
  %649 = vst.msk [vmem:[%s648] sm:$0xff] %vm647, %v646
  %s650 = scalar_lea.vmem %s0, 209
  %v651 = vld [vmem:[%s650] ss:$24 sm:$0xf]
  %s652 = scalar_lea.vmem %s0, 209
  %v653 = vld [vmem:[%s652] ss:$24 sm:$0xf0]
  %vm654 = vcmask 1047556
  %v655 = vsel %vm654, %v653, %v651
  %656 = vrot.lane.b32.xlu0 %v655, 32
  %v657 = vpop.permute.xlu0 %656
  %vm658 = vcmask 523520
  %s659 = scalar_lea.vmem %s1, 72
  %660 = vst.msk [vmem:[%s659] sm:$0xff] %vm658, %v657
  %s661 = scalar_lea.vmem %s0, 397
  %v662 = vld [vmem:[%s661] ss:$24 sm:$0xf]
  %s663 = scalar_lea.vmem %s0, 397
  %v664 = vld [vmem:[%s663] ss:$24 sm:$0xf0]
  %vm665 = vcmask 1047556
  %v666 = vsel %vm665, %v664, %v662
  %667 = vrot.lane.b32.xlu0 %v666, 32
  %v668 = vpop.permute.xlu0 %667
  %vm669 = vcmask 523520
  %s670 = scalar_lea.vmem %s1, 104
  %671 = vst.msk [vmem:[%s670] sm:$0xff] %vm669, %v668
  %s672 = scalar_lea.vmem %s0, 585
  %v673 = vld [vmem:[%s672] ss:$24 sm:$0xf]
  %s674 = scalar_lea.vmem %s0, 585
  %v675 = vld [vmem:[%s674] ss:$24 sm:$0xf0]
  %vm676 = vcmask 1047556
  %v677 = vsel %vm676, %v675, %v673
  %678 = vrot.lane.b32.xlu0 %v677, 32
  %v679 = vpop.permute.xlu0 %678
  %vm680 = vcmask 523520
  %s681 = scalar_lea.vmem %s1, 136
  %682 = vst.msk [vmem:[%s681] sm:$0xff] %vm680, %v679
  %s683 = scalar_lea.vmem %s0, 9
  %v684 = vld [vmem:[%s683] ss:$24 sm:$0xf]
  %s685 = scalar_lea.vmem %s0, 9
  %v686 = vld [vmem:[%s685] ss:$24 sm:$0xf0]
  %vm687 = vcmask 1047556
  %v688 = vsel %vm687, %v686, %v684
  %689 = vrot.lane.b32.xlu0 %v688, 32
  %v690 = vpop.permute.xlu0 %689
  %vm691 = vcmask 523520
  %s692 = scalar_lea.vmem %s1, 16
  %693 = vst.msk [vmem:[%s692] sm:$0xff] %vm691, %v690
  %s694 = scalar_lea.vmem %s0, 197
  %v695 = vld [vmem:[%s694] ss:$24 sm:$0xf]
  %s696 = scalar_lea.vmem %s0, 197
  %v697 = vld [vmem:[%s696] ss:$24 sm:$0xf0]
  %vm698 = vcmask 1047556
  %v699 = vsel %vm698, %v697, %v695
  %700 = vrot.lane.b32.xlu0 %v699, 32
  %v701 = vpop.permute.xlu0 %700
  %vm702 = vcmask 523520
  %s703 = scalar_lea.vmem %s1, 48
  %704 = vst.msk [vmem:[%s703] sm:$0xff] %vm702, %v701
  %s705 = scalar_lea.vmem %s0, 385
  %v706 = vld [vmem:[%s705] ss:$24 sm:$0xf]
  %s707 = scalar_lea.vmem %s0, 385
  %v708 = vld [vmem:[%s707] ss:$24 sm:$0xf0]
  %vm709 = vcmask 1047556
  %v710 = vsel %vm709, %v708, %v706
  %711 = vrot.lane.b32.xlu0 %v710, 32
  %v712 = vpop.permute.xlu0 %711
  %vm713 = vcmask 523520
  %s714 = scalar_lea.vmem %s1, 80
  %715 = vst.msk [vmem:[%s714] sm:$0xff] %vm713, %v712
  %s716 = scalar_lea.vmem %s0, 401
  %v717 = vld [vmem:[%s716] ss:$24 sm:$0xf]
  %s718 = scalar_lea.vmem %s0, 401
  %v719 = vld [vmem:[%s718] ss:$24 sm:$0xf0]
  %vm720 = vcmask 1047556
  %v721 = vsel %vm720, %v719, %v717
  %722 = vrot.lane.b32.xlu0 %v721, 32
  %v723 = vpop.permute.xlu0 %722
  %vm724 = vcmask 523520
  %s725 = scalar_lea.vmem %s1, 112
  %726 = vst.msk [vmem:[%s725] sm:$0xff] %vm724, %v723
  %s727 = scalar_lea.vmem %s0, 589
  %v728 = vld [vmem:[%s727] ss:$24 sm:$0xf]
  %s729 = scalar_lea.vmem %s0, 589
  %v730 = vld [vmem:[%s729] ss:$24 sm:$0xf0]
  %vm731 = vcmask 1047556
  %v732 = vsel %vm731, %v730, %v728
  %733 = vrot.lane.b32.xlu0 %v732, 32
  %v734 = vpop.permute.xlu0 %733
  %vm735 = vcmask 523520
  %s736 = scalar_lea.vmem %s1, 144
  %737 = vst.msk [vmem:[%s736] sm:$0xff] %vm735, %v734
  %s738 = scalar_lea.vmem %s0, 13
  %v739 = vld [vmem:[%s738] ss:$24 sm:$0xf]
  %s740 = scalar_lea.vmem %s0, 13
  %v741 = vld [vmem:[%s740] ss:$24 sm:$0xf0]
  %vm742 = vcmask 1047556
  %v743 = vsel %vm742, %v741, %v739
  %744 = vrot.lane.b32.xlu0 %v743, 32
  %v745 = vpop.permute.xlu0 %744
  %vm746 = vcmask 523520
  %s747 = scalar_lea.vmem %s1, 24
  %748 = vst.msk [vmem:[%s747] sm:$0xff] %vm746, %v745
  %s749 = scalar_lea.vmem %s0, 201
  %v750 = vld [vmem:[%s749] ss:$24 sm:$0xf]
  %s751 = scalar_lea.vmem %s0, 201
  %v752 = vld [vmem:[%s751] ss:$24 sm:$0xf0]
  %vm753 = vcmask 1047556
  %v754 = vsel %vm753, %v752, %v750
  %755 = vrot.lane.b32.xlu0 %v754, 32
  %v756 = vpop.permute.xlu0 %755
  %vm757 = vcmask 523520
  %s758 = scalar_lea.vmem %s1, 56
  %759 = vst.msk [vmem:[%s758] sm:$0xff] %vm757, %v756
  %s760 = scalar_lea.vmem %s0, 389
  %v761 = vld [vmem:[%s760] ss:$24 sm:$0xf]
  %s762 = scalar_lea.vmem %s0, 389
  %v763 = vld [vmem:[%s762] ss:$24 sm:$0xf0]
  %vm764 = vcmask 1047556
  %v765 = vsel %vm764, %v763, %v761
  %766 = vrot.lane.b32.xlu0 %v765, 32
  %v767 = vpop.permute.xlu0 %766
  %vm768 = vcmask 523520
  %s769 = scalar_lea.vmem %s1, 88
  %770 = vst.msk [vmem:[%s769] sm:$0xff] %vm768, %v767
  %s771 = scalar_lea.vmem %s0, 577
  %v772 = vld [vmem:[%s771] ss:$24 sm:$0xf]
  %s773 = scalar_lea.vmem %s0, 577
  %v774 = vld [vmem:[%s773] ss:$24 sm:$0xf0]
  %vm775 = vcmask 1047556
  %v776 = vsel %vm775, %v774, %v772
  %777 = vrot.lane.b32.xlu0 %v776, 32
  %v778 = vpop.permute.xlu0 %777
  %vm779 = vcmask 523520
  %s780 = scalar_lea.vmem %s1, 120
  %781 = vst.msk [vmem:[%s780] sm:$0xff] %vm779, %v778
  %s782 = scalar_lea.vmem %s0, 593
  %v783 = vld [vmem:[%s782] ss:$24 sm:$0xf]
  %s784 = scalar_lea.vmem %s0, 593
  %v785 = vld [vmem:[%s784] ss:$24 sm:$0xf0]
  %vm786 = vcmask 1047556
  %v787 = vsel %vm786, %v785, %v783
  %788 = vrot.lane.b32.xlu0 %v787, 32
  %v789 = vpop.permute.xlu0 %788
  %vm790 = vcmask 523520
  %s791 = scalar_lea.vmem %s1, 152
  %792 = vst.msk [vmem:[%s791] sm:$0xff] %vm790, %v789

// kernel: tile.29
$region0: #{tile.29}
  %s0 = inlined_call_operand.vmem [shape: f32[18,3,3], index: 0, kind: input, shape index: {}]
  %s1 = inlined_call_operand.vmem [shape: f32[54,3], index: 1, kind: output, shape index: {}]
  $region1: #{tile.29} parent=0
    #allocation0 [shape = 'u8[4096]{0}', space=vmem, size = 0x1000, scoped, tag = 'scoped mem for output reshape']
    %v2 = vld [vmem:[%s0] ss:$24 sm:$0x7]
    %vm3 = vcmask 23552
    %4 = vst.msk [vmem:[#allocation0] sm:$0x7] %vm3, %v2
    %s5 = scalar_lea.vmem %s0, 17
    %v6 = vld [vmem:[%s5] ss:$24 sm:$0x7]
    %7 = vrot.lane.b32.xlu0 %v6, 51
    %v8 = vpop.permute.xlu0 %7
    %vm9 = vcmask 441752
    %10 = vst.msk [vmem:[#allocation0] sm:$0x7] %vm9, %v8
    %s11 = scalar_lea.vmem %s0, 16
    %v12 = vld [vmem:[%s11] ss:$24 sm:$0x7]
    %13 = vrot.lane.b32.xlu0 %v12, 48
    %v14 = vpop.permute.xlu0 %13
    %vm15 = vcmask 417152
    %16 = vst.msk [vmem:[#allocation0] sm:$0x7] %vm15, %v14
    %s17 = scalar_lea.vmem %s0, 15
    %v18 = vld [vmem:[%s17] ss:$24 sm:$0x7]
    %19 = vrot.lane.b32.xlu0 %v18, 45
    %v20 = vpop.permute.xlu0 %19
    %vm21 = vcmask 392552
    %22 = vst.msk [vmem:[#allocation0] sm:$0x7] %vm21, %v20
    %s23 = scalar_lea.vmem %s0, 14
    %v24 = vld [vmem:[%s23] ss:$24 sm:$0x7]
    %25 = vrot.lane.b32.xlu0 %v24, 42
    %v26 = vpop.permute.xlu0 %25
    %vm27 = vcmask 367952
    %28 = vst.msk [vmem:[#allocation0] sm:$0x7] %vm27, %v26
    %s29 = scalar_lea.vmem %s0, 13
    %v30 = vld [vmem:[%s29] ss:$24 sm:$0x7]
    %31 = vrot.lane.b32.xlu0 %v30, 39
    %v32 = vpop.permute.xlu0 %31
    %vm33 = vcmask 343352
    %34 = vst.msk [vmem:[#allocation0] sm:$0x7] %vm33, %v32
    %s35 = scalar_lea.vmem %s0, 12
    %v36 = vld [vmem:[%s35] ss:$24 sm:$0x7]
    %37 = vrot.lane.b32.xlu0 %v36, 36
    %v38 = vpop.permute.xlu0 %37
    %vm39 = vcmask 318752
    %40 = vst.msk [vmem:[#allocation0] sm:$0x7] %vm39, %v38
    %s41 = scalar_lea.vmem %s0, 11
    %v42 = vld [vmem:[%s41] ss:$24 sm:$0x7]
    %43 = vrot.lane.b32.xlu0 %v42, 33
    %v44 = vpop.permute.xlu0 %43
    %vm45 = vcmask 294152
    %46 = vst.msk [vmem:[#allocation0] sm:$0x7] %vm45, %v44
    %s47 = scalar_lea.vmem %s0, 10
    %v48 = vld [vmem:[%s47] ss:$24 sm:$0x7]
    %49 = vrot.lane.b32.xlu0 %v48, 30
    %v50 = vpop.permute.xlu0 %49
    %vm51 = vcmask 269552
    %52 = vst.msk [vmem:[#allocation0] sm:$0x7] %vm51, %v50
    %s53 = scalar_lea.vmem %s0, 9
    %v54 = vld [vmem:[%s53] ss:$24 sm:$0x7]
    %55 = vrot.lane.b32.xlu0 %v54, 27
    %v56 = vpop.permute.xlu0 %55
    %vm57 = vcmask 244952
    %58 = vst.msk [vmem:[#allocation0] sm:$0x7] %vm57, %v56
    %s59 = scalar_lea.vmem %s0, 8
    %v60 = vld [vmem:[%s59] ss:$24 sm:$0x7]
    %61 = vrot.lane.b32.xlu0 %v60, 24
    %v62 = vpop.permute.xlu0 %61
    %vm63 = vcmask 220352
    %64 = vst.msk [vmem:[#allocation0] sm:$0x7] %vm63, %v62
    %s65 = scalar_lea.vmem %s0, 7
    %v66 = vld [vmem:[%s65] ss:$24 sm:$0x7]
    %67 = vrot.lane.b32.xlu0 %v66, 21
    %v68 = vpop.permute.xlu0 %67
    %vm69 = vcmask 195752
    %70 = vst.msk [vmem:[#allocation0] sm:$0x7] %vm69, %v68
    %s71 = scalar_lea.vmem %s0, 6
    %v72 = vld [vmem:[%s71] ss:$24 sm:$0x7]
    %73 = vrot.lane.b32.xlu0 %v72, 18
    %v74 = vpop.permute.xlu0 %73
    %vm75 = vcmask 171152
    %76 = vst.msk [vmem:[#allocation0] sm:$0x7] %vm75, %v74
    %s77 = scalar_lea.vmem %s0, 5
    %v78 = vld [vmem:[%s77] ss:$24 sm:$0x7]
    %79 = vrot.lane.b32.xlu0 %v78, 15
    %v80 = vpop.permute.xlu0 %79
    %vm81 = vcmask 146552
    %82 = vst.msk [vmem:[#allocation0] sm:$0x7] %vm81, %v80
    %s83 = scalar_lea.vmem %s0, 4
    %v84 = vld [vmem:[%s83] ss:$24 sm:$0x7]
    %85 = vrot.lane.b32.xlu0 %v84, 12
    %v86 = vpop.permute.xlu0 %85
    %vm87 = vcmask 121952
    %88 = vst.msk [vmem:[#allocation0] sm:$0x7] %vm87, %v86
    %s89 = scalar_lea.vmem %s0, 3
    %v90 = vld [vmem:[%s89] ss:$24 sm:$0x7]
    %91 = vrot.lane.b32.xlu0 %v90, 9
    %v92 = vpop.permute.xlu0 %91
    %vm93 = vcmask 97352
    %94 = vst.msk [vmem:[#allocation0] sm:$0x7] %vm93, %v92
    %s95 = scalar_lea.vmem %s0, 2
    %v96 = vld [vmem:[%s95] ss:$24 sm:$0x7]
    %97 = vrot.lane.b32.xlu0 %v96, 6
    %v98 = vpop.permute.xlu0 %97
    %vm99 = vcmask 72752
    %100 = vst.msk [vmem:[#allocation0] sm:$0x7] %vm99, %v98
    %s101 = scalar_lea.vmem %s0, 1
    %v102 = vld [vmem:[%s101] ss:$24 sm:$0x7]
    %103 = vrot.lane.b32.xlu0 %v102, 3
    %v104 = vpop.permute.xlu0 %103
    %vm105 = vcmask 48152
    %106 = vst.msk [vmem:[#allocation0] sm:$0x7] %vm105, %v104
    %s108 = ssub.s32 16, 1
    %v109 = vld [vmem:[#allocation0] sm:%s108]
    %s111 = ssub.s32 16, 1
    %112 = vst [vmem:[%s1] sm:%s111] %v109

// kernel: correction_net_pallas.1
$region0: #{correction_net_pallas.1}
  #allocation0 [shape = 'u32[]', space=smem, size = 0x4, offset = 0x4, fixed_abs, tag = 'smem constant byte address 0x4 - core index']
  #allocation1 [shape = 'u32[72,128]{1,0:T(1,128)}', space=vmem, size = 0x9000, scoped, tag = 'internal scratch']
  #allocation2 [shape = 'f32[38,576]{1,0:T(8,128)}', space=vmem, size = 0x19000, scoped, tag = 'scratch operand']
  #allocation3 [shape = 'f32[38,576]{1,0:T(8,128)}', space=vmem, size = 0x19000, scoped, tag = 'scratch operand']
  %s0 = inlined_call_operand.vmem [shape: f32[38,54], index: 0, kind: input, shape index: {}]
  %s1 = inlined_call_operand.vmem [shape: f32[3,54,288], index: 1, kind: input, shape index: {}]
  %s2 = inlined_call_operand.vmem [shape: f32[1,288], index: 2, kind: input, shape index: {}]
  %s3 = inlined_call_operand.vmem [shape: f32[3,288,576], index: 3, kind: input, shape index: {}]
  %s4 = inlined_call_operand.vmem [shape: f32[1,576], index: 4, kind: input, shape index: {}]
  %s5 = inlined_call_operand.vmem [shape: f32[3,576,576], index: 5, kind: input, shape index: {}]
  %s6 = inlined_call_operand.vmem [shape: f32[1,576], index: 6, kind: input, shape index: {}]
  %s7 = inlined_call_operand.vmem [shape: f32[3,576,288], index: 7, kind: input, shape index: {}]
  %s8 = inlined_call_operand.vmem [shape: f32[1,288], index: 8, kind: input, shape index: {}]
  %s9 = inlined_call_operand.vmem [shape: f32[3,288,54], index: 9, kind: input, shape index: {}]
  %s10 = inlined_call_operand.vmem [shape: f32[1,54], index: 10, kind: input, shape index: {}]
  %s11 = inlined_call_operand.vmem [shape: f32[1,32], index: 11, kind: input, shape index: {}]
  %s12 = inlined_call_operand.vmem [shape: f32[1,32], index: 12, kind: input, shape index: {}]
  %s13 = inlined_call_operand.vmem [shape: f32[1,3], index: 13, kind: input, shape index: {}]
  %s14 = inlined_call_operand.vmem [shape: f32[1,3], index: 14, kind: input, shape index: {}]
  %s15 = inlined_call_operand.vmem [shape: f32[36,1], index: 15, kind: input, shape index: {}]
  %s16 = inlined_call_operand.vmem [shape: f32[1,576], index: 16, kind: input, shape index: {}]
  %s17 = inlined_call_operand.vmem [shape: f32[576,32], index: 17, kind: input, shape index: {}]
  %s18 = inlined_call_operand.vmem [shape: f32[32,576], index: 18, kind: input, shape index: {}]
  %s19 = inlined_call_operand.vmem [shape: f32[54,3], index: 19, kind: input, shape index: {}]
  %s20 = inlined_call_operand.vmem [shape: f32[3,54], index: 20, kind: input, shape index: {}]
  %s21 = inlined_call_operand.vmem [shape: f32[36,54], index: 21, kind: output, shape index: {}]
  %s22 = sld [smem:[#allocation0]]
  $region94: #{correction_net_pallas.1} parent=0
    _
  %s24 = ssub.s32 1, %s22
  %s25 = scalar_select 0, %s24, %s22
  // Predicated region
  $region2: #{correction_net_pallas.1} parent=0 // pred_check
    _
  $region3: #{correction_net_pallas.1} parent=0 // pred_check_branch
    %27 = sbr.rel (0) target = $region5
  $region4: #{correction_net_pallas.1} parent=0 // pred_region
    _
  $region5: #{correction_net_pallas.1} parent=0 // pred_fallthru
    _
  // Predicated region
  $region6: #{correction_net_pallas.1} parent=0 // pred_check
    _
  $region7: #{correction_net_pallas.1} parent=0 // pred_check_branch
    %29 = sbr.rel (0) target = $region9
  $region8: #{correction_net_pallas.1} parent=0 // pred_region
    _
  $region9: #{correction_net_pallas.1} parent=0 // pred_fallthru
    _
  // Predicated region
  $region10: #{correction_net_pallas.1} parent=0 // pred_check
    _
  $region11: #{correction_net_pallas.1} parent=0 // pred_check_branch
    %31 = sbr.rel (0) target = $region13
  $region12: #{correction_net_pallas.1} parent=0 // pred_region
    _
  $region13: #{correction_net_pallas.1} parent=0 // pred_fallthru
    _
  // Predicated region
  $region14: #{correction_net_pallas.1} parent=0 // pred_check
    _
  $region15: #{correction_net_pallas.1} parent=0 // pred_check_branch
    %33 = sbr.rel (0) target = $region17
  $region16: #{correction_net_pallas.1} parent=0 // pred_region
    _
  $region17: #{correction_net_pallas.1} parent=0 // pred_fallthru
    _
  // Predicated region
  $region18: #{correction_net_pallas.1} parent=0 // pred_check
    _
  $region19: #{correction_net_pallas.1} parent=0 // pred_check_branch
    %35 = sbr.rel (0) target = $region21
  $region20: #{correction_net_pallas.1} parent=0 // pred_region
    _
  $region21: #{correction_net_pallas.1} parent=0 // pred_fallthru
    _
  // Predicated region
  $region22: #{correction_net_pallas.1} parent=0 // pred_check
    _
  $region23: #{correction_net_pallas.1} parent=0 // pred_check_branch
    %37 = sbr.rel (0) target = $region25
  $region24: #{correction_net_pallas.1} parent=0 // pred_region
    _
  $region25: #{correction_net_pallas.1} parent=0 // pred_fallthru
    _
  // Predicated region
  $region26: #{correction_net_pallas.1} parent=0 // pred_check
    _
  $region27: #{correction_net_pallas.1} parent=0 // pred_check_branch
    %39 = sbr.rel (0) target = $region29
  $region28: #{correction_net_pallas.1} parent=0 // pred_region
    _
  $region29: #{correction_net_pallas.1} parent=0 // pred_fallthru
    _
  // Predicated region
  $region30: #{correction_net_pallas.1} parent=0 // pred_check
    _
  $region31: #{correction_net_pallas.1} parent=0 // pred_check_branch
    %41 = sbr.rel (0) target = $region33
  $region32: #{correction_net_pallas.1} parent=0 // pred_region
    _
  $region33: #{correction_net_pallas.1} parent=0 // pred_fallthru
    _
  // Predicated region
  $region34: #{correction_net_pallas.1} parent=0 // pred_check
    _
  $region35: #{correction_net_pallas.1} parent=0 // pred_check_branch
    %43 = sbr.rel (0) target = $region37
  $region36: #{correction_net_pallas.1} parent=0 // pred_region
    _
  $region37: #{correction_net_pallas.1} parent=0 // pred_fallthru
    _
  // Predicated region
  $region38: #{correction_net_pallas.1} parent=0 // pred_check
    _
  $region39: #{correction_net_pallas.1} parent=0 // pred_check_branch
    %45 = sbr.rel (0) target = $region41
  $region40: #{correction_net_pallas.1} parent=0 // pred_region
    _
  $region41: #{correction_net_pallas.1} parent=0 // pred_fallthru
    _
  // Predicated region
  $region42: #{correction_net_pallas.1} parent=0 // pred_check
    _
  $region43: #{correction_net_pallas.1} parent=0 // pred_check_branch
    %47 = sbr.rel (0) target = $region45
  $region44: #{correction_net_pallas.1} parent=0 // pred_region
    _
  $region45: #{correction_net_pallas.1} parent=0 // pred_fallthru
    _
  // Predicated region
  $region46: #{correction_net_pallas.1} parent=0 // pred_check
    _
  $region47: #{correction_net_pallas.1} parent=0 // pred_check_branch
    %49 = sbr.rel (0) target = $region49
  $region48: #{correction_net_pallas.1} parent=0 // pred_region
    _
  $region49: #{correction_net_pallas.1} parent=0 // pred_fallthru
    _
  // Predicated region
  $region50: #{correction_net_pallas.1} parent=0 // pred_check
    _
  $region51: #{correction_net_pallas.1} parent=0 // pred_check_branch
    %51 = sbr.rel (0) target = $region53
  $region52: #{correction_net_pallas.1} parent=0 // pred_region
    _
  $region53: #{correction_net_pallas.1} parent=0 // pred_fallthru
    _
  // Predicated region
  $region54: #{correction_net_pallas.1} parent=0 // pred_check
    _
  $region55: #{correction_net_pallas.1} parent=0 // pred_check_branch
    %53 = sbr.rel (0) target = $region57
  $region56: #{correction_net_pallas.1} parent=0 // pred_region
    _
  $region57: #{correction_net_pallas.1} parent=0 // pred_fallthru
    _
  // Predicated region
  $region58: #{correction_net_pallas.1} parent=0 // pred_check
    _
  $region59: #{correction_net_pallas.1} parent=0 // pred_check_branch
    %55 = sbr.rel (0) target = $region61
  $region60: #{correction_net_pallas.1} parent=0 // pred_region
    _
  $region61: #{correction_net_pallas.1} parent=0 // pred_fallthru
    _
  // Predicated region
  $region62: #{correction_net_pallas.1} parent=0 // pred_check
    _
  $region63: #{correction_net_pallas.1} parent=0 // pred_check_branch
    %57 = sbr.rel (0) target = $region65
  $region64: #{correction_net_pallas.1} parent=0 // pred_region
    _
  $region65: #{correction_net_pallas.1} parent=0 // pred_fallthru
    _
  // Predicated region
  $region66: #{correction_net_pallas.1} parent=0 // pred_check
    _
  $region67: #{correction_net_pallas.1} parent=0 // pred_check_branch
    %59 = sbr.rel (0) target = $region69
  $region68: #{correction_net_pallas.1} parent=0 // pred_region
    _
  $region69: #{correction_net_pallas.1} parent=0 // pred_fallthru
    _
  // Predicated region
  $region70: #{correction_net_pallas.1} parent=0 // pred_check
    _
  $region71: #{correction_net_pallas.1} parent=0 // pred_check_branch
    %61 = sbr.rel (0) target = $region73
  $region72: #{correction_net_pallas.1} parent=0 // pred_region
    _
  $region73: #{correction_net_pallas.1} parent=0 // pred_fallthru
    _
  // Predicated region
  $region74: #{correction_net_pallas.1} parent=0 // pred_check
    _
  $region75: #{correction_net_pallas.1} parent=0 // pred_check_branch
    %63 = sbr.rel (0) target = $region77
  $region76: #{correction_net_pallas.1} parent=0 // pred_region
    _
  $region77: #{correction_net_pallas.1} parent=0 // pred_fallthru
    _
  // Predicated region
  $region78: #{correction_net_pallas.1} parent=0 // pred_check
    _
  $region79: #{correction_net_pallas.1} parent=0 // pred_check_branch
    %65 = sbr.rel (0) target = $region81
  $region80: #{correction_net_pallas.1} parent=0 // pred_region
    _
  $region81: #{correction_net_pallas.1} parent=0 // pred_fallthru
    _
  // Predicated region
  $region82: #{correction_net_pallas.1} parent=0 // pred_check
    _
  $region83: #{correction_net_pallas.1} parent=0 // pred_check_branch
    %67 = sbr.rel (0) target = $region85
  $region84: #{correction_net_pallas.1} parent=0 // pred_region
    _
  $region85: #{correction_net_pallas.1} parent=0 // pred_fallthru
    _
  %v68 = vld [vmem:[%s15] sm:$0xff]
  %v69 = vld [vmem:[%s15 + $0x8] sm:$0xff]
  %v70 = vld [vmem:[%s15 + $0x10] sm:$0xff]
  %v71 = vld [vmem:[%s15 + $0x18] sm:$0xff]
  %v72 = vld [vmem:[%s15 + $0x20] sm:$0xf]
  %v73 = vlaneseq
  %vm74 = vcmp.ge.s32.totalorder %v73, 0
  %vm75 = vcmp.lt.s32.totalorder %v73, 576
  %vm76 = vmand %vm74, %vm75
  %77 = vst.msk [vmem:[#allocation2] ss:$8 sm:$0xf] %vm76, 0.0
  %78 = vst.msk [vmem:[#allocation2] ss:$8 sm:$0x10] %vm76, 0.0
  %s79 = scalar_lea.vmem [#allocation2], 165
  %80 = vst.msk [vmem:[%s79] ss:$8 sm:$0xf] %vm76, 0.0
  %81 = vst.msk [vmem:[%s79] ss:$8 sm:$0x10] %vm76, 0.0
  %82 = vst.msk [vmem:[#allocation3] ss:$8 sm:$0xf] %vm76, 0.0
  %83 = vst.msk [vmem:[#allocation3] ss:$8 sm:$0x10] %vm76, 0.0
  %s84 = scalar_lea.vmem [#allocation3], 165
  %85 = vst.msk [vmem:[%s84] ss:$8 sm:$0xf] %vm76, 0.0
  %86 = vst.msk [vmem:[%s84] ss:$8 sm:$0x10] %vm76, 0.0
  %v87 = vld [vmem:[%s0] sm:$0xff]
  %v88 = vld [vmem:[%s0 + $0x8] sm:$0xff]
  %v89 = vld [vmem:[%s0 + $0x10] sm:$0xff]
  %v90 = vld [vmem:[%s0 + $0x18] sm:$0xff]
  %v91 = vld [vmem:[%s0 + $0x20] sm:$0xf]
  %v92 = vld [vmem:[%s1] sm:$0xff]
  %v93 = vld [vmem:[%s1 + $0x8] sm:$0xff]
  %v94 = vld [vmem:[%s1 + $0x10] sm:$0xff]
  %v95 = vld [vmem:[%s1 + $0x18] sm:$0xff]
  %v96 = vld [vmem:[%s1 + $0x20] sm:$0xff]
  %v97 = vld [vmem:[%s1 + $0x28] sm:$0xff]
  %v98 = vld [vmem:[%s1 + $0x30] sm:$0xff]
  %v99 = vld [vmem:[%s1 + $0x38] sm:$0xff]
  %v100 = vld [vmem:[%s1 + $0x40] sm:$0xff]
  %v101 = vld [vmem:[%s1 + $0x48] sm:$0xff]
  %v102 = vld [vmem:[%s1 + $0x50] sm:$0xff]
  %v103 = vld [vmem:[%s1 + $0x58] sm:$0xff]
  %v104 = vld [vmem:[%s1 + $0x60] sm:$0xff]
  %v105 = vld [vmem:[%s1 + $0x68] sm:$0xff]
  %v106 = vld [vmem:[%s1 + $0x70] sm:$0xff]
  %v107 = vld [vmem:[%s1 + $0x78] sm:$0xff]
  %v108 = vld [vmem:[%s1 + $0x80] sm:$0xff]
  %v109 = vld [vmem:[%s1 + $0x88] sm:$0xff]
  %v110 = vld [vmem:[%s1 + $0x90] sm:$0x3f]
  %v111 = vld [vmem:[%s1 + $0x98] sm:$0x3f]
  %v112 = vld [vmem:[%s1 + $0xa0] sm:$0x3f]
  %v113 = vld [vmem:[%s0 + $0x1] sm:$0xff]
  %v114 = vld [vmem:[%s0 + $0x9] sm:$0xff]
  %v115 = vld [vmem:[%s0 + $0x11] sm:$0xff]
  %v116 = vld [vmem:[%s0 + $0x19] sm:$0xff]
  %v117 = vld [vmem:[%s0 + $0x21] sm:$0xf]
  %s118 = scalar_lea.vmem %s1, 168
  %v119 = vld [vmem:[%s118] sm:$0xff]
  %v120 = vld [vmem:[%s118 + $0x8] sm:$0xff]
  %v121 = vld [vmem:[%s118 + $0x10] sm:$0xff]
  %v122 = vld [vmem:[%s118 + $0x18] sm:$0xff]
  %v123 = vld [vmem:[%s118 + $0x20] sm:$0xff]
  %v124 = vld [vmem:[%s118 + $0x28] sm:$0xff]
  %v125 = vld [vmem:[%s118 + $0x30] sm:$0xff]
  %v126 = vld [vmem:[%s118 + $0x38] sm:$0xff]
  %v127 = vld [vmem:[%s118 + $0x40] sm:$0xff]
  %v128 = vld [vmem:[%s118 + $0x48] sm:$0xff]
  %v129 = vld [vmem:[%s118 + $0x50] sm:$0xff]
  %v130 = vld [vmem:[%s118 + $0x58] sm:$0xff]
  %v131 = vld [vmem:[%s118 + $0x60] sm:$0xff]
  %v132 = vld [vmem:[%s118 + $0x68] sm:$0xff]
  %v133 = vld [vmem:[%s118 + $0x70] sm:$0xff]
  %v134 = vld [vmem:[%s118 + $0x78] sm:$0xff]
  %v135 = vld [vmem:[%s118 + $0x80] sm:$0xff]
  %v136 = vld [vmem:[%s118 + $0x88] sm:$0xff]
  %v137 = vld [vmem:[%s118 + $0x90] sm:$0x3f]
  %v138 = vld [vmem:[%s118 + $0x98] sm:$0x3f]
  %v139 = vld [vmem:[%s118 + $0xa0] sm:$0x3f]
  %vm140 = vcmask 441344
  %v142 = vsel %vm140, %v113, 0
  %v145 = vsel %vm140, %v114, 0
  %v148 = vsel %vm140, %v115, 0
  %v151 = vsel %vm140, %v116, 0
  %v154 = vsel %vm140, %v117, 0
  %vm156 = vcmask 1045504
  %v158 = vsel %vm156, %v137, 0
  %v161 = vsel %vm156, %v138, 0
  %v164 = vsel %vm156, %v139, 0
  %166 = vmatpush.msra.mxu0 0.0
  %167 = vmatpush.msra.mxu0 0.0
  %168 = vmatpush.msra.mxu0 0.0
  %169 = vmatpush.msra.mxu0 0.0
  %170 = vmatpush.msra.mxu0 0.0
  %171 = vmatpush.msra.mxu0 0.0
  %172 = vmatpush.msra.mxu0 0.0
  %173 = vmatpush.msra.mxu0 0.0
  %174 = vmatpush.msra.mxu0 0.0
  %175 = vmatpush.msra.mxu0 %v158
  %176 = vmatpush.msra.mxu0 %v134
  %177 = vmatpush.msra.mxu0 %v131
  %178 = vmatpush.msra.mxu0 %v128
  %179 = vmatpush.msra.mxu0 %v125
  %180 = vmatpush.msra.mxu0 %v122
  %181 = vmatpush.msra.mxu0 %v119
  %182 = vmatmul.f32.gmra.mxu0 %v142
  %v183 = vpop.f32.mrf.mxu0
  %v184 = vadd.f32 0.0, %v183
  %185 = vmatmul.f32.gmra.mxu0 %v145
  %v186 = vpop.f32.mrf.mxu0
  %v187 = vadd.f32 0.0, %v186
  %188 = vmatmul.f32.gmra.mxu0 %v148
  %v189 = vpop.f32.mrf.mxu0
  %v190 = vadd.f32 0.0, %v189
  %191 = vmatmul.f32.gmra.mxu0 %v151
  %v192 = vpop.f32.mrf.mxu0
  %v193 = vadd.f32 0.0, %v192
  %194 = vmatmul.f32.gmra.mxu0 %v154
  %v195 = vpop.f32.mrf.mxu0
  %v196 = vadd.f32 0.0, %v195
  %197 = vdwg.mxu0
  %198 = vmatpush.msra.mxu0 0.0
  %199 = vmatpush.msra.mxu0 0.0
  %200 = vmatpush.msra.mxu0 0.0
  %201 = vmatpush.msra.mxu0 0.0
  %202 = vmatpush.msra.mxu0 0.0
  %203 = vmatpush.msra.mxu0 0.0
  %204 = vmatpush.msra.mxu0 0.0
  %205 = vmatpush.msra.mxu0 0.0
  %206 = vmatpush.msra.mxu0 0.0
  %207 = vmatpush.msra.mxu0 %v161
  %208 = vmatpush.msra.mxu0 %v135
  %209 = vmatpush.msra.mxu0 %v132
  %210 = vmatpush.msra.mxu0 %v129
  %211 = vmatpush.msra.mxu0 %v126
  %212 = vmatpush.msra.mxu0 %v123
  %213 = vmatpush.msra.mxu0 %v120
  %214 = vmatmul.f32.gmra.mxu0 %v142
  %v215 = vpop.f32.mrf.mxu0
  %v216 = vadd.f32 0.0, %v215
  %217 = vmatmul.f32.gmra.mxu0 %v145
  %v218 = vpop.f32.mrf.mxu0
  %v219 = vadd.f32 0.0, %v218
  %220 = vmatmul.f32.gmra.mxu0 %v148
  %v221 = vpop.f32.mrf.mxu0
  %v222 = vadd.f32 0.0, %v221
  %223 = vmatmul.f32.gmra.mxu0 %v151
  %v224 = vpop.f32.mrf.mxu0
  %v225 = vadd.f32 0.0, %v224
  %226 = vmatmul.f32.gmra.mxu0 %v154
  %v227 = vpop.f32.mrf.mxu0
  %v228 = vadd.f32 0.0, %v227
  %229 = vdwg.mxu0
  %230 = vmatpush.msra.mxu0 0.0
  %231 = vmatpush.msra.mxu0 0.0
  %232 = vmatpush.msra.mxu0 0.0
  %233 = vmatpush.msra.mxu0 0.0
  %234 = vmatpush.msra.mxu0 0.0
  %235 = vmatpush.msra.mxu0 0.0
  %236 = vmatpush.msra.mxu0 0.0
  %237 = vmatpush.msra.mxu0 0.0
  %238 = vmatpush.msra.mxu0 0.0
  %239 = vmatpush.msra.mxu0 %v164
  %240 = vmatpush.msra.mxu0 %v136
  %241 = vmatpush.msra.mxu0 %v133
  %242 = vmatpush.msra.mxu0 %v130
  %243 = vmatpush.msra.mxu0 %v127
  %244 = vmatpush.msra.mxu0 %v124
  %245 = vmatpush.msra.mxu0 %v121
  %246 = vmatmul.f32.gmra.mxu0 %v142
  %v247 = vpop.f32.mrf.mxu0
  %v248 = vadd.f32 0.0, %v247
  %249 = vmatmul.f32.gmra.mxu0 %v145
  %v250 = vpop.f32.mrf.mxu0
  %v251 = vadd.f32 0.0, %v250
  %252 = vmatmul.f32.gmra.mxu0 %v148
  %v253 = vpop.f32.mrf.mxu0
  %v254 = vadd.f32 0.0, %v253
  %255 = vmatmul.f32.gmra.mxu0 %v151
  %v256 = vpop.f32.mrf.mxu0
  %v257 = vadd.f32 0.0, %v256
  %258 = vmatmul.f32.gmra.mxu0 %v154
  %v259 = vpop.f32.mrf.mxu0
  %v260 = vadd.f32 0.0, %v259
  %261 = vdwg.mxu0
  %v263 = vsel %vm140, %v87, 0
  %v266 = vsel %vm140, %v88, 0
  %v269 = vsel %vm140, %v89, 0
  %v272 = vsel %vm140, %v90, 0
  %v275 = vsel %vm140, %v91, 0
  %v278 = vsel %vm156, %v110, 0
  %v281 = vsel %vm156, %v111, 0
  %v284 = vsel %vm156, %v112, 0
  %286 = vmatpush.msra.mxu0 0.0
  %287 = vmatpush.msra.mxu0 0.0
  %288 = vmatpush.msra.mxu0 0.0
  %289 = vmatpush.msra.mxu0 0.0
  %290 = vmatpush.msra.mxu0 0.0
  %291 = vmatpush.msra.mxu0 0.0
  %292 = vmatpush.msra.mxu0 0.0
  %293 = vmatpush.msra.mxu0 0.0
  %294 = vmatpush.msra.mxu0 0.0
  %295 = vmatpush.msra.mxu0 %v278
  %296 = vmatpush.msra.mxu0 %v107
  %297 = vmatpush.msra.mxu0 %v104
  %298 = vmatpush.msra.mxu0 %v101
  %299 = vmatpush.msra.mxu0 %v98
  %300 = vmatpush.msra.mxu0 %v95
  %301 = vmatpush.msra.mxu0 %v92
  %302 = vmatmul.f32.gmra.mxu0 %v263
  %v303 = vpop.f32.mrf.mxu0
  %v304 = vadd.f32 %v184, %v303
  %305 = vmatmul.f32.gmra.mxu0 %v266
  %v306 = vpop.f32.mrf.mxu0
  %v307 = vadd.f32 %v187, %v306
  %308 = vmatmul.f32.gmra.mxu0 %v269
  %v309 = vpop.f32.mrf.mxu0
  %v310 = vadd.f32 %v190, %v309
  %311 = vmatmul.f32.gmra.mxu0 %v272
  %v312 = vpop.f32.mrf.mxu0
  %v313 = vadd.f32 %v193, %v312
  %314 = vmatmul.f32.gmra.mxu0 %v275
  %v315 = vpop.f32.mrf.mxu0
  %v316 = vadd.f32 %v196, %v315
  %317 = vdwg.mxu0
  %318 = vmatpush.msra.mxu0 0.0
  %319 = vmatpush.msra.mxu0 0.0
  %320 = vmatpush.msra.mxu0 0.0
  %321 = vmatpush.msra.mxu0 0.0
  %322 = vmatpush.msra.mxu0 0.0
  %323 = vmatpush.msra.mxu0 0.0
  %324 = vmatpush.msra.mxu0 0.0
  %325 = vmatpush.msra.mxu0 0.0
  %326 = vmatpush.msra.mxu0 0.0
  %327 = vmatpush.msra.mxu0 %v281
  %328 = vmatpush.msra.mxu0 %v108
  %329 = vmatpush.msra.mxu0 %v105
  %330 = vmatpush.msra.mxu0 %v102
  %331 = vmatpush.msra.mxu0 %v99
  %332 = vmatpush.msra.mxu0 %v96
  %333 = vmatpush.msra.mxu0 %v93
  %334 = vmatmul.f32.gmra.mxu0 %v263
  %v335 = vpop.f32.mrf.mxu0
  %v336 = vadd.f32 %v216, %v335
  %337 = vmatmul.f32.gmra.mxu0 %v266
  %v338 = vpop.f32.mrf.mxu0
  %v339 = vadd.f32 %v219, %v338
  %340 = vmatmul.f32.gmra.mxu0 %v269
  %v341 = vpop.f32.mrf.mxu0
  %v342 = vadd.f32 %v222, %v341
  %343 = vmatmul.f32.gmra.mxu0 %v272
  %v344 = vpop.f32.mrf.mxu0
  %v345 = vadd.f32 %v225, %v344
  %346 = vmatmul.f32.gmra.mxu0 %v275
  %v347 = vpop.f32.mrf.mxu0
  %v348 = vadd.f32 %v228, %v347
  %349 = vdwg.mxu0
  %350 = vmatpush.msra.mxu0 0.0
  %351 = vmatpush.msra.mxu0 0.0
  %352 = vmatpush.msra.mxu0 0.0
  %353 = vmatpush.msra.mxu0 0.0
  %354 = vmatpush.msra.mxu0 0.0
  %355 = vmatpush.msra.mxu0 0.0
  %356 = vmatpush.msra.mxu0 0.0
  %357 = vmatpush.msra.mxu0 0.0
  %358 = vmatpush.msra.mxu0 0.0
  %359 = vmatpush.msra.mxu0 %v284
  %360 = vmatpush.msra.mxu0 %v109
  %361 = vmatpush.msra.mxu0 %v106
  %362 = vmatpush.msra.mxu0 %v103
  %363 = vmatpush.msra.mxu0 %v100
  %364 = vmatpush.msra.mxu0 %v97
  %365 = vmatpush.msra.mxu0 %v94
  %366 = vmatmul.f32.gmra.mxu0 %v263
  %v367 = vpop.f32.mrf.mxu0
  %v368 = vadd.f32 %v248, %v367
  %369 = vmatmul.f32.gmra.mxu0 %v266
  %v370 = vpop.f32.mrf.mxu0
  %v371 = vadd.f32 %v251, %v370
  %372 = vmatmul.f32.gmra.mxu0 %v269
  %v373 = vpop.f32.mrf.mxu0
  %v374 = vadd.f32 %v254, %v373
  %375 = vmatmul.f32.gmra.mxu0 %v272
  %v376 = vpop.f32.mrf.mxu0
  %v377 = vadd.f32 %v257, %v376
  %378 = vmatmul.f32.gmra.mxu0 %v275
  %v379 = vpop.f32.mrf.mxu0
  %v380 = vadd.f32 %v260, %v379
  %381 = vdwg.mxu0
  %v382 = vld [vmem:[%s0 + $0x2] sm:$0xff]
  %v383 = vld [vmem:[%s0 + $0xa] sm:$0xff]
  %v384 = vld [vmem:[%s0 + $0x12] sm:$0xff]
  %v385 = vld [vmem:[%s0 + $0x1a] sm:$0xff]
  %v386 = vld [vmem:[%s0 + $0x22] sm:$0xf]
  %s387 = scalar_lea.vmem %s1, 336
  %v388 = vld [vmem:[%s387] sm:$0xff]
  %v389 = vld [vmem:[%s387 + $0x8] sm:$0xff]
  %v390 = vld [vmem:[%s387 + $0x10] sm:$0xff]
  %v391 = vld [vmem:[%s387 + $0x18] sm:$0xff]
  %v392 = vld [vmem:[%s387 + $0x20] sm:$0xff]
  %v393 = vld [vmem:[%s387 + $0x28] sm:$0xff]
  %v394 = vld [vmem:[%s387 + $0x30] sm:$0xff]
  %v395 = vld [vmem:[%s387 + $0x38] sm:$0xff]
  %v396 = vld [vmem:[%s387 + $0x40] sm:$0xff]
  %v397 = vld [vmem:[%s387 + $0x48] sm:$0xff]
  %v398 = vld [vmem:[%s387 + $0x50] sm:$0xff]
  %v399 = vld [vmem:[%s387 + $0x58] sm:$0xff]
  %v400 = vld [vmem:[%s387 + $0x60] sm:$0xff]
  %v401 = vld [vmem:[%s387 + $0x68] sm:$0xff]
  %v402 = vld [vmem:[%s387 + $0x70] sm:$0xff]
  %v403 = vld [vmem:[%s387 + $0x78] sm:$0xff]
  %v404 = vld [vmem:[%s387 + $0x80] sm:$0xff]
  %v405 = vld [vmem:[%s387 + $0x88] sm:$0xff]
  %v406 = vld [vmem:[%s387 + $0x90] sm:$0x3f]
  %v407 = vld [vmem:[%s387 + $0x98] sm:$0x3f]
  %v408 = vld [vmem:[%s387 + $0xa0] sm:$0x3f]
  %v410 = vsel %vm140, %v382, 0
  %v413 = vsel %vm140, %v383, 0
  %v416 = vsel %vm140, %v384, 0
  %v419 = vsel %vm140, %v385, 0
  %v422 = vsel %vm140, %v386, 0
  %v425 = vsel %vm156, %v406, 0
  %v428 = vsel %vm156, %v407, 0
  %v431 = vsel %vm156, %v408, 0
  %433 = vmatpush.msra.mxu0 0.0
  %434 = vmatpush.msra.mxu0 0.0
  %435 = vmatpush.msra.mxu0 0.0
  %436 = vmatpush.msra.mxu0 0.0
  %437 = vmatpush.msra.mxu0 0.0
  %438 = vmatpush.msra.mxu0 0.0
  %439 = vmatpush.msra.mxu0 0.0
  %440 = vmatpush.msra.mxu0 0.0
  %441 = vmatpush.msra.mxu0 0.0
  %442 = vmatpush.msra.mxu0 %v425
  %443 = vmatpush.msra.mxu0 %v403
  %444 = vmatpush.msra.mxu0 %v400
  %445 = vmatpush.msra.mxu0 %v397
  %446 = vmatpush.msra.mxu0 %v394
  %447 = vmatpush.msra.mxu0 %v391
  %448 = vmatpush.msra.mxu0 %v388
  %449 = vmatmul.f32.gmra.mxu0 %v410
  %v450 = vpop.f32.mrf.mxu0
  %v451 = vadd.f32 0.0, %v450
  %452 = vmatmul.f32.gmra.mxu0 %v413
  %v453 = vpop.f32.mrf.mxu0
  %v454 = vadd.f32 0.0, %v453
  %455 = vmatmul.f32.gmra.mxu0 %v416
  %v456 = vpop.f32.mrf.mxu0
  %v457 = vadd.f32 0.0, %v456
  %458 = vmatmul.f32.gmra.mxu0 %v419
  %v459 = vpop.f32.mrf.mxu0
  %v460 = vadd.f32 0.0, %v459
  %461 = vmatmul.f32.gmra.mxu0 %v422
  %v462 = vpop.f32.mrf.mxu0
  %v463 = vadd.f32 0.0, %v462
  %464 = vdwg.mxu0
  %465 = vmatpush.msra.mxu0 0.0
  %466 = vmatpush.msra.mxu0 0.0
  %467 = vmatpush.msra.mxu0 0.0
  %468 = vmatpush.msra.mxu0 0.0
  %469 = vmatpush.msra.mxu0 0.0
  %470 = vmatpush.msra.mxu0 0.0
  %471 = vmatpush.msra.mxu0 0.0
  %472 = vmatpush.msra.mxu0 0.0
  %473 = vmatpush.msra.mxu0 0.0
  %474 = vmatpush.msra.mxu0 %v428
  %475 = vmatpush.msra.mxu0 %v404
  %476 = vmatpush.msra.mxu0 %v401
  %477 = vmatpush.msra.mxu0 %v398
  %478 = vmatpush.msra.mxu0 %v395
  %479 = vmatpush.msra.mxu0 %v392
  %480 = vmatpush.msra.mxu0 %v389
  %481 = vmatmul.f32.gmra.mxu0 %v410
  %v482 = vpop.f32.mrf.mxu0
  %v483 = vadd.f32 0.0, %v482
  %484 = vmatmul.f32.gmra.mxu0 %v413
  %v485 = vpop.f32.mrf.mxu0
  %v486 = vadd.f32 0.0, %v485
  %487 = vmatmul.f32.gmra.mxu0 %v416
  %v488 = vpop.f32.mrf.mxu0
  %v489 = vadd.f32 0.0, %v488
  %490 = vmatmul.f32.gmra.mxu0 %v419
  %v491 = vpop.f32.mrf.mxu0
  %v492 = vadd.f32 0.0, %v491
  %493 = vmatmul.f32.gmra.mxu0 %v422
  %v494 = vpop.f32.mrf.mxu0
  %v495 = vadd.f32 0.0, %v494
  %496 = vdwg.mxu0
  %497 = vmatpush.msra.mxu0 0.0
  %498 = vmatpush.msra.mxu0 0.0
  %499 = vmatpush.msra.mxu0 0.0
  %500 = vmatpush.msra.mxu0 0.0
  %501 = vmatpush.msra.mxu0 0.0
  %502 = vmatpush.msra.mxu0 0.0
  %503 = vmatpush.msra.mxu0 0.0
  %504 = vmatpush.msra.mxu0 0.0
  %505 = vmatpush.msra.mxu0 0.0
  %506 = vmatpush.msra.mxu0 %v431
  %507 = vmatpush.msra.mxu0 %v405
  %508 = vmatpush.msra.mxu0 %v402
  %509 = vmatpush.msra.mxu0 %v399
  %510 = vmatpush.msra.mxu0 %v396
  %511 = vmatpush.msra.mxu0 %v393
  %512 = vmatpush.msra.mxu0 %v390
  %513 = vmatmul.f32.gmra.mxu0 %v410
  %v514 = vpop.f32.mrf.mxu0
  %v515 = vadd.f32 0.0, %v514
  %516 = vmatmul.f32.gmra.mxu0 %v413
  %v517 = vpop.f32.mrf.mxu0
  %v518 = vadd.f32 0.0, %v517
  %519 = vmatmul.f32.gmra.mxu0 %v416
  %v520 = vpop.f32.mrf.mxu0
  %v521 = vadd.f32 0.0, %v520
  %522 = vmatmul.f32.gmra.mxu0 %v419
  %v523 = vpop.f32.mrf.mxu0
  %v524 = vadd.f32 0.0, %v523
  %525 = vmatmul.f32.gmra.mxu0 %v422
  %v526 = vpop.f32.mrf.mxu0
  %v527 = vadd.f32 0.0, %v526
  %528 = vdwg.mxu0
  %v529 = vadd.f32 %v304, %v451
  %v530 = vadd.f32 %v336, %v483
  %v531 = vadd.f32 %v368, %v515
  %v532 = vadd.f32 %v307, %v454
  %v533 = vadd.f32 %v339, %v486
  %v534 = vadd.f32 %v371, %v518
  %v535 = vadd.f32 %v310, %v457
  %v536 = vadd.f32 %v342, %v489
  %v537 = vadd.f32 %v374, %v521
  %v538 = vadd.f32 %v313, %v460
  %v539 = vadd.f32 %v345, %v492
  %v540 = vadd.f32 %v377, %v524
  %v541 = vadd.f32 %v316, %v463
  %v542 = vadd.f32 %v348, %v495
  %v543 = vadd.f32 %v380, %v527
  %v544 = vld [vmem:[%s2] sm:$0x7]
  %v546 = vperm.slane %v544, 0
  %v547 = vperm.slane %v544, 1
  %v548 = vperm.slane %v544, 2
  %v552 = vadd.f32 %v529, %v546
  %v553 = vadd.f32 %v530, %v547
  %v554 = vadd.f32 %v531, %v548
  %v555 = vadd.f32 %v532, %v546
  %v556 = vadd.f32 %v533, %v547
  %v557 = vadd.f32 %v534, %v548
  %v558 = vadd.f32 %v535, %v546
  %v559 = vadd.f32 %v536, %v547
  %v560 = vadd.f32 %v537, %v548
  %v561 = vadd.f32 %v538, %v546
  %v562 = vadd.f32 %v539, %v547
  %v563 = vadd.f32 %v540, %v548
  %v564 = vadd.f32 %v541, %v546
  %v565 = vadd.f32 %v542, %v547
  %v566 = vadd.f32 %v543, %v548
  %568 = vset.pattern.permute.xlu0 0
  %569 = vperm.xlu0 %568, %v68
  %v570 = vpop.permute.xlu0 %569
  %573 = vset.pattern.permute.xlu0 0
  %574 = vperm.xlu0 %573, %v69
  %v575 = vpop.permute.xlu0 %574
  %578 = vset.pattern.permute.xlu0 0
  %579 = vperm.xlu0 %578, %v70
  %v580 = vpop.permute.xlu0 %579
  %583 = vset.pattern.permute.xlu0 0
  %584 = vperm.xlu0 %583, %v71
  %v585 = vpop.permute.xlu0 %584
  %588 = vset.pattern.permute.xlu0 0
  %589 = vperm.xlu0 %588, %v72
  %v590 = vpop.permute.xlu0 %589
  %v592 = vmul.f32 %v552, %v570
  %v593 = vmul.f32 %v553, %v570
  %v594 = vmul.f32 %v554, %v570
  %v595 = vmul.f32 %v555, %v575
  %v596 = vmul.f32 %v556, %v575
  %v597 = vmul.f32 %v557, %v575
  %v598 = vmul.f32 %v558, %v580
  %v599 = vmul.f32 %v559, %v580
  %v600 = vmul.f32 %v560, %v580
  %v601 = vmul.f32 %v561, %v585
  %v602 = vmul.f32 %v562, %v585
  %v603 = vmul.f32 %v563, %v585
  %v604 = vmul.f32 %v564, %v590
  %v605 = vmul.f32 %v565, %v590
  %v606 = vmul.f32 %v566, %v590
  %vm607 = vcmp.gt.f32.partialorder %v592, 0.0
  %vm608 = vcmp.gt.f32.partialorder %v593, 0.0
  %vm609 = vcmp.gt.f32.partialorder %v594, 0.0
  %vm610 = vcmp.gt.f32.partialorder %v595, 0.0
  %vm611 = vcmp.gt.f32.partialorder %v596, 0.0
  %vm612 = vcmp.gt.f32.partialorder %v597, 0.0
  %vm613 = vcmp.gt.f32.partialorder %v598, 0.0
  %vm614 = vcmp.gt.f32.partialorder %v599, 0.0
  %vm615 = vcmp.gt.f32.partialorder %v600, 0.0
  %vm616 = vcmp.gt.f32.partialorder %v601, 0.0
  %vm617 = vcmp.gt.f32.partialorder %v602, 0.0
  %vm618 = vcmp.gt.f32.partialorder %v603, 0.0
  %vm619 = vcmp.gt.f32.partialorder %v604, 0.0
  %vm620 = vcmp.gt.f32.partialorder %v605, 0.0
  %vm621 = vcmp.gt.f32.partialorder %v606, 0.0
  %v622 = vmul.f32 %v592, 0.2
  %v623 = vmul.f32 %v593, 0.2
  %v624 = vmul.f32 %v594, 0.2
  %v625 = vmul.f32 %v595, 0.2
  %v626 = vmul.f32 %v596, 0.2
  %v627 = vmul.f32 %v597, 0.2
  %v628 = vmul.f32 %v598, 0.2
  %v629 = vmul.f32 %v599, 0.2
  %v630 = vmul.f32 %v600, 0.2
  %v631 = vmul.f32 %v601, 0.2
  %v632 = vmul.f32 %v602, 0.2
  %v633 = vmul.f32 %v603, 0.2
  %v634 = vmul.f32 %v604, 0.2
  %v635 = vmul.f32 %v605, 0.2
  %v636 = vmul.f32 %v606, 0.2
  %v637 = vsel %vm607, %v592, %v622
  %v638 = vsel %vm608, %v593, %v623
  %v639 = vsel %vm609, %v594, %v624
  %v640 = vsel %vm610, %v595, %v625
  %v641 = vsel %vm611, %v596, %v626
  %v642 = vsel %vm612, %v597, %v627
  %v643 = vsel %vm613, %v598, %v628
  %v644 = vsel %vm614, %v599, %v629
  %v645 = vsel %vm615, %v600, %v630
  %v646 = vsel %vm616, %v601, %v631
  %v647 = vsel %vm617, %v602, %v632
  %v648 = vsel %vm618, %v603, %v633
  %v649 = vsel %vm619, %v604, %v634
  %v650 = vsel %vm620, %v605, %v635
  %v651 = vsel %vm621, %v606, %v636
  %vm667 = vcmask 1040384
  %v668 = vrot.slane %v637, 7
  %v669 = vrot.slane %v638, 7
  %v670 = vrot.slane %v639, 7
  %v671 = vrot.slane %v640, 7
  %v672 = vsel %vm667, %v668, %v671
  %v673 = vrot.slane %v641, 7
  %v674 = vsel %vm667, %v669, %v673
  %v675 = vrot.slane %v642, 7
  %v676 = vsel %vm667, %v670, %v675
  %v677 = vrot.slane %v643, 7
  %v678 = vsel %vm667, %v671, %v677
  %v679 = vrot.slane %v644, 7
  %v680 = vsel %vm667, %v673, %v679
  %v681 = vrot.slane %v645, 7
  %v682 = vsel %vm667, %v675, %v681
  %v683 = vrot.slane %v646, 7
  %v684 = vsel %vm667, %v677, %v683
  %v685 = vrot.slane %v647, 7
  %v686 = vsel %vm667, %v679, %v685
  %v687 = vrot.slane %v648, 7
  %v688 = vsel %vm667, %v681, %v687
  %v689 = vrot.slane %v649, 7
  %v690 = vsel %vm667, %v683, %v689
  %v691 = vrot.slane %v650, 7
  %v692 = vsel %vm667, %v685, %v691
  %v693 = vrot.slane %v651, 7
  %v694 = vsel %vm667, %v687, %v693
  %710 = vst [vmem:[#allocation2] sm:$0xfe] %v668
  %711 = vst [vmem:[#allocation2 + $0x8] sm:$0xfe] %v669
  %vm712 = vcmask 261121
  %713 = vst.msk [vmem:[#allocation2 + $0x10] sm:$0xfe] %vm712, %v670
  %714 = vst [vmem:[#allocation2 + $0x28] sm:$0xff] %v672
  %715 = vst [vmem:[#allocation2 + $0x30] sm:$0xff] %v674
  %vm716 = vcmask 261120
  %717 = vst.msk [vmem:[#allocation2 + $0x38] sm:$0xff] %vm716, %v676
  %718 = vst [vmem:[#allocation2 + $0x50] sm:$0xff] %v678
  %719 = vst [vmem:[#allocation2 + $0x58] sm:$0xff] %v680
  %720 = vst.msk [vmem:[#allocation2 + $0x60] sm:$0xff] %vm716, %v682
  %721 = vst [vmem:[#allocation2 + $0x78] sm:$0xff] %v684
  %722 = vst [vmem:[#allocation2 + $0x80] sm:$0xff] %v686
  %723 = vst.msk [vmem:[#allocation2 + $0x88] sm:$0xff] %vm716, %v688
  %724 = vst [vmem:[#allocation2 + $0xa0] sm:$0x1f] %v690
  %725 = vst [vmem:[#allocation2 + $0xa8] sm:$0x1f] %v692
  %vm726 = vcmask 258048
  %727 = vst.msk [vmem:[#allocation2 + $0xb0] sm:$0x1f] %vm726, %v694
  %v728 = vld [vmem:[#allocation2] sm:$0xff]
  %v729 = vld [vmem:[#allocation2 + $0x8] sm:$0xff]
  %v730 = vld [vmem:[#allocation2 + $0x10] sm:$0xff]
  %v731 = vld [vmem:[#allocation2 + $0x28] sm:$0xff]
  %v732 = vld [vmem:[#allocation2 + $0x30] sm:$0xff]
  %v733 = vld [vmem:[#allocation2 + $0x38] sm:$0xff]
  %v734 = vld [vmem:[#allocation2 + $0x50] sm:$0xff]
  %v735 = vld [vmem:[#allocation2 + $0x58] sm:$0xff]
  %v736 = vld [vmem:[#allocation2 + $0x60] sm:$0xff]
  %v737 = vld [vmem:[#allocation2 + $0x78] sm:$0xff]
  %v738 = vld [vmem:[#allocation2 + $0x80] sm:$0xff]
  %v739 = vld [vmem:[#allocation2 + $0x88] sm:$0xff]
  %v740 = vld [vmem:[#allocation2 + $0xa0] sm:$0xf]
  %v741 = vld [vmem:[#allocation2 + $0xa8] sm:$0xf]
  %v742 = vld [vmem:[#allocation2 + $0xb0] sm:$0xf]
  %v743 = vld [vmem:[%s3] sm:$0xff]
  %v744 = vld [vmem:[%s3 + $0x8] sm:$0xff]
  %v745 = vld [vmem:[%s3 + $0x10] sm:$0xff]
  %v746 = vld [vmem:[%s3 + $0x18] sm:$0xff]
  %v747 = vld [vmem:[%s3 + $0x20] sm:$0xff]
  %v748 = vld [vmem:[%s3 + $0x28] sm:$0xff]
  %v749 = vld [vmem:[%s3 + $0x30] sm:$0xff]
  %v750 = vld [vmem:[%s3 + $0x38] sm:$0xff]
  %v751 = vld [vmem:[%s3 + $0x40] sm:$0xff]
  %v752 = vld [vmem:[%s3 + $0x48] sm:$0xff]
  %v753 = vld [vmem:[%s3 + $0x50] sm:$0xff]
  %v754 = vld [vmem:[%s3 + $0x58] sm:$0xff]
  %v755 = vld [vmem:[%s3 + $0x60] sm:$0xff]
  %v756 = vld [vmem:[%s3 + $0x68] sm:$0xff]
  %v757 = vld [vmem:[%s3 + $0x70] sm:$0xff]
  %v758 = vld [vmem:[%s3 + $0x78] sm:$0xff]
  %v759 = vld [vmem:[%s3 + $0x80] sm:$0xff]
  %v760 = vld [vmem:[%s3 + $0x88] sm:$0xff]
  %v761 = vld [vmem:[%s3 + $0x90] sm:$0xff]
  %v762 = vld [vmem:[%s3 + $0x98] sm:$0xff]
  %v763 = vld [vmem:[%s3 + $0xa0] sm:$0xff]
  %v764 = vld [vmem:[%s3 + $0xa8] sm:$0xff]
  %v765 = vld [vmem:[%s3 + $0xb0] sm:$0xff]
  %v766 = vld [vmem:[%s3 + $0xb8] sm:$0xff]
  %v767 = vld [vmem:[%s3 + $0xc0] sm:$0xff]
  %v768 = vld [vmem:[%s3 + $0xc8] sm:$0xff]
  %v769 = vld [vmem:[%s3 + $0xd0] sm:$0xff]
  %v770 = vld [vmem:[%s3 + $0xd8] sm:$0xff]
  %v771 = vld [vmem:[%s3 + $0xe0] sm:$0xff]
  %v772 = vld [vmem:[%s3 + $0xe8] sm:$0xff]
  %v773 = vld [vmem:[%s3 + $0xf0] sm:$0xff]
  %v774 = vld [vmem:[%s3 + $0xf8] sm:$0xff]
  %v775 = vld [vmem:[%s3 + $0x100] sm:$0xff]
  %v776 = vld [vmem:[%s3 + $0x108] sm:$0xff]
  %v777 = vld [vmem:[%s3 + $0x110] sm:$0xff]
  %v778 = vld [vmem:[%s3 + $0x118] sm:$0xff]
  %v779 = vld [vmem:[%s3 + $0x120] sm:$0xff]
  %v780 = vld [vmem:[%s3 + $0x128] sm:$0xff]
  %v781 = vld [vmem:[%s3 + $0x130] sm:$0xff]
  %v782 = vld [vmem:[%s3 + $0x138] sm:$0xff]
  %v783 = vld [vmem:[%s3 + $0x140] sm:$0xff]
  %v784 = vld [vmem:[%s3 + $0x148] sm:$0xff]
  %v785 = vld [vmem:[%s3 + $0x150] sm:$0xff]
  %v786 = vld [vmem:[%s3 + $0x158] sm:$0xff]
  %v787 = vld [vmem:[%s3 + $0x160] sm:$0xff]
  %v788 = vld [vmem:[%s3 + $0x168] sm:$0xff]
  %v789 = vld [vmem:[%s3 + $0x170] sm:$0xff]
  %v790 = vld [vmem:[%s3 + $0x178] sm:$0xff]
  %v791 = vld [vmem:[%s3 + $0x180] sm:$0xff]
  %v792 = vld [vmem:[%s3 + $0x188] sm:$0xff]
  %v793 = vld [vmem:[%s3 + $0x190] sm:$0xff]
  %v794 = vld [vmem:[%s3 + $0x198] sm:$0xff]
  %v795 = vld [vmem:[%s3 + $0x1a0] sm:$0xff]
  %v796 = vld [vmem:[%s3 + $0x1a8] sm:$0xff]
  %v797 = vld [vmem:[%s3 + $0x1b0] sm:$0xff]
  %v798 = vld [vmem:[%s3 + $0x1b8] sm:$0xff]
  %v799 = vld [vmem:[%s3 + $0x1c0] sm:$0xff]
  %v800 = vld [vmem:[%s3 + $0x1c8] sm:$0xff]
  %v801 = vld [vmem:[%s3 + $0x1d0] sm:$0xff]
  %v802 = vld [vmem:[%s3 + $0x1d8] sm:$0xff]
  %v803 = vld [vmem:[%s3 + $0x1e0] sm:$0xff]
  %v804 = vld [vmem:[%s3 + $0x1e8] sm:$0xff]
  %v805 = vld [vmem:[%s3 + $0x1f0] sm:$0xff]
  %v806 = vld [vmem:[%s3 + $0x1f8] sm:$0xff]
  %v807 = vld [vmem:[%s3 + $0x200] sm:$0xff]
  %v808 = vld [vmem:[%s3 + $0x208] sm:$0xff]
  %v809 = vld [vmem:[%s3 + $0x210] sm:$0xff]
  %v810 = vld [vmem:[%s3 + $0x218] sm:$0xff]
  %v811 = vld [vmem:[%s3 + $0x220] sm:$0xff]
  %v812 = vld [vmem:[%s3 + $0x228] sm:$0xff]
  %v813 = vld [vmem:[%s3 + $0x230] sm:$0xff]
  %v814 = vld [vmem:[%s3 + $0x238] sm:$0xff]
  %v815 = vld [vmem:[%s3 + $0x240] sm:$0xff]
  %v816 = vld [vmem:[%s3 + $0x248] sm:$0xff]
  %v817 = vld [vmem:[%s3 + $0x250] sm:$0xff]
  %v818 = vld [vmem:[%s3 + $0x258] sm:$0xff]
  %v819 = vld [vmem:[%s3 + $0x260] sm:$0xff]
  %v820 = vld [vmem:[%s3 + $0x268] sm:$0xff]
  %v821 = vld [vmem:[%s3 + $0x270] sm:$0xff]
  %v822 = vld [vmem:[%s3 + $0x278] sm:$0xff]
  %v823 = vld [vmem:[%s3 + $0x280] sm:$0xff]
  %v824 = vld [vmem:[%s3 + $0x288] sm:$0xff]
  %v825 = vld [vmem:[%s3 + $0x290] sm:$0xff]
  %v826 = vld [vmem:[%s3 + $0x298] sm:$0xff]
  %v827 = vld [vmem:[%s3 + $0x2a0] sm:$0xff]
  %v828 = vld [vmem:[%s3 + $0x2a8] sm:$0xff]
  %v829 = vld [vmem:[%s3 + $0x2b0] sm:$0xff]
  %v830 = vld [vmem:[%s3 + $0x2b8] sm:$0xff]
  %v831 = vld [vmem:[%s3 + $0x2c0] sm:$0xff]
  %v832 = vld [vmem:[%s3 + $0x2c8] sm:$0xff]
  %v833 = vld [vmem:[%s3 + $0x2d0] sm:$0xff]
  %v834 = vld [vmem:[%s3 + $0x2d8] sm:$0xff]
  %v835 = vld [vmem:[%s3 + $0x2e0] sm:$0xff]
  %v836 = vld [vmem:[%s3 + $0x2e8] sm:$0xff]
  %v837 = vld [vmem:[%s3 + $0x2f0] sm:$0xff]
  %v838 = vld [vmem:[%s3 + $0x2f8] sm:$0xff]
  %v839 = vld [vmem:[%s3 + $0x300] sm:$0xff]
  %v840 = vld [vmem:[%s3 + $0x308] sm:$0xff]
  %v841 = vld [vmem:[%s3 + $0x310] sm:$0xff]
  %v842 = vld [vmem:[%s3 + $0x318] sm:$0xff]
  %v843 = vld [vmem:[%s3 + $0x320] sm:$0xff]
  %v844 = vld [vmem:[%s3 + $0x328] sm:$0xff]
  %v845 = vld [vmem:[%s3 + $0x330] sm:$0xff]
  %v846 = vld [vmem:[%s3 + $0x338] sm:$0xff]
  %v847 = vld [vmem:[%s3 + $0x340] sm:$0xff]
  %v848 = vld [vmem:[%s3 + $0x348] sm:$0xff]
  %v849 = vld [vmem:[%s3 + $0x350] sm:$0xff]
  %v850 = vld [vmem:[%s3 + $0x358] sm:$0xff]
  %v851 = vld [vmem:[%s3 + $0x360] sm:$0xff]
  %v852 = vld [vmem:[%s3 + $0x368] sm:$0xff]
  %v853 = vld [vmem:[%s3 + $0x370] sm:$0xff]
  %v854 = vld [vmem:[%s3 + $0x378] sm:$0xff]
  %v855 = vld [vmem:[%s3 + $0x380] sm:$0xff]
  %v856 = vld [vmem:[%s3 + $0x388] sm:$0xff]
  %v857 = vld [vmem:[%s3 + $0x390] sm:$0xff]
  %v858 = vld [vmem:[%s3 + $0x398] sm:$0xff]
  %v859 = vld [vmem:[%s3 + $0x3a0] sm:$0xff]
  %v860 = vld [vmem:[%s3 + $0x3a8] sm:$0xff]
  %v861 = vld [vmem:[%s3 + $0x3b0] sm:$0xff]
  %v862 = vld [vmem:[%s3 + $0x3b8] sm:$0xff]
  %v863 = vld [vmem:[%s3 + $0x3c0] sm:$0xff]
  %v864 = vld [vmem:[%s3 + $0x3c8] sm:$0xff]
  %v865 = vld [vmem:[%s3 + $0x3d0] sm:$0xff]
  %v866 = vld [vmem:[%s3 + $0x3d8] sm:$0xff]
  %v867 = vld [vmem:[%s3 + $0x3e0] sm:$0xff]
  %v868 = vld [vmem:[%s3 + $0x3e8] sm:$0xff]
  %v869 = vld [vmem:[%s3 + $0x3f0] sm:$0xff]
  %v870 = vld [vmem:[%s3 + $0x3f8] sm:$0xff]
  %v871 = vld [vmem:[%s3 + $0x400] sm:$0xff]
  %v872 = vld [vmem:[%s3 + $0x408] sm:$0xff]
  %v873 = vld [vmem:[%s3 + $0x410] sm:$0xff]
  %v874 = vld [vmem:[%s3 + $0x418] sm:$0xff]
  %v875 = vld [vmem:[%s3 + $0x420] sm:$0xff]
  %v876 = vld [vmem:[%s3 + $0x428] sm:$0xff]
  %v877 = vld [vmem:[%s3 + $0x430] sm:$0xff]
  %v878 = vld [vmem:[%s3 + $0x438] sm:$0xff]
  %v879 = vld [vmem:[%s3 + $0x440] sm:$0xff]
  %v880 = vld [vmem:[%s3 + $0x448] sm:$0xff]
  %v881 = vld [vmem:[%s3 + $0x450] sm:$0xff]
  %v882 = vld [vmem:[%s3 + $0x458] sm:$0xff]
  %v883 = vld [vmem:[%s3 + $0x460] sm:$0xff]
  %v884 = vld [vmem:[%s3 + $0x468] sm:$0xff]
  %v885 = vld [vmem:[%s3 + $0x470] sm:$0xff]
  %v886 = vld [vmem:[%s3 + $0x478] sm:$0xff]
  %v887 = vld [vmem:[%s3 + $0x480] sm:$0xff]
  %v888 = vld [vmem:[%s3 + $0x488] sm:$0xff]
  %v889 = vld [vmem:[%s3 + $0x490] sm:$0xff]
  %v890 = vld [vmem:[%s3 + $0x498] sm:$0xff]
  %v891 = vld [vmem:[%s3 + $0x4a0] sm:$0xff]
  %v892 = vld [vmem:[%s3 + $0x4a8] sm:$0xff]
  %v893 = vld [vmem:[%s3 + $0x4b0] sm:$0xff]
  %v894 = vld [vmem:[%s3 + $0x4b8] sm:$0xff]
  %v895 = vld [vmem:[%s3 + $0x4c0] sm:$0xff]
  %v896 = vld [vmem:[%s3 + $0x4c8] sm:$0xff]
  %v897 = vld [vmem:[%s3 + $0x4d0] sm:$0xff]
  %v898 = vld [vmem:[%s3 + $0x4d8] sm:$0xff]
  %v899 = vld [vmem:[%s3 + $0x4e0] sm:$0xff]
  %v900 = vld [vmem:[%s3 + $0x4e8] sm:$0xff]
  %v901 = vld [vmem:[%s3 + $0x4f0] sm:$0xff]
  %v902 = vld [vmem:[%s3 + $0x4f8] sm:$0xff]
  %v903 = vld [vmem:[%s3 + $0x500] sm:$0xff]
  %v904 = vld [vmem:[%s3 + $0x508] sm:$0xff]
  %v905 = vld [vmem:[%s3 + $0x510] sm:$0xff]
  %v906 = vld [vmem:[%s3 + $0x518] sm:$0xff]
  %v907 = vld [vmem:[%s3 + $0x520] sm:$0xff]
  %v908 = vld [vmem:[%s3 + $0x528] sm:$0xff]
  %v909 = vld [vmem:[%s3 + $0x530] sm:$0xff]
  %v910 = vld [vmem:[%s3 + $0x538] sm:$0xff]
  %v911 = vld [vmem:[%s3 + $0x540] sm:$0xff]
  %v912 = vld [vmem:[%s3 + $0x548] sm:$0xff]
  %v913 = vld [vmem:[%s3 + $0x550] sm:$0xff]
  %v914 = vld [vmem:[%s3 + $0x558] sm:$0xff]
  %v915 = vld [vmem:[%s3 + $0x560] sm:$0xff]
  %v916 = vld [vmem:[%s3 + $0x568] sm:$0xff]
  %v917 = vld [vmem:[%s3 + $0x570] sm:$0xff]
  %v918 = vld [vmem:[%s3 + $0x578] sm:$0xff]
  %v919 = vld [vmem:[%s3 + $0x580] sm:$0xff]
  %v920 = vld [vmem:[%s3 + $0x588] sm:$0xff]
  %v921 = vld [vmem:[%s3 + $0x590] sm:$0xff]
  %v922 = vld [vmem:[%s3 + $0x598] sm:$0xff]
  %v923 = vld [vmem:[#allocation2] sm:$0xfe]
  %v924 = vld [vmem:[#allocation2 + $0x8] sm:$0xfe]
  %v925 = vld [vmem:[#allocation2 + $0x10] sm:$0xfe]
  %v926 = vld [vmem:[#allocation2 + $0xa0] sm:$0x1f]
  %v927 = vld [vmem:[#allocation2 + $0xa8] sm:$0x1f]
  %v928 = vld [vmem:[#allocation2 + $0xb0] sm:$0x1f]
  %s929 = scalar_lea.vmem %s3, 1440
  %v930 = vld [vmem:[%s929] sm:$0xff]
  %v931 = vld [vmem:[%s929 + $0x8] sm:$0xff]
  %v932 = vld [vmem:[%s929 + $0x10] sm:$0xff]
  %v933 = vld [vmem:[%s929 + $0x18] sm:$0xff]
  %v934 = vld [vmem:[%s929 + $0x20] sm:$0xff]
  %v935 = vld [vmem:[%s929 + $0x28] sm:$0xff]
  %v936 = vld [vmem:[%s929 + $0x30] sm:$0xff]
  %v937 = vld [vmem:[%s929 + $0x38] sm:$0xff]
  %v938 = vld [vmem:[%s929 + $0x40] sm:$0xff]
  %v939 = vld [vmem:[%s929 + $0x48] sm:$0xff]
  %v940 = vld [vmem:[%s929 + $0x50] sm:$0xff]
  %v941 = vld [vmem:[%s929 + $0x58] sm:$0xff]
  %v942 = vld [vmem:[%s929 + $0x60] sm:$0xff]
  %v943 = vld [vmem:[%s929 + $0x68] sm:$0xff]
  %v944 = vld [vmem:[%s929 + $0x70] sm:$0xff]
  %v945 = vld [vmem:[%s929 + $0x78] sm:$0xff]
  %v946 = vld [vmem:[%s929 + $0x80] sm:$0xff]
  %v947 = vld [vmem:[%s929 + $0x88] sm:$0xff]
  %v948 = vld [vmem:[%s929 + $0x90] sm:$0xff]
  %v949 = vld [vmem:[%s929 + $0x98] sm:$0xff]
  %v950 = vld [vmem:[%s929 + $0xa0] sm:$0xff]
  %v951 = vld [vmem:[%s929 + $0xa8] sm:$0xff]
  %v952 = vld [vmem:[%s929 + $0xb0] sm:$0xff]
  %v953 = vld [vmem:[%s929 + $0xb8] sm:$0xff]
  %v954 = vld [vmem:[%s929 + $0xc0] sm:$0xff]
  %v955 = vld [vmem:[%s929 + $0xc8] sm:$0xff]
  %v956 = vld [vmem:[%s929 + $0xd0] sm:$0xff]
  %v957 = vld [vmem:[%s929 + $0xd8] sm:$0xff]
  %v958 = vld [vmem:[%s929 + $0xe0] sm:$0xff]
  %v959 = vld [vmem:[%s929 + $0xe8] sm:$0xff]
  %v960 = vld [vmem:[%s929 + $0xf0] sm:$0xff]
  %v961 = vld [vmem:[%s929 + $0xf8] sm:$0xff]
  %v962 = vld [vmem:[%s929 + $0x100] sm:$0xff]
  %v963 = vld [vmem:[%s929 + $0x108] sm:$0xff]
  %v964 = vld [vmem:[%s929 + $0x110] sm:$0xff]
  %v965 = vld [vmem:[%s929 + $0x118] sm:$0xff]
  %v966 = vld [vmem:[%s929 + $0x120] sm:$0xff]
  %v967 = vld [vmem:[%s929 + $0x128] sm:$0xff]
  %v968 = vld [vmem:[%s929 + $0x130] sm:$0xff]
  %v969 = vld [vmem:[%s929 + $0x138] sm:$0xff]
  %v970 = vld [vmem:[%s929 + $0x140] sm:$0xff]
  %v971 = vld [vmem:[%s929 + $0x148] sm:$0xff]
  %v972 = vld [vmem:[%s929 + $0x150] sm:$0xff]
  %v973 = vld [vmem:[%s929 + $0x158] sm:$0xff]
  %v974 = vld [vmem:[%s929 + $0x160] sm:$0xff]
  %v975 = vld [vmem:[%s929 + $0x168] sm:$0xff]
  %v976 = vld [vmem:[%s929 + $0x170] sm:$0xff]
  %v977 = vld [vmem:[%s929 + $0x178] sm:$0xff]
  %v978 = vld [vmem:[%s929 + $0x180] sm:$0xff]
  %v979 = vld [vmem:[%s929 + $0x188] sm:$0xff]
  %v980 = vld [vmem:[%s929 + $0x190] sm:$0xff]
  %v981 = vld [vmem:[%s929 + $0x198] sm:$0xff]
  %v982 = vld [vmem:[%s929 + $0x1a0] sm:$0xff]
  %v983 = vld [vmem:[%s929 + $0x1a8] sm:$0xff]
  %v984 = vld [vmem:[%s929 + $0x1b0] sm:$0xff]
  %v985 = vld [vmem:[%s929 + $0x1b8] sm:$0xff]
  %v986 = vld [vmem:[%s929 + $0x1c0] sm:$0xff]
  %v987 = vld [vmem:[%s929 + $0x1c8] sm:$0xff]
  %v988 = vld [vmem:[%s929 + $0x1d0] sm:$0xff]
  %v989 = vld [vmem:[%s929 + $0x1d8] sm:$0xff]
  %v990 = vld [vmem:[%s929 + $0x1e0] sm:$0xff]
  %v991 = vld [vmem:[%s929 + $0x1e8] sm:$0xff]
  %v992 = vld [vmem:[%s929 + $0x1f0] sm:$0xff]
  %v993 = vld [vmem:[%s929 + $0x1f8] sm:$0xff]
  %v994 = vld [vmem:[%s929 + $0x200] sm:$0xff]
  %v995 = vld [vmem:[%s929 + $0x208] sm:$0xff]
  %v996 = vld [vmem:[%s929 + $0x210] sm:$0xff]
  %v997 = vld [vmem:[%s929 + $0x218] sm:$0xff]
  %v998 = vld [vmem:[%s929 + $0x220] sm:$0xff]
  %v999 = vld [vmem:[%s929 + $0x228] sm:$0xff]
  %v1000 = vld [vmem:[%s929 + $0x230] sm:$0xff]
  %v1001 = vld [vmem:[%s929 + $0x238] sm:$0xff]
  %v1002 = vld [vmem:[%s929 + $0x240] sm:$0xff]
  %v1003 = vld [vmem:[%s929 + $0x248] sm:$0xff]
  %v1004 = vld [vmem:[%s929 + $0x250] sm:$0xff]
  %v1005 = vld [vmem:[%s929 + $0x258] sm:$0xff]
  %v1006 = vld [vmem:[%s929 + $0x260] sm:$0xff]
  %v1007 = vld [vmem:[%s929 + $0x268] sm:$0xff]
  %v1008 = vld [vmem:[%s929 + $0x270] sm:$0xff]
  %v1009 = vld [vmem:[%s929 + $0x278] sm:$0xff]
  %v1010 = vld [vmem:[%s929 + $0x280] sm:$0xff]
  %v1011 = vld [vmem:[%s929 + $0x288] sm:$0xff]
  %v1012 = vld [vmem:[%s929 + $0x290] sm:$0xff]
  %v1013 = vld [vmem:[%s929 + $0x298] sm:$0xff]
  %v1014 = vld [vmem:[%s929 + $0x2a0] sm:$0xff]
  %v1015 = vld [vmem:[%s929 + $0x2a8] sm:$0xff]
  %v1016 = vld [vmem:[%s929 + $0x2b0] sm:$0xff]
  %v1017 = vld [vmem:[%s929 + $0x2b8] sm:$0xff]
  %v1018 = vld [vmem:[%s929 + $0x2c0] sm:$0xff]
  %v1019 = vld [vmem:[%s929 + $0x2c8] sm:$0xff]
  %v1020 = vld [vmem:[%s929 + $0x2d0] sm:$0xff]
  %v1021 = vld [vmem:[%s929 + $0x2d8] sm:$0xff]
  %v1022 = vld [vmem:[%s929 + $0x2e0] sm:$0xff]
  %v1023 = vld [vmem:[%s929 + $0x2e8] sm:$0xff]
  %v1024 = vld [vmem:[%s929 + $0x2f0] sm:$0xff]
  %v1025 = vld [vmem:[%s929 + $0x2f8] sm:$0xff]
  %v1026 = vld [vmem:[%s929 + $0x300] sm:$0xff]
  %v1027 = vld [vmem:[%s929 + $0x308] sm:$0xff]
  %v1028 = vld [vmem:[%s929 + $0x310] sm:$0xff]
  %v1029 = vld [vmem:[%s929 + $0x318] sm:$0xff]
  %v1030 = vld [vmem:[%s929 + $0x320] sm:$0xff]
  %v1031 = vld [vmem:[%s929 + $0x328] sm:$0xff]
  %v1032 = vld [vmem:[%s929 + $0x330] sm:$0xff]
  %v1033 = vld [vmem:[%s929 + $0x338] sm:$0xff]
  %v1034 = vld [vmem:[%s929 + $0x340] sm:$0xff]
  %v1035 = vld [vmem:[%s929 + $0x348] sm:$0xff]
  %v1036 = vld [vmem:[%s929 + $0x350] sm:$0xff]
  %v1037 = vld [vmem:[%s929 + $0x358] sm:$0xff]
  %v1038 = vld [vmem:[%s929 + $0x360] sm:$0xff]
  %v1039 = vld [vmem:[%s929 + $0x368] sm:$0xff]
  %v1040 = vld [vmem:[%s929 + $0x370] sm:$0xff]
  %v1041 = vld [vmem:[%s929 + $0x378] sm:$0xff]
  %v1042 = vld [vmem:[%s929 + $0x380] sm:$0xff]
  %v1043 = vld [vmem:[%s929 + $0x388] sm:$0xff]
  %v1044 = vld [vmem:[%s929 + $0x390] sm:$0xff]
  %v1045 = vld [vmem:[%s929 + $0x398] sm:$0xff]
  %v1046 = vld [vmem:[%s929 + $0x3a0] sm:$0xff]
  %v1047 = vld [vmem:[%s929 + $0x3a8] sm:$0xff]
  %v1048 = vld [vmem:[%s929 + $0x3b0] sm:$0xff]
  %v1049 = vld [vmem:[%s929 + $0x3b8] sm:$0xff]
  %v1050 = vld [vmem:[%s929 + $0x3c0] sm:$0xff]
  %v1051 = vld [vmem:[%s929 + $0x3c8] sm:$0xff]
  %v1052 = vld [vmem:[%s929 + $0x3d0] sm:$0xff]
  %v1053 = vld [vmem:[%s929 + $0x3d8] sm:$0xff]
  %v1054 = vld [vmem:[%s929 + $0x3e0] sm:$0xff]
  %v1055 = vld [vmem:[%s929 + $0x3e8] sm:$0xff]
  %v1056 = vld [vmem:[%s929 + $0x3f0] sm:$0xff]
  %v1057 = vld [vmem:[%s929 + $0x3f8] sm:$0xff]
  %v1058 = vld [vmem:[%s929 + $0x400] sm:$0xff]
  %v1059 = vld [vmem:[%s929 + $0x408] sm:$0xff]
  %v1060 = vld [vmem:[%s929 + $0x410] sm:$0xff]
  %v1061 = vld [vmem:[%s929 + $0x418] sm:$0xff]
  %v1062 = vld [vmem:[%s929 + $0x420] sm:$0xff]
  %v1063 = vld [vmem:[%s929 + $0x428] sm:$0xff]
  %v1064 = vld [vmem:[%s929 + $0x430] sm:$0xff]
  %v1065 = vld [vmem:[%s929 + $0x438] sm:$0xff]
  %v1066 = vld [vmem:[%s929 + $0x440] sm:$0xff]
  %v1067 = vld [vmem:[%s929 + $0x448] sm:$0xff]
  %v1068 = vld [vmem:[%s929 + $0x450] sm:$0xff]
  %v1069 = vld [vmem:[%s929 + $0x458] sm:$0xff]
  %v1070 = vld [vmem:[%s929 + $0x460] sm:$0xff]
  %v1071 = vld [vmem:[%s929 + $0x468] sm:$0xff]
  %v1072 = vld [vmem:[%s929 + $0x470] sm:$0xff]
  %v1073 = vld [vmem:[%s929 + $0x478] sm:$0xff]
  %v1074 = vld [vmem:[%s929 + $0x480] sm:$0xff]
  %v1075 = vld [vmem:[%s929 + $0x488] sm:$0xff]
  %v1076 = vld [vmem:[%s929 + $0x490] sm:$0xff]
  %v1077 = vld [vmem:[%s929 + $0x498] sm:$0xff]
  %v1078 = vld [vmem:[%s929 + $0x4a0] sm:$0xff]
  %v1079 = vld [vmem:[%s929 + $0x4a8] sm:$0xff]
  %v1080 = vld [vmem:[%s929 + $0x4b0] sm:$0xff]
  %v1081 = vld [vmem:[%s929 + $0x4b8] sm:$0xff]
  %v1082 = vld [vmem:[%s929 + $0x4c0] sm:$0xff]
  %v1083 = vld [vmem:[%s929 + $0x4c8] sm:$0xff]
  %v1084 = vld [vmem:[%s929 + $0x4d0] sm:$0xff]
  %v1085 = vld [vmem:[%s929 + $0x4d8] sm:$0xff]
  %v1086 = vld [vmem:[%s929 + $0x4e0] sm:$0xff]
  %v1087 = vld [vmem:[%s929 + $0x4e8] sm:$0xff]
  %v1088 = vld [vmem:[%s929 + $0x4f0] sm:$0xff]
  %v1089 = vld [vmem:[%s929 + $0x4f8] sm:$0xff]
  %v1090 = vld [vmem:[%s929 + $0x500] sm:$0xff]
  %v1091 = vld [vmem:[%s929 + $0x508] sm:$0xff]
  %v1092 = vld [vmem:[%s929 + $0x510] sm:$0xff]
  %v1093 = vld [vmem:[%s929 + $0x518] sm:$0xff]
  %v1094 = vld [vmem:[%s929 + $0x520] sm:$0xff]
  %v1095 = vld [vmem:[%s929 + $0x528] sm:$0xff]
  %v1096 = vld [vmem:[%s929 + $0x530] sm:$0xff]
  %v1097 = vld [vmem:[%s929 + $0x538] sm:$0xff]
  %v1098 = vld [vmem:[%s929 + $0x540] sm:$0xff]
  %v1099 = vld [vmem:[%s929 + $0x548] sm:$0xff]
  %v1100 = vld [vmem:[%s929 + $0x550] sm:$0xff]
  %v1101 = vld [vmem:[%s929 + $0x558] sm:$0xff]
  %v1102 = vld [vmem:[%s929 + $0x560] sm:$0xff]
  %v1103 = vld [vmem:[%s929 + $0x568] sm:$0xff]
  %v1104 = vld [vmem:[%s929 + $0x570] sm:$0xff]
  %v1105 = vld [vmem:[%s929 + $0x578] sm:$0xff]
  %v1106 = vld [vmem:[%s929 + $0x580] sm:$0xff]
  %v1107 = vld [vmem:[%s929 + $0x588] sm:$0xff]
  %v1108 = vld [vmem:[%s929 + $0x590] sm:$0xff]
  %v1109 = vld [vmem:[%s929 + $0x598] sm:$0xff]
  %vm1125 = vcmask 1046528
  %v1126 = vrot.slane %v923, 1
  %v1127 = vrot.slane %v731, 1
  %v1128 = vsel %vm1125, %v1126, %v1127
  %v1129 = vrot.slane %v924, 1
  %v1130 = vrot.slane %v732, 1
  %v1131 = vsel %vm1125, %v1129, %v1130
  %v1132 = vrot.slane %v925, 1
  %v1133 = vrot.slane %v733, 1
  %v1134 = vsel %vm1125, %v1132, %v1133
  %v1135 = vrot.slane %v734, 1
  %v1136 = vsel %vm1125, %v1127, %v1135
  %v1137 = vrot.slane %v735, 1
  %v1138 = vsel %vm1125, %v1130, %v1137
  %v1139 = vrot.slane %v736, 1
  %v1140 = vsel %vm1125, %v1133, %v1139
  %v1141 = vrot.slane %v737, 1
  %v1142 = vsel %vm1125, %v1135, %v1141
  %v1143 = vrot.slane %v738, 1
  %v1144 = vsel %vm1125, %v1137, %v1143
  %v1145 = vrot.slane %v739, 1
  %v1146 = vsel %vm1125, %v1139, %v1145
  %v1147 = vrot.slane %v926, 1
  %v1148 = vsel %vm1125, %v1141, %v1147
  %v1149 = vrot.slane %v927, 1
  %v1150 = vsel %vm1125, %v1143, %v1149
  %v1151 = vrot.slane %v928, 1
  %v1152 = vsel %vm1125, %v1145, %v1151
  %v1163 = vsel %vm716, %v1134, 0
  %v1165 = vsel %vm716, %v1140, 0
  %v1167 = vsel %vm716, %v1146, 0
  %v1169 = vsel %vm716, %v1152, 0
  %v1171 = vsel %vm716, %v1151, 0
  %1173 = vmatpush.msra.mxu0 %v1005
  %1174 = vmatpush.msra.mxu0 %v1000
  %1175 = vmatpush.msra.mxu0 %v995
  %1176 = vmatpush.msra.mxu0 %v990
  %1177 = vmatpush.msra.mxu0 %v985
  %1178 = vmatpush.msra.mxu0 %v980
  %1179 = vmatpush.msra.mxu0 %v975
  %1180 = vmatpush.msra.mxu0 %v970
  %1181 = vmatpush.msra.mxu0 %v965
  %1182 = vmatpush.msra.mxu0 %v960
  %1183 = vmatpush.msra.mxu0 %v955
  %1184 = vmatpush.msra.mxu0 %v950
  %1185 = vmatpush.msra.mxu0 %v945
  %1186 = vmatpush.msra.mxu0 %v940
  %1187 = vmatpush.msra.mxu0 %v935
  %1188 = vmatpush.msra.mxu0 %v930
  %1189 = vmatmul.f32.gmra.mxu0 %v1128
  %v1190 = vpop.f32.mrf.mxu0
  %v1191 = vadd.f32 0.0, %v1190
  %1192 = vmatmul.f32.gmra.mxu0 %v1136
  %v1193 = vpop.f32.mrf.mxu0
  %v1194 = vadd.f32 0.0, %v1193
  %1195 = vmatmul.f32.gmra.mxu0 %v1142
  %v1196 = vpop.f32.mrf.mxu0
  %v1197 = vadd.f32 0.0, %v1196
  %1198 = vmatmul.f32.gmra.mxu0 %v1148
  %v1199 = vpop.f32.mrf.mxu0
  %v1200 = vadd.f32 0.0, %v1199
  %1201 = vmatmul.f32.gmra.mxu0 %v1147
  %v1202 = vpop.f32.mrf.mxu0
  %v1203 = vadd.f32 0.0, %v1202
  %1204 = vdwg.mxu0
  %1205 = vmatpush.msra.mxu0 %v1085
  %1206 = vmatpush.msra.mxu0 %v1080
  %1207 = vmatpush.msra.mxu0 %v1075
  %1208 = vmatpush.msra.mxu0 %v1070
  %1209 = vmatpush.msra.mxu0 %v1065
  %1210 = vmatpush.msra.mxu0 %v1060
  %1211 = vmatpush.msra.mxu0 %v1055
  %1212 = vmatpush.msra.mxu0 %v1050
  %1213 = vmatpush.msra.mxu0 %v1045
  %1214 = vmatpush.msra.mxu0 %v1040
  %1215 = vmatpush.msra.mxu0 %v1035
  %1216 = vmatpush.msra.mxu0 %v1030
  %1217 = vmatpush.msra.mxu0 %v1025
  %1218 = vmatpush.msra.mxu0 %v1020
  %1219 = vmatpush.msra.mxu0 %v1015
  %1220 = vmatpush.msra.mxu0 %v1010
  %1221 = vmatmul.f32.gmra.mxu0 %v1131
  %v1222 = vpop.f32.mrf.mxu0
  %v1223 = vadd.f32 %v1191, %v1222
  %1224 = vmatmul.f32.gmra.mxu0 %v1138
  %v1225 = vpop.f32.mrf.mxu0
  %v1226 = vadd.f32 %v1194, %v1225
  %1227 = vmatmul.f32.gmra.mxu0 %v1144
  %v1228 = vpop.f32.mrf.mxu0
  %v1229 = vadd.f32 %v1197, %v1228
  %1230 = vmatmul.f32.gmra.mxu0 %v1150
  %v1231 = vpop.f32.mrf.mxu0
  %v1232 = vadd.f32 %v1200, %v1231
  %1233 = vmatmul.f32.gmra.mxu0 %v1149
  %v1234 = vpop.f32.mrf.mxu0
  %v1235 = vadd.f32 %v1203, %v1234
  %1236 = vdwg.mxu0
  %1237 = vmatpush.msra.mxu0 0.0
  %1238 = vmatpush.msra.mxu0 0.0
  %1239 = vmatpush.msra.mxu0 0.0
  %1240 = vmatpush.msra.mxu0 0.0
  %1241 = vmatpush.msra.mxu0 0.0
  %1242 = vmatpush.msra.mxu0 0.0
  %1243 = vmatpush.msra.mxu0 0.0
  %1244 = vmatpush.msra.mxu0 0.0
  %1245 = vmatpush.msra.mxu0 0.0
  %1246 = vmatpush.msra.mxu0 0.0
  %1247 = vmatpush.msra.mxu0 0.0
  %1248 = vmatpush.msra.mxu0 0.0
  %1249 = vmatpush.msra.mxu0 %v1105
  %1250 = vmatpush.msra.mxu0 %v1100
  %1251 = vmatpush.msra.mxu0 %v1095
  %1252 = vmatpush.msra.mxu0 %v1090
  %1253 = vmatmul.f32.gmra.mxu0 %v1163
  %v1254 = vpop.f32.mrf.mxu0
  %v1255 = vadd.f32 %v1223, %v1254
  %1256 = vmatmul.f32.gmra.mxu0 %v1165
  %v1257 = vpop.f32.mrf.mxu0
  %v1258 = vadd.f32 %v1226, %v1257
  %1259 = vmatmul.f32.gmra.mxu0 %v1167
  %v1260 = vpop.f32.mrf.mxu0
  %v1261 = vadd.f32 %v1229, %v1260
  %1262 = vmatmul.f32.gmra.mxu0 %v1169
  %v1263 = vpop.f32.mrf.mxu0
  %v1264 = vadd.f32 %v1232, %v1263
  %1265 = vmatmul.f32.gmra.mxu0 %v1171
  %v1266 = vpop.f32.mrf.mxu0
  %v1267 = vadd.f32 %v1235, %v1266
  %1268 = vdwg.mxu0
  %1269 = vmatpush.msra.mxu0 %v1006
  %1270 = vmatpush.msra.mxu0 %v1001
  %1271 = vmatpush.msra.mxu0 %v996
  %1272 = vmatpush.msra.mxu0 %v991
  %1273 = vmatpush.msra.mxu0 %v986
  %1274 = vmatpush.msra.mxu0 %v981
  %1275 = vmatpush.msra.mxu0 %v976
  %1276 = vmatpush.msra.mxu0 %v971
  %1277 = vmatpush.msra.mxu0 %v966
  %1278 = vmatpush.msra.mxu0 %v961
  %1279 = vmatpush.msra.mxu0 %v956
  %1280 = vmatpush.msra.mxu0 %v951
  %1281 = vmatpush.msra.mxu0 %v946
  %1282 = vmatpush.msra.mxu0 %v941
  %1283 = vmatpush.msra.mxu0 %v936
  %1284 = vmatpush.msra.mxu0 %v931
  %1285 = vmatmul.f32.gmra.mxu0 %v1128
  %v1286 = vpop.f32.mrf.mxu0
  %v1287 = vadd.f32 0.0, %v1286
  %1288 = vmatmul.f32.gmra.mxu0 %v1136
  %v1289 = vpop.f32.mrf.mxu0
  %v1290 = vadd.f32 0.0, %v1289
  %1291 = vmatmul.f32.gmra.mxu0 %v1142
  %v1292 = vpop.f32.mrf.mxu0
  %v1293 = vadd.f32 0.0, %v1292
  %1294 = vmatmul.f32.gmra.mxu0 %v1148
  %v1295 = vpop.f32.mrf.mxu0
  %v1296 = vadd.f32 0.0, %v1295
  %1297 = vmatmul.f32.gmra.mxu0 %v1147
  %v1298 = vpop.f32.mrf.mxu0
  %v1299 = vadd.f32 0.0, %v1298
  %1300 = vdwg.mxu0
  %1301 = vmatpush.msra.mxu0 %v1086
  %1302 = vmatpush.msra.mxu0 %v1081
  %1303 = vmatpush.msra.mxu0 %v1076
  %1304 = vmatpush.msra.mxu0 %v1071
  %1305 = vmatpush.msra.mxu0 %v1066
  %1306 = vmatpush.msra.mxu0 %v1061
  %1307 = vmatpush.msra.mxu0 %v1056
  %1308 = vmatpush.msra.mxu0 %v1051
  %1309 = vmatpush.msra.mxu0 %v1046
  %1310 = vmatpush.msra.mxu0 %v1041
  %1311 = vmatpush.msra.mxu0 %v1036
  %1312 = vmatpush.msra.mxu0 %v1031
  %1313 = vmatpush.msra.mxu0 %v1026
  %1314 = vmatpush.msra.mxu0 %v1021
  %1315 = vmatpush.msra.mxu0 %v1016
  %1316 = vmatpush.msra.mxu0 %v1011
  %1317 = vmatmul.f32.gmra.mxu0 %v1131
  %v1318 = vpop.f32.mrf.mxu0
  %v1319 = vadd.f32 %v1287, %v1318
  %1320 = vmatmul.f32.gmra.mxu0 %v1138
  %v1321 = vpop.f32.mrf.mxu0
  %v1322 = vadd.f32 %v1290, %v1321
  %1323 = vmatmul.f32.gmra.mxu0 %v1144
  %v1324 = vpop.f32.mrf.mxu0
  %v1325 = vadd.f32 %v1293, %v1324
  %1326 = vmatmul.f32.gmra.mxu0 %v1150
  %v1327 = vpop.f32.mrf.mxu0
  %v1328 = vadd.f32 %v1296, %v1327
  %1329 = vmatmul.f32.gmra.mxu0 %v1149
  %v1330 = vpop.f32.mrf.mxu0
  %v1331 = vadd.f32 %v1299, %v1330
  %1332 = vdwg.mxu0
  %1333 = vmatpush.msra.mxu0 0.0
  %1334 = vmatpush.msra.mxu0 0.0
  %1335 = vmatpush.msra.mxu0 0.0
  %1336 = vmatpush.msra.mxu0 0.0
  %1337 = vmatpush.msra.mxu0 0.0
  %1338 = vmatpush.msra.mxu0 0.0
  %1339 = vmatpush.msra.mxu0 0.0
  %1340 = vmatpush.msra.mxu0 0.0
  %1341 = vmatpush.msra.mxu0 0.0
  %1342 = vmatpush.msra.mxu0 0.0
  %1343 = vmatpush.msra.mxu0 0.0
  %1344 = vmatpush.msra.mxu0 0.0
  %1345 = vmatpush.msra.mxu0 %v1106
  %1346 = vmatpush.msra.mxu0 %v1101
  %1347 = vmatpush.msra.mxu0 %v1096
  %1348 = vmatpush.msra.mxu0 %v1091
  %1349 = vmatmul.f32.gmra.mxu0 %v1163
  %v1350 = vpop.f32.mrf.mxu0
  %v1351 = vadd.f32 %v1319, %v1350
  %1352 = vmatmul.f32.gmra.mxu0 %v1165
  %v1353 = vpop.f32.mrf.mxu0
  %v1354 = vadd.f32 %v1322, %v1353
  %1355 = vmatmul.f32.gmra.mxu0 %v1167
  %v1356 = vpop.f32.mrf.mxu0
  %v1357 = vadd.f32 %v1325, %v1356
  %1358 = vmatmul.f32.gmra.mxu0 %v1169
  %v1359 = vpop.f32.mrf.mxu0
  %v1360 = vadd.f32 %v1328, %v1359
  %1361 = vmatmul.f32.gmra.mxu0 %v1171
  %v1362 = vpop.f32.mrf.mxu0
  %v1363 = vadd.f32 %v1331, %v1362
  %1364 = vdwg.mxu0
  %1365 = vmatpush.msra.mxu0 %v1007
  %1366 = vmatpush.msra.mxu0 %v1002
  %1367 = vmatpush.msra.mxu0 %v997
  %1368 = vmatpush.msra.mxu0 %v992
  %1369 = vmatpush.msra.mxu0 %v987
  %1370 = vmatpush.msra.mxu0 %v982
  %1371 = vmatpush.msra.mxu0 %v977
  %1372 = vmatpush.msra.mxu0 %v972
  %1373 = vmatpush.msra.mxu0 %v967
  %1374 = vmatpush.msra.mxu0 %v962
  %1375 = vmatpush.msra.mxu0 %v957
  %1376 = vmatpush.msra.mxu0 %v952
  %1377 = vmatpush.msra.mxu0 %v947
  %1378 = vmatpush.msra.mxu0 %v942
  %1379 = vmatpush.msra.mxu0 %v937
  %1380 = vmatpush.msra.mxu0 %v932
  %1381 = vmatmul.f32.gmra.mxu0 %v1128
  %v1382 = vpop.f32.mrf.mxu0
  %v1383 = vadd.f32 0.0, %v1382
  %1384 = vmatmul.f32.gmra.mxu0 %v1136
  %v1385 = vpop.f32.mrf.mxu0
  %v1386 = vadd.f32 0.0, %v1385
  %1387 = vmatmul.f32.gmra.mxu0 %v1142
  %v1388 = vpop.f32.mrf.mxu0
  %v1389 = vadd.f32 0.0, %v1388
  %1390 = vmatmul.f32.gmra.mxu0 %v1148
  %v1391 = vpop.f32.mrf.mxu0
  %v1392 = vadd.f32 0.0, %v1391
  %1393 = vmatmul.f32.gmra.mxu0 %v1147
  %v1394 = vpop.f32.mrf.mxu0
  %v1395 = vadd.f32 0.0, %v1394
  %1396 = vdwg.mxu0
  %1397 = vmatpush.msra.mxu0 %v1087
  %1398 = vmatpush.msra.mxu0 %v1082
  %1399 = vmatpush.msra.mxu0 %v1077
  %1400 = vmatpush.msra.mxu0 %v1072
  %1401 = vmatpush.msra.mxu0 %v1067
  %1402 = vmatpush.msra.mxu0 %v1062
  %1403 = vmatpush.msra.mxu0 %v1057
  %1404 = vmatpush.msra.mxu0 %v1052
  %1405 = vmatpush.msra.mxu0 %v1047
  %1406 = vmatpush.msra.mxu0 %v1042
  %1407 = vmatpush.msra.mxu0 %v1037
  %1408 = vmatpush.msra.mxu0 %v1032
  %1409 = vmatpush.msra.mxu0 %v1027
  %1410 = vmatpush.msra.mxu0 %v1022
  %1411 = vmatpush.msra.mxu0 %v1017
  %1412 = vmatpush.msra.mxu0 %v1012
  %1413 = vmatmul.f32.gmra.mxu0 %v1131
  %v1414 = vpop.f32.mrf.mxu0
  %v1415 = vadd.f32 %v1383, %v1414
  %1416 = vmatmul.f32.gmra.mxu0 %v1138
  %v1417 = vpop.f32.mrf.mxu0
  %v1418 = vadd.f32 %v1386, %v1417
  %1419 = vmatmul.f32.gmra.mxu0 %v1144
  %v1420 = vpop.f32.mrf.mxu0
  %v1421 = vadd.f32 %v1389, %v1420
  %1422 = vmatmul.f32.gmra.mxu0 %v1150
  %v1423 = vpop.f32.mrf.mxu0
  %v1424 = vadd.f32 %v1392, %v1423
  %1425 = vmatmul.f32.gmra.mxu0 %v1149
  %v1426 = vpop.f32.mrf.mxu0
  %v1427 = vadd.f32 %v1395, %v1426
  %1428 = vdwg.mxu0
  %1429 = vmatpush.msra.mxu0 0.0
  %1430 = vmatpush.msra.mxu0 0.0
  %1431 = vmatpush.msra.mxu0 0.0
  %1432 = vmatpush.msra.mxu0 0.0
  %1433 = vmatpush.msra.mxu0 0.0
  %1434 = vmatpush.msra.mxu0 0.0
  %1435 = vmatpush.msra.mxu0 0.0
  %1436 = vmatpush.msra.mxu0 0.0
  %1437 = vmatpush.msra.mxu0 0.0
  %1438 = vmatpush.msra.mxu0 0.0
  %1439 = vmatpush.msra.mxu0 0.0
  %1440 = vmatpush.msra.mxu0 0.0
  %1441 = vmatpush.msra.mxu0 %v1107
  %1442 = vmatpush.msra.mxu0 %v1102
  %1443 = vmatpush.msra.mxu0 %v1097
  %1444 = vmatpush.msra.mxu0 %v1092
  %1445 = vmatmul.f32.gmra.mxu0 %v1163
  %v1446 = vpop.f32.mrf.mxu0
  %v1447 = vadd.f32 %v1415, %v1446
  %1448 = vmatmul.f32.gmra.mxu0 %v1165
  %v1449 = vpop.f32.mrf.mxu0
  %v1450 = vadd.f32 %v1418, %v1449
  %1451 = vmatmul.f32.gmra.mxu0 %v1167
  %v1452 = vpop.f32.mrf.mxu0
  %v1453 = vadd.f32 %v1421, %v1452
  %1454 = vmatmul.f32.gmra.mxu0 %v1169
  %v1455 = vpop.f32.mrf.mxu0
  %v1456 = vadd.f32 %v1424, %v1455
  %1457 = vmatmul.f32.gmra.mxu0 %v1171
  %v1458 = vpop.f32.mrf.mxu0
  %v1459 = vadd.f32 %v1427, %v1458
  %1460 = vdwg.mxu0
  %1461 = vmatpush.msra.mxu0 %v1008
  %1462 = vmatpush.msra.mxu0 %v1003
  %1463 = vmatpush.msra.mxu0 %v998
  %1464 = vmatpush.msra.mxu0 %v993
  %1465 = vmatpush.msra.mxu0 %v988
  %1466 = vmatpush.msra.mxu0 %v983
  %1467 = vmatpush.msra.mxu0 %v978
  %1468 = vmatpush.msra.mxu0 %v973
  %1469 = vmatpush.msra.mxu0 %v968
  %1470 = vmatpush.msra.mxu0 %v963
  %1471 = vmatpush.msra.mxu0 %v958
  %1472 = vmatpush.msra.mxu0 %v953
  %1473 = vmatpush.msra.mxu0 %v948
  %1474 = vmatpush.msra.mxu0 %v943
  %1475 = vmatpush.msra.mxu0 %v938
  %1476 = vmatpush.msra.mxu0 %v933
  %1477 = vmatmul.f32.gmra.mxu0 %v1128
  %v1478 = vpop.f32.mrf.mxu0
  %v1479 = vadd.f32 0.0, %v1478
  %1480 = vmatmul.f32.gmra.mxu0 %v1136
  %v1481 = vpop.f32.mrf.mxu0
  %v1482 = vadd.f32 0.0, %v1481
  %1483 = vmatmul.f32.gmra.mxu0 %v1142
  %v1484 = vpop.f32.mrf.mxu0
  %v1485 = vadd.f32 0.0, %v1484
  %1486 = vmatmul.f32.gmra.mxu0 %v1148
  %v1487 = vpop.f32.mrf.mxu0
  %v1488 = vadd.f32 0.0, %v1487
  %1489 = vmatmul.f32.gmra.mxu0 %v1147
  %v1490 = vpop.f32.mrf.mxu0
  %v1491 = vadd.f32 0.0, %v1490
  %1492 = vdwg.mxu0
  %1493 = vmatpush.msra.mxu0 %v1088
  %1494 = vmatpush.msra.mxu0 %v1083
  %1495 = vmatpush.msra.mxu0 %v1078
  %1496 = vmatpush.msra.mxu0 %v1073
  %1497 = vmatpush.msra.mxu0 %v1068
  %1498 = vmatpush.msra.mxu0 %v1063
  %1499 = vmatpush.msra.mxu0 %v1058
  %1500 = vmatpush.msra.mxu0 %v1053
  %1501 = vmatpush.msra.mxu0 %v1048
  %1502 = vmatpush.msra.mxu0 %v1043
  %1503 = vmatpush.msra.mxu0 %v1038
  %1504 = vmatpush.msra.mxu0 %v1033
  %1505 = vmatpush.msra.mxu0 %v1028
  %1506 = vmatpush.msra.mxu0 %v1023
  %1507 = vmatpush.msra.mxu0 %v1018
  %1508 = vmatpush.msra.mxu0 %v1013
  %1509 = vmatmul.f32.gmra.mxu0 %v1131
  %v1510 = vpop.f32.mrf.mxu0
  %v1511 = vadd.f32 %v1479, %v1510
  %1512 = vmatmul.f32.gmra.mxu0 %v1138
  %v1513 = vpop.f32.mrf.mxu0
  %v1514 = vadd.f32 %v1482, %v1513
  %1515 = vmatmul.f32.gmra.mxu0 %v1144
  %v1516 = vpop.f32.mrf.mxu0
  %v1517 = vadd.f32 %v1485, %v1516
  %1518 = vmatmul.f32.gmra.mxu0 %v1150
  %v1519 = vpop.f32.mrf.mxu0
  %v1520 = vadd.f32 %v1488, %v1519
  %1521 = vmatmul.f32.gmra.mxu0 %v1149
  %v1522 = vpop.f32.mrf.mxu0
  %v1523 = vadd.f32 %v1491, %v1522
  %1524 = vdwg.mxu0
  %1525 = vmatpush.msra.mxu0 0.0
  %1526 = vmatpush.msra.mxu0 0.0
  %1527 = vmatpush.msra.mxu0 0.0
  %1528 = vmatpush.msra.mxu0 0.0
  %1529 = vmatpush.msra.mxu0 0.0
  %1530 = vmatpush.msra.mxu0 0.0
  %1531 = vmatpush.msra.mxu0 0.0
  %1532 = vmatpush.msra.mxu0 0.0
  %1533 = vmatpush.msra.mxu0 0.0
  %1534 = vmatpush.msra.mxu0 0.0
  %1535 = vmatpush.msra.mxu0 0.0
  %1536 = vmatpush.msra.mxu0 0.0
  %1537 = vmatpush.msra.mxu0 %v1108
  %1538 = vmatpush.msra.mxu0 %v1103
  %1539 = vmatpush.msra.mxu0 %v1098
  %1540 = vmatpush.msra.mxu0 %v1093
  %1541 = vmatmul.f32.gmra.mxu0 %v1163
  %v1542 = vpop.f32.mrf.mxu0
  %v1543 = vadd.f32 %v1511, %v1542
  %1544 = vmatmul.f32.gmra.mxu0 %v1165
  %v1545 = vpop.f32.mrf.mxu0
  %v1546 = vadd.f32 %v1514, %v1545
  %1547 = vmatmul.f32.gmra.mxu0 %v1167
  %v1548 = vpop.f32.mrf.mxu0
  %v1549 = vadd.f32 %v1517, %v1548
  %1550 = vmatmul.f32.gmra.mxu0 %v1169
  %v1551 = vpop.f32.mrf.mxu0
  %v1552 = vadd.f32 %v1520, %v1551
  %1553 = vmatmul.f32.gmra.mxu0 %v1171
  %v1554 = vpop.f32.mrf.mxu0
  %v1555 = vadd.f32 %v1523, %v1554
  %1556 = vdwg.mxu0
  %1557 = vmatpush.msra.mxu0 %v1009
  %1558 = vmatpush.msra.mxu0 %v1004
  %1559 = vmatpush.msra.mxu0 %v999
  %1560 = vmatpush.msra.mxu0 %v994
  %1561 = vmatpush.msra.mxu0 %v989
  %1562 = vmatpush.msra.mxu0 %v984
  %1563 = vmatpush.msra.mxu0 %v979
  %1564 = vmatpush.msra.mxu0 %v974
  %1565 = vmatpush.msra.mxu0 %v969
  %1566 = vmatpush.msra.mxu0 %v964
  %1567 = vmatpush.msra.mxu0 %v959
  %1568 = vmatpush.msra.mxu0 %v954
  %1569 = vmatpush.msra.mxu0 %v949
  %1570 = vmatpush.msra.mxu0 %v944
  %1571 = vmatpush.msra.mxu0 %v939
  %1572 = vmatpush.msra.mxu0 %v934
  %1573 = vmatmul.f32.gmra.mxu0 %v1128
  %v1574 = vpop.f32.mrf.mxu0
  %v1575 = vadd.f32 0.0, %v1574
  %1576 = vmatmul.f32.gmra.mxu0 %v1136
  %v1577 = vpop.f32.mrf.mxu0
  %v1578 = vadd.f32 0.0, %v1577
  %1579 = vmatmul.f32.gmra.mxu0 %v1142
  %v1580 = vpop.f32.mrf.mxu0
  %v1581 = vadd.f32 0.0, %v1580
  %1582 = vmatmul.f32.gmra.mxu0 %v1148
  %v1583 = vpop.f32.mrf.mxu0
  %v1584 = vadd.f32 0.0, %v1583
  %1585 = vmatmul.f32.gmra.mxu0 %v1147
  %v1586 = vpop.f32.mrf.mxu0
  %v1587 = vadd.f32 0.0, %v1586
  %1588 = vdwg.mxu0
  %1589 = vmatpush.msra.mxu0 %v1089
  %1590 = vmatpush.msra.mxu0 %v1084
  %1591 = vmatpush.msra.mxu0 %v1079
  %1592 = vmatpush.msra.mxu0 %v1074
  %1593 = vmatpush.msra.mxu0 %v1069
  %1594 = vmatpush.msra.mxu0 %v1064
  %1595 = vmatpush.msra.mxu0 %v1059
  %1596 = vmatpush.msra.mxu0 %v1054
  %1597 = vmatpush.msra.mxu0 %v1049
  %1598 = vmatpush.msra.mxu0 %v1044
  %1599 = vmatpush.msra.mxu0 %v1039
  %1600 = vmatpush.msra.mxu0 %v1034
  %1601 = vmatpush.msra.mxu0 %v1029
  %1602 = vmatpush.msra.mxu0 %v1024
  %1603 = vmatpush.msra.mxu0 %v1019
  %1604 = vmatpush.msra.mxu0 %v1014
  %1605 = vmatmul.f32.gmra.mxu0 %v1131
  %v1606 = vpop.f32.mrf.mxu0
  %v1607 = vadd.f32 %v1575, %v1606
  %1608 = vmatmul.f32.gmra.mxu0 %v1138
  %v1609 = vpop.f32.mrf.mxu0
  %v1610 = vadd.f32 %v1578, %v1609
  %1611 = vmatmul.f32.gmra.mxu0 %v1144
  %v1612 = vpop.f32.mrf.mxu0
  %v1613 = vadd.f32 %v1581, %v1612
  %1614 = vmatmul.f32.gmra.mxu0 %v1150
  %v1615 = vpop.f32.mrf.mxu0
  %v1616 = vadd.f32 %v1584, %v1615
  %1617 = vmatmul.f32.gmra.mxu0 %v1149
  %v1618 = vpop.f32.mrf.mxu0
  %v1619 = vadd.f32 %v1587, %v1618
  %1620 = vdwg.mxu0
  %1621 = vmatpush.msra.mxu0 0.0
  %1622 = vmatpush.msra.mxu0 0.0
  %1623 = vmatpush.msra.mxu0 0.0
  %1624 = vmatpush.msra.mxu0 0.0
  %1625 = vmatpush.msra.mxu0 0.0
  %1626 = vmatpush.msra.mxu0 0.0
  %1627 = vmatpush.msra.mxu0 0.0
  %1628 = vmatpush.msra.mxu0 0.0
  %1629 = vmatpush.msra.mxu0 0.0
  %1630 = vmatpush.msra.mxu0 0.0
  %1631 = vmatpush.msra.mxu0 0.0
  %1632 = vmatpush.msra.mxu0 0.0
  %1633 = vmatpush.msra.mxu0 %v1109
  %1634 = vmatpush.msra.mxu0 %v1104
  %1635 = vmatpush.msra.mxu0 %v1099
  %1636 = vmatpush.msra.mxu0 %v1094
  %1637 = vmatmul.f32.gmra.mxu0 %v1163
  %v1638 = vpop.f32.mrf.mxu0
  %v1639 = vadd.f32 %v1607, %v1638
  %1640 = vmatmul.f32.gmra.mxu0 %v1165
  %v1641 = vpop.f32.mrf.mxu0
  %v1642 = vadd.f32 %v1610, %v1641
  %1643 = vmatmul.f32.gmra.mxu0 %v1167
  %v1644 = vpop.f32.mrf.mxu0
  %v1645 = vadd.f32 %v1613, %v1644
  %1646 = vmatmul.f32.gmra.mxu0 %v1169
  %v1647 = vpop.f32.mrf.mxu0
  %v1648 = vadd.f32 %v1616, %v1647
  %1649 = vmatmul.f32.gmra.mxu0 %v1171
  %v1650 = vpop.f32.mrf.mxu0
  %v1651 = vadd.f32 %v1619, %v1650
  %1652 = vdwg.mxu0
  %v1654 = vsel %vm716, %v730, 0
  %v1656 = vsel %vm716, %v733, 0
  %v1658 = vsel %vm716, %v736, 0
  %v1660 = vsel %vm716, %v739, 0
  %v1663 = vsel %vm716, %v742, 0
  %1665 = vmatpush.msra.mxu0 %v818
  %1666 = vmatpush.msra.mxu0 %v813
  %1667 = vmatpush.msra.mxu0 %v808
  %1668 = vmatpush.msra.mxu0 %v803
  %1669 = vmatpush.msra.mxu0 %v798
  %1670 = vmatpush.msra.mxu0 %v793
  %1671 = vmatpush.msra.mxu0 %v788
  %1672 = vmatpush.msra.mxu0 %v783
  %1673 = vmatpush.msra.mxu0 %v778
  %1674 = vmatpush.msra.mxu0 %v773
  %1675 = vmatpush.msra.mxu0 %v768
  %1676 = vmatpush.msra.mxu0 %v763
  %1677 = vmatpush.msra.mxu0 %v758
  %1678 = vmatpush.msra.mxu0 %v753
  %1679 = vmatpush.msra.mxu0 %v748
  %1680 = vmatpush.msra.mxu0 %v743
  %1681 = vmatmul.f32.gmra.mxu0 %v728
  %v1682 = vpop.f32.mrf.mxu0
  %v1683 = vadd.f32 %v1255, %v1682
  %1684 = vmatmul.f32.gmra.mxu0 %v731
  %v1685 = vpop.f32.mrf.mxu0
  %v1686 = vadd.f32 %v1258, %v1685
  %1687 = vmatmul.f32.gmra.mxu0 %v734
  %v1688 = vpop.f32.mrf.mxu0
  %v1689 = vadd.f32 %v1261, %v1688
  %1690 = vmatmul.f32.gmra.mxu0 %v737
  %v1691 = vpop.f32.mrf.mxu0
  %v1692 = vadd.f32 %v1264, %v1691
  %1693 = vmatmul.f32.gmra.mxu0 %v740
  %v1694 = vpop.f32.mrf.mxu0
  %v1695 = vadd.f32 %v1267, %v1694
  %1696 = vdwg.mxu0
  %1697 = vmatpush.msra.mxu0 %v898
  %1698 = vmatpush.msra.mxu0 %v893
  %1699 = vmatpush.msra.mxu0 %v888
  %1700 = vmatpush.msra.mxu0 %v883
  %1701 = vmatpush.msra.mxu0 %v878
  %1702 = vmatpush.msra.mxu0 %v873
  %1703 = vmatpush.msra.mxu0 %v868
  %1704 = vmatpush.msra.mxu0 %v863
  %1705 = vmatpush.msra.mxu0 %v858
  %1706 = vmatpush.msra.mxu0 %v853
  %1707 = vmatpush.msra.mxu0 %v848
  %1708 = vmatpush.msra.mxu0 %v843
  %1709 = vmatpush.msra.mxu0 %v838
  %1710 = vmatpush.msra.mxu0 %v833
  %1711 = vmatpush.msra.mxu0 %v828
  %1712 = vmatpush.msra.mxu0 %v823
  %1713 = vmatmul.f32.gmra.mxu0 %v729
  %v1714 = vpop.f32.mrf.mxu0
  %v1715 = vadd.f32 %v1683, %v1714
  %1716 = vmatmul.f32.gmra.mxu0 %v732
  %v1717 = vpop.f32.mrf.mxu0
  %v1718 = vadd.f32 %v1686, %v1717
  %1719 = vmatmul.f32.gmra.mxu0 %v735
  %v1720 = vpop.f32.mrf.mxu0
  %v1721 = vadd.f32 %v1689, %v1720
  %1722 = vmatmul.f32.gmra.mxu0 %v738
  %v1723 = vpop.f32.mrf.mxu0
  %v1724 = vadd.f32 %v1692, %v1723
  %1725 = vmatmul.f32.gmra.mxu0 %v741
  %v1726 = vpop.f32.mrf.mxu0
  %v1727 = vadd.f32 %v1695, %v1726
  %1728 = vdwg.mxu0
  %1729 = vmatpush.msra.mxu0 0.0
  %1730 = vmatpush.msra.mxu0 0.0
  %1731 = vmatpush.msra.mxu0 0.0
  %1732 = vmatpush.msra.mxu0 0.0
  %1733 = vmatpush.msra.mxu0 0.0
  %1734 = vmatpush.msra.mxu0 0.0
  %1735 = vmatpush.msra.mxu0 0.0
  %1736 = vmatpush.msra.mxu0 0.0
  %1737 = vmatpush.msra.mxu0 0.0
  %1738 = vmatpush.msra.mxu0 0.0
  %1739 = vmatpush.msra.mxu0 0.0
  %1740 = vmatpush.msra.mxu0 0.0
  %1741 = vmatpush.msra.mxu0 %v918
  %1742 = vmatpush.msra.mxu0 %v913
  %1743 = vmatpush.msra.mxu0 %v908
  %1744 = vmatpush.msra.mxu0 %v903
  %1745 = vmatmul.f32.gmra.mxu0 %v1654
  %v1746 = vpop.f32.mrf.mxu0
  %v1747 = vadd.f32 %v1715, %v1746
  %1748 = vmatmul.f32.gmra.mxu0 %v1656
  %v1749 = vpop.f32.mrf.mxu0
  %v1750 = vadd.f32 %v1718, %v1749
  %1751 = vmatmul.f32.gmra.mxu0 %v1658
  %v1752 = vpop.f32.mrf.mxu0
  %v1753 = vadd.f32 %v1721, %v1752
  %1754 = vmatmul.f32.gmra.mxu0 %v1660
  %v1755 = vpop.f32.mrf.mxu0
  %v1756 = vadd.f32 %v1724, %v1755
  %1757 = vmatmul.f32.gmra.mxu0 %v1663
  %v1758 = vpop.f32.mrf.mxu0
  %v1759 = vadd.f32 %v1727, %v1758
  %1760 = vdwg.mxu0
  %1761 = vmatpush.msra.mxu0 %v819
  %1762 = vmatpush.msra.mxu0 %v814
  %1763 = vmatpush.msra.mxu0 %v809
  %1764 = vmatpush.msra.mxu0 %v804
  %1765 = vmatpush.msra.mxu0 %v799
  %1766 = vmatpush.msra.mxu0 %v794
  %1767 = vmatpush.msra.mxu0 %v789
  %1768 = vmatpush.msra.mxu0 %v784
  %1769 = vmatpush.msra.mxu0 %v779
  %1770 = vmatpush.msra.mxu0 %v774
  %1771 = vmatpush.msra.mxu0 %v769
  %1772 = vmatpush.msra.mxu0 %v764
  %1773 = vmatpush.msra.mxu0 %v759
  %1774 = vmatpush.msra.mxu0 %v754
  %1775 = vmatpush.msra.mxu0 %v749
  %1776 = vmatpush.msra.mxu0 %v744
  %1777 = vmatmul.f32.gmra.mxu0 %v728
  %v1778 = vpop.f32.mrf.mxu0
  %v1779 = vadd.f32 %v1351, %v1778
  %1780 = vmatmul.f32.gmra.mxu0 %v731
  %v1781 = vpop.f32.mrf.mxu0
  %v1782 = vadd.f32 %v1354, %v1781
  %1783 = vmatmul.f32.gmra.mxu0 %v734
  %v1784 = vpop.f32.mrf.mxu0
  %v1785 = vadd.f32 %v1357, %v1784
  %1786 = vmatmul.f32.gmra.mxu0 %v737
  %v1787 = vpop.f32.mrf.mxu0
  %v1788 = vadd.f32 %v1360, %v1787
  %1789 = vmatmul.f32.gmra.mxu0 %v740
  %v1790 = vpop.f32.mrf.mxu0
  %v1791 = vadd.f32 %v1363, %v1790
  %1792 = vdwg.mxu0
  %1793 = vmatpush.msra.mxu0 %v899
  %1794 = vmatpush.msra.mxu0 %v894
  %1795 = vmatpush.msra.mxu0 %v889
  %1796 = vmatpush.msra.mxu0 %v884
  %1797 = vmatpush.msra.mxu0 %v879
  %1798 = vmatpush.msra.mxu0 %v874
  %1799 = vmatpush.msra.mxu0 %v869
  %1800 = vmatpush.msra.mxu0 %v864
  %1801 = vmatpush.msra.mxu0 %v859
  %1802 = vmatpush.msra.mxu0 %v854
  %1803 = vmatpush.msra.mxu0 %v849
  %1804 = vmatpush.msra.mxu0 %v844
  %1805 = vmatpush.msra.mxu0 %v839
  %1806 = vmatpush.msra.mxu0 %v834
  %1807 = vmatpush.msra.mxu0 %v829
  %1808 = vmatpush.msra.mxu0 %v824
  %1809 = vmatmul.f32.gmra.mxu0 %v729
  %v1810 = vpop.f32.mrf.mxu0
  %v1811 = vadd.f32 %v1779, %v1810
  %1812 = vmatmul.f32.gmra.mxu0 %v732
  %v1813 = vpop.f32.mrf.mxu0
  %v1814 = vadd.f32 %v1782, %v1813
  %1815 = vmatmul.f32.gmra.mxu0 %v735
  %v1816 = vpop.f32.mrf.mxu0
  %v1817 = vadd.f32 %v1785, %v1816
  %1818 = vmatmul.f32.gmra.mxu0 %v738
  %v1819 = vpop.f32.mrf.mxu0
  %v1820 = vadd.f32 %v1788, %v1819
  %1821 = vmatmul.f32.gmra.mxu0 %v741
  %v1822 = vpop.f32.mrf.mxu0
  %v1823 = vadd.f32 %v1791, %v1822
  %1824 = vdwg.mxu0
  %1825 = vmatpush.msra.mxu0 0.0
  %1826 = vmatpush.msra.mxu0 0.0
  %1827 = vmatpush.msra.mxu0 0.0
  %1828 = vmatpush.msra.mxu0 0.0
  %1829 = vmatpush.msra.mxu0 0.0
  %1830 = vmatpush.msra.mxu0 0.0
  %1831 = vmatpush.msra.mxu0 0.0
  %1832 = vmatpush.msra.mxu0 0.0
  %1833 = vmatpush.msra.mxu0 0.0
  %1834 = vmatpush.msra.mxu0 0.0
  %1835 = vmatpush.msra.mxu0 0.0
  %1836 = vmatpush.msra.mxu0 0.0
  %1837 = vmatpush.msra.mxu0 %v919
  %1838 = vmatpush.msra.mxu0 %v914
  %1839 = vmatpush.msra.mxu0 %v909
  %1840 = vmatpush.msra.mxu0 %v904
  %1841 = vmatmul.f32.gmra.mxu0 %v1654
  %v1842 = vpop.f32.mrf.mxu0
  %v1843 = vadd.f32 %v1811, %v1842
  %1844 = vmatmul.f32.gmra.mxu0 %v1656
  %v1845 = vpop.f32.mrf.mxu0
  %v1846 = vadd.f32 %v1814, %v1845
  %1847 = vmatmul.f32.gmra.mxu0 %v1658
  %v1848 = vpop.f32.mrf.mxu0
  %v1849 = vadd.f32 %v1817, %v1848
  %1850 = vmatmul.f32.gmra.mxu0 %v1660
  %v1851 = vpop.f32.mrf.mxu0
  %v1852 = vadd.f32 %v1820, %v1851
  %1853 = vmatmul.f32.gmra.mxu0 %v1663
  %v1854 = vpop.f32.mrf.mxu0
  %v1855 = vadd.f32 %v1823, %v1854
  %1856 = vdwg.mxu0
  %1857 = vmatpush.msra.mxu0 %v820
  %1858 = vmatpush.msra.mxu0 %v815
  %1859 = vmatpush.msra.mxu0 %v810
  %1860 = vmatpush.msra.mxu0 %v805
  %1861 = vmatpush.msra.mxu0 %v800
  %1862 = vmatpush.msra.mxu0 %v795
  %1863 = vmatpush.msra.mxu0 %v790
  %1864 = vmatpush.msra.mxu0 %v785
  %1865 = vmatpush.msra.mxu0 %v780
  %1866 = vmatpush.msra.mxu0 %v775
  %1867 = vmatpush.msra.mxu0 %v770
  %1868 = vmatpush.msra.mxu0 %v765
  %1869 = vmatpush.msra.mxu0 %v760
  %1870 = vmatpush.msra.mxu0 %v755
  %1871 = vmatpush.msra.mxu0 %v750
  %1872 = vmatpush.msra.mxu0 %v745
  %1873 = vmatmul.f32.gmra.mxu0 %v728
  %v1874 = vpop.f32.mrf.mxu0
  %v1875 = vadd.f32 %v1447, %v1874
  %1876 = vmatmul.f32.gmra.mxu0 %v731
  %v1877 = vpop.f32.mrf.mxu0
  %v1878 = vadd.f32 %v1450, %v1877
  %1879 = vmatmul.f32.gmra.mxu0 %v734
  %v1880 = vpop.f32.mrf.mxu0
  %v1881 = vadd.f32 %v1453, %v1880
  %1882 = vmatmul.f32.gmra.mxu0 %v737
  %v1883 = vpop.f32.mrf.mxu0
  %v1884 = vadd.f32 %v1456, %v1883
  %1885 = vmatmul.f32.gmra.mxu0 %v740
  %v1886 = vpop.f32.mrf.mxu0
  %v1887 = vadd.f32 %v1459, %v1886
  %1888 = vdwg.mxu0
  %1889 = vmatpush.msra.mxu0 %v900
  %1890 = vmatpush.msra.mxu0 %v895
  %1891 = vmatpush.msra.mxu0 %v890
  %1892 = vmatpush.msra.mxu0 %v885
  %1893 = vmatpush.msra.mxu0 %v880
  %1894 = vmatpush.msra.mxu0 %v875
  %1895 = vmatpush.msra.mxu0 %v870
  %1896 = vmatpush.msra.mxu0 %v865
  %1897 = vmatpush.msra.mxu0 %v860
  %1898 = vmatpush.msra.mxu0 %v855
  %1899 = vmatpush.msra.mxu0 %v850
  %1900 = vmatpush.msra.mxu0 %v845
  %1901 = vmatpush.msra.mxu0 %v840
  %1902 = vmatpush.msra.mxu0 %v835
  %1903 = vmatpush.msra.mxu0 %v830
  %1904 = vmatpush.msra.mxu0 %v825
  %1905 = vmatmul.f32.gmra.mxu0 %v729
  %v1906 = vpop.f32.mrf.mxu0
  %v1907 = vadd.f32 %v1875, %v1906
  %1908 = vmatmul.f32.gmra.mxu0 %v732
  %v1909 = vpop.f32.mrf.mxu0
  %v1910 = vadd.f32 %v1878, %v1909
  %1911 = vmatmul.f32.gmra.mxu0 %v735
  %v1912 = vpop.f32.mrf.mxu0
  %v1913 = vadd.f32 %v1881, %v1912
  %1914 = vmatmul.f32.gmra.mxu0 %v738
  %v1915 = vpop.f32.mrf.mxu0
  %v1916 = vadd.f32 %v1884, %v1915
  %1917 = vmatmul.f32.gmra.mxu0 %v741
  %v1918 = vpop.f32.mrf.mxu0
  %v1919 = vadd.f32 %v1887, %v1918
  %1920 = vdwg.mxu0
  %1921 = vmatpush.msra.mxu0 0.0
  %1922 = vmatpush.msra.mxu0 0.0
  %1923 = vmatpush.msra.mxu0 0.0
  %1924 = vmatpush.msra.mxu0 0.0
  %1925 = vmatpush.msra.mxu0 0.0
  %1926 = vmatpush.msra.mxu0 0.0
  %1927 = vmatpush.msra.mxu0 0.0
  %1928 = vmatpush.msra.mxu0 0.0
  %1929 = vmatpush.msra.mxu0 0.0
  %1930 = vmatpush.msra.mxu0 0.0
  %1931 = vmatpush.msra.mxu0 0.0
  %1932 = vmatpush.msra.mxu0 0.0
  %1933 = vmatpush.msra.mxu0 %v920
  %1934 = vmatpush.msra.mxu0 %v915
  %1935 = vmatpush.msra.mxu0 %v910
  %1936 = vmatpush.msra.mxu0 %v905
  %1937 = vmatmul.f32.gmra.mxu0 %v1654
  %v1938 = vpop.f32.mrf.mxu0
  %v1939 = vadd.f32 %v1907, %v1938
  %1940 = vmatmul.f32.gmra.mxu0 %v1656
  %v1941 = vpop.f32.mrf.mxu0
  %v1942 = vadd.f32 %v1910, %v1941
  %1943 = vmatmul.f32.gmra.mxu0 %v1658
  %v1944 = vpop.f32.mrf.mxu0
  %v1945 = vadd.f32 %v1913, %v1944
  %1946 = vmatmul.f32.gmra.mxu0 %v1660
  %v1947 = vpop.f32.mrf.mxu0
  %v1948 = vadd.f32 %v1916, %v1947
  %1949 = vmatmul.f32.gmra.mxu0 %v1663
  %v1950 = vpop.f32.mrf.mxu0
  %v1951 = vadd.f32 %v1919, %v1950
  %1952 = vdwg.mxu0
  %1953 = vmatpush.msra.mxu0 %v821
  %1954 = vmatpush.msra.mxu0 %v816
  %1955 = vmatpush.msra.mxu0 %v811
  %1956 = vmatpush.msra.mxu0 %v806
  %1957 = vmatpush.msra.mxu0 %v801
  %1958 = vmatpush.msra.mxu0 %v796
  %1959 = vmatpush.msra.mxu0 %v791
  %1960 = vmatpush.msra.mxu0 %v786
  %1961 = vmatpush.msra.mxu0 %v781
  %1962 = vmatpush.msra.mxu0 %v776
  %1963 = vmatpush.msra.mxu0 %v771
  %1964 = vmatpush.msra.mxu0 %v766
  %1965 = vmatpush.msra.mxu0 %v761
  %1966 = vmatpush.msra.mxu0 %v756
  %1967 = vmatpush.msra.mxu0 %v751
  %1968 = vmatpush.msra.mxu0 %v746
  %1969 = vmatmul.f32.gmra.mxu0 %v728
  %v1970 = vpop.f32.mrf.mxu0
  %v1971 = vadd.f32 %v1543, %v1970
  %1972 = vmatmul.f32.gmra.mxu0 %v731
  %v1973 = vpop.f32.mrf.mxu0
  %v1974 = vadd.f32 %v1546, %v1973
  %1975 = vmatmul.f32.gmra.mxu0 %v734
  %v1976 = vpop.f32.mrf.mxu0
  %v1977 = vadd.f32 %v1549, %v1976
  %1978 = vmatmul.f32.gmra.mxu0 %v737
  %v1979 = vpop.f32.mrf.mxu0
  %v1980 = vadd.f32 %v1552, %v1979
  %1981 = vmatmul.f32.gmra.mxu0 %v740
  %v1982 = vpop.f32.mrf.mxu0
  %v1983 = vadd.f32 %v1555, %v1982
  %1984 = vdwg.mxu0
  %1985 = vmatpush.msra.mxu0 %v901
  %1986 = vmatpush.msra.mxu0 %v896
  %1987 = vmatpush.msra.mxu0 %v891
  %1988 = vmatpush.msra.mxu0 %v886
  %1989 = vmatpush.msra.mxu0 %v881
  %1990 = vmatpush.msra.mxu0 %v876
  %1991 = vmatpush.msra.mxu0 %v871
  %1992 = vmatpush.msra.mxu0 %v866
  %1993 = vmatpush.msra.mxu0 %v861
  %1994 = vmatpush.msra.mxu0 %v856
  %1995 = vmatpush.msra.mxu0 %v851
  %1996 = vmatpush.msra.mxu0 %v846
  %1997 = vmatpush.msra.mxu0 %v841
  %1998 = vmatpush.msra.mxu0 %v836
  %1999 = vmatpush.msra.mxu0 %v831
  %2000 = vmatpush.msra.mxu0 %v826
  %2001 = vmatmul.f32.gmra.mxu0 %v729
  %v2002 = vpop.f32.mrf.mxu0
  %v2003 = vadd.f32 %v1971, %v2002
  %2004 = vmatmul.f32.gmra.mxu0 %v732
  %v2005 = vpop.f32.mrf.mxu0
  %v2006 = vadd.f32 %v1974, %v2005
  %2007 = vmatmul.f32.gmra.mxu0 %v735
  %v2008 = vpop.f32.mrf.mxu0
  %v2009 = vadd.f32 %v1977, %v2008
  %2010 = vmatmul.f32.gmra.mxu0 %v738
  %v2011 = vpop.f32.mrf.mxu0
  %v2012 = vadd.f32 %v1980, %v2011
  %2013 = vmatmul.f32.gmra.mxu0 %v741
  %v2014 = vpop.f32.mrf.mxu0
  %v2015 = vadd.f32 %v1983, %v2014
  %2016 = vdwg.mxu0
  %2017 = vmatpush.msra.mxu0 0.0
  %2018 = vmatpush.msra.mxu0 0.0
  %2019 = vmatpush.msra.mxu0 0.0
  %2020 = vmatpush.msra.mxu0 0.0
  %2021 = vmatpush.msra.mxu0 0.0
  %2022 = vmatpush.msra.mxu0 0.0
  %2023 = vmatpush.msra.mxu0 0.0
  %2024 = vmatpush.msra.mxu0 0.0
  %2025 = vmatpush.msra.mxu0 0.0
  %2026 = vmatpush.msra.mxu0 0.0
  %2027 = vmatpush.msra.mxu0 0.0
  %2028 = vmatpush.msra.mxu0 0.0
  %2029 = vmatpush.msra.mxu0 %v921
  %2030 = vmatpush.msra.mxu0 %v916
  %2031 = vmatpush.msra.mxu0 %v911
  %2032 = vmatpush.msra.mxu0 %v906
  %2033 = vmatmul.f32.gmra.mxu0 %v1654
  %v2034 = vpop.f32.mrf.mxu0
  %v2035 = vadd.f32 %v2003, %v2034
  %2036 = vmatmul.f32.gmra.mxu0 %v1656
  %v2037 = vpop.f32.mrf.mxu0
  %v2038 = vadd.f32 %v2006, %v2037
  %2039 = vmatmul.f32.gmra.mxu0 %v1658
  %v2040 = vpop.f32.mrf.mxu0
  %v2041 = vadd.f32 %v2009, %v2040
  %2042 = vmatmul.f32.gmra.mxu0 %v1660
  %v2043 = vpop.f32.mrf.mxu0
  %v2044 = vadd.f32 %v2012, %v2043
  %2045 = vmatmul.f32.gmra.mxu0 %v1663
  %v2046 = vpop.f32.mrf.mxu0
  %v2047 = vadd.f32 %v2015, %v2046
  %2048 = vdwg.mxu0
  %2049 = vmatpush.msra.mxu0 %v822
  %2050 = vmatpush.msra.mxu0 %v817
  %2051 = vmatpush.msra.mxu0 %v812
  %2052 = vmatpush.msra.mxu0 %v807
  %2053 = vmatpush.msra.mxu0 %v802
  %2054 = vmatpush.msra.mxu0 %v797
  %2055 = vmatpush.msra.mxu0 %v792
  %2056 = vmatpush.msra.mxu0 %v787
  %2057 = vmatpush.msra.mxu0 %v782
  %2058 = vmatpush.msra.mxu0 %v777
  %2059 = vmatpush.msra.mxu0 %v772
  %2060 = vmatpush.msra.mxu0 %v767
  %2061 = vmatpush.msra.mxu0 %v762
  %2062 = vmatpush.msra.mxu0 %v757
  %2063 = vmatpush.msra.mxu0 %v752
  %2064 = vmatpush.msra.mxu0 %v747
  %2065 = vmatmul.f32.gmra.mxu0 %v728
  %v2066 = vpop.f32.mrf.mxu0
  %v2067 = vadd.f32 %v1639, %v2066
  %2068 = vmatmul.f32.gmra.mxu0 %v731
  %v2069 = vpop.f32.mrf.mxu0
  %v2070 = vadd.f32 %v1642, %v2069
  %2071 = vmatmul.f32.gmra.mxu0 %v734
  %v2072 = vpop.f32.mrf.mxu0
  %v2073 = vadd.f32 %v1645, %v2072
  %2074 = vmatmul.f32.gmra.mxu0 %v737
  %v2075 = vpop.f32.mrf.mxu0
  %v2076 = vadd.f32 %v1648, %v2075
  %2077 = vmatmul.f32.gmra.mxu0 %v740
  %v2078 = vpop.f32.mrf.mxu0
  %v2079 = vadd.f32 %v1651, %v2078
  %2080 = vdwg.mxu0
  %2081 = vmatpush.msra.mxu0 %v902
  %2082 = vmatpush.msra.mxu0 %v897
  %2083 = vmatpush.msra.mxu0 %v892
  %2084 = vmatpush.msra.mxu0 %v887
  %2085 = vmatpush.msra.mxu0 %v882
  %2086 = vmatpush.msra.mxu0 %v877
  %2087 = vmatpush.msra.mxu0 %v872
  %2088 = vmatpush.msra.mxu0 %v867
  %2089 = vmatpush.msra.mxu0 %v862
  %2090 = vmatpush.msra.mxu0 %v857
  %2091 = vmatpush.msra.mxu0 %v852
  %2092 = vmatpush.msra.mxu0 %v847
  %2093 = vmatpush.msra.mxu0 %v842
  %2094 = vmatpush.msra.mxu0 %v837
  %2095 = vmatpush.msra.mxu0 %v832
  %2096 = vmatpush.msra.mxu0 %v827
  %2097 = vmatmul.f32.gmra.mxu0 %v729
  %v2098 = vpop.f32.mrf.mxu0
  %v2099 = vadd.f32 %v2067, %v2098
  %2100 = vmatmul.f32.gmra.mxu0 %v732
  %v2101 = vpop.f32.mrf.mxu0
  %v2102 = vadd.f32 %v2070, %v2101
  %2103 = vmatmul.f32.gmra.mxu0 %v735
  %v2104 = vpop.f32.mrf.mxu0
  %v2105 = vadd.f32 %v2073, %v2104
  %2106 = vmatmul.f32.gmra.mxu0 %v738
  %v2107 = vpop.f32.mrf.mxu0
  %v2108 = vadd.f32 %v2076, %v2107
  %2109 = vmatmul.f32.gmra.mxu0 %v741
  %v2110 = vpop.f32.mrf.mxu0
  %v2111 = vadd.f32 %v2079, %v2110
  %2112 = vdwg.mxu0
  %2113 = vmatpush.msra.mxu0 0.0
  %2114 = vmatpush.msra.mxu0 0.0
  %2115 = vmatpush.msra.mxu0 0.0
  %2116 = vmatpush.msra.mxu0 0.0
  %2117 = vmatpush.msra.mxu0 0.0
  %2118 = vmatpush.msra.mxu0 0.0
  %2119 = vmatpush.msra.mxu0 0.0
  %2120 = vmatpush.msra.mxu0 0.0
  %2121 = vmatpush.msra.mxu0 0.0
  %2122 = vmatpush.msra.mxu0 0.0
  %2123 = vmatpush.msra.mxu0 0.0
  %2124 = vmatpush.msra.mxu0 0.0
  %2125 = vmatpush.msra.mxu0 %v922
  %2126 = vmatpush.msra.mxu0 %v917
  %2127 = vmatpush.msra.mxu0 %v912
  %2128 = vmatpush.msra.mxu0 %v907
  %2129 = vmatmul.f32.gmra.mxu0 %v1654
  %v2130 = vpop.f32.mrf.mxu0
  %v2131 = vadd.f32 %v2099, %v2130
  %2132 = vmatmul.f32.gmra.mxu0 %v1656
  %v2133 = vpop.f32.mrf.mxu0
  %v2134 = vadd.f32 %v2102, %v2133
  %2135 = vmatmul.f32.gmra.mxu0 %v1658
  %v2136 = vpop.f32.mrf.mxu0
  %v2137 = vadd.f32 %v2105, %v2136
  %2138 = vmatmul.f32.gmra.mxu0 %v1660
  %v2139 = vpop.f32.mrf.mxu0
  %v2140 = vadd.f32 %v2108, %v2139
  %2141 = vmatmul.f32.gmra.mxu0 %v1663
  %v2142 = vpop.f32.mrf.mxu0
  %v2143 = vadd.f32 %v2111, %v2142
  %2144 = vdwg.mxu0
  %v2145 = vld [vmem:[#allocation2] sm:$0xfc]
  %v2146 = vld [vmem:[#allocation2 + $0x8] sm:$0xfc]
  %v2147 = vld [vmem:[#allocation2 + $0x10] sm:$0xfc]
  %v2148 = vld [vmem:[#allocation2 + $0xa0] sm:$0x3f]
  %v2149 = vld [vmem:[#allocation2 + $0xa8] sm:$0x3f]
  %v2150 = vld [vmem:[#allocation2 + $0xb0] sm:$0x3f]
  %s2151 = scalar_lea.vmem %s3, 2880
  %v2152 = vld [vmem:[%s2151] sm:$0xff]
  %v2153 = vld [vmem:[%s2151 + $0x8] sm:$0xff]
  %v2154 = vld [vmem:[%s2151 + $0x10] sm:$0xff]
  %v2155 = vld [vmem:[%s2151 + $0x18] sm:$0xff]
  %v2156 = vld [vmem:[%s2151 + $0x20] sm:$0xff]
  %v2157 = vld [vmem:[%s2151 + $0x28] sm:$0xff]
  %v2158 = vld [vmem:[%s2151 + $0x30] sm:$0xff]
  %v2159 = vld [vmem:[%s2151 + $0x38] sm:$0xff]
  %v2160 = vld [vmem:[%s2151 + $0x40] sm:$0xff]
  %v2161 = vld [vmem:[%s2151 + $0x48] sm:$0xff]
  %v2162 = vld [vmem:[%s2151 + $0x50] sm:$0xff]
  %v2163 = vld [vmem:[%s2151 + $0x58] sm:$0xff]
  %v2164 = vld [vmem:[%s2151 + $0x60] sm:$0xff]
  %v2165 = vld [vmem:[%s2151 + $0x68] sm:$0xff]
  %v2166 = vld [vmem:[%s2151 + $0x70] sm:$0xff]
  %v2167 = vld [vmem:[%s2151 + $0x78] sm:$0xff]
  %v2168 = vld [vmem:[%s2151 + $0x80] sm:$0xff]
  %v2169 = vld [vmem:[%s2151 + $0x88] sm:$0xff]
  %v2170 = vld [vmem:[%s2151 + $0x90] sm:$0xff]
  %v2171 = vld [vmem:[%s2151 + $0x98] sm:$0xff]
  %v2172 = vld [vmem:[%s2151 + $0xa0] sm:$0xff]
  %v2173 = vld [vmem:[%s2151 + $0xa8] sm:$0xff]
  %v2174 = vld [vmem:[%s2151 + $0xb0] sm:$0xff]
  %v2175 = vld [vmem:[%s2151 + $0xb8] sm:$0xff]
  %v2176 = vld [vmem:[%s2151 + $0xc0] sm:$0xff]
  %v2177 = vld [vmem:[%s2151 + $0xc8] sm:$0xff]
  %v2178 = vld [vmem:[%s2151 + $0xd0] sm:$0xff]
  %v2179 = vld [vmem:[%s2151 + $0xd8] sm:$0xff]
  %v2180 = vld [vmem:[%s2151 + $0xe0] sm:$0xff]
  %v2181 = vld [vmem:[%s2151 + $0xe8] sm:$0xff]
  %v2182 = vld [vmem:[%s2151 + $0xf0] sm:$0xff]
  %v2183 = vld [vmem:[%s2151 + $0xf8] sm:$0xff]
  %v2184 = vld [vmem:[%s2151 + $0x100] sm:$0xff]
  %v2185 = vld [vmem:[%s2151 + $0x108] sm:$0xff]
  %v2186 = vld [vmem:[%s2151 + $0x110] sm:$0xff]
  %v2187 = vld [vmem:[%s2151 + $0x118] sm:$0xff]
  %v2188 = vld [vmem:[%s2151 + $0x120] sm:$0xff]
  %v2189 = vld [vmem:[%s2151 + $0x128] sm:$0xff]
  %v2190 = vld [vmem:[%s2151 + $0x130] sm:$0xff]
  %v2191 = vld [vmem:[%s2151 + $0x138] sm:$0xff]
  %v2192 = vld [vmem:[%s2151 + $0x140] sm:$0xff]
  %v2193 = vld [vmem:[%s2151 + $0x148] sm:$0xff]
  %v2194 = vld [vmem:[%s2151 + $0x150] sm:$0xff]
  %v2195 = vld [vmem:[%s2151 + $0x158] sm:$0xff]
  %v2196 = vld [vmem:[%s2151 + $0x160] sm:$0xff]
  %v2197 = vld [vmem:[%s2151 + $0x168] sm:$0xff]
  %v2198 = vld [vmem:[%s2151 + $0x170] sm:$0xff]
  %v2199 = vld [vmem:[%s2151 + $0x178] sm:$0xff]
  %v2200 = vld [vmem:[%s2151 + $0x180] sm:$0xff]
  %v2201 = vld [vmem:[%s2151 + $0x188] sm:$0xff]
  %v2202 = vld [vmem:[%s2151 + $0x190] sm:$0xff]
  %v2203 = vld [vmem:[%s2151 + $0x198] sm:$0xff]
  %v2204 = vld [vmem:[%s2151 + $0x1a0] sm:$0xff]
  %v2205 = vld [vmem:[%s2151 + $0x1a8] sm:$0xff]
  %v2206 = vld [vmem:[%s2151 + $0x1b0] sm:$0xff]
  %v2207 = vld [vmem:[%s2151 + $0x1b8] sm:$0xff]
  %v2208 = vld [vmem:[%s2151 + $0x1c0] sm:$0xff]
  %v2209 = vld [vmem:[%s2151 + $0x1c8] sm:$0xff]
  %v2210 = vld [vmem:[%s2151 + $0x1d0] sm:$0xff]
  %v2211 = vld [vmem:[%s2151 + $0x1d8] sm:$0xff]
  %v2212 = vld [vmem:[%s2151 + $0x1e0] sm:$0xff]
  %v2213 = vld [vmem:[%s2151 + $0x1e8] sm:$0xff]
  %v2214 = vld [vmem:[%s2151 + $0x1f0] sm:$0xff]
  %v2215 = vld [vmem:[%s2151 + $0x1f8] sm:$0xff]
  %v2216 = vld [vmem:[%s2151 + $0x200] sm:$0xff]
  %v2217 = vld [vmem:[%s2151 + $0x208] sm:$0xff]
  %v2218 = vld [vmem:[%s2151 + $0x210] sm:$0xff]
  %v2219 = vld [vmem:[%s2151 + $0x218] sm:$0xff]
  %v2220 = vld [vmem:[%s2151 + $0x220] sm:$0xff]
  %v2221 = vld [vmem:[%s2151 + $0x228] sm:$0xff]
  %v2222 = vld [vmem:[%s2151 + $0x230] sm:$0xff]
  %v2223 = vld [vmem:[%s2151 + $0x238] sm:$0xff]
  %v2224 = vld [vmem:[%s2151 + $0x240] sm:$0xff]
  %v2225 = vld [vmem:[%s2151 + $0x248] sm:$0xff]
  %v2226 = vld [vmem:[%s2151 + $0x250] sm:$0xff]
  %v2227 = vld [vmem:[%s2151 + $0x258] sm:$0xff]
  %v2228 = vld [vmem:[%s2151 + $0x260] sm:$0xff]
  %v2229 = vld [vmem:[%s2151 + $0x268] sm:$0xff]
  %v2230 = vld [vmem:[%s2151 + $0x270] sm:$0xff]
  %v2231 = vld [vmem:[%s2151 + $0x278] sm:$0xff]
  %v2232 = vld [vmem:[%s2151 + $0x280] sm:$0xff]
  %v2233 = vld [vmem:[%s2151 + $0x288] sm:$0xff]
  %v2234 = vld [vmem:[%s2151 + $0x290] sm:$0xff]
  %v2235 = vld [vmem:[%s2151 + $0x298] sm:$0xff]
  %v2236 = vld [vmem:[%s2151 + $0x2a0] sm:$0xff]
  %v2237 = vld [vmem:[%s2151 + $0x2a8] sm:$0xff]
  %v2238 = vld [vmem:[%s2151 + $0x2b0] sm:$0xff]
  %v2239 = vld [vmem:[%s2151 + $0x2b8] sm:$0xff]
  %v2240 = vld [vmem:[%s2151 + $0x2c0] sm:$0xff]
  %v2241 = vld [vmem:[%s2151 + $0x2c8] sm:$0xff]
  %v2242 = vld [vmem:[%s2151 + $0x2d0] sm:$0xff]
  %v2243 = vld [vmem:[%s2151 + $0x2d8] sm:$0xff]
  %v2244 = vld [vmem:[%s2151 + $0x2e0] sm:$0xff]
  %v2245 = vld [vmem:[%s2151 + $0x2e8] sm:$0xff]
  %v2246 = vld [vmem:[%s2151 + $0x2f0] sm:$0xff]
  %v2247 = vld [vmem:[%s2151 + $0x2f8] sm:$0xff]
  %v2248 = vld [vmem:[%s2151 + $0x300] sm:$0xff]
  %v2249 = vld [vmem:[%s2151 + $0x308] sm:$0xff]
  %v2250 = vld [vmem:[%s2151 + $0x310] sm:$0xff]
  %v2251 = vld [vmem:[%s2151 + $0x318] sm:$0xff]
  %v2252 = vld [vmem:[%s2151 + $0x320] sm:$0xff]
  %v2253 = vld [vmem:[%s2151 + $0x328] sm:$0xff]
  %v2254 = vld [vmem:[%s2151 + $0x330] sm:$0xff]
  %v2255 = vld [vmem:[%s2151 + $0x338] sm:$0xff]
  %v2256 = vld [vmem:[%s2151 + $0x340] sm:$0xff]
  %v2257 = vld [vmem:[%s2151 + $0x348] sm:$0xff]
  %v2258 = vld [vmem:[%s2151 + $0x350] sm:$0xff]
  %v2259 = vld [vmem:[%s2151 + $0x358] sm:$0xff]
  %v2260 = vld [vmem:[%s2151 + $0x360] sm:$0xff]
  %v2261 = vld [vmem:[%s2151 + $0x368] sm:$0xff]
  %v2262 = vld [vmem:[%s2151 + $0x370] sm:$0xff]
  %v2263 = vld [vmem:[%s2151 + $0x378] sm:$0xff]
  %v2264 = vld [vmem:[%s2151 + $0x380] sm:$0xff]
  %v2265 = vld [vmem:[%s2151 + $0x388] sm:$0xff]
  %v2266 = vld [vmem:[%s2151 + $0x390] sm:$0xff]
  %v2267 = vld [vmem:[%s2151 + $0x398] sm:$0xff]
  %v2268 = vld [vmem:[%s2151 + $0x3a0] sm:$0xff]
  %v2269 = vld [vmem:[%s2151 + $0x3a8] sm:$0xff]
  %v2270 = vld [vmem:[%s2151 + $0x3b0] sm:$0xff]
  %v2271 = vld [vmem:[%s2151 + $0x3b8] sm:$0xff]
  %v2272 = vld [vmem:[%s2151 + $0x3c0] sm:$0xff]
  %v2273 = vld [vmem:[%s2151 + $0x3c8] sm:$0xff]
  %v2274 = vld [vmem:[%s2151 + $0x3d0] sm:$0xff]
  %v2275 = vld [vmem:[%s2151 + $0x3d8] sm:$0xff]
  %v2276 = vld [vmem:[%s2151 + $0x3e0] sm:$0xff]
  %v2277 = vld [vmem:[%s2151 + $0x3e8] sm:$0xff]
  %v2278 = vld [vmem:[%s2151 + $0x3f0] sm:$0xff]
  %v2279 = vld [vmem:[%s2151 + $0x3f8] sm:$0xff]
  %v2280 = vld [vmem:[%s2151 + $0x400] sm:$0xff]
  %v2281 = vld [vmem:[%s2151 + $0x408] sm:$0xff]
  %v2282 = vld [vmem:[%s2151 + $0x410] sm:$0xff]
  %v2283 = vld [vmem:[%s2151 + $0x418] sm:$0xff]
  %v2284 = vld [vmem:[%s2151 + $0x420] sm:$0xff]
  %v2285 = vld [vmem:[%s2151 + $0x428] sm:$0xff]
  %v2286 = vld [vmem:[%s2151 + $0x430] sm:$0xff]
  %v2287 = vld [vmem:[%s2151 + $0x438] sm:$0xff]
  %v2288 = vld [vmem:[%s2151 + $0x440] sm:$0xff]
  %v2289 = vld [vmem:[%s2151 + $0x448] sm:$0xff]
  %v2290 = vld [vmem:[%s2151 + $0x450] sm:$0xff]
  %v2291 = vld [vmem:[%s2151 + $0x458] sm:$0xff]
  %v2292 = vld [vmem:[%s2151 + $0x460] sm:$0xff]
  %v2293 = vld [vmem:[%s2151 + $0x468] sm:$0xff]
  %v2294 = vld [vmem:[%s2151 + $0x470] sm:$0xff]
  %v2295 = vld [vmem:[%s2151 + $0x478] sm:$0xff]
  %v2296 = vld [vmem:[%s2151 + $0x480] sm:$0xff]
  %v2297 = vld [vmem:[%s2151 + $0x488] sm:$0xff]
  %v2298 = vld [vmem:[%s2151 + $0x490] sm:$0xff]
  %v2299 = vld [vmem:[%s2151 + $0x498] sm:$0xff]
  %v2300 = vld [vmem:[%s2151 + $0x4a0] sm:$0xff]
  %v2301 = vld [vmem:[%s2151 + $0x4a8] sm:$0xff]
  %v2302 = vld [vmem:[%s2151 + $0x4b0] sm:$0xff]
  %v2303 = vld [vmem:[%s2151 + $0x4b8] sm:$0xff]
  %v2304 = vld [vmem:[%s2151 + $0x4c0] sm:$0xff]
  %v2305 = vld [vmem:[%s2151 + $0x4c8] sm:$0xff]
  %v2306 = vld [vmem:[%s2151 + $0x4d0] sm:$0xff]
  %v2307 = vld [vmem:[%s2151 + $0x4d8] sm:$0xff]
  %v2308 = vld [vmem:[%s2151 + $0x4e0] sm:$0xff]
  %v2309 = vld [vmem:[%s2151 + $0x4e8] sm:$0xff]
  %v2310 = vld [vmem:[%s2151 + $0x4f0] sm:$0xff]
  %v2311 = vld [vmem:[%s2151 + $0x4f8] sm:$0xff]
  %v2312 = vld [vmem:[%s2151 + $0x500] sm:$0xff]
  %v2313 = vld [vmem:[%s2151 + $0x508] sm:$0xff]
  %v2314 = vld [vmem:[%s2151 + $0x510] sm:$0xff]
  %v2315 = vld [vmem:[%s2151 + $0x518] sm:$0xff]
  %v2316 = vld [vmem:[%s2151 + $0x520] sm:$0xff]
  %v2317 = vld [vmem:[%s2151 + $0x528] sm:$0xff]
  %v2318 = vld [vmem:[%s2151 + $0x530] sm:$0xff]
  %v2319 = vld [vmem:[%s2151 + $0x538] sm:$0xff]
  %v2320 = vld [vmem:[%s2151 + $0x540] sm:$0xff]
  %v2321 = vld [vmem:[%s2151 + $0x548] sm:$0xff]
  %v2322 = vld [vmem:[%s2151 + $0x550] sm:$0xff]
  %v2323 = vld [vmem:[%s2151 + $0x558] sm:$0xff]
  %v2324 = vld [vmem:[%s2151 + $0x560] sm:$0xff]
  %v2325 = vld [vmem:[%s2151 + $0x568] sm:$0xff]
  %v2326 = vld [vmem:[%s2151 + $0x570] sm:$0xff]
  %v2327 = vld [vmem:[%s2151 + $0x578] sm:$0xff]
  %v2328 = vld [vmem:[%s2151 + $0x580] sm:$0xff]
  %v2329 = vld [vmem:[%s2151 + $0x588] sm:$0xff]
  %v2330 = vld [vmem:[%s2151 + $0x590] sm:$0xff]
  %v2331 = vld [vmem:[%s2151 + $0x598] sm:$0xff]
  %v2338 = vrot.slane %v2145, 2
  %v2339 = vrot.slane %v731, 2
  %v2340 = vsel %vm156, %v2338, %v2339
  %v2341 = vrot.slane %v2146, 2
  %v2342 = vrot.slane %v732, 2
  %v2343 = vsel %vm156, %v2341, %v2342
  %v2344 = vrot.slane %v2147, 2
  %v2345 = vrot.slane %v733, 2
  %v2346 = vsel %vm156, %v2344, %v2345
  %v2347 = vrot.slane %v734, 2
  %v2348 = vsel %vm156, %v2339, %v2347
  %v2349 = vrot.slane %v735, 2
  %v2350 = vsel %vm156, %v2342, %v2349
  %v2351 = vrot.slane %v736, 2
  %v2352 = vsel %vm156, %v2345, %v2351
  %v2353 = vrot.slane %v737, 2
  %v2354 = vsel %vm156, %v2347, %v2353
  %v2355 = vrot.slane %v738, 2
  %v2356 = vsel %vm156, %v2349, %v2355
  %v2357 = vrot.slane %v739, 2
  %v2358 = vsel %vm156, %v2351, %v2357
  %v2359 = vrot.slane %v2148, 2
  %v2360 = vsel %vm156, %v2353, %v2359
  %v2361 = vrot.slane %v2149, 2
  %v2362 = vsel %vm156, %v2355, %v2361
  %v2363 = vrot.slane %v2150, 2
  %v2364 = vsel %vm156, %v2357, %v2363
  %v2375 = vsel %vm716, %v2346, 0
  %v2377 = vsel %vm716, %v2352, 0
  %v2379 = vsel %vm716, %v2358, 0
  %v2381 = vsel %vm716, %v2364, 0
  %v2383 = vsel %vm716, %v2363, 0
  %2385 = vmatpush.msra.mxu0 %v2227
  %2386 = vmatpush.msra.mxu0 %v2222
  %2387 = vmatpush.msra.mxu0 %v2217
  %2388 = vmatpush.msra.mxu0 %v2212
  %2389 = vmatpush.msra.mxu0 %v2207
  %2390 = vmatpush.msra.mxu0 %v2202
  %2391 = vmatpush.msra.mxu0 %v2197
  %2392 = vmatpush.msra.mxu0 %v2192
  %2393 = vmatpush.msra.mxu0 %v2187
  %2394 = vmatpush.msra.mxu0 %v2182
  %2395 = vmatpush.msra.mxu0 %v2177
  %2396 = vmatpush.msra.mxu0 %v2172
  %2397 = vmatpush.msra.mxu0 %v2167
  %2398 = vmatpush.msra.mxu0 %v2162
  %2399 = vmatpush.msra.mxu0 %v2157
  %2400 = vmatpush.msra.mxu0 %v2152
  %2401 = vmatmul.f32.gmra.mxu0 %v2340
  %v2402 = vpop.f32.mrf.mxu0
  %v2403 = vadd.f32 0.0, %v2402
  %2404 = vmatmul.f32.gmra.mxu0 %v2348
  %v2405 = vpop.f32.mrf.mxu0
  %v2406 = vadd.f32 0.0, %v2405
  %2407 = vmatmul.f32.gmra.mxu0 %v2354
  %v2408 = vpop.f32.mrf.mxu0
  %v2409 = vadd.f32 0.0, %v2408
  %2410 = vmatmul.f32.gmra.mxu0 %v2360
  %v2411 = vpop.f32.mrf.mxu0
  %v2412 = vadd.f32 0.0, %v2411
  %2413 = vmatmul.f32.gmra.mxu0 %v2359
  %v2414 = vpop.f32.mrf.mxu0
  %v2415 = vadd.f32 0.0, %v2414
  %2416 = vdwg.mxu0
  %2417 = vmatpush.msra.mxu0 %v2307
  %2418 = vmatpush.msra.mxu0 %v2302
  %2419 = vmatpush.msra.mxu0 %v2297
  %2420 = vmatpush.msra.mxu0 %v2292
  %2421 = vmatpush.msra.mxu0 %v2287
  %2422 = vmatpush.msra.mxu0 %v2282
  %2423 = vmatpush.msra.mxu0 %v2277
  %2424 = vmatpush.msra.mxu0 %v2272
  %2425 = vmatpush.msra.mxu0 %v2267
  %2426 = vmatpush.msra.mxu0 %v2262
  %2427 = vmatpush.msra.mxu0 %v2257
  %2428 = vmatpush.msra.mxu0 %v2252
  %2429 = vmatpush.msra.mxu0 %v2247
  %2430 = vmatpush.msra.mxu0 %v2242
  %2431 = vmatpush.msra.mxu0 %v2237
  %2432 = vmatpush.msra.mxu0 %v2232
  %2433 = vmatmul.f32.gmra.mxu0 %v2343
  %v2434 = vpop.f32.mrf.mxu0
  %v2435 = vadd.f32 %v2403, %v2434
  %2436 = vmatmul.f32.gmra.mxu0 %v2350
  %v2437 = vpop.f32.mrf.mxu0
  %v2438 = vadd.f32 %v2406, %v2437
  %2439 = vmatmul.f32.gmra.mxu0 %v2356
  %v2440 = vpop.f32.mrf.mxu0
  %v2441 = vadd.f32 %v2409, %v2440
  %2442 = vmatmul.f32.gmra.mxu0 %v2362
  %v2443 = vpop.f32.mrf.mxu0
  %v2444 = vadd.f32 %v2412, %v2443
  %2445 = vmatmul.f32.gmra.mxu0 %v2361
  %v2446 = vpop.f32.mrf.mxu0
  %v2447 = vadd.f32 %v2415, %v2446
  %2448 = vdwg.mxu0
  %2449 = vmatpush.msra.mxu0 0.0
  %2450 = vmatpush.msra.mxu0 0.0
  %2451 = vmatpush.msra.mxu0 0.0
  %2452 = vmatpush.msra.mxu0 0.0
  %2453 = vmatpush.msra.mxu0 0.0
  %2454 = vmatpush.msra.mxu0 0.0
  %2455 = vmatpush.msra.mxu0 0.0
  %2456 = vmatpush.msra.mxu0 0.0
  %2457 = vmatpush.msra.mxu0 0.0
  %2458 = vmatpush.msra.mxu0 0.0
  %2459 = vmatpush.msra.mxu0 0.0
  %2460 = vmatpush.msra.mxu0 0.0
  %2461 = vmatpush.msra.mxu0 %v2327
  %2462 = vmatpush.msra.mxu0 %v2322
  %2463 = vmatpush.msra.mxu0 %v2317
  %2464 = vmatpush.msra.mxu0 %v2312
  %2465 = vmatmul.f32.gmra.mxu0 %v2375
  %v2466 = vpop.f32.mrf.mxu0
  %v2467 = vadd.f32 %v2435, %v2466
  %2468 = vmatmul.f32.gmra.mxu0 %v2377
  %v2469 = vpop.f32.mrf.mxu0
  %v2470 = vadd.f32 %v2438, %v2469
  %2471 = vmatmul.f32.gmra.mxu0 %v2379
  %v2472 = vpop.f32.mrf.mxu0
  %v2473 = vadd.f32 %v2441, %v2472
  %2474 = vmatmul.f32.gmra.mxu0 %v2381
  %v2475 = vpop.f32.mrf.mxu0
  %v2476 = vadd.f32 %v2444, %v2475
  %2477 = vmatmul.f32.gmra.mxu0 %v2383
  %v2478 = vpop.f32.mrf.mxu0
  %v2479 = vadd.f32 %v2447, %v2478
  %2480 = vdwg.mxu0
  %2481 = vmatpush.msra.mxu0 %v2228
  %2482 = vmatpush.msra.mxu0 %v2223
  %2483 = vmatpush.msra.mxu0 %v2218
  %2484 = vmatpush.msra.mxu0 %v2213
  %2485 = vmatpush.msra.mxu0 %v2208
  %2486 = vmatpush.msra.mxu0 %v2203
  %2487 = vmatpush.msra.mxu0 %v2198
  %2488 = vmatpush.msra.mxu0 %v2193
  %2489 = vmatpush.msra.mxu0 %v2188
  %2490 = vmatpush.msra.mxu0 %v2183
  %2491 = vmatpush.msra.mxu0 %v2178
  %2492 = vmatpush.msra.mxu0 %v2173
  %2493 = vmatpush.msra.mxu0 %v2168
  %2494 = vmatpush.msra.mxu0 %v2163
  %2495 = vmatpush.msra.mxu0 %v2158
  %2496 = vmatpush.msra.mxu0 %v2153
  %2497 = vmatmul.f32.gmra.mxu0 %v2340
  %v2498 = vpop.f32.mrf.mxu0
  %v2499 = vadd.f32 0.0, %v2498
  %2500 = vmatmul.f32.gmra.mxu0 %v2348
  %v2501 = vpop.f32.mrf.mxu0
  %v2502 = vadd.f32 0.0, %v2501
  %2503 = vmatmul.f32.gmra.mxu0 %v2354
  %v2504 = vpop.f32.mrf.mxu0
  %v2505 = vadd.f32 0.0, %v2504
  %2506 = vmatmul.f32.gmra.mxu0 %v2360
  %v2507 = vpop.f32.mrf.mxu0
  %v2508 = vadd.f32 0.0, %v2507
  %2509 = vmatmul.f32.gmra.mxu0 %v2359
  %v2510 = vpop.f32.mrf.mxu0
  %v2511 = vadd.f32 0.0, %v2510
  %2512 = vdwg.mxu0
  %2513 = vmatpush.msra.mxu0 %v2308
  %2514 = vmatpush.msra.mxu0 %v2303
  %2515 = vmatpush.msra.mxu0 %v2298
  %2516 = vmatpush.msra.mxu0 %v2293
  %2517 = vmatpush.msra.mxu0 %v2288
  %2518 = vmatpush.msra.mxu0 %v2283
  %2519 = vmatpush.msra.mxu0 %v2278
  %2520 = vmatpush.msra.mxu0 %v2273
  %2521 = vmatpush.msra.mxu0 %v2268
  %2522 = vmatpush.msra.mxu0 %v2263
  %2523 = vmatpush.msra.mxu0 %v2258
  %2524 = vmatpush.msra.mxu0 %v2253
  %2525 = vmatpush.msra.mxu0 %v2248
  %2526 = vmatpush.msra.mxu0 %v2243
  %2527 = vmatpush.msra.mxu0 %v2238
  %2528 = vmatpush.msra.mxu0 %v2233
  %2529 = vmatmul.f32.gmra.mxu0 %v2343
  %v2530 = vpop.f32.mrf.mxu0
  %v2531 = vadd.f32 %v2499, %v2530
  %2532 = vmatmul.f32.gmra.mxu0 %v2350
  %v2533 = vpop.f32.mrf.mxu0
  %v2534 = vadd.f32 %v2502, %v2533
  %2535 = vmatmul.f32.gmra.mxu0 %v2356
  %v2536 = vpop.f32.mrf.mxu0
  %v2537 = vadd.f32 %v2505, %v2536
  %2538 = vmatmul.f32.gmra.mxu0 %v2362
  %v2539 = vpop.f32.mrf.mxu0
  %v2540 = vadd.f32 %v2508, %v2539
  %2541 = vmatmul.f32.gmra.mxu0 %v2361
  %v2542 = vpop.f32.mrf.mxu0
  %v2543 = vadd.f32 %v2511, %v2542
  %2544 = vdwg.mxu0
  %2545 = vmatpush.msra.mxu0 0.0
  %2546 = vmatpush.msra.mxu0 0.0
  %2547 = vmatpush.msra.mxu0 0.0
  %2548 = vmatpush.msra.mxu0 0.0
  %2549 = vmatpush.msra.mxu0 0.0
  %2550 = vmatpush.msra.mxu0 0.0
  %2551 = vmatpush.msra.mxu0 0.0
  %2552 = vmatpush.msra.mxu0 0.0
  %2553 = vmatpush.msra.mxu0 0.0
  %2554 = vmatpush.msra.mxu0 0.0
  %2555 = vmatpush.msra.mxu0 0.0
  %2556 = vmatpush.msra.mxu0 0.0
  %2557 = vmatpush.msra.mxu0 %v2328
  %2558 = vmatpush.msra.mxu0 %v2323
  %2559 = vmatpush.msra.mxu0 %v2318
  %2560 = vmatpush.msra.mxu0 %v2313
  %2561 = vmatmul.f32.gmra.mxu0 %v2375
  %v2562 = vpop.f32.mrf.mxu0
  %v2563 = vadd.f32 %v2531, %v2562
  %2564 = vmatmul.f32.gmra.mxu0 %v2377
  %v2565 = vpop.f32.mrf.mxu0
  %v2566 = vadd.f32 %v2534, %v2565
  %2567 = vmatmul.f32.gmra.mxu0 %v2379
  %v2568 = vpop.f32.mrf.mxu0
  %v2569 = vadd.f32 %v2537, %v2568
  %2570 = vmatmul.f32.gmra.mxu0 %v2381
  %v2571 = vpop.f32.mrf.mxu0
  %v2572 = vadd.f32 %v2540, %v2571
  %2573 = vmatmul.f32.gmra.mxu0 %v2383
  %v2574 = vpop.f32.mrf.mxu0
  %v2575 = vadd.f32 %v2543, %v2574
  %2576 = vdwg.mxu0
  %2577 = vmatpush.msra.mxu0 %v2229
  %2578 = vmatpush.msra.mxu0 %v2224
  %2579 = vmatpush.msra.mxu0 %v2219
  %2580 = vmatpush.msra.mxu0 %v2214
  %2581 = vmatpush.msra.mxu0 %v2209
  %2582 = vmatpush.msra.mxu0 %v2204
  %2583 = vmatpush.msra.mxu0 %v2199
  %2584 = vmatpush.msra.mxu0 %v2194
  %2585 = vmatpush.msra.mxu0 %v2189
  %2586 = vmatpush.msra.mxu0 %v2184
  %2587 = vmatpush.msra.mxu0 %v2179
  %2588 = vmatpush.msra.mxu0 %v2174
  %2589 = vmatpush.msra.mxu0 %v2169
  %2590 = vmatpush.msra.mxu0 %v2164
  %2591 = vmatpush.msra.mxu0 %v2159
  %2592 = vmatpush.msra.mxu0 %v2154
  %2593 = vmatmul.f32.gmra.mxu0 %v2340
  %v2594 = vpop.f32.mrf.mxu0
  %v2595 = vadd.f32 0.0, %v2594
  %2596 = vmatmul.f32.gmra.mxu0 %v2348
  %v2597 = vpop.f32.mrf.mxu0
  %v2598 = vadd.f32 0.0, %v2597
  %2599 = vmatmul.f32.gmra.mxu0 %v2354
  %v2600 = vpop.f32.mrf.mxu0
  %v2601 = vadd.f32 0.0, %v2600
  %2602 = vmatmul.f32.gmra.mxu0 %v2360
  %v2603 = vpop.f32.mrf.mxu0
  %v2604 = vadd.f32 0.0, %v2603
  %2605 = vmatmul.f32.gmra.mxu0 %v2359
  %v2606 = vpop.f32.mrf.mxu0
  %v2607 = vadd.f32 0.0, %v2606
  %2608 = vdwg.mxu0
  %2609 = vmatpush.msra.mxu0 %v2309
  %2610 = vmatpush.msra.mxu0 %v2304
  %2611 = vmatpush.msra.mxu0 %v2299
  %2612 = vmatpush.msra.mxu0 %v2294
  %2613 = vmatpush.msra.mxu0 %v2289
  %2614 = vmatpush.msra.mxu0 %v2284
  %2615 = vmatpush.msra.mxu0 %v2279
  %2616 = vmatpush.msra.mxu0 %v2274
  %2617 = vmatpush.msra.mxu0 %v2269
  %2618 = vmatpush.msra.mxu0 %v2264
  %2619 = vmatpush.msra.mxu0 %v2259
  %2620 = vmatpush.msra.mxu0 %v2254
  %2621 = vmatpush.msra.mxu0 %v2249
  %2622 = vmatpush.msra.mxu0 %v2244
  %2623 = vmatpush.msra.mxu0 %v2239
  %2624 = vmatpush.msra.mxu0 %v2234
  %2625 = vmatmul.f32.gmra.mxu0 %v2343
  %v2626 = vpop.f32.mrf.mxu0
  %v2627 = vadd.f32 %v2595, %v2626
  %2628 = vmatmul.f32.gmra.mxu0 %v2350
  %v2629 = vpop.f32.mrf.mxu0
  %v2630 = vadd.f32 %v2598, %v2629
  %2631 = vmatmul.f32.gmra.mxu0 %v2356
  %v2632 = vpop.f32.mrf.mxu0
  %v2633 = vadd.f32 %v2601, %v2632
  %2634 = vmatmul.f32.gmra.mxu0 %v2362
  %v2635 = vpop.f32.mrf.mxu0
  %v2636 = vadd.f32 %v2604, %v2635
  %2637 = vmatmul.f32.gmra.mxu0 %v2361
  %v2638 = vpop.f32.mrf.mxu0
  %v2639 = vadd.f32 %v2607, %v2638
  %2640 = vdwg.mxu0
  %2641 = vmatpush.msra.mxu0 0.0
  %2642 = vmatpush.msra.mxu0 0.0
  %2643 = vmatpush.msra.mxu0 0.0
  %2644 = vmatpush.msra.mxu0 0.0
  %2645 = vmatpush.msra.mxu0 0.0
  %2646 = vmatpush.msra.mxu0 0.0
  %2647 = vmatpush.msra.mxu0 0.0
  %2648 = vmatpush.msra.mxu0 0.0
  %2649 = vmatpush.msra.mxu0 0.0
  %2650 = vmatpush.msra.mxu0 0.0
  %2651 = vmatpush.msra.mxu0 0.0
  %2652 = vmatpush.msra.mxu0 0.0
  %2653 = vmatpush.msra.mxu0 %v2329
  %2654 = vmatpush.msra.mxu0 %v2324
  %2655 = vmatpush.msra.mxu0 %v2319
  %2656 = vmatpush.msra.mxu0 %v2314
  %2657 = vmatmul.f32.gmra.mxu0 %v2375
  %v2658 = vpop.f32.mrf.mxu0
  %v2659 = vadd.f32 %v2627, %v2658
  %2660 = vmatmul.f32.gmra.mxu0 %v2377
  %v2661 = vpop.f32.mrf.mxu0
  %v2662 = vadd.f32 %v2630, %v2661
  %2663 = vmatmul.f32.gmra.mxu0 %v2379
  %v2664 = vpop.f32.mrf.mxu0
  %v2665 = vadd.f32 %v2633, %v2664
  %2666 = vmatmul.f32.gmra.mxu0 %v2381
  %v2667 = vpop.f32.mrf.mxu0
  %v2668 = vadd.f32 %v2636, %v2667
  %2669 = vmatmul.f32.gmra.mxu0 %v2383
  %v2670 = vpop.f32.mrf.mxu0
  %v2671 = vadd.f32 %v2639, %v2670
  %2672 = vdwg.mxu0
  %2673 = vmatpush.msra.mxu0 %v2230
  %2674 = vmatpush.msra.mxu0 %v2225
  %2675 = vmatpush.msra.mxu0 %v2220
  %2676 = vmatpush.msra.mxu0 %v2215
  %2677 = vmatpush.msra.mxu0 %v2210
  %2678 = vmatpush.msra.mxu0 %v2205
  %2679 = vmatpush.msra.mxu0 %v2200
  %2680 = vmatpush.msra.mxu0 %v2195
  %2681 = vmatpush.msra.mxu0 %v2190
  %2682 = vmatpush.msra.mxu0 %v2185
  %2683 = vmatpush.msra.mxu0 %v2180
  %2684 = vmatpush.msra.mxu0 %v2175
  %2685 = vmatpush.msra.mxu0 %v2170
  %2686 = vmatpush.msra.mxu0 %v2165
  %2687 = vmatpush.msra.mxu0 %v2160
  %2688 = vmatpush.msra.mxu0 %v2155
  %2689 = vmatmul.f32.gmra.mxu0 %v2340
  %v2690 = vpop.f32.mrf.mxu0
  %v2691 = vadd.f32 0.0, %v2690
  %2692 = vmatmul.f32.gmra.mxu0 %v2348
  %v2693 = vpop.f32.mrf.mxu0
  %v2694 = vadd.f32 0.0, %v2693
  %2695 = vmatmul.f32.gmra.mxu0 %v2354
  %v2696 = vpop.f32.mrf.mxu0
  %v2697 = vadd.f32 0.0, %v2696
  %2698 = vmatmul.f32.gmra.mxu0 %v2360
  %v2699 = vpop.f32.mrf.mxu0
  %v2700 = vadd.f32 0.0, %v2699
  %2701 = vmatmul.f32.gmra.mxu0 %v2359
  %v2702 = vpop.f32.mrf.mxu0
  %v2703 = vadd.f32 0.0, %v2702
  %2704 = vdwg.mxu0
  %2705 = vmatpush.msra.mxu0 %v2310
  %2706 = vmatpush.msra.mxu0 %v2305
  %2707 = vmatpush.msra.mxu0 %v2300
  %2708 = vmatpush.msra.mxu0 %v2295
  %2709 = vmatpush.msra.mxu0 %v2290
  %2710 = vmatpush.msra.mxu0 %v2285
  %2711 = vmatpush.msra.mxu0 %v2280
  %2712 = vmatpush.msra.mxu0 %v2275
  %2713 = vmatpush.msra.mxu0 %v2270
  %2714 = vmatpush.msra.mxu0 %v2265
  %2715 = vmatpush.msra.mxu0 %v2260
  %2716 = vmatpush.msra.mxu0 %v2255
  %2717 = vmatpush.msra.mxu0 %v2250
  %2718 = vmatpush.msra.mxu0 %v2245
  %2719 = vmatpush.msra.mxu0 %v2240
  %2720 = vmatpush.msra.mxu0 %v2235
  %2721 = vmatmul.f32.gmra.mxu0 %v2343
  %v2722 = vpop.f32.mrf.mxu0
  %v2723 = vadd.f32 %v2691, %v2722
  %2724 = vmatmul.f32.gmra.mxu0 %v2350
  %v2725 = vpop.f32.mrf.mxu0
  %v2726 = vadd.f32 %v2694, %v2725
  %2727 = vmatmul.f32.gmra.mxu0 %v2356
  %v2728 = vpop.f32.mrf.mxu0
  %v2729 = vadd.f32 %v2697, %v2728
  %2730 = vmatmul.f32.gmra.mxu0 %v2362
  %v2731 = vpop.f32.mrf.mxu0
  %v2732 = vadd.f32 %v2700, %v2731
  %2733 = vmatmul.f32.gmra.mxu0 %v2361
  %v2734 = vpop.f32.mrf.mxu0
  %v2735 = vadd.f32 %v2703, %v2734
  %2736 = vdwg.mxu0
  %2737 = vmatpush.msra.mxu0 0.0
  %2738 = vmatpush.msra.mxu0 0.0
  %2739 = vmatpush.msra.mxu0 0.0
  %2740 = vmatpush.msra.mxu0 0.0
  %2741 = vmatpush.msra.mxu0 0.0
  %2742 = vmatpush.msra.mxu0 0.0
  %2743 = vmatpush.msra.mxu0 0.0
  %2744 = vmatpush.msra.mxu0 0.0
  %2745 = vmatpush.msra.mxu0 0.0
  %2746 = vmatpush.msra.mxu0 0.0
  %2747 = vmatpush.msra.mxu0 0.0
  %2748 = vmatpush.msra.mxu0 0.0
  %2749 = vmatpush.msra.mxu0 %v2330
  %2750 = vmatpush.msra.mxu0 %v2325
  %2751 = vmatpush.msra.mxu0 %v2320
  %2752 = vmatpush.msra.mxu0 %v2315
  %2753 = vmatmul.f32.gmra.mxu0 %v2375
  %v2754 = vpop.f32.mrf.mxu0
  %v2755 = vadd.f32 %v2723, %v2754
  %2756 = vmatmul.f32.gmra.mxu0 %v2377
  %v2757 = vpop.f32.mrf.mxu0
  %v2758 = vadd.f32 %v2726, %v2757
  %2759 = vmatmul.f32.gmra.mxu0 %v2379
  %v2760 = vpop.f32.mrf.mxu0
  %v2761 = vadd.f32 %v2729, %v2760
  %2762 = vmatmul.f32.gmra.mxu0 %v2381
  %v2763 = vpop.f32.mrf.mxu0
  %v2764 = vadd.f32 %v2732, %v2763
  %2765 = vmatmul.f32.gmra.mxu0 %v2383
  %v2766 = vpop.f32.mrf.mxu0
  %v2767 = vadd.f32 %v2735, %v2766
  %2768 = vdwg.mxu0
  %2769 = vmatpush.msra.mxu0 %v2231
  %2770 = vmatpush.msra.mxu0 %v2226
  %2771 = vmatpush.msra.mxu0 %v2221
  %2772 = vmatpush.msra.mxu0 %v2216
  %2773 = vmatpush.msra.mxu0 %v2211
  %2774 = vmatpush.msra.mxu0 %v2206
  %2775 = vmatpush.msra.mxu0 %v2201
  %2776 = vmatpush.msra.mxu0 %v2196
  %2777 = vmatpush.msra.mxu0 %v2191
  %2778 = vmatpush.msra.mxu0 %v2186
  %2779 = vmatpush.msra.mxu0 %v2181
  %2780 = vmatpush.msra.mxu0 %v2176
  %2781 = vmatpush.msra.mxu0 %v2171
  %2782 = vmatpush.msra.mxu0 %v2166
  %2783 = vmatpush.msra.mxu0 %v2161
  %2784 = vmatpush.msra.mxu0 %v2156
  %2785 = vmatmul.f32.gmra.mxu0 %v2340
  %v2786 = vpop.f32.mrf.mxu0
  %v2787 = vadd.f32 0.0, %v2786
  %2788 = vmatmul.f32.gmra.mxu0 %v2348
  %v2789 = vpop.f32.mrf.mxu0
  %v2790 = vadd.f32 0.0, %v2789
  %2791 = vmatmul.f32.gmra.mxu0 %v2354
  %v2792 = vpop.f32.mrf.mxu0
  %v2793 = vadd.f32 0.0, %v2792
  %2794 = vmatmul.f32.gmra.mxu0 %v2360
  %v2795 = vpop.f32.mrf.mxu0
  %v2796 = vadd.f32 0.0, %v2795
  %2797 = vmatmul.f32.gmra.mxu0 %v2359
  %v2798 = vpop.f32.mrf.mxu0
  %v2799 = vadd.f32 0.0, %v2798
  %2800 = vdwg.mxu0
  %2801 = vmatpush.msra.mxu0 %v2311
  %2802 = vmatpush.msra.mxu0 %v2306
  %2803 = vmatpush.msra.mxu0 %v2301
  %2804 = vmatpush.msra.mxu0 %v2296
  %2805 = vmatpush.msra.mxu0 %v2291
  %2806 = vmatpush.msra.mxu0 %v2286
  %2807 = vmatpush.msra.mxu0 %v2281
  %2808 = vmatpush.msra.mxu0 %v2276
  %2809 = vmatpush.msra.mxu0 %v2271
  %2810 = vmatpush.msra.mxu0 %v2266
  %2811 = vmatpush.msra.mxu0 %v2261
  %2812 = vmatpush.msra.mxu0 %v2256
  %2813 = vmatpush.msra.mxu0 %v2251
  %2814 = vmatpush.msra.mxu0 %v2246
  %2815 = vmatpush.msra.mxu0 %v2241
  %2816 = vmatpush.msra.mxu0 %v2236
  %2817 = vmatmul.f32.gmra.mxu0 %v2343
  %v2818 = vpop.f32.mrf.mxu0
  %v2819 = vadd.f32 %v2787, %v2818
  %2820 = vmatmul.f32.gmra.mxu0 %v2350
  %v2821 = vpop.f32.mrf.mxu0
  %v2822 = vadd.f32 %v2790, %v2821
  %2823 = vmatmul.f32.gmra.mxu0 %v2356
  %v2824 = vpop.f32.mrf.mxu0
  %v2825 = vadd.f32 %v2793, %v2824
  %2826 = vmatmul.f32.gmra.mxu0 %v2362
  %v2827 = vpop.f32.mrf.mxu0
  %v2828 = vadd.f32 %v2796, %v2827
  %2829 = vmatmul.f32.gmra.mxu0 %v2361
  %v2830 = vpop.f32.mrf.mxu0
  %v2831 = vadd.f32 %v2799, %v2830
  %2832 = vdwg.mxu0
  %2833 = vmatpush.msra.mxu0 0.0
  %2834 = vmatpush.msra.mxu0 0.0
  %2835 = vmatpush.msra.mxu0 0.0
  %2836 = vmatpush.msra.mxu0 0.0
  %2837 = vmatpush.msra.mxu0 0.0
  %2838 = vmatpush.msra.mxu0 0.0
  %2839 = vmatpush.msra.mxu0 0.0
  %2840 = vmatpush.msra.mxu0 0.0
  %2841 = vmatpush.msra.mxu0 0.0
  %2842 = vmatpush.msra.mxu0 0.0
  %2843 = vmatpush.msra.mxu0 0.0
  %2844 = vmatpush.msra.mxu0 0.0
  %2845 = vmatpush.msra.mxu0 %v2331
  %2846 = vmatpush.msra.mxu0 %v2326
  %2847 = vmatpush.msra.mxu0 %v2321
  %2848 = vmatpush.msra.mxu0 %v2316
  %2849 = vmatmul.f32.gmra.mxu0 %v2375
  %v2850 = vpop.f32.mrf.mxu0
  %v2851 = vadd.f32 %v2819, %v2850
  %2852 = vmatmul.f32.gmra.mxu0 %v2377
  %v2853 = vpop.f32.mrf.mxu0
  %v2854 = vadd.f32 %v2822, %v2853
  %2855 = vmatmul.f32.gmra.mxu0 %v2379
  %v2856 = vpop.f32.mrf.mxu0
  %v2857 = vadd.f32 %v2825, %v2856
  %2858 = vmatmul.f32.gmra.mxu0 %v2381
  %v2859 = vpop.f32.mrf.mxu0
  %v2860 = vadd.f32 %v2828, %v2859
  %2861 = vmatmul.f32.gmra.mxu0 %v2383
  %v2862 = vpop.f32.mrf.mxu0
  %v2863 = vadd.f32 %v2831, %v2862
  %2864 = vdwg.mxu0
  %v2865 = vadd.f32 %v1747, %v2467
  %v2866 = vadd.f32 %v1843, %v2563
  %v2867 = vadd.f32 %v1939, %v2659
  %v2868 = vadd.f32 %v2035, %v2755
  %v2869 = vadd.f32 %v2131, %v2851
  %v2870 = vadd.f32 %v1750, %v2470
  %v2871 = vadd.f32 %v1846, %v2566
  %v2872 = vadd.f32 %v1942, %v2662
  %v2873 = vadd.f32 %v2038, %v2758
  %v2874 = vadd.f32 %v2134, %v2854
  %v2875 = vadd.f32 %v1753, %v2473
  %v2876 = vadd.f32 %v1849, %v2569
  %v2877 = vadd.f32 %v1945, %v2665
  %v2878 = vadd.f32 %v2041, %v2761
  %v2879 = vadd.f32 %v2137, %v2857
  %v2880 = vadd.f32 %v1756, %v2476
  %v2881 = vadd.f32 %v1852, %v2572
  %v2882 = vadd.f32 %v1948, %v2668
  %v2883 = vadd.f32 %v2044, %v2764
  %v2884 = vadd.f32 %v2140, %v2860
  %v2885 = vadd.f32 %v1759, %v2479
  %v2886 = vadd.f32 %v1855, %v2575
  %v2887 = vadd.f32 %v1951, %v2671
  %v2888 = vadd.f32 %v2047, %v2767
  %v2889 = vadd.f32 %v2143, %v2863
  %v2890 = vld [vmem:[%s4] sm:$0x1f]
  %v2892 = vperm.slane %v2890, 0
  %v2893 = vperm.slane %v2890, 1
  %v2894 = vperm.slane %v2890, 2
  %v2895 = vperm.slane %v2890, 3
  %v2896 = vperm.slane %v2890, 4
  %v2902 = vadd.f32 %v2865, %v2892
  %v2903 = vadd.f32 %v2866, %v2893
  %v2904 = vadd.f32 %v2867, %v2894
  %v2905 = vadd.f32 %v2868, %v2895
  %v2906 = vadd.f32 %v2869, %v2896
  %v2907 = vadd.f32 %v2870, %v2892
  %v2908 = vadd.f32 %v2871, %v2893
  %v2909 = vadd.f32 %v2872, %v2894
  %v2910 = vadd.f32 %v2873, %v2895
  %v2911 = vadd.f32 %v2874, %v2896
  %v2912 = vadd.f32 %v2875, %v2892
  %v2913 = vadd.f32 %v2876, %v2893
  %v2914 = vadd.f32 %v2877, %v2894
  %v2915 = vadd.f32 %v2878, %v2895
  %v2916 = vadd.f32 %v2879, %v2896
  %v2917 = vadd.f32 %v2880, %v2892
  %v2918 = vadd.f32 %v2881, %v2893
  %v2919 = vadd.f32 %v2882, %v2894
  %v2920 = vadd.f32 %v2883, %v2895
  %v2921 = vadd.f32 %v2884, %v2896
  %v2922 = vadd.f32 %v2885, %v2892
  %v2923 = vadd.f32 %v2886, %v2893
  %v2924 = vadd.f32 %v2887, %v2894
  %v2925 = vadd.f32 %v2888, %v2895
  %v2926 = vadd.f32 %v2889, %v2896
  %v2927 = vmul.f32 %v2902, %v570
  %v2928 = vmul.f32 %v2903, %v570
  %v2929 = vmul.f32 %v2904, %v570
  %v2930 = vmul.f32 %v2905, %v570
  %v2931 = vmul.f32 %v2906, %v570
  %v2932 = vmul.f32 %v2907, %v575
  %v2933 = vmul.f32 %v2908, %v575
  %v2934 = vmul.f32 %v2909, %v575
  %v2935 = vmul.f32 %v2910, %v575
  %v2936 = vmul.f32 %v2911, %v575
  %v2937 = vmul.f32 %v2912, %v580
  %v2938 = vmul.f32 %v2913, %v580
  %v2939 = vmul.f32 %v2914, %v580
  %v2940 = vmul.f32 %v2915, %v580
  %v2941 = vmul.f32 %v2916, %v580
  %v2942 = vmul.f32 %v2917, %v585
  %v2943 = vmul.f32 %v2918, %v585
  %v2944 = vmul.f32 %v2919, %v585
  %v2945 = vmul.f32 %v2920, %v585
  %v2946 = vmul.f32 %v2921, %v585
  %v2947 = vmul.f32 %v2922, %v590
  %v2948 = vmul.f32 %v2923, %v590
  %v2949 = vmul.f32 %v2924, %v590
  %v2950 = vmul.f32 %v2925, %v590
  %v2951 = vmul.f32 %v2926, %v590
  %vm2952 = vcmp.gt.f32.partialorder %v2927, 0.0
  %vm2953 = vcmp.gt.f32.partialorder %v2928, 0.0
  %vm2954 = vcmp.gt.f32.partialorder %v2929, 0.0
  %vm2955 = vcmp.gt.f32.partialorder %v2930, 0.0
  %vm2956 = vcmp.gt.f32.partialorder %v2931, 0.0
  %vm2957 = vcmp.gt.f32.partialorder %v2932, 0.0
  %vm2958 = vcmp.gt.f32.partialorder %v2933, 0.0
  %vm2959 = vcmp.gt.f32.partialorder %v2934, 0.0
  %vm2960 = vcmp.gt.f32.partialorder %v2935, 0.0
  %vm2961 = vcmp.gt.f32.partialorder %v2936, 0.0
  %vm2962 = vcmp.gt.f32.partialorder %v2937, 0.0
  %vm2963 = vcmp.gt.f32.partialorder %v2938, 0.0
  %vm2964 = vcmp.gt.f32.partialorder %v2939, 0.0
  %vm2965 = vcmp.gt.f32.partialorder %v2940, 0.0
  %vm2966 = vcmp.gt.f32.partialorder %v2941, 0.0
  %vm2967 = vcmp.gt.f32.partialorder %v2942, 0.0
  %vm2968 = vcmp.gt.f32.partialorder %v2943, 0.0
  %vm2969 = vcmp.gt.f32.partialorder %v2944, 0.0
  %vm2970 = vcmp.gt.f32.partialorder %v2945, 0.0
  %vm2971 = vcmp.gt.f32.partialorder %v2946, 0.0
  %vm2972 = vcmp.gt.f32.partialorder %v2947, 0.0
  %vm2973 = vcmp.gt.f32.partialorder %v2948, 0.0
  %vm2974 = vcmp.gt.f32.partialorder %v2949, 0.0
  %vm2975 = vcmp.gt.f32.partialorder %v2950, 0.0
  %vm2976 = vcmp.gt.f32.partialorder %v2951, 0.0
  %v2977 = vmul.f32 %v2927, 0.2
  %v2978 = vmul.f32 %v2928, 0.2
  %v2979 = vmul.f32 %v2929, 0.2
  %v2980 = vmul.f32 %v2930, 0.2
  %v2981 = vmul.f32 %v2931, 0.2
  %v2982 = vmul.f32 %v2932, 0.2
  %v2983 = vmul.f32 %v2933, 0.2
  %v2984 = vmul.f32 %v2934, 0.2
  %v2985 = vmul.f32 %v2935, 0.2
  %v2986 = vmul.f32 %v2936, 0.2
  %v2987 = vmul.f32 %v2937, 0.2
  %v2988 = vmul.f32 %v2938, 0.2
  %v2989 = vmul.f32 %v2939, 0.2
  %v2990 = vmul.f32 %v2940, 0.2
  %v2991 = vmul.f32 %v2941, 0.2
  %v2992 = vmul.f32 %v2942, 0.2
  %v2993 = vmul.f32 %v2943, 0.2
  %v2994 = vmul.f32 %v2944, 0.2
  %v2995 = vmul.f32 %v2945, 0.2
  %v2996 = vmul.f32 %v2946, 0.2
  %v2997 = vmul.f32 %v2947, 0.2
  %v2998 = vmul.f32 %v2948, 0.2
  %v2999 = vmul.f32 %v2949, 0.2
  %v3000 = vmul.f32 %v2950, 0.2
  %v3001 = vmul.f32 %v2951, 0.2
  %v3002 = vsel %vm2952, %v2927, %v2977
  %v3003 = vsel %vm2953, %v2928, %v2978
  %v3004 = vsel %vm2954, %v2929, %v2979
  %v3005 = vsel %vm2955, %v2930, %v2980
  %v3006 = vsel %vm2956, %v2931, %v2981
  %v3007 = vsel %vm2957, %v2932, %v2982
  %v3008 = vsel %vm2958, %v2933, %v2983
  %v3009 = vsel %vm2959, %v2934, %v2984
  %v3010 = vsel %vm2960, %v2935, %v2985
  %v3011 = vsel %vm2961, %v2936, %v2986
  %v3012 = vsel %vm2962, %v2937, %v2987
  %v3013 = vsel %vm2963, %v2938, %v2988
  %v3014 = vsel %vm2964, %v2939, %v2989
  %v3015 = vsel %vm2965, %v2940, %v2990
  %v3016 = vsel %vm2966, %v2941, %v2991
  %v3017 = vsel %vm2967, %v2942, %v2992
  %v3018 = vsel %vm2968, %v2943, %v2993
  %v3019 = vsel %vm2969, %v2944, %v2994
  %v3020 = vsel %vm2970, %v2945, %v2995
  %v3021 = vsel %vm2971, %v2946, %v2996
  %v3022 = vsel %vm2972, %v2947, %v2997
  %v3023 = vsel %vm2973, %v2948, %v2998
  %v3024 = vsel %vm2974, %v2949, %v2999
  %v3025 = vsel %vm2975, %v2950, %v3000
  %v3026 = vsel %vm2976, %v2951, %v3001
  %v3052 = vrot.slane %v3002, 7
  %v3053 = vrot.slane %v3003, 7
  %v3054 = vrot.slane %v3004, 7
  %v3055 = vrot.slane %v3005, 7
  %v3056 = vrot.slane %v3006, 7
  %v3057 = vrot.slane %v3007, 7
  %v3058 = vsel %vm667, %v3052, %v3057
  %v3059 = vrot.slane %v3008, 7
  %v3060 = vsel %vm667, %v3053, %v3059
  %v3061 = vrot.slane %v3009, 7
  %v3062 = vsel %vm667, %v3054, %v3061
  %v3063 = vrot.slane %v3010, 7
  %v3064 = vsel %vm667, %v3055, %v3063
  %v3065 = vrot.slane %v3011, 7
  %v3066 = vsel %vm667, %v3056, %v3065
  %v3067 = vrot.slane %v3012, 7
  %v3068 = vsel %vm667, %v3057, %v3067
  %v3069 = vrot.slane %v3013, 7
  %v3070 = vsel %vm667, %v3059, %v3069
  %v3071 = vrot.slane %v3014, 7
  %v3072 = vsel %vm667, %v3061, %v3071
  %v3073 = vrot.slane %v3015, 7
  %v3074 = vsel %vm667, %v3063, %v3073
  %v3075 = vrot.slane %v3016, 7
  %v3076 = vsel %vm667, %v3065, %v3075
  %v3077 = vrot.slane %v3017, 7
  %v3078 = vsel %vm667, %v3067, %v3077
  %v3079 = vrot.slane %v3018, 7
  %v3080 = vsel %vm667, %v3069, %v3079
  %v3081 = vrot.slane %v3019, 7
  %v3082 = vsel %vm667, %v3071, %v3081
  %v3083 = vrot.slane %v3020, 7
  %v3084 = vsel %vm667, %v3073, %v3083
  %v3085 = vrot.slane %v3021, 7
  %v3086 = vsel %vm667, %v3075, %v3085
  %v3087 = vrot.slane %v3022, 7
  %v3088 = vsel %vm667, %v3077, %v3087
  %v3089 = vrot.slane %v3023, 7
  %v3090 = vsel %vm667, %v3079, %v3089
  %v3091 = vrot.slane %v3024, 7
  %v3092 = vsel %vm667, %v3081, %v3091
  %v3093 = vrot.slane %v3025, 7
  %v3094 = vsel %vm667, %v3083, %v3093
  %v3095 = vrot.slane %v3026, 7
  %v3096 = vsel %vm667, %v3085, %v3095
  %3122 = vst [vmem:[#allocation3] sm:$0xfe] %v3052
  %3123 = vst [vmem:[#allocation3 + $0x8] sm:$0xfe] %v3053
  %3124 = vst [vmem:[#allocation3 + $0x10] sm:$0xfe] %v3054
  %3125 = vst [vmem:[#allocation3 + $0x18] sm:$0xfe] %v3055
  %vm3126 = vcmask 523265
  %3127 = vst.msk [vmem:[#allocation3 + $0x20] sm:$0xfe] %vm3126, %v3056
  %3128 = vst [vmem:[#allocation3 + $0x28] sm:$0xff] %v3058
  %3129 = vst [vmem:[#allocation3 + $0x30] sm:$0xff] %v3060
  %3130 = vst [vmem:[#allocation3 + $0x38] sm:$0xff] %v3062
  %3131 = vst [vmem:[#allocation3 + $0x40] sm:$0xff] %v3064
  %vm3132 = vcmask 523264
  %3133 = vst.msk [vmem:[#allocation3 + $0x48] sm:$0xff] %vm3132, %v3066
  %3134 = vst [vmem:[#allocation3 + $0x50] sm:$0xff] %v3068
  %3135 = vst [vmem:[#allocation3 + $0x58] sm:$0xff] %v3070
  %3136 = vst [vmem:[#allocation3 + $0x60] sm:$0xff] %v3072
  %3137 = vst [vmem:[#allocation3 + $0x68] sm:$0xff] %v3074
  %3138 = vst.msk [vmem:[#allocation3 + $0x70] sm:$0xff] %vm3132, %v3076
  %3139 = vst [vmem:[#allocation3 + $0x78] sm:$0xff] %v3078
  %3140 = vst [vmem:[#allocation3 + $0x80] sm:$0xff] %v3080
  %3141 = vst [vmem:[#allocation3 + $0x88] sm:$0xff] %v3082
  %3142 = vst [vmem:[#allocation3 + $0x90] sm:$0xff] %v3084
  %3143 = vst.msk [vmem:[#allocation3 + $0x98] sm:$0xff] %vm3132, %v3086
  %3144 = vst [vmem:[#allocation3 + $0xa0] sm:$0x1f] %v3088
  %3145 = vst [vmem:[#allocation3 + $0xa8] sm:$0x1f] %v3090
  %3146 = vst [vmem:[#allocation3 + $0xb0] sm:$0x1f] %v3092
  %3147 = vst [vmem:[#allocation3 + $0xb8] sm:$0x1f] %v3094
  %vm3148 = vcmask 520192
  %3149 = vst.msk [vmem:[#allocation3 + $0xc0] sm:$0x1f] %vm3148, %v3096
  %v3150 = vld [vmem:[#allocation3] sm:$0xff]
  %v3151 = vld [vmem:[#allocation3 + $0x8] sm:$0xff]
  %v3152 = vld [vmem:[#allocation3 + $0x10] sm:$0xff]
  %v3153 = vld [vmem:[#allocation3 + $0x18] sm:$0xff]
  %v3154 = vld [vmem:[#allocation3 + $0x20] sm:$0xff]
  %v3155 = vld [vmem:[#allocation3 + $0x28] sm:$0xff]
  %v3156 = vld [vmem:[#allocation3 + $0x30] sm:$0xff]
  %v3157 = vld [vmem:[#allocation3 + $0x38] sm:$0xff]
  %v3158 = vld [vmem:[#allocation3 + $0x40] sm:$0xff]
  %v3159 = vld [vmem:[#allocation3 + $0x48] sm:$0xff]
  %v3160 = vld [vmem:[#allocation3 + $0x50] sm:$0xff]
  %v3161 = vld [vmem:[#allocation3 + $0x58] sm:$0xff]
  %v3162 = vld [vmem:[#allocation3 + $0x60] sm:$0xff]
  %v3163 = vld [vmem:[#allocation3 + $0x68] sm:$0xff]
  %v3164 = vld [vmem:[#allocation3 + $0x70] sm:$0xff]
  %v3165 = vld [vmem:[#allocation3 + $0x78] sm:$0xff]
  %v3166 = vld [vmem:[#allocation3 + $0x80] sm:$0xff]
  %v3167 = vld [vmem:[#allocation3 + $0x88] sm:$0xff]
  %v3168 = vld [vmem:[#allocation3 + $0x90] sm:$0xff]
  %v3169 = vld [vmem:[#allocation3 + $0x98] sm:$0xff]
  %v3170 = vld [vmem:[#allocation3 + $0xa0] sm:$0xf]
  %v3171 = vld [vmem:[#allocation3 + $0xa8] sm:$0xf]
  %v3172 = vld [vmem:[#allocation3 + $0xb0] sm:$0xf]
  %v3173 = vld [vmem:[#allocation3 + $0xb8] sm:$0xf]
  %v3174 = vld [vmem:[#allocation3 + $0xc0] sm:$0xf]
  %v3175 = vld [vmem:[%s5] sm:$0xff]
  %v3176 = vld [vmem:[%s5 + $0x8] sm:$0xff]
  %v3177 = vld [vmem:[%s5 + $0x10] sm:$0xff]
  %v3178 = vld [vmem:[%s5 + $0x18] sm:$0xff]
  %v3179 = vld [vmem:[%s5 + $0x20] sm:$0xff]
  %v3180 = vld [vmem:[%s5 + $0x28] sm:$0xff]
  %v3181 = vld [vmem:[%s5 + $0x30] sm:$0xff]
  %v3182 = vld [vmem:[%s5 + $0x38] sm:$0xff]
  %v3183 = vld [vmem:[%s5 + $0x40] sm:$0xff]
  %v3184 = vld [vmem:[%s5 + $0x48] sm:$0xff]
  %v3185 = vld [vmem:[%s5 + $0x50] sm:$0xff]
  %v3186 = vld [vmem:[%s5 + $0x58] sm:$0xff]
  %v3187 = vld [vmem:[%s5 + $0x60] sm:$0xff]
  %v3188 = vld [vmem:[%s5 + $0x68] sm:$0xff]
  %v3189 = vld [vmem:[%s5 + $0x70] sm:$0xff]
  %v3190 = vld [vmem:[%s5 + $0x78] sm:$0xff]
  %v3191 = vld [vmem:[%s5 + $0x80] sm:$0xff]
  %v3192 = vld [vmem:[%s5 + $0x88] sm:$0xff]
  %v3193 = vld [vmem:[%s5 + $0x90] sm:$0xff]
  %v3194 = vld [vmem:[%s5 + $0x98] sm:$0xff]
  %v3195 = vld [vmem:[%s5 + $0xa0] sm:$0xff]
  %v3196 = vld [vmem:[%s5 + $0xa8] sm:$0xff]
  %v3197 = vld [vmem:[%s5 + $0xb0] sm:$0xff]
  %v3198 = vld [vmem:[%s5 + $0xb8] sm:$0xff]
  %v3199 = vld [vmem:[%s5 + $0xc0] sm:$0xff]
  %v3200 = vld [vmem:[%s5 + $0xc8] sm:$0xff]
  %v3201 = vld [vmem:[%s5 + $0xd0] sm:$0xff]
  %v3202 = vld [vmem:[%s5 + $0xd8] sm:$0xff]
  %v3203 = vld [vmem:[%s5 + $0xe0] sm:$0xff]
  %v3204 = vld [vmem:[%s5 + $0xe8] sm:$0xff]
  %v3205 = vld [vmem:[%s5 + $0xf0] sm:$0xff]
  %v3206 = vld [vmem:[%s5 + $0xf8] sm:$0xff]
  %v3207 = vld [vmem:[%s5 + $0x100] sm:$0xff]
  %v3208 = vld [vmem:[%s5 + $0x108] sm:$0xff]
  %v3209 = vld [vmem:[%s5 + $0x110] sm:$0xff]
  %v3210 = vld [vmem:[%s5 + $0x118] sm:$0xff]
  %v3211 = vld [vmem:[%s5 + $0x120] sm:$0xff]
  %v3212 = vld [vmem:[%s5 + $0x128] sm:$0xff]
  %v3213 = vld [vmem:[%s5 + $0x130] sm:$0xff]
  %v3214 = vld [vmem:[%s5 + $0x138] sm:$0xff]
  %v3215 = vld [vmem:[%s5 + $0x140] sm:$0xff]
  %v3216 = vld [vmem:[%s5 + $0x148] sm:$0xff]
  %v3217 = vld [vmem:[%s5 + $0x150] sm:$0xff]
  %v3218 = vld [vmem:[%s5 + $0x158] sm:$0xff]
  %v3219 = vld [vmem:[%s5 + $0x160] sm:$0xff]
  %v3220 = vld [vmem:[%s5 + $0x168] sm:$0xff]
  %v3221 = vld [vmem:[%s5 + $0x170] sm:$0xff]
  %v3222 = vld [vmem:[%s5 + $0x178] sm:$0xff]
  %v3223 = vld [vmem:[%s5 + $0x180] sm:$0xff]
  %v3224 = vld [vmem:[%s5 + $0x188] sm:$0xff]
  %v3225 = vld [vmem:[%s5 + $0x190] sm:$0xff]
  %v3226 = vld [vmem:[%s5 + $0x198] sm:$0xff]
  %v3227 = vld [vmem:[%s5 + $0x1a0] sm:$0xff]
  %v3228 = vld [vmem:[%s5 + $0x1a8] sm:$0xff]
  %v3229 = vld [vmem:[%s5 + $0x1b0] sm:$0xff]
  %v3230 = vld [vmem:[%s5 + $0x1b8] sm:$0xff]
  %v3231 = vld [vmem:[%s5 + $0x1c0] sm:$0xff]
  %v3232 = vld [vmem:[%s5 + $0x1c8] sm:$0xff]
  %v3233 = vld [vmem:[%s5 + $0x1d0] sm:$0xff]
  %v3234 = vld [vmem:[%s5 + $0x1d8] sm:$0xff]
  %v3235 = vld [vmem:[%s5 + $0x1e0] sm:$0xff]
  %v3236 = vld [vmem:[%s5 + $0x1e8] sm:$0xff]
  %v3237 = vld [vmem:[%s5 + $0x1f0] sm:$0xff]
  %v3238 = vld [vmem:[%s5 + $0x1f8] sm:$0xff]
  %v3239 = vld [vmem:[%s5 + $0x200] sm:$0xff]
  %v3240 = vld [vmem:[%s5 + $0x208] sm:$0xff]
  %v3241 = vld [vmem:[%s5 + $0x210] sm:$0xff]
  %v3242 = vld [vmem:[%s5 + $0x218] sm:$0xff]
  %v3243 = vld [vmem:[%s5 + $0x220] sm:$0xff]
  %v3244 = vld [vmem:[%s5 + $0x228] sm:$0xff]
  %v3245 = vld [vmem:[%s5 + $0x230] sm:$0xff]
  %v3246 = vld [vmem:[%s5 + $0x238] sm:$0xff]
  %v3247 = vld [vmem:[%s5 + $0x240] sm:$0xff]
  %v3248 = vld [vmem:[%s5 + $0x248] sm:$0xff]
  %v3249 = vld [vmem:[%s5 + $0x250] sm:$0xff]
  %v3250 = vld [vmem:[%s5 + $0x258] sm:$0xff]
  %v3251 = vld [vmem:[%s5 + $0x260] sm:$0xff]
  %v3252 = vld [vmem:[%s5 + $0x268] sm:$0xff]
  %v3253 = vld [vmem:[%s5 + $0x270] sm:$0xff]
  %v3254 = vld [vmem:[%s5 + $0x278] sm:$0xff]
  %v3255 = vld [vmem:[%s5 + $0x280] sm:$0xff]
  %v3256 = vld [vmem:[%s5 + $0x288] sm:$0xff]
  %v3257 = vld [vmem:[%s5 + $0x290] sm:$0xff]
  %v3258 = vld [vmem:[%s5 + $0x298] sm:$0xff]
  %v3259 = vld [vmem:[%s5 + $0x2a0] sm:$0xff]
  %v3260 = vld [vmem:[%s5 + $0x2a8] sm:$0xff]
  %v3261 = vld [vmem:[%s5 + $0x2b0] sm:$0xff]
  %v3262 = vld [vmem:[%s5 + $0x2b8] sm:$0xff]
  %v3263 = vld [vmem:[%s5 + $0x2c0] sm:$0xff]
  %v3264 = vld [vmem:[%s5 + $0x2c8] sm:$0xff]
  %v3265 = vld [vmem:[%s5 + $0x2d0] sm:$0xff]
  %v3266 = vld [vmem:[%s5 + $0x2d8] sm:$0xff]
  %v3267 = vld [vmem:[%s5 + $0x2e0] sm:$0xff]
  %v3268 = vld [vmem:[%s5 + $0x2e8] sm:$0xff]
  %v3269 = vld [vmem:[%s5 + $0x2f0] sm:$0xff]
  %v3270 = vld [vmem:[%s5 + $0x2f8] sm:$0xff]
  %v3271 = vld [vmem:[%s5 + $0x300] sm:$0xff]
  %v3272 = vld [vmem:[%s5 + $0x308] sm:$0xff]
  %v3273 = vld [vmem:[%s5 + $0x310] sm:$0xff]
  %v3274 = vld [vmem:[%s5 + $0x318] sm:$0xff]
  %v3275 = vld [vmem:[%s5 + $0x320] sm:$0xff]
  %v3276 = vld [vmem:[%s5 + $0x328] sm:$0xff]
  %v3277 = vld [vmem:[%s5 + $0x330] sm:$0xff]
  %v3278 = vld [vmem:[%s5 + $0x338] sm:$0xff]
  %v3279 = vld [vmem:[%s5 + $0x340] sm:$0xff]
  %v3280 = vld [vmem:[%s5 + $0x348] sm:$0xff]
  %v3281 = vld [vmem:[%s5 + $0x350] sm:$0xff]
  %v3282 = vld [vmem:[%s5 + $0x358] sm:$0xff]
  %v3283 = vld [vmem:[%s5 + $0x360] sm:$0xff]
  %v3284 = vld [vmem:[%s5 + $0x368] sm:$0xff]
  %v3285 = vld [vmem:[%s5 + $0x370] sm:$0xff]
  %v3286 = vld [vmem:[%s5 + $0x378] sm:$0xff]
  %v3287 = vld [vmem:[%s5 + $0x380] sm:$0xff]
  %v3288 = vld [vmem:[%s5 + $0x388] sm:$0xff]
  %v3289 = vld [vmem:[%s5 + $0x390] sm:$0xff]
  %v3290 = vld [vmem:[%s5 + $0x398] sm:$0xff]
  %v3291 = vld [vmem:[%s5 + $0x3a0] sm:$0xff]
  %v3292 = vld [vmem:[%s5 + $0x3a8] sm:$0xff]
  %v3293 = vld [vmem:[%s5 + $0x3b0] sm:$0xff]
  %v3294 = vld [vmem:[%s5 + $0x3b8] sm:$0xff]
  %v3295 = vld [vmem:[%s5 + $0x3c0] sm:$0xff]
  %v3296 = vld [vmem:[%s5 + $0x3c8] sm:$0xff]
  %v3297 = vld [vmem:[%s5 + $0x3d0] sm:$0xff]
  %v3298 = vld [vmem:[%s5 + $0x3d8] sm:$0xff]
  %v3299 = vld [vmem:[%s5 + $0x3e0] sm:$0xff]
  %v3300 = vld [vmem:[%s5 + $0x3e8] sm:$0xff]
  %v3301 = vld [vmem:[%s5 + $0x3f0] sm:$0xff]
  %v3302 = vld [vmem:[%s5 + $0x3f8] sm:$0xff]
  %v3303 = vld [vmem:[%s5 + $0x400] sm:$0xff]
  %v3304 = vld [vmem:[%s5 + $0x408] sm:$0xff]
  %v3305 = vld [vmem:[%s5 + $0x410] sm:$0xff]
  %v3306 = vld [vmem:[%s5 + $0x418] sm:$0xff]
  %v3307 = vld [vmem:[%s5 + $0x420] sm:$0xff]
  %v3308 = vld [vmem:[%s5 + $0x428] sm:$0xff]
  %v3309 = vld [vmem:[%s5 + $0x430] sm:$0xff]
  %v3310 = vld [vmem:[%s5 + $0x438] sm:$0xff]
  %v3311 = vld [vmem:[%s5 + $0x440] sm:$0xff]
  %v3312 = vld [vmem:[%s5 + $0x448] sm:$0xff]
  %v3313 = vld [vmem:[%s5 + $0x450] sm:$0xff]
  %v3314 = vld [vmem:[%s5 + $0x458] sm:$0xff]
  %v3315 = vld [vmem:[%s5 + $0x460] sm:$0xff]
  %v3316 = vld [vmem:[%s5 + $0x468] sm:$0xff]
  %v3317 = vld [vmem:[%s5 + $0x470] sm:$0xff]
  %v3318 = vld [vmem:[%s5 + $0x478] sm:$0xff]
  %v3319 = vld [vmem:[%s5 + $0x480] sm:$0xff]
  %v3320 = vld [vmem:[%s5 + $0x488] sm:$0xff]
  %v3321 = vld [vmem:[%s5 + $0x490] sm:$0xff]
  %v3322 = vld [vmem:[%s5 + $0x498] sm:$0xff]
  %v3323 = vld [vmem:[%s5 + $0x4a0] sm:$0xff]
  %v3324 = vld [vmem:[%s5 + $0x4a8] sm:$0xff]
  %v3325 = vld [vmem:[%s5 + $0x4b0] sm:$0xff]
  %v3326 = vld [vmem:[%s5 + $0x4b8] sm:$0xff]
  %v3327 = vld [vmem:[%s5 + $0x4c0] sm:$0xff]
  %v3328 = vld [vmem:[%s5 + $0x4c8] sm:$0xff]
  %v3329 = vld [vmem:[%s5 + $0x4d0] sm:$0xff]
  %v3330 = vld [vmem:[%s5 + $0x4d8] sm:$0xff]
  %v3331 = vld [vmem:[%s5 + $0x4e0] sm:$0xff]
  %v3332 = vld [vmem:[%s5 + $0x4e8] sm:$0xff]
  %v3333 = vld [vmem:[%s5 + $0x4f0] sm:$0xff]
  %v3334 = vld [vmem:[%s5 + $0x4f8] sm:$0xff]
  %v3335 = vld [vmem:[%s5 + $0x500] sm:$0xff]
  %v3336 = vld [vmem:[%s5 + $0x508] sm:$0xff]
  %v3337 = vld [vmem:[%s5 + $0x510] sm:$0xff]
  %v3338 = vld [vmem:[%s5 + $0x518] sm:$0xff]
  %v3339 = vld [vmem:[%s5 + $0x520] sm:$0xff]
  %v3340 = vld [vmem:[%s5 + $0x528] sm:$0xff]
  %v3341 = vld [vmem:[%s5 + $0x530] sm:$0xff]
  %v3342 = vld [vmem:[%s5 + $0x538] sm:$0xff]
  %v3343 = vld [vmem:[%s5 + $0x540] sm:$0xff]
  %v3344 = vld [vmem:[%s5 + $0x548] sm:$0xff]
  %v3345 = vld [vmem:[%s5 + $0x550] sm:$0xff]
  %v3346 = vld [vmem:[%s5 + $0x558] sm:$0xff]
  %v3347 = vld [vmem:[%s5 + $0x560] sm:$0xff]
  %v3348 = vld [vmem:[%s5 + $0x568] sm:$0xff]
  %v3349 = vld [vmem:[%s5 + $0x570] sm:$0xff]
  %v3350 = vld [vmem:[%s5 + $0x578] sm:$0xff]
  %v3351 = vld [vmem:[%s5 + $0x580] sm:$0xff]
  %v3352 = vld [vmem:[%s5 + $0x588] sm:$0xff]
  %v3353 = vld [vmem:[%s5 + $0x590] sm:$0xff]
  %v3354 = vld [vmem:[%s5 + $0x598] sm:$0xff]
  %v3355 = vld [vmem:[%s5 + $0x5a0] sm:$0xff]
  %v3356 = vld [vmem:[%s5 + $0x5a8] sm:$0xff]
  %v3357 = vld [vmem:[%s5 + $0x5b0] sm:$0xff]
  %v3358 = vld [vmem:[%s5 + $0x5b8] sm:$0xff]
  %v3359 = vld [vmem:[%s5 + $0x5c0] sm:$0xff]
  %v3360 = vld [vmem:[%s5 + $0x5c8] sm:$0xff]
  %v3361 = vld [vmem:[%s5 + $0x5d0] sm:$0xff]
  %v3362 = vld [vmem:[%s5 + $0x5d8] sm:$0xff]
  %v3363 = vld [vmem:[%s5 + $0x5e0] sm:$0xff]
  %v3364 = vld [vmem:[%s5 + $0x5e8] sm:$0xff]
  %v3365 = vld [vmem:[%s5 + $0x5f0] sm:$0xff]
  %v3366 = vld [vmem:[%s5 + $0x5f8] sm:$0xff]
  %v3367 = vld [vmem:[%s5 + $0x600] sm:$0xff]
  %v3368 = vld [vmem:[%s5 + $0x608] sm:$0xff]
  %v3369 = vld [vmem:[%s5 + $0x610] sm:$0xff]
  %v3370 = vld [vmem:[%s5 + $0x618] sm:$0xff]
  %v3371 = vld [vmem:[%s5 + $0x620] sm:$0xff]
  %v3372 = vld [vmem:[%s5 + $0x628] sm:$0xff]
  %v3373 = vld [vmem:[%s5 + $0x630] sm:$0xff]
  %v3374 = vld [vmem:[%s5 + $0x638] sm:$0xff]
  %v3375 = vld [vmem:[%s5 + $0x640] sm:$0xff]
  %v3376 = vld [vmem:[%s5 + $0x648] sm:$0xff]
  %v3377 = vld [vmem:[%s5 + $0x650] sm:$0xff]
  %v3378 = vld [vmem:[%s5 + $0x658] sm:$0xff]
  %v3379 = vld [vmem:[%s5 + $0x660] sm:$0xff]
  %v3380 = vld [vmem:[%s5 + $0x668] sm:$0xff]
  %v3381 = vld [vmem:[%s5 + $0x670] sm:$0xff]
  %v3382 = vld [vmem:[%s5 + $0x678] sm:$0xff]
  %v3383 = vld [vmem:[%s5 + $0x680] sm:$0xff]
  %v3384 = vld [vmem:[%s5 + $0x688] sm:$0xff]
  %v3385 = vld [vmem:[%s5 + $0x690] sm:$0xff]
  %v3386 = vld [vmem:[%s5 + $0x698] sm:$0xff]
  %v3387 = vld [vmem:[%s5 + $0x6a0] sm:$0xff]
  %v3388 = vld [vmem:[%s5 + $0x6a8] sm:$0xff]
  %v3389 = vld [vmem:[%s5 + $0x6b0] sm:$0xff]
  %v3390 = vld [vmem:[%s5 + $0x6b8] sm:$0xff]
  %v3391 = vld [vmem:[%s5 + $0x6c0] sm:$0xff]
  %v3392 = vld [vmem:[%s5 + $0x6c8] sm:$0xff]
  %v3393 = vld [vmem:[%s5 + $0x6d0] sm:$0xff]
  %v3394 = vld [vmem:[%s5 + $0x6d8] sm:$0xff]
  %v3395 = vld [vmem:[%s5 + $0x6e0] sm:$0xff]
  %v3396 = vld [vmem:[%s5 + $0x6e8] sm:$0xff]
  %v3397 = vld [vmem:[%s5 + $0x6f0] sm:$0xff]
  %v3398 = vld [vmem:[%s5 + $0x6f8] sm:$0xff]
  %v3399 = vld [vmem:[%s5 + $0x700] sm:$0xff]
  %v3400 = vld [vmem:[%s5 + $0x708] sm:$0xff]
  %v3401 = vld [vmem:[%s5 + $0x710] sm:$0xff]
  %v3402 = vld [vmem:[%s5 + $0x718] sm:$0xff]
  %v3403 = vld [vmem:[%s5 + $0x720] sm:$0xff]
  %v3404 = vld [vmem:[%s5 + $0x728] sm:$0xff]
  %v3405 = vld [vmem:[%s5 + $0x730] sm:$0xff]
  %v3406 = vld [vmem:[%s5 + $0x738] sm:$0xff]
  %v3407 = vld [vmem:[%s5 + $0x740] sm:$0xff]
  %v3408 = vld [vmem:[%s5 + $0x748] sm:$0xff]
  %v3409 = vld [vmem:[%s5 + $0x750] sm:$0xff]
  %v3410 = vld [vmem:[%s5 + $0x758] sm:$0xff]
  %v3411 = vld [vmem:[%s5 + $0x760] sm:$0xff]
  %v3412 = vld [vmem:[%s5 + $0x768] sm:$0xff]
  %v3413 = vld [vmem:[%s5 + $0x770] sm:$0xff]
  %v3414 = vld [vmem:[%s5 + $0x778] sm:$0xff]
  %v3415 = vld [vmem:[%s5 + $0x780] sm:$0xff]
  %v3416 = vld [vmem:[%s5 + $0x788] sm:$0xff]
  %v3417 = vld [vmem:[%s5 + $0x790] sm:$0xff]
  %v3418 = vld [vmem:[%s5 + $0x798] sm:$0xff]
  %v3419 = vld [vmem:[%s5 + $0x7a0] sm:$0xff]
  %v3420 = vld [vmem:[%s5 + $0x7a8] sm:$0xff]
  %v3421 = vld [vmem:[%s5 + $0x7b0] sm:$0xff]
  %v3422 = vld [vmem:[%s5 + $0x7b8] sm:$0xff]
  %v3423 = vld [vmem:[%s5 + $0x7c0] sm:$0xff]
  %v3424 = vld [vmem:[%s5 + $0x7c8] sm:$0xff]
  %v3425 = vld [vmem:[%s5 + $0x7d0] sm:$0xff]
  %v3426 = vld [vmem:[%s5 + $0x7d8] sm:$0xff]
  %v3427 = vld [vmem:[%s5 + $0x7e0] sm:$0xff]
  %v3428 = vld [vmem:[%s5 + $0x7e8] sm:$0xff]
  %v3429 = vld [vmem:[%s5 + $0x7f0] sm:$0xff]
  %v3430 = vld [vmem:[%s5 + $0x7f8] sm:$0xff]
  %v3431 = vld [vmem:[%s5 + $0x800] sm:$0xff]
  %v3432 = vld [vmem:[%s5 + $0x808] sm:$0xff]
  %v3433 = vld [vmem:[%s5 + $0x810] sm:$0xff]
  %v3434 = vld [vmem:[%s5 + $0x818] sm:$0xff]
  %v3435 = vld [vmem:[%s5 + $0x820] sm:$0xff]
  %v3436 = vld [vmem:[%s5 + $0x828] sm:$0xff]
  %v3437 = vld [vmem:[%s5 + $0x830] sm:$0xff]
  %v3438 = vld [vmem:[%s5 + $0x838] sm:$0xff]
  %v3439 = vld [vmem:[%s5 + $0x840] sm:$0xff]
  %v3440 = vld [vmem:[%s5 + $0x848] sm:$0xff]
  %v3441 = vld [vmem:[%s5 + $0x850] sm:$0xff]
  %v3442 = vld [vmem:[%s5 + $0x858] sm:$0xff]
  %v3443 = vld [vmem:[%s5 + $0x860] sm:$0xff]
  %v3444 = vld [vmem:[%s5 + $0x868] sm:$0xff]
  %v3445 = vld [vmem:[%s5 + $0x870] sm:$0xff]
  %v3446 = vld [vmem:[%s5 + $0x878] sm:$0xff]
  %v3447 = vld [vmem:[%s5 + $0x880] sm:$0xff]
  %v3448 = vld [vmem:[%s5 + $0x888] sm:$0xff]
  %v3449 = vld [vmem:[%s5 + $0x890] sm:$0xff]
  %v3450 = vld [vmem:[%s5 + $0x898] sm:$0xff]
  %v3451 = vld [vmem:[%s5 + $0x8a0] sm:$0xff]
  %v3452 = vld [vmem:[%s5 + $0x8a8] sm:$0xff]
  %v3453 = vld [vmem:[%s5 + $0x8b0] sm:$0xff]
  %v3454 = vld [vmem:[%s5 + $0x8b8] sm:$0xff]
  %v3455 = vld [vmem:[%s5 + $0x8c0] sm:$0xff]
  %v3456 = vld [vmem:[%s5 + $0x8c8] sm:$0xff]
  %v3457 = vld [vmem:[%s5 + $0x8d0] sm:$0xff]
  %v3458 = vld [vmem:[%s5 + $0x8d8] sm:$0xff]
  %v3459 = vld [vmem:[%s5 + $0x8e0] sm:$0xff]
  %v3460 = vld [vmem:[%s5 + $0x8e8] sm:$0xff]
  %v3461 = vld [vmem:[%s5 + $0x8f0] sm:$0xff]
  %v3462 = vld [vmem:[%s5 + $0x8f8] sm:$0xff]
  %v3463 = vld [vmem:[%s5 + $0x900] sm:$0xff]
  %v3464 = vld [vmem:[%s5 + $0x908] sm:$0xff]
  %v3465 = vld [vmem:[%s5 + $0x910] sm:$0xff]
  %v3466 = vld [vmem:[%s5 + $0x918] sm:$0xff]
  %v3467 = vld [vmem:[%s5 + $0x920] sm:$0xff]
  %v3468 = vld [vmem:[%s5 + $0x928] sm:$0xff]
  %v3469 = vld [vmem:[%s5 + $0x930] sm:$0xff]
  %v3470 = vld [vmem:[%s5 + $0x938] sm:$0xff]
  %v3471 = vld [vmem:[%s5 + $0x940] sm:$0xff]
  %v3472 = vld [vmem:[%s5 + $0x948] sm:$0xff]
  %v3473 = vld [vmem:[%s5 + $0x950] sm:$0xff]
  %v3474 = vld [vmem:[%s5 + $0x958] sm:$0xff]
  %v3475 = vld [vmem:[%s5 + $0x960] sm:$0xff]
  %v3476 = vld [vmem:[%s5 + $0x968] sm:$0xff]
  %v3477 = vld [vmem:[%s5 + $0x970] sm:$0xff]
  %v3478 = vld [vmem:[%s5 + $0x978] sm:$0xff]
  %v3479 = vld [vmem:[%s5 + $0x980] sm:$0xff]
  %v3480 = vld [vmem:[%s5 + $0x988] sm:$0xff]
  %v3481 = vld [vmem:[%s5 + $0x990] sm:$0xff]
  %v3482 = vld [vmem:[%s5 + $0x998] sm:$0xff]
  %v3483 = vld [vmem:[%s5 + $0x9a0] sm:$0xff]
  %v3484 = vld [vmem:[%s5 + $0x9a8] sm:$0xff]
  %v3485 = vld [vmem:[%s5 + $0x9b0] sm:$0xff]
  %v3486 = vld [vmem:[%s5 + $0x9b8] sm:$0xff]
  %v3487 = vld [vmem:[%s5 + $0x9c0] sm:$0xff]
  %v3488 = vld [vmem:[%s5 + $0x9c8] sm:$0xff]
  %v3489 = vld [vmem:[%s5 + $0x9d0] sm:$0xff]
  %v3490 = vld [vmem:[%s5 + $0x9d8] sm:$0xff]
  %v3491 = vld [vmem:[%s5 + $0x9e0] sm:$0xff]
  %v3492 = vld [vmem:[%s5 + $0x9e8] sm:$0xff]
  %v3493 = vld [vmem:[%s5 + $0x9f0] sm:$0xff]
  %v3494 = vld [vmem:[%s5 + $0x9f8] sm:$0xff]
  %v3495 = vld [vmem:[%s5 + $0xa00] sm:$0xff]
  %v3496 = vld [vmem:[%s5 + $0xa08] sm:$0xff]
  %v3497 = vld [vmem:[%s5 + $0xa10] sm:$0xff]
  %v3498 = vld [vmem:[%s5 + $0xa18] sm:$0xff]
  %v3499 = vld [vmem:[%s5 + $0xa20] sm:$0xff]
  %v3500 = vld [vmem:[%s5 + $0xa28] sm:$0xff]
  %v3501 = vld [vmem:[%s5 + $0xa30] sm:$0xff]
  %v3502 = vld [vmem:[%s5 + $0xa38] sm:$0xff]
  %v3503 = vld [vmem:[%s5 + $0xa40] sm:$0xff]
  %v3504 = vld [vmem:[%s5 + $0xa48] sm:$0xff]
  %v3505 = vld [vmem:[%s5 + $0xa50] sm:$0xff]
  %v3506 = vld [vmem:[%s5 + $0xa58] sm:$0xff]
  %v3507 = vld [vmem:[%s5 + $0xa60] sm:$0xff]
  %v3508 = vld [vmem:[%s5 + $0xa68] sm:$0xff]
  %v3509 = vld [vmem:[%s5 + $0xa70] sm:$0xff]
  %v3510 = vld [vmem:[%s5 + $0xa78] sm:$0xff]
  %v3511 = vld [vmem:[%s5 + $0xa80] sm:$0xff]
  %v3512 = vld [vmem:[%s5 + $0xa88] sm:$0xff]
  %v3513 = vld [vmem:[%s5 + $0xa90] sm:$0xff]
  %v3514 = vld [vmem:[%s5 + $0xa98] sm:$0xff]
  %v3515 = vld [vmem:[%s5 + $0xaa0] sm:$0xff]
  %v3516 = vld [vmem:[%s5 + $0xaa8] sm:$0xff]
  %v3517 = vld [vmem:[%s5 + $0xab0] sm:$0xff]
  %v3518 = vld [vmem:[%s5 + $0xab8] sm:$0xff]
  %v3519 = vld [vmem:[%s5 + $0xac0] sm:$0xff]
  %v3520 = vld [vmem:[%s5 + $0xac8] sm:$0xff]
  %v3521 = vld [vmem:[%s5 + $0xad0] sm:$0xff]
  %v3522 = vld [vmem:[%s5 + $0xad8] sm:$0xff]
  %v3523 = vld [vmem:[%s5 + $0xae0] sm:$0xff]
  %v3524 = vld [vmem:[%s5 + $0xae8] sm:$0xff]
  %v3525 = vld [vmem:[%s5 + $0xaf0] sm:$0xff]
  %v3526 = vld [vmem:[%s5 + $0xaf8] sm:$0xff]
  %v3527 = vld [vmem:[%s5 + $0xb00] sm:$0xff]
  %v3528 = vld [vmem:[%s5 + $0xb08] sm:$0xff]
  %v3529 = vld [vmem:[%s5 + $0xb10] sm:$0xff]
  %v3530 = vld [vmem:[%s5 + $0xb18] sm:$0xff]
  %v3531 = vld [vmem:[%s5 + $0xb20] sm:$0xff]
  %v3532 = vld [vmem:[%s5 + $0xb28] sm:$0xff]
  %v3533 = vld [vmem:[%s5 + $0xb30] sm:$0xff]
  %v3534 = vld [vmem:[%s5 + $0xb38] sm:$0xff]
  %v3535 = vld [vmem:[#allocation3] sm:$0xfe]
  %v3536 = vld [vmem:[#allocation3 + $0x8] sm:$0xfe]
  %v3537 = vld [vmem:[#allocation3 + $0x10] sm:$0xfe]
  %v3538 = vld [vmem:[#allocation3 + $0x18] sm:$0xfe]
  %v3539 = vld [vmem:[#allocation3 + $0x20] sm:$0xfe]
  %v3540 = vld [vmem:[#allocation3 + $0xa0] sm:$0x1f]
  %v3541 = vld [vmem:[#allocation3 + $0xa8] sm:$0x1f]
  %v3542 = vld [vmem:[#allocation3 + $0xb0] sm:$0x1f]
  %v3543 = vld [vmem:[#allocation3 + $0xb8] sm:$0x1f]
  %v3544 = vld [vmem:[#allocation3 + $0xc0] sm:$0x1f]
  %s3545 = scalar_lea.vmem %s5, 2880
  %v3546 = vld [vmem:[%s3545] sm:$0xff]
  %v3547 = vld [vmem:[%s3545 + $0x8] sm:$0xff]
  %v3548 = vld [vmem:[%s3545 + $0x10] sm:$0xff]
  %v3549 = vld [vmem:[%s3545 + $0x18] sm:$0xff]
  %v3550 = vld [vmem:[%s3545 + $0x20] sm:$0xff]
  %v3551 = vld [vmem:[%s3545 + $0x28] sm:$0xff]
  %v3552 = vld [vmem:[%s3545 + $0x30] sm:$0xff]
  %v3553 = vld [vmem:[%s3545 + $0x38] sm:$0xff]
  %v3554 = vld [vmem:[%s3545 + $0x40] sm:$0xff]
  %v3555 = vld [vmem:[%s3545 + $0x48] sm:$0xff]
  %v3556 = vld [vmem:[%s3545 + $0x50] sm:$0xff]
  %v3557 = vld [vmem:[%s3545 + $0x58] sm:$0xff]
  %v3558 = vld [vmem:[%s3545 + $0x60] sm:$0xff]
  %v3559 = vld [vmem:[%s3545 + $0x68] sm:$0xff]
  %v3560 = vld [vmem:[%s3545 + $0x70] sm:$0xff]
  %v3561 = vld [vmem:[%s3545 + $0x78] sm:$0xff]
  %v3562 = vld [vmem:[%s3545 + $0x80] sm:$0xff]
  %v3563 = vld [vmem:[%s3545 + $0x88] sm:$0xff]
  %v3564 = vld [vmem:[%s3545 + $0x90] sm:$0xff]
  %v3565 = vld [vmem:[%s3545 + $0x98] sm:$0xff]
  %v3566 = vld [vmem:[%s3545 + $0xa0] sm:$0xff]
  %v3567 = vld [vmem:[%s3545 + $0xa8] sm:$0xff]
  %v3568 = vld [vmem:[%s3545 + $0xb0] sm:$0xff]
  %v3569 = vld [vmem:[%s3545 + $0xb8] sm:$0xff]
  %v3570 = vld [vmem:[%s3545 + $0xc0] sm:$0xff]
  %v3571 = vld [vmem:[%s3545 + $0xc8] sm:$0xff]
  %v3572 = vld [vmem:[%s3545 + $0xd0] sm:$0xff]
  %v3573 = vld [vmem:[%s3545 + $0xd8] sm:$0xff]
  %v3574 = vld [vmem:[%s3545 + $0xe0] sm:$0xff]
  %v3575 = vld [vmem:[%s3545 + $0xe8] sm:$0xff]
  %v3576 = vld [vmem:[%s3545 + $0xf0] sm:$0xff]
  %v3577 = vld [vmem:[%s3545 + $0xf8] sm:$0xff]
  %v3578 = vld [vmem:[%s3545 + $0x100] sm:$0xff]
  %v3579 = vld [vmem:[%s3545 + $0x108] sm:$0xff]
  %v3580 = vld [vmem:[%s3545 + $0x110] sm:$0xff]
  %v3581 = vld [vmem:[%s3545 + $0x118] sm:$0xff]
  %v3582 = vld [vmem:[%s3545 + $0x120] sm:$0xff]
  %v3583 = vld [vmem:[%s3545 + $0x128] sm:$0xff]
  %v3584 = vld [vmem:[%s3545 + $0x130] sm:$0xff]
  %v3585 = vld [vmem:[%s3545 + $0x138] sm:$0xff]
  %v3586 = vld [vmem:[%s3545 + $0x140] sm:$0xff]
  %v3587 = vld [vmem:[%s3545 + $0x148] sm:$0xff]
  %v3588 = vld [vmem:[%s3545 + $0x150] sm:$0xff]
  %v3589 = vld [vmem:[%s3545 + $0x158] sm:$0xff]
  %v3590 = vld [vmem:[%s3545 + $0x160] sm:$0xff]
  %v3591 = vld [vmem:[%s3545 + $0x168] sm:$0xff]
  %v3592 = vld [vmem:[%s3545 + $0x170] sm:$0xff]
  %v3593 = vld [vmem:[%s3545 + $0x178] sm:$0xff]
  %v3594 = vld [vmem:[%s3545 + $0x180] sm:$0xff]
  %v3595 = vld [vmem:[%s3545 + $0x188] sm:$0xff]
  %v3596 = vld [vmem:[%s3545 + $0x190] sm:$0xff]
  %v3597 = vld [vmem:[%s3545 + $0x198] sm:$0xff]
  %v3598 = vld [vmem:[%s3545 + $0x1a0] sm:$0xff]
  %v3599 = vld [vmem:[%s3545 + $0x1a8] sm:$0xff]
  %v3600 = vld [vmem:[%s3545 + $0x1b0] sm:$0xff]
  %v3601 = vld [vmem:[%s3545 + $0x1b8] sm:$0xff]
  %v3602 = vld [vmem:[%s3545 + $0x1c0] sm:$0xff]
  %v3603 = vld [vmem:[%s3545 + $0x1c8] sm:$0xff]
  %v3604 = vld [vmem:[%s3545 + $0x1d0] sm:$0xff]
  %v3605 = vld [vmem:[%s3545 + $0x1d8] sm:$0xff]
  %v3606 = vld [vmem:[%s3545 + $0x1e0] sm:$0xff]
  %v3607 = vld [vmem:[%s3545 + $0x1e8] sm:$0xff]
  %v3608 = vld [vmem:[%s3545 + $0x1f0] sm:$0xff]
  %v3609 = vld [vmem:[%s3545 + $0x1f8] sm:$0xff]
  %v3610 = vld [vmem:[%s3545 + $0x200] sm:$0xff]
  %v3611 = vld [vmem:[%s3545 + $0x208] sm:$0xff]
  %v3612 = vld [vmem:[%s3545 + $0x210] sm:$0xff]
  %v3613 = vld [vmem:[%s3545 + $0x218] sm:$0xff]
  %v3614 = vld [vmem:[%s3545 + $0x220] sm:$0xff]
  %v3615 = vld [vmem:[%s3545 + $0x228] sm:$0xff]
  %v3616 = vld [vmem:[%s3545 + $0x230] sm:$0xff]
  %v3617 = vld [vmem:[%s3545 + $0x238] sm:$0xff]
  %v3618 = vld [vmem:[%s3545 + $0x240] sm:$0xff]
  %v3619 = vld [vmem:[%s3545 + $0x248] sm:$0xff]
  %v3620 = vld [vmem:[%s3545 + $0x250] sm:$0xff]
  %v3621 = vld [vmem:[%s3545 + $0x258] sm:$0xff]
  %v3622 = vld [vmem:[%s3545 + $0x260] sm:$0xff]
  %v3623 = vld [vmem:[%s3545 + $0x268] sm:$0xff]
  %v3624 = vld [vmem:[%s3545 + $0x270] sm:$0xff]
  %v3625 = vld [vmem:[%s3545 + $0x278] sm:$0xff]
  %v3626 = vld [vmem:[%s3545 + $0x280] sm:$0xff]
  %v3627 = vld [vmem:[%s3545 + $0x288] sm:$0xff]
  %v3628 = vld [vmem:[%s3545 + $0x290] sm:$0xff]
  %v3629 = vld [vmem:[%s3545 + $0x298] sm:$0xff]
  %v3630 = vld [vmem:[%s3545 + $0x2a0] sm:$0xff]
  %v3631 = vld [vmem:[%s3545 + $0x2a8] sm:$0xff]
  %v3632 = vld [vmem:[%s3545 + $0x2b0] sm:$0xff]
  %v3633 = vld [vmem:[%s3545 + $0x2b8] sm:$0xff]
  %v3634 = vld [vmem:[%s3545 + $0x2c0] sm:$0xff]
  %v3635 = vld [vmem:[%s3545 + $0x2c8] sm:$0xff]
  %v3636 = vld [vmem:[%s3545 + $0x2d0] sm:$0xff]
  %v3637 = vld [vmem:[%s3545 + $0x2d8] sm:$0xff]
  %v3638 = vld [vmem:[%s3545 + $0x2e0] sm:$0xff]
  %v3639 = vld [vmem:[%s3545 + $0x2e8] sm:$0xff]
  %v3640 = vld [vmem:[%s3545 + $0x2f0] sm:$0xff]
  %v3641 = vld [vmem:[%s3545 + $0x2f8] sm:$0xff]
  %v3642 = vld [vmem:[%s3545 + $0x300] sm:$0xff]
  %v3643 = vld [vmem:[%s3545 + $0x308] sm:$0xff]
  %v3644 = vld [vmem:[%s3545 + $0x310] sm:$0xff]
  %v3645 = vld [vmem:[%s3545 + $0x318] sm:$0xff]
  %v3646 = vld [vmem:[%s3545 + $0x320] sm:$0xff]
  %v3647 = vld [vmem:[%s3545 + $0x328] sm:$0xff]
  %v3648 = vld [vmem:[%s3545 + $0x330] sm:$0xff]
  %v3649 = vld [vmem:[%s3545 + $0x338] sm:$0xff]
  %v3650 = vld [vmem:[%s3545 + $0x340] sm:$0xff]
  %v3651 = vld [vmem:[%s3545 + $0x348] sm:$0xff]
  %v3652 = vld [vmem:[%s3545 + $0x350] sm:$0xff]
  %v3653 = vld [vmem:[%s3545 + $0x358] sm:$0xff]
  %v3654 = vld [vmem:[%s3545 + $0x360] sm:$0xff]
  %v3655 = vld [vmem:[%s3545 + $0x368] sm:$0xff]
  %v3656 = vld [vmem:[%s3545 + $0x370] sm:$0xff]
  %v3657 = vld [vmem:[%s3545 + $0x378] sm:$0xff]
  %v3658 = vld [vmem:[%s3545 + $0x380] sm:$0xff]
  %v3659 = vld [vmem:[%s3545 + $0x388] sm:$0xff]
  %v3660 = vld [vmem:[%s3545 + $0x390] sm:$0xff]
  %v3661 = vld [vmem:[%s3545 + $0x398] sm:$0xff]
  %v3662 = vld [vmem:[%s3545 + $0x3a0] sm:$0xff]
  %v3663 = vld [vmem:[%s3545 + $0x3a8] sm:$0xff]
  %v3664 = vld [vmem:[%s3545 + $0x3b0] sm:$0xff]
  %v3665 = vld [vmem:[%s3545 + $0x3b8] sm:$0xff]
  %v3666 = vld [vmem:[%s3545 + $0x3c0] sm:$0xff]
  %v3667 = vld [vmem:[%s3545 + $0x3c8] sm:$0xff]
  %v3668 = vld [vmem:[%s3545 + $0x3d0] sm:$0xff]
  %v3669 = vld [vmem:[%s3545 + $0x3d8] sm:$0xff]
  %v3670 = vld [vmem:[%s3545 + $0x3e0] sm:$0xff]
  %v3671 = vld [vmem:[%s3545 + $0x3e8] sm:$0xff]
  %v3672 = vld [vmem:[%s3545 + $0x3f0] sm:$0xff]
  %v3673 = vld [vmem:[%s3545 + $0x3f8] sm:$0xff]
  %v3674 = vld [vmem:[%s3545 + $0x400] sm:$0xff]
  %v3675 = vld [vmem:[%s3545 + $0x408] sm:$0xff]
  %v3676 = vld [vmem:[%s3545 + $0x410] sm:$0xff]
  %v3677 = vld [vmem:[%s3545 + $0x418] sm:$0xff]
  %v3678 = vld [vmem:[%s3545 + $0x420] sm:$0xff]
  %v3679 = vld [vmem:[%s3545 + $0x428] sm:$0xff]
  %v3680 = vld [vmem:[%s3545 + $0x430] sm:$0xff]
  %v3681 = vld [vmem:[%s3545 + $0x438] sm:$0xff]
  %v3682 = vld [vmem:[%s3545 + $0x440] sm:$0xff]
  %v3683 = vld [vmem:[%s3545 + $0x448] sm:$0xff]
  %v3684 = vld [vmem:[%s3545 + $0x450] sm:$0xff]
  %v3685 = vld [vmem:[%s3545 + $0x458] sm:$0xff]
  %v3686 = vld [vmem:[%s3545 + $0x460] sm:$0xff]
  %v3687 = vld [vmem:[%s3545 + $0x468] sm:$0xff]
  %v3688 = vld [vmem:[%s3545 + $0x470] sm:$0xff]
  %v3689 = vld [vmem:[%s3545 + $0x478] sm:$0xff]
  %v3690 = vld [vmem:[%s3545 + $0x480] sm:$0xff]
  %v3691 = vld [vmem:[%s3545 + $0x488] sm:$0xff]
  %v3692 = vld [vmem:[%s3545 + $0x490] sm:$0xff]
  %v3693 = vld [vmem:[%s3545 + $0x498] sm:$0xff]
  %v3694 = vld [vmem:[%s3545 + $0x4a0] sm:$0xff]
  %v3695 = vld [vmem:[%s3545 + $0x4a8] sm:$0xff]
  %v3696 = vld [vmem:[%s3545 + $0x4b0] sm:$0xff]
  %v3697 = vld [vmem:[%s3545 + $0x4b8] sm:$0xff]
  %v3698 = vld [vmem:[%s3545 + $0x4c0] sm:$0xff]
  %v3699 = vld [vmem:[%s3545 + $0x4c8] sm:$0xff]
  %v3700 = vld [vmem:[%s3545 + $0x4d0] sm:$0xff]
  %v3701 = vld [vmem:[%s3545 + $0x4d8] sm:$0xff]
  %v3702 = vld [vmem:[%s3545 + $0x4e0] sm:$0xff]
  %v3703 = vld [vmem:[%s3545 + $0x4e8] sm:$0xff]
  %v3704 = vld [vmem:[%s3545 + $0x4f0] sm:$0xff]
  %v3705 = vld [vmem:[%s3545 + $0x4f8] sm:$0xff]
  %v3706 = vld [vmem:[%s3545 + $0x500] sm:$0xff]
  %v3707 = vld [vmem:[%s3545 + $0x508] sm:$0xff]
  %v3708 = vld [vmem:[%s3545 + $0x510] sm:$0xff]
  %v3709 = vld [vmem:[%s3545 + $0x518] sm:$0xff]
  %v3710 = vld [vmem:[%s3545 + $0x520] sm:$0xff]
  %v3711 = vld [vmem:[%s3545 + $0x528] sm:$0xff]
  %v3712 = vld [vmem:[%s3545 + $0x530] sm:$0xff]
  %v3713 = vld [vmem:[%s3545 + $0x538] sm:$0xff]
  %v3714 = vld [vmem:[%s3545 + $0x540] sm:$0xff]
  %v3715 = vld [vmem:[%s3545 + $0x548] sm:$0xff]
  %v3716 = vld [vmem:[%s3545 + $0x550] sm:$0xff]
  %v3717 = vld [vmem:[%s3545 + $0x558] sm:$0xff]
  %v3718 = vld [vmem:[%s3545 + $0x560] sm:$0xff]
  %v3719 = vld [vmem:[%s3545 + $0x568] sm:$0xff]
  %v3720 = vld [vmem:[%s3545 + $0x570] sm:$0xff]
  %v3721 = vld [vmem:[%s3545 + $0x578] sm:$0xff]
  %v3722 = vld [vmem:[%s3545 + $0x580] sm:$0xff]
  %v3723 = vld [vmem:[%s3545 + $0x588] sm:$0xff]
  %v3724 = vld [vmem:[%s3545 + $0x590] sm:$0xff]
  %v3725 = vld [vmem:[%s3545 + $0x598] sm:$0xff]
  %v3726 = vld [vmem:[%s3545 + $0x5a0] sm:$0xff]
  %v3727 = vld [vmem:[%s3545 + $0x5a8] sm:$0xff]
  %v3728 = vld [vmem:[%s3545 + $0x5b0] sm:$0xff]
  %v3729 = vld [vmem:[%s3545 + $0x5b8] sm:$0xff]
  %v3730 = vld [vmem:[%s3545 + $0x5c0] sm:$0xff]
  %v3731 = vld [vmem:[%s3545 + $0x5c8] sm:$0xff]
  %v3732 = vld [vmem:[%s3545 + $0x5d0] sm:$0xff]
  %v3733 = vld [vmem:[%s3545 + $0x5d8] sm:$0xff]
  %v3734 = vld [vmem:[%s3545 + $0x5e0] sm:$0xff]
  %v3735 = vld [vmem:[%s3545 + $0x5e8] sm:$0xff]
  %v3736 = vld [vmem:[%s3545 + $0x5f0] sm:$0xff]
  %v3737 = vld [vmem:[%s3545 + $0x5f8] sm:$0xff]
  %v3738 = vld [vmem:[%s3545 + $0x600] sm:$0xff]
  %v3739 = vld [vmem:[%s3545 + $0x608] sm:$0xff]
  %v3740 = vld [vmem:[%s3545 + $0x610] sm:$0xff]
  %v3741 = vld [vmem:[%s3545 + $0x618] sm:$0xff]
  %v3742 = vld [vmem:[%s3545 + $0x620] sm:$0xff]
  %v3743 = vld [vmem:[%s3545 + $0x628] sm:$0xff]
  %v3744 = vld [vmem:[%s3545 + $0x630] sm:$0xff]
  %v3745 = vld [vmem:[%s3545 + $0x638] sm:$0xff]
  %v3746 = vld [vmem:[%s3545 + $0x640] sm:$0xff]
  %v3747 = vld [vmem:[%s3545 + $0x648] sm:$0xff]
  %v3748 = vld [vmem:[%s3545 + $0x650] sm:$0xff]
  %v3749 = vld [vmem:[%s3545 + $0x658] sm:$0xff]
  %v3750 = vld [vmem:[%s3545 + $0x660] sm:$0xff]
  %v3751 = vld [vmem:[%s3545 + $0x668] sm:$0xff]
  %v3752 = vld [vmem:[%s3545 + $0x670] sm:$0xff]
  %v3753 = vld [vmem:[%s3545 + $0x678] sm:$0xff]
  %v3754 = vld [vmem:[%s3545 + $0x680] sm:$0xff]
  %v3755 = vld [vmem:[%s3545 + $0x688] sm:$0xff]
  %v3756 = vld [vmem:[%s3545 + $0x690] sm:$0xff]
  %v3757 = vld [vmem:[%s3545 + $0x698] sm:$0xff]
  %v3758 = vld [vmem:[%s3545 + $0x6a0] sm:$0xff]
  %v3759 = vld [vmem:[%s3545 + $0x6a8] sm:$0xff]
  %v3760 = vld [vmem:[%s3545 + $0x6b0] sm:$0xff]
  %v3761 = vld [vmem:[%s3545 + $0x6b8] sm:$0xff]
  %v3762 = vld [vmem:[%s3545 + $0x6c0] sm:$0xff]
  %v3763 = vld [vmem:[%s3545 + $0x6c8] sm:$0xff]
  %v3764 = vld [vmem:[%s3545 + $0x6d0] sm:$0xff]
  %v3765 = vld [vmem:[%s3545 + $0x6d8] sm:$0xff]
  %v3766 = vld [vmem:[%s3545 + $0x6e0] sm:$0xff]
  %v3767 = vld [vmem:[%s3545 + $0x6e8] sm:$0xff]
  %v3768 = vld [vmem:[%s3545 + $0x6f0] sm:$0xff]
  %v3769 = vld [vmem:[%s3545 + $0x6f8] sm:$0xff]
  %v3770 = vld [vmem:[%s3545 + $0x700] sm:$0xff]
  %v3771 = vld [vmem:[%s3545 + $0x708] sm:$0xff]
  %v3772 = vld [vmem:[%s3545 + $0x710] sm:$0xff]
  %v3773 = vld [vmem:[%s3545 + $0x718] sm:$0xff]
  %v3774 = vld [vmem:[%s3545 + $0x720] sm:$0xff]
  %v3775 = vld [vmem:[%s3545 + $0x728] sm:$0xff]
  %v3776 = vld [vmem:[%s3545 + $0x730] sm:$0xff]
  %v3777 = vld [vmem:[%s3545 + $0x738] sm:$0xff]
  %v3778 = vld [vmem:[%s3545 + $0x740] sm:$0xff]
  %v3779 = vld [vmem:[%s3545 + $0x748] sm:$0xff]
  %v3780 = vld [vmem:[%s3545 + $0x750] sm:$0xff]
  %v3781 = vld [vmem:[%s3545 + $0x758] sm:$0xff]
  %v3782 = vld [vmem:[%s3545 + $0x760] sm:$0xff]
  %v3783 = vld [vmem:[%s3545 + $0x768] sm:$0xff]
  %v3784 = vld [vmem:[%s3545 + $0x770] sm:$0xff]
  %v3785 = vld [vmem:[%s3545 + $0x778] sm:$0xff]
  %v3786 = vld [vmem:[%s3545 + $0x780] sm:$0xff]
  %v3787 = vld [vmem:[%s3545 + $0x788] sm:$0xff]
  %v3788 = vld [vmem:[%s3545 + $0x790] sm:$0xff]
  %v3789 = vld [vmem:[%s3545 + $0x798] sm:$0xff]
  %v3790 = vld [vmem:[%s3545 + $0x7a0] sm:$0xff]
  %v3791 = vld [vmem:[%s3545 + $0x7a8] sm:$0xff]
  %v3792 = vld [vmem:[%s3545 + $0x7b0] sm:$0xff]
  %v3793 = vld [vmem:[%s3545 + $0x7b8] sm:$0xff]
  %v3794 = vld [vmem:[%s3545 + $0x7c0] sm:$0xff]
  %v3795 = vld [vmem:[%s3545 + $0x7c8] sm:$0xff]
  %v3796 = vld [vmem:[%s3545 + $0x7d0] sm:$0xff]
  %v3797 = vld [vmem:[%s3545 + $0x7d8] sm:$0xff]
  %v3798 = vld [vmem:[%s3545 + $0x7e0] sm:$0xff]
  %v3799 = vld [vmem:[%s3545 + $0x7e8] sm:$0xff]
  %v3800 = vld [vmem:[%s3545 + $0x7f0] sm:$0xff]
  %v3801 = vld [vmem:[%s3545 + $0x7f8] sm:$0xff]
  %v3802 = vld [vmem:[%s3545 + $0x800] sm:$0xff]
  %v3803 = vld [vmem:[%s3545 + $0x808] sm:$0xff]
  %v3804 = vld [vmem:[%s3545 + $0x810] sm:$0xff]
  %v3805 = vld [vmem:[%s3545 + $0x818] sm:$0xff]
  %v3806 = vld [vmem:[%s3545 + $0x820] sm:$0xff]
  %v3807 = vld [vmem:[%s3545 + $0x828] sm:$0xff]
  %v3808 = vld [vmem:[%s3545 + $0x830] sm:$0xff]
  %v3809 = vld [vmem:[%s3545 + $0x838] sm:$0xff]
  %v3810 = vld [vmem:[%s3545 + $0x840] sm:$0xff]
  %v3811 = vld [vmem:[%s3545 + $0x848] sm:$0xff]
  %v3812 = vld [vmem:[%s3545 + $0x850] sm:$0xff]
  %v3813 = vld [vmem:[%s3545 + $0x858] sm:$0xff]
  %v3814 = vld [vmem:[%s3545 + $0x860] sm:$0xff]
  %v3815 = vld [vmem:[%s3545 + $0x868] sm:$0xff]
  %v3816 = vld [vmem:[%s3545 + $0x870] sm:$0xff]
  %v3817 = vld [vmem:[%s3545 + $0x878] sm:$0xff]
  %v3818 = vld [vmem:[%s3545 + $0x880] sm:$0xff]
  %v3819 = vld [vmem:[%s3545 + $0x888] sm:$0xff]
  %v3820 = vld [vmem:[%s3545 + $0x890] sm:$0xff]
  %v3821 = vld [vmem:[%s3545 + $0x898] sm:$0xff]
  %v3822 = vld [vmem:[%s3545 + $0x8a0] sm:$0xff]
  %v3823 = vld [vmem:[%s3545 + $0x8a8] sm:$0xff]
  %v3824 = vld [vmem:[%s3545 + $0x8b0] sm:$0xff]
  %v3825 = vld [vmem:[%s3545 + $0x8b8] sm:$0xff]
  %v3826 = vld [vmem:[%s3545 + $0x8c0] sm:$0xff]
  %v3827 = vld [vmem:[%s3545 + $0x8c8] sm:$0xff]
  %v3828 = vld [vmem:[%s3545 + $0x8d0] sm:$0xff]
  %v3829 = vld [vmem:[%s3545 + $0x8d8] sm:$0xff]
  %v3830 = vld [vmem:[%s3545 + $0x8e0] sm:$0xff]
  %v3831 = vld [vmem:[%s3545 + $0x8e8] sm:$0xff]
  %v3832 = vld [vmem:[%s3545 + $0x8f0] sm:$0xff]
  %v3833 = vld [vmem:[%s3545 + $0x8f8] sm:$0xff]
  %v3834 = vld [vmem:[%s3545 + $0x900] sm:$0xff]
  %v3835 = vld [vmem:[%s3545 + $0x908] sm:$0xff]
  %v3836 = vld [vmem:[%s3545 + $0x910] sm:$0xff]
  %v3837 = vld [vmem:[%s3545 + $0x918] sm:$0xff]
  %v3838 = vld [vmem:[%s3545 + $0x920] sm:$0xff]
  %v3839 = vld [vmem:[%s3545 + $0x928] sm:$0xff]
  %v3840 = vld [vmem:[%s3545 + $0x930] sm:$0xff]
  %v3841 = vld [vmem:[%s3545 + $0x938] sm:$0xff]
  %v3842 = vld [vmem:[%s3545 + $0x940] sm:$0xff]
  %v3843 = vld [vmem:[%s3545 + $0x948] sm:$0xff]
  %v3844 = vld [vmem:[%s3545 + $0x950] sm:$0xff]
  %v3845 = vld [vmem:[%s3545 + $0x958] sm:$0xff]
  %v3846 = vld [vmem:[%s3545 + $0x960] sm:$0xff]
  %v3847 = vld [vmem:[%s3545 + $0x968] sm:$0xff]
  %v3848 = vld [vmem:[%s3545 + $0x970] sm:$0xff]
  %v3849 = vld [vmem:[%s3545 + $0x978] sm:$0xff]
  %v3850 = vld [vmem:[%s3545 + $0x980] sm:$0xff]
  %v3851 = vld [vmem:[%s3545 + $0x988] sm:$0xff]
  %v3852 = vld [vmem:[%s3545 + $0x990] sm:$0xff]
  %v3853 = vld [vmem:[%s3545 + $0x998] sm:$0xff]
  %v3854 = vld [vmem:[%s3545 + $0x9a0] sm:$0xff]
  %v3855 = vld [vmem:[%s3545 + $0x9a8] sm:$0xff]
  %v3856 = vld [vmem:[%s3545 + $0x9b0] sm:$0xff]
  %v3857 = vld [vmem:[%s3545 + $0x9b8] sm:$0xff]
  %v3858 = vld [vmem:[%s3545 + $0x9c0] sm:$0xff]
  %v3859 = vld [vmem:[%s3545 + $0x9c8] sm:$0xff]
  %v3860 = vld [vmem:[%s3545 + $0x9d0] sm:$0xff]
  %v3861 = vld [vmem:[%s3545 + $0x9d8] sm:$0xff]
  %v3862 = vld [vmem:[%s3545 + $0x9e0] sm:$0xff]
  %v3863 = vld [vmem:[%s3545 + $0x9e8] sm:$0xff]
  %v3864 = vld [vmem:[%s3545 + $0x9f0] sm:$0xff]
  %v3865 = vld [vmem:[%s3545 + $0x9f8] sm:$0xff]
  %v3866 = vld [vmem:[%s3545 + $0xa00] sm:$0xff]
  %v3867 = vld [vmem:[%s3545 + $0xa08] sm:$0xff]
  %v3868 = vld [vmem:[%s3545 + $0xa10] sm:$0xff]
  %v3869 = vld [vmem:[%s3545 + $0xa18] sm:$0xff]
  %v3870 = vld [vmem:[%s3545 + $0xa20] sm:$0xff]
  %v3871 = vld [vmem:[%s3545 + $0xa28] sm:$0xff]
  %v3872 = vld [vmem:[%s3545 + $0xa30] sm:$0xff]
  %v3873 = vld [vmem:[%s3545 + $0xa38] sm:$0xff]
  %v3874 = vld [vmem:[%s3545 + $0xa40] sm:$0xff]
  %v3875 = vld [vmem:[%s3545 + $0xa48] sm:$0xff]
  %v3876 = vld [vmem:[%s3545 + $0xa50] sm:$0xff]
  %v3877 = vld [vmem:[%s3545 + $0xa58] sm:$0xff]
  %v3878 = vld [vmem:[%s3545 + $0xa60] sm:$0xff]
  %v3879 = vld [vmem:[%s3545 + $0xa68] sm:$0xff]
  %v3880 = vld [vmem:[%s3545 + $0xa70] sm:$0xff]
  %v3881 = vld [vmem:[%s3545 + $0xa78] sm:$0xff]
  %v3882 = vld [vmem:[%s3545 + $0xa80] sm:$0xff]
  %v3883 = vld [vmem:[%s3545 + $0xa88] sm:$0xff]
  %v3884 = vld [vmem:[%s3545 + $0xa90] sm:$0xff]
  %v3885 = vld [vmem:[%s3545 + $0xa98] sm:$0xff]
  %v3886 = vld [vmem:[%s3545 + $0xaa0] sm:$0xff]
  %v3887 = vld [vmem:[%s3545 + $0xaa8] sm:$0xff]
  %v3888 = vld [vmem:[%s3545 + $0xab0] sm:$0xff]
  %v3889 = vld [vmem:[%s3545 + $0xab8] sm:$0xff]
  %v3890 = vld [vmem:[%s3545 + $0xac0] sm:$0xff]
  %v3891 = vld [vmem:[%s3545 + $0xac8] sm:$0xff]
  %v3892 = vld [vmem:[%s3545 + $0xad0] sm:$0xff]
  %v3893 = vld [vmem:[%s3545 + $0xad8] sm:$0xff]
  %v3894 = vld [vmem:[%s3545 + $0xae0] sm:$0xff]
  %v3895 = vld [vmem:[%s3545 + $0xae8] sm:$0xff]
  %v3896 = vld [vmem:[%s3545 + $0xaf0] sm:$0xff]
  %v3897 = vld [vmem:[%s3545 + $0xaf8] sm:$0xff]
  %v3898 = vld [vmem:[%s3545 + $0xb00] sm:$0xff]
  %v3899 = vld [vmem:[%s3545 + $0xb08] sm:$0xff]
  %v3900 = vld [vmem:[%s3545 + $0xb10] sm:$0xff]
  %v3901 = vld [vmem:[%s3545 + $0xb18] sm:$0xff]
  %v3902 = vld [vmem:[%s3545 + $0xb20] sm:$0xff]
  %v3903 = vld [vmem:[%s3545 + $0xb28] sm:$0xff]
  %v3904 = vld [vmem:[%s3545 + $0xb30] sm:$0xff]
  %v3905 = vld [vmem:[%s3545 + $0xb38] sm:$0xff]
  %v3931 = vrot.slane %v3535, 1
  %v3932 = vrot.slane %v3155, 1
  %v3933 = vsel %vm1125, %v3931, %v3932
  %v3934 = vrot.slane %v3536, 1
  %v3935 = vrot.slane %v3156, 1
  %v3936 = vsel %vm1125, %v3934, %v3935
  %v3937 = vrot.slane %v3537, 1
  %v3938 = vrot.slane %v3157, 1
  %v3939 = vsel %vm1125, %v3937, %v3938
  %v3940 = vrot.slane %v3538, 1
  %v3941 = vrot.slane %v3158, 1
  %v3942 = vsel %vm1125, %v3940, %v3941
  %v3943 = vrot.slane %v3539, 1
  %v3944 = vrot.slane %v3159, 1
  %v3945 = vsel %vm1125, %v3943, %v3944
  %v3946 = vrot.slane %v3160, 1
  %v3947 = vsel %vm1125, %v3932, %v3946
  %v3948 = vrot.slane %v3161, 1
  %v3949 = vsel %vm1125, %v3935, %v3948
  %v3950 = vrot.slane %v3162, 1
  %v3951 = vsel %vm1125, %v3938, %v3950
  %v3952 = vrot.slane %v3163, 1
  %v3953 = vsel %vm1125, %v3941, %v3952
  %v3954 = vrot.slane %v3164, 1
  %v3955 = vsel %vm1125, %v3944, %v3954
  %v3956 = vrot.slane %v3165, 1
  %v3957 = vsel %vm1125, %v3946, %v3956
  %v3958 = vrot.slane %v3166, 1
  %v3959 = vsel %vm1125, %v3948, %v3958
  %v3960 = vrot.slane %v3167, 1
  %v3961 = vsel %vm1125, %v3950, %v3960
  %v3962 = vrot.slane %v3168, 1
  %v3963 = vsel %vm1125, %v3952, %v3962
  %v3964 = vrot.slane %v3169, 1
  %v3965 = vsel %vm1125, %v3954, %v3964
  %v3966 = vrot.slane %v3540, 1
  %v3967 = vsel %vm1125, %v3956, %v3966
  %v3968 = vrot.slane %v3541, 1
  %v3969 = vsel %vm1125, %v3958, %v3968
  %v3970 = vrot.slane %v3542, 1
  %v3971 = vsel %vm1125, %v3960, %v3970
  %v3972 = vrot.slane %v3543, 1
  %v3973 = vsel %vm1125, %v3962, %v3972
  %v3974 = vrot.slane %v3544, 1
  %v3975 = vsel %vm1125, %v3964, %v3974
  %v3996 = vsel %vm3132, %v3945, 0
  %v3998 = vsel %vm3132, %v3955, 0
  %v4000 = vsel %vm3132, %v3965, 0
  %v4002 = vsel %vm3132, %v3975, 0
  %v4004 = vsel %vm3132, %v3974, 0
  %4006 = vmatpush.msra.mxu0 %v3621
  %4007 = vmatpush.msra.mxu0 %v3616
  %4008 = vmatpush.msra.mxu0 %v3611
  %4009 = vmatpush.msra.mxu0 %v3606
  %4010 = vmatpush.msra.mxu0 %v3601
  %4011 = vmatpush.msra.mxu0 %v3596
  %4012 = vmatpush.msra.mxu0 %v3591
  %4013 = vmatpush.msra.mxu0 %v3586
  %4014 = vmatpush.msra.mxu0 %v3581
  %4015 = vmatpush.msra.mxu0 %v3576
  %4016 = vmatpush.msra.mxu0 %v3571
  %4017 = vmatpush.msra.mxu0 %v3566
  %4018 = vmatpush.msra.mxu0 %v3561
  %4019 = vmatpush.msra.mxu0 %v3556
  %4020 = vmatpush.msra.mxu0 %v3551
  %4021 = vmatpush.msra.mxu0 %v3546
  %4022 = vmatmul.f32.gmra.mxu0 %v3933
  %v4023 = vpop.f32.mrf.mxu0
  %v4024 = vadd.f32 0.0, %v4023
  %4025 = vmatmul.f32.gmra.mxu0 %v3947
  %v4026 = vpop.f32.mrf.mxu0
  %v4027 = vadd.f32 0.0, %v4026
  %4028 = vmatmul.f32.gmra.mxu0 %v3957
  %v4029 = vpop.f32.mrf.mxu0
  %v4030 = vadd.f32 0.0, %v4029
  %4031 = vmatmul.f32.gmra.mxu0 %v3967
  %v4032 = vpop.f32.mrf.mxu0
  %v4033 = vadd.f32 0.0, %v4032
  %4034 = vmatmul.f32.gmra.mxu0 %v3966
  %v4035 = vpop.f32.mrf.mxu0
  %v4036 = vadd.f32 0.0, %v4035
  %4037 = vdwg.mxu0
  %4038 = vmatpush.msra.mxu0 %v3701
  %4039 = vmatpush.msra.mxu0 %v3696
  %4040 = vmatpush.msra.mxu0 %v3691
  %4041 = vmatpush.msra.mxu0 %v3686
  %4042 = vmatpush.msra.mxu0 %v3681
  %4043 = vmatpush.msra.mxu0 %v3676
  %4044 = vmatpush.msra.mxu0 %v3671
  %4045 = vmatpush.msra.mxu0 %v3666
  %4046 = vmatpush.msra.mxu0 %v3661
  %4047 = vmatpush.msra.mxu0 %v3656
  %4048 = vmatpush.msra.mxu0 %v3651
  %4049 = vmatpush.msra.mxu0 %v3646
  %4050 = vmatpush.msra.mxu0 %v3641
  %4051 = vmatpush.msra.mxu0 %v3636
  %4052 = vmatpush.msra.mxu0 %v3631
  %4053 = vmatpush.msra.mxu0 %v3626
  %4054 = vmatmul.f32.gmra.mxu0 %v3936
  %v4055 = vpop.f32.mrf.mxu0
  %v4056 = vadd.f32 %v4024, %v4055
  %4057 = vmatmul.f32.gmra.mxu0 %v3949
  %v4058 = vpop.f32.mrf.mxu0
  %v4059 = vadd.f32 %v4027, %v4058
  %4060 = vmatmul.f32.gmra.mxu0 %v3959
  %v4061 = vpop.f32.mrf.mxu0
  %v4062 = vadd.f32 %v4030, %v4061
  %4063 = vmatmul.f32.gmra.mxu0 %v3969
  %v4064 = vpop.f32.mrf.mxu0
  %v4065 = vadd.f32 %v4033, %v4064
  %4066 = vmatmul.f32.gmra.mxu0 %v3968
  %v4067 = vpop.f32.mrf.mxu0
  %v4068 = vadd.f32 %v4036, %v4067
  %4069 = vdwg.mxu0
  %4070 = vmatpush.msra.mxu0 %v3781
  %4071 = vmatpush.msra.mxu0 %v3776
  %4072 = vmatpush.msra.mxu0 %v3771
  %4073 = vmatpush.msra.mxu0 %v3766
  %4074 = vmatpush.msra.mxu0 %v3761
  %4075 = vmatpush.msra.mxu0 %v3756
  %4076 = vmatpush.msra.mxu0 %v3751
  %4077 = vmatpush.msra.mxu0 %v3746
  %4078 = vmatpush.msra.mxu0 %v3741
  %4079 = vmatpush.msra.mxu0 %v3736
  %4080 = vmatpush.msra.mxu0 %v3731
  %4081 = vmatpush.msra.mxu0 %v3726
  %4082 = vmatpush.msra.mxu0 %v3721
  %4083 = vmatpush.msra.mxu0 %v3716
  %4084 = vmatpush.msra.mxu0 %v3711
  %4085 = vmatpush.msra.mxu0 %v3706
  %4086 = vmatmul.f32.gmra.mxu0 %v3939
  %v4087 = vpop.f32.mrf.mxu0
  %v4088 = vadd.f32 %v4056, %v4087
  %4089 = vmatmul.f32.gmra.mxu0 %v3951
  %v4090 = vpop.f32.mrf.mxu0
  %v4091 = vadd.f32 %v4059, %v4090
  %4092 = vmatmul.f32.gmra.mxu0 %v3961
  %v4093 = vpop.f32.mrf.mxu0
  %v4094 = vadd.f32 %v4062, %v4093
  %4095 = vmatmul.f32.gmra.mxu0 %v3971
  %v4096 = vpop.f32.mrf.mxu0
  %v4097 = vadd.f32 %v4065, %v4096
  %4098 = vmatmul.f32.gmra.mxu0 %v3970
  %v4099 = vpop.f32.mrf.mxu0
  %v4100 = vadd.f32 %v4068, %v4099
  %4101 = vdwg.mxu0
  %4102 = vmatpush.msra.mxu0 %v3861
  %4103 = vmatpush.msra.mxu0 %v3856
  %4104 = vmatpush.msra.mxu0 %v3851
  %4105 = vmatpush.msra.mxu0 %v3846
  %4106 = vmatpush.msra.mxu0 %v3841
  %4107 = vmatpush.msra.mxu0 %v3836
  %4108 = vmatpush.msra.mxu0 %v3831
  %4109 = vmatpush.msra.mxu0 %v3826
  %4110 = vmatpush.msra.mxu0 %v3821
  %4111 = vmatpush.msra.mxu0 %v3816
  %4112 = vmatpush.msra.mxu0 %v3811
  %4113 = vmatpush.msra.mxu0 %v3806
  %4114 = vmatpush.msra.mxu0 %v3801
  %4115 = vmatpush.msra.mxu0 %v3796
  %4116 = vmatpush.msra.mxu0 %v3791
  %4117 = vmatpush.msra.mxu0 %v3786
  %4118 = vmatmul.f32.gmra.mxu0 %v3942
  %v4119 = vpop.f32.mrf.mxu0
  %v4120 = vadd.f32 %v4088, %v4119
  %4121 = vmatmul.f32.gmra.mxu0 %v3953
  %v4122 = vpop.f32.mrf.mxu0
  %v4123 = vadd.f32 %v4091, %v4122
  %4124 = vmatmul.f32.gmra.mxu0 %v3963
  %v4125 = vpop.f32.mrf.mxu0
  %v4126 = vadd.f32 %v4094, %v4125
  %4127 = vmatmul.f32.gmra.mxu0 %v3973
  %v4128 = vpop.f32.mrf.mxu0
  %v4129 = vadd.f32 %v4097, %v4128
  %4130 = vmatmul.f32.gmra.mxu0 %v3972
  %v4131 = vpop.f32.mrf.mxu0
  %v4132 = vadd.f32 %v4100, %v4131
  %4133 = vdwg.mxu0
  %4134 = vmatpush.msra.mxu0 0.0
  %4135 = vmatpush.msra.mxu0 0.0
  %4136 = vmatpush.msra.mxu0 0.0
  %4137 = vmatpush.msra.mxu0 0.0
  %4138 = vmatpush.msra.mxu0 0.0
  %4139 = vmatpush.msra.mxu0 0.0
  %4140 = vmatpush.msra.mxu0 0.0
  %4141 = vmatpush.msra.mxu0 0.0
  %4142 = vmatpush.msra.mxu0 %v3901
  %4143 = vmatpush.msra.mxu0 %v3896
  %4144 = vmatpush.msra.mxu0 %v3891
  %4145 = vmatpush.msra.mxu0 %v3886
  %4146 = vmatpush.msra.mxu0 %v3881
  %4147 = vmatpush.msra.mxu0 %v3876
  %4148 = vmatpush.msra.mxu0 %v3871
  %4149 = vmatpush.msra.mxu0 %v3866
  %4150 = vmatmul.f32.gmra.mxu0 %v3996
  %v4151 = vpop.f32.mrf.mxu0
  %v4152 = vadd.f32 %v4120, %v4151
  %4153 = vmatmul.f32.gmra.mxu0 %v3998
  %v4154 = vpop.f32.mrf.mxu0
  %v4155 = vadd.f32 %v4123, %v4154
  %4156 = vmatmul.f32.gmra.mxu0 %v4000
  %v4157 = vpop.f32.mrf.mxu0
  %v4158 = vadd.f32 %v4126, %v4157
  %4159 = vmatmul.f32.gmra.mxu0 %v4002
  %v4160 = vpop.f32.mrf.mxu0
  %v4161 = vadd.f32 %v4129, %v4160
  %4162 = vmatmul.f32.gmra.mxu0 %v4004
  %v4163 = vpop.f32.mrf.mxu0
  %v4164 = vadd.f32 %v4132, %v4163
  %4165 = vdwg.mxu0
  %4166 = vmatpush.msra.mxu0 %v3622
  %4167 = vmatpush.msra.mxu0 %v3617
  %4168 = vmatpush.msra.mxu0 %v3612
  %4169 = vmatpush.msra.mxu0 %v3607
  %4170 = vmatpush.msra.mxu0 %v3602
  %4171 = vmatpush.msra.mxu0 %v3597
  %4172 = vmatpush.msra.mxu0 %v3592
  %4173 = vmatpush.msra.mxu0 %v3587
  %4174 = vmatpush.msra.mxu0 %v3582
  %4175 = vmatpush.msra.mxu0 %v3577
  %4176 = vmatpush.msra.mxu0 %v3572
  %4177 = vmatpush.msra.mxu0 %v3567
  %4178 = vmatpush.msra.mxu0 %v3562
  %4179 = vmatpush.msra.mxu0 %v3557
  %4180 = vmatpush.msra.mxu0 %v3552
  %4181 = vmatpush.msra.mxu0 %v3547
  %4182 = vmatmul.f32.gmra.mxu0 %v3933
  %v4183 = vpop.f32.mrf.mxu0
  %v4184 = vadd.f32 0.0, %v4183
  %4185 = vmatmul.f32.gmra.mxu0 %v3947
  %v4186 = vpop.f32.mrf.mxu0
  %v4187 = vadd.f32 0.0, %v4186
  %4188 = vmatmul.f32.gmra.mxu0 %v3957
  %v4189 = vpop.f32.mrf.mxu0
  %v4190 = vadd.f32 0.0, %v4189
  %4191 = vmatmul.f32.gmra.mxu0 %v3967
  %v4192 = vpop.f32.mrf.mxu0
  %v4193 = vadd.f32 0.0, %v4192
  %4194 = vmatmul.f32.gmra.mxu0 %v3966
  %v4195 = vpop.f32.mrf.mxu0
  %v4196 = vadd.f32 0.0, %v4195
  %4197 = vdwg.mxu0
  %4198 = vmatpush.msra.mxu0 %v3702
  %4199 = vmatpush.msra.mxu0 %v3697
  %4200 = vmatpush.msra.mxu0 %v3692
  %4201 = vmatpush.msra.mxu0 %v3687
  %4202 = vmatpush.msra.mxu0 %v3682
  %4203 = vmatpush.msra.mxu0 %v3677
  %4204 = vmatpush.msra.mxu0 %v3672
  %4205 = vmatpush.msra.mxu0 %v3667
  %4206 = vmatpush.msra.mxu0 %v3662
  %4207 = vmatpush.msra.mxu0 %v3657
  %4208 = vmatpush.msra.mxu0 %v3652
  %4209 = vmatpush.msra.mxu0 %v3647
  %4210 = vmatpush.msra.mxu0 %v3642
  %4211 = vmatpush.msra.mxu0 %v3637
  %4212 = vmatpush.msra.mxu0 %v3632
  %4213 = vmatpush.msra.mxu0 %v3627
  %4214 = vmatmul.f32.gmra.mxu0 %v3936
  %v4215 = vpop.f32.mrf.mxu0
  %v4216 = vadd.f32 %v4184, %v4215
  %4217 = vmatmul.f32.gmra.mxu0 %v3949
  %v4218 = vpop.f32.mrf.mxu0
  %v4219 = vadd.f32 %v4187, %v4218
  %4220 = vmatmul.f32.gmra.mxu0 %v3959
  %v4221 = vpop.f32.mrf.mxu0
  %v4222 = vadd.f32 %v4190, %v4221
  %4223 = vmatmul.f32.gmra.mxu0 %v3969
  %v4224 = vpop.f32.mrf.mxu0
  %v4225 = vadd.f32 %v4193, %v4224
  %4226 = vmatmul.f32.gmra.mxu0 %v3968
  %v4227 = vpop.f32.mrf.mxu0
  %v4228 = vadd.f32 %v4196, %v4227
  %4229 = vdwg.mxu0
  %4230 = vmatpush.msra.mxu0 %v3782
  %4231 = vmatpush.msra.mxu0 %v3777
  %4232 = vmatpush.msra.mxu0 %v3772
  %4233 = vmatpush.msra.mxu0 %v3767
  %4234 = vmatpush.msra.mxu0 %v3762
  %4235 = vmatpush.msra.mxu0 %v3757
  %4236 = vmatpush.msra.mxu0 %v3752
  %4237 = vmatpush.msra.mxu0 %v3747
  %4238 = vmatpush.msra.mxu0 %v3742
  %4239 = vmatpush.msra.mxu0 %v3737
  %4240 = vmatpush.msra.mxu0 %v3732
  %4241 = vmatpush.msra.mxu0 %v3727
  %4242 = vmatpush.msra.mxu0 %v3722
  %4243 = vmatpush.msra.mxu0 %v3717
  %4244 = vmatpush.msra.mxu0 %v3712
  %4245 = vmatpush.msra.mxu0 %v3707
  %4246 = vmatmul.f32.gmra.mxu0 %v3939
  %v4247 = vpop.f32.mrf.mxu0
  %v4248 = vadd.f32 %v4216, %v4247
  %4249 = vmatmul.f32.gmra.mxu0 %v3951
  %v4250 = vpop.f32.mrf.mxu0
  %v4251 = vadd.f32 %v4219, %v4250
  %4252 = vmatmul.f32.gmra.mxu0 %v3961
  %v4253 = vpop.f32.mrf.mxu0
  %v4254 = vadd.f32 %v4222, %v4253
  %4255 = vmatmul.f32.gmra.mxu0 %v3971
  %v4256 = vpop.f32.mrf.mxu0
  %v4257 = vadd.f32 %v4225, %v4256
  %4258 = vmatmul.f32.gmra.mxu0 %v3970
  %v4259 = vpop.f32.mrf.mxu0
  %v4260 = vadd.f32 %v4228, %v4259
  %4261 = vdwg.mxu0
  %4262 = vmatpush.msra.mxu0 %v3862
  %4263 = vmatpush.msra.mxu0 %v3857
  %4264 = vmatpush.msra.mxu0 %v3852
  %4265 = vmatpush.msra.mxu0 %v3847
  %4266 = vmatpush.msra.mxu0 %v3842
  %4267 = vmatpush.msra.mxu0 %v3837
  %4268 = vmatpush.msra.mxu0 %v3832
  %4269 = vmatpush.msra.mxu0 %v3827
  %4270 = vmatpush.msra.mxu0 %v3822
  %4271 = vmatpush.msra.mxu0 %v3817
  %4272 = vmatpush.msra.mxu0 %v3812
  %4273 = vmatpush.msra.mxu0 %v3807
  %4274 = vmatpush.msra.mxu0 %v3802
  %4275 = vmatpush.msra.mxu0 %v3797
  %4276 = vmatpush.msra.mxu0 %v3792
  %4277 = vmatpush.msra.mxu0 %v3787
  %4278 = vmatmul.f32.gmra.mxu0 %v3942
  %v4279 = vpop.f32.mrf.mxu0
  %v4280 = vadd.f32 %v4248, %v4279
  %4281 = vmatmul.f32.gmra.mxu0 %v3953
  %v4282 = vpop.f32.mrf.mxu0
  %v4283 = vadd.f32 %v4251, %v4282
  %4284 = vmatmul.f32.gmra.mxu0 %v3963
  %v4285 = vpop.f32.mrf.mxu0
  %v4286 = vadd.f32 %v4254, %v4285
  %4287 = vmatmul.f32.gmra.mxu0 %v3973
  %v4288 = vpop.f32.mrf.mxu0
  %v4289 = vadd.f32 %v4257, %v4288
  %4290 = vmatmul.f32.gmra.mxu0 %v3972
  %v4291 = vpop.f32.mrf.mxu0
  %v4292 = vadd.f32 %v4260, %v4291
  %4293 = vdwg.mxu0
  %4294 = vmatpush.msra.mxu0 0.0
  %4295 = vmatpush.msra.mxu0 0.0
  %4296 = vmatpush.msra.mxu0 0.0
  %4297 = vmatpush.msra.mxu0 0.0
  %4298 = vmatpush.msra.mxu0 0.0
  %4299 = vmatpush.msra.mxu0 0.0
  %4300 = vmatpush.msra.mxu0 0.0
  %4301 = vmatpush.msra.mxu0 0.0
  %4302 = vmatpush.msra.mxu0 %v3902
  %4303 = vmatpush.msra.mxu0 %v3897
  %4304 = vmatpush.msra.mxu0 %v3892
  %4305 = vmatpush.msra.mxu0 %v3887
  %4306 = vmatpush.msra.mxu0 %v3882
  %4307 = vmatpush.msra.mxu0 %v3877
  %4308 = vmatpush.msra.mxu0 %v3872
  %4309 = vmatpush.msra.mxu0 %v3867
  %4310 = vmatmul.f32.gmra.mxu0 %v3996
  %v4311 = vpop.f32.mrf.mxu0
  %v4312 = vadd.f32 %v4280, %v4311
  %4313 = vmatmul.f32.gmra.mxu0 %v3998
  %v4314 = vpop.f32.mrf.mxu0
  %v4315 = vadd.f32 %v4283, %v4314
  %4316 = vmatmul.f32.gmra.mxu0 %v4000
  %v4317 = vpop.f32.mrf.mxu0
  %v4318 = vadd.f32 %v4286, %v4317
  %4319 = vmatmul.f32.gmra.mxu0 %v4002
  %v4320 = vpop.f32.mrf.mxu0
  %v4321 = vadd.f32 %v4289, %v4320
  %4322 = vmatmul.f32.gmra.mxu0 %v4004
  %v4323 = vpop.f32.mrf.mxu0
  %v4324 = vadd.f32 %v4292, %v4323
  %4325 = vdwg.mxu0
  %4326 = vmatpush.msra.mxu0 %v3623
  %4327 = vmatpush.msra.mxu0 %v3618
  %4328 = vmatpush.msra.mxu0 %v3613
  %4329 = vmatpush.msra.mxu0 %v3608
  %4330 = vmatpush.msra.mxu0 %v3603
  %4331 = vmatpush.msra.mxu0 %v3598
  %4332 = vmatpush.msra.mxu0 %v3593
  %4333 = vmatpush.msra.mxu0 %v3588
  %4334 = vmatpush.msra.mxu0 %v3583
  %4335 = vmatpush.msra.mxu0 %v3578
  %4336 = vmatpush.msra.mxu0 %v3573
  %4337 = vmatpush.msra.mxu0 %v3568
  %4338 = vmatpush.msra.mxu0 %v3563
  %4339 = vmatpush.msra.mxu0 %v3558
  %4340 = vmatpush.msra.mxu0 %v3553
  %4341 = vmatpush.msra.mxu0 %v3548
  %4342 = vmatmul.f32.gmra.mxu0 %v3933
  %v4343 = vpop.f32.mrf.mxu0
  %v4344 = vadd.f32 0.0, %v4343
  %4345 = vmatmul.f32.gmra.mxu0 %v3947
  %v4346 = vpop.f32.mrf.mxu0
  %v4347 = vadd.f32 0.0, %v4346
  %4348 = vmatmul.f32.gmra.mxu0 %v3957
  %v4349 = vpop.f32.mrf.mxu0
  %v4350 = vadd.f32 0.0, %v4349
  %4351 = vmatmul.f32.gmra.mxu0 %v3967
  %v4352 = vpop.f32.mrf.mxu0
  %v4353 = vadd.f32 0.0, %v4352
  %4354 = vmatmul.f32.gmra.mxu0 %v3966
  %v4355 = vpop.f32.mrf.mxu0
  %v4356 = vadd.f32 0.0, %v4355
  %4357 = vdwg.mxu0
  %4358 = vmatpush.msra.mxu0 %v3703
  %4359 = vmatpush.msra.mxu0 %v3698
  %4360 = vmatpush.msra.mxu0 %v3693
  %4361 = vmatpush.msra.mxu0 %v3688
  %4362 = vmatpush.msra.mxu0 %v3683
  %4363 = vmatpush.msra.mxu0 %v3678
  %4364 = vmatpush.msra.mxu0 %v3673
  %4365 = vmatpush.msra.mxu0 %v3668
  %4366 = vmatpush.msra.mxu0 %v3663
  %4367 = vmatpush.msra.mxu0 %v3658
  %4368 = vmatpush.msra.mxu0 %v3653
  %4369 = vmatpush.msra.mxu0 %v3648
  %4370 = vmatpush.msra.mxu0 %v3643
  %4371 = vmatpush.msra.mxu0 %v3638
  %4372 = vmatpush.msra.mxu0 %v3633
  %4373 = vmatpush.msra.mxu0 %v3628
  %4374 = vmatmul.f32.gmra.mxu0 %v3936
  %v4375 = vpop.f32.mrf.mxu0
  %v4376 = vadd.f32 %v4344, %v4375
  %4377 = vmatmul.f32.gmra.mxu0 %v3949
  %v4378 = vpop.f32.mrf.mxu0
  %v4379 = vadd.f32 %v4347, %v4378
  %4380 = vmatmul.f32.gmra.mxu0 %v3959
  %v4381 = vpop.f32.mrf.mxu0
  %v4382 = vadd.f32 %v4350, %v4381
  %4383 = vmatmul.f32.gmra.mxu0 %v3969
  %v4384 = vpop.f32.mrf.mxu0
  %v4385 = vadd.f32 %v4353, %v4384
  %4386 = vmatmul.f32.gmra.mxu0 %v3968
  %v4387 = vpop.f32.mrf.mxu0
  %v4388 = vadd.f32 %v4356, %v4387
  %4389 = vdwg.mxu0
  %4390 = vmatpush.msra.mxu0 %v3783
  %4391 = vmatpush.msra.mxu0 %v3778
  %4392 = vmatpush.msra.mxu0 %v3773
  %4393 = vmatpush.msra.mxu0 %v3768
  %4394 = vmatpush.msra.mxu0 %v3763
  %4395 = vmatpush.msra.mxu0 %v3758
  %4396 = vmatpush.msra.mxu0 %v3753
  %4397 = vmatpush.msra.mxu0 %v3748
  %4398 = vmatpush.msra.mxu0 %v3743
  %4399 = vmatpush.msra.mxu0 %v3738
  %4400 = vmatpush.msra.mxu0 %v3733
  %4401 = vmatpush.msra.mxu0 %v3728
  %4402 = vmatpush.msra.mxu0 %v3723
  %4403 = vmatpush.msra.mxu0 %v3718
  %4404 = vmatpush.msra.mxu0 %v3713
  %4405 = vmatpush.msra.mxu0 %v3708
  %4406 = vmatmul.f32.gmra.mxu0 %v3939
  %v4407 = vpop.f32.mrf.mxu0
  %v4408 = vadd.f32 %v4376, %v4407
  %4409 = vmatmul.f32.gmra.mxu0 %v3951
  %v4410 = vpop.f32.mrf.mxu0
  %v4411 = vadd.f32 %v4379, %v4410
  %4412 = vmatmul.f32.gmra.mxu0 %v3961
  %v4413 = vpop.f32.mrf.mxu0
  %v4414 = vadd.f32 %v4382, %v4413
  %4415 = vmatmul.f32.gmra.mxu0 %v3971
  %v4416 = vpop.f32.mrf.mxu0
  %v4417 = vadd.f32 %v4385, %v4416
  %4418 = vmatmul.f32.gmra.mxu0 %v3970
  %v4419 = vpop.f32.mrf.mxu0
  %v4420 = vadd.f32 %v4388, %v4419
  %4421 = vdwg.mxu0
  %4422 = vmatpush.msra.mxu0 %v3863
  %4423 = vmatpush.msra.mxu0 %v3858
  %4424 = vmatpush.msra.mxu0 %v3853
  %4425 = vmatpush.msra.mxu0 %v3848
  %4426 = vmatpush.msra.mxu0 %v3843
  %4427 = vmatpush.msra.mxu0 %v3838
  %4428 = vmatpush.msra.mxu0 %v3833
  %4429 = vmatpush.msra.mxu0 %v3828
  %4430 = vmatpush.msra.mxu0 %v3823
  %4431 = vmatpush.msra.mxu0 %v3818
  %4432 = vmatpush.msra.mxu0 %v3813
  %4433 = vmatpush.msra.mxu0 %v3808
  %4434 = vmatpush.msra.mxu0 %v3803
  %4435 = vmatpush.msra.mxu0 %v3798
  %4436 = vmatpush.msra.mxu0 %v3793
  %4437 = vmatpush.msra.mxu0 %v3788
  %4438 = vmatmul.f32.gmra.mxu0 %v3942
  %v4439 = vpop.f32.mrf.mxu0
  %v4440 = vadd.f32 %v4408, %v4439
  %4441 = vmatmul.f32.gmra.mxu0 %v3953
  %v4442 = vpop.f32.mrf.mxu0
  %v4443 = vadd.f32 %v4411, %v4442
  %4444 = vmatmul.f32.gmra.mxu0 %v3963
  %v4445 = vpop.f32.mrf.mxu0
  %v4446 = vadd.f32 %v4414, %v4445
  %4447 = vmatmul.f32.gmra.mxu0 %v3973
  %v4448 = vpop.f32.mrf.mxu0
  %v4449 = vadd.f32 %v4417, %v4448
  %4450 = vmatmul.f32.gmra.mxu0 %v3972
  %v4451 = vpop.f32.mrf.mxu0
  %v4452 = vadd.f32 %v4420, %v4451
  %4453 = vdwg.mxu0
  %4454 = vmatpush.msra.mxu0 0.0
  %4455 = vmatpush.msra.mxu0 0.0
  %4456 = vmatpush.msra.mxu0 0.0
  %4457 = vmatpush.msra.mxu0 0.0
  %4458 = vmatpush.msra.mxu0 0.0
  %4459 = vmatpush.msra.mxu0 0.0
  %4460 = vmatpush.msra.mxu0 0.0
  %4461 = vmatpush.msra.mxu0 0.0
  %4462 = vmatpush.msra.mxu0 %v3903
  %4463 = vmatpush.msra.mxu0 %v3898
  %4464 = vmatpush.msra.mxu0 %v3893
  %4465 = vmatpush.msra.mxu0 %v3888
  %4466 = vmatpush.msra.mxu0 %v3883
  %4467 = vmatpush.msra.mxu0 %v3878
  %4468 = vmatpush.msra.mxu0 %v3873
  %4469 = vmatpush.msra.mxu0 %v3868
  %4470 = vmatmul.f32.gmra.mxu0 %v3996
  %v4471 = vpop.f32.mrf.mxu0
  %v4472 = vadd.f32 %v4440, %v4471
  %4473 = vmatmul.f32.gmra.mxu0 %v3998
  %v4474 = vpop.f32.mrf.mxu0
  %v4475 = vadd.f32 %v4443, %v4474
  %4476 = vmatmul.f32.gmra.mxu0 %v4000
  %v4477 = vpop.f32.mrf.mxu0
  %v4478 = vadd.f32 %v4446, %v4477
  %4479 = vmatmul.f32.gmra.mxu0 %v4002
  %v4480 = vpop.f32.mrf.mxu0
  %v4481 = vadd.f32 %v4449, %v4480
  %4482 = vmatmul.f32.gmra.mxu0 %v4004
  %v4483 = vpop.f32.mrf.mxu0
  %v4484 = vadd.f32 %v4452, %v4483
  %4485 = vdwg.mxu0
  %4486 = vmatpush.msra.mxu0 %v3624
  %4487 = vmatpush.msra.mxu0 %v3619
  %4488 = vmatpush.msra.mxu0 %v3614
  %4489 = vmatpush.msra.mxu0 %v3609
  %4490 = vmatpush.msra.mxu0 %v3604
  %4491 = vmatpush.msra.mxu0 %v3599
  %4492 = vmatpush.msra.mxu0 %v3594
  %4493 = vmatpush.msra.mxu0 %v3589
  %4494 = vmatpush.msra.mxu0 %v3584
  %4495 = vmatpush.msra.mxu0 %v3579
  %4496 = vmatpush.msra.mxu0 %v3574
  %4497 = vmatpush.msra.mxu0 %v3569
  %4498 = vmatpush.msra.mxu0 %v3564
  %4499 = vmatpush.msra.mxu0 %v3559
  %4500 = vmatpush.msra.mxu0 %v3554
  %4501 = vmatpush.msra.mxu0 %v3549
  %4502 = vmatmul.f32.gmra.mxu0 %v3933
  %v4503 = vpop.f32.mrf.mxu0
  %v4504 = vadd.f32 0.0, %v4503
  %4505 = vmatmul.f32.gmra.mxu0 %v3947
  %v4506 = vpop.f32.mrf.mxu0
  %v4507 = vadd.f32 0.0, %v4506
  %4508 = vmatmul.f32.gmra.mxu0 %v3957
  %v4509 = vpop.f32.mrf.mxu0
  %v4510 = vadd.f32 0.0, %v4509
  %4511 = vmatmul.f32.gmra.mxu0 %v3967
  %v4512 = vpop.f32.mrf.mxu0
  %v4513 = vadd.f32 0.0, %v4512
  %4514 = vmatmul.f32.gmra.mxu0 %v3966
  %v4515 = vpop.f32.mrf.mxu0
  %v4516 = vadd.f32 0.0, %v4515
  %4517 = vdwg.mxu0
  %4518 = vmatpush.msra.mxu0 %v3704
  %4519 = vmatpush.msra.mxu0 %v3699
  %4520 = vmatpush.msra.mxu0 %v3694
  %4521 = vmatpush.msra.mxu0 %v3689
  %4522 = vmatpush.msra.mxu0 %v3684
  %4523 = vmatpush.msra.mxu0 %v3679
  %4524 = vmatpush.msra.mxu0 %v3674
  %4525 = vmatpush.msra.mxu0 %v3669
  %4526 = vmatpush.msra.mxu0 %v3664
  %4527 = vmatpush.msra.mxu0 %v3659
  %4528 = vmatpush.msra.mxu0 %v3654
  %4529 = vmatpush.msra.mxu0 %v3649
  %4530 = vmatpush.msra.mxu0 %v3644
  %4531 = vmatpush.msra.mxu0 %v3639
  %4532 = vmatpush.msra.mxu0 %v3634
  %4533 = vmatpush.msra.mxu0 %v3629
  %4534 = vmatmul.f32.gmra.mxu0 %v3936
  %v4535 = vpop.f32.mrf.mxu0
  %v4536 = vadd.f32 %v4504, %v4535
  %4537 = vmatmul.f32.gmra.mxu0 %v3949
  %v4538 = vpop.f32.mrf.mxu0
  %v4539 = vadd.f32 %v4507, %v4538
  %4540 = vmatmul.f32.gmra.mxu0 %v3959
  %v4541 = vpop.f32.mrf.mxu0
  %v4542 = vadd.f32 %v4510, %v4541
  %4543 = vmatmul.f32.gmra.mxu0 %v3969
  %v4544 = vpop.f32.mrf.mxu0
  %v4545 = vadd.f32 %v4513, %v4544
  %4546 = vmatmul.f32.gmra.mxu0 %v3968
  %v4547 = vpop.f32.mrf.mxu0
  %v4548 = vadd.f32 %v4516, %v4547
  %4549 = vdwg.mxu0
  %4550 = vmatpush.msra.mxu0 %v3784
  %4551 = vmatpush.msra.mxu0 %v3779
  %4552 = vmatpush.msra.mxu0 %v3774
  %4553 = vmatpush.msra.mxu0 %v3769
  %4554 = vmatpush.msra.mxu0 %v3764
  %4555 = vmatpush.msra.mxu0 %v3759
  %4556 = vmatpush.msra.mxu0 %v3754
  %4557 = vmatpush.msra.mxu0 %v3749
  %4558 = vmatpush.msra.mxu0 %v3744
  %4559 = vmatpush.msra.mxu0 %v3739
  %4560 = vmatpush.msra.mxu0 %v3734
  %4561 = vmatpush.msra.mxu0 %v3729
  %4562 = vmatpush.msra.mxu0 %v3724
  %4563 = vmatpush.msra.mxu0 %v3719
  %4564 = vmatpush.msra.mxu0 %v3714
  %4565 = vmatpush.msra.mxu0 %v3709
  %4566 = vmatmul.f32.gmra.mxu0 %v3939
  %v4567 = vpop.f32.mrf.mxu0
  %v4568 = vadd.f32 %v4536, %v4567
  %4569 = vmatmul.f32.gmra.mxu0 %v3951
  %v4570 = vpop.f32.mrf.mxu0
  %v4571 = vadd.f32 %v4539, %v4570
  %4572 = vmatmul.f32.gmra.mxu0 %v3961
  %v4573 = vpop.f32.mrf.mxu0
  %v4574 = vadd.f32 %v4542, %v4573
  %4575 = vmatmul.f32.gmra.mxu0 %v3971
  %v4576 = vpop.f32.mrf.mxu0
  %v4577 = vadd.f32 %v4545, %v4576
  %4578 = vmatmul.f32.gmra.mxu0 %v3970
  %v4579 = vpop.f32.mrf.mxu0
  %v4580 = vadd.f32 %v4548, %v4579
  %4581 = vdwg.mxu0
  %4582 = vmatpush.msra.mxu0 %v3864
  %4583 = vmatpush.msra.mxu0 %v3859
  %4584 = vmatpush.msra.mxu0 %v3854
  %4585 = vmatpush.msra.mxu0 %v3849
  %4586 = vmatpush.msra.mxu0 %v3844
  %4587 = vmatpush.msra.mxu0 %v3839
  %4588 = vmatpush.msra.mxu0 %v3834
  %4589 = vmatpush.msra.mxu0 %v3829
  %4590 = vmatpush.msra.mxu0 %v3824
  %4591 = vmatpush.msra.mxu0 %v3819
  %4592 = vmatpush.msra.mxu0 %v3814
  %4593 = vmatpush.msra.mxu0 %v3809
  %4594 = vmatpush.msra.mxu0 %v3804
  %4595 = vmatpush.msra.mxu0 %v3799
  %4596 = vmatpush.msra.mxu0 %v3794
  %4597 = vmatpush.msra.mxu0 %v3789
  %4598 = vmatmul.f32.gmra.mxu0 %v3942
  %v4599 = vpop.f32.mrf.mxu0
  %v4600 = vadd.f32 %v4568, %v4599
  %4601 = vmatmul.f32.gmra.mxu0 %v3953
  %v4602 = vpop.f32.mrf.mxu0
  %v4603 = vadd.f32 %v4571, %v4602
  %4604 = vmatmul.f32.gmra.mxu0 %v3963
  %v4605 = vpop.f32.mrf.mxu0
  %v4606 = vadd.f32 %v4574, %v4605
  %4607 = vmatmul.f32.gmra.mxu0 %v3973
  %v4608 = vpop.f32.mrf.mxu0
  %v4609 = vadd.f32 %v4577, %v4608
  %4610 = vmatmul.f32.gmra.mxu0 %v3972
  %v4611 = vpop.f32.mrf.mxu0
  %v4612 = vadd.f32 %v4580, %v4611
  %4613 = vdwg.mxu0
  %4614 = vmatpush.msra.mxu0 0.0
  %4615 = vmatpush.msra.mxu0 0.0
  %4616 = vmatpush.msra.mxu0 0.0
  %4617 = vmatpush.msra.mxu0 0.0
  %4618 = vmatpush.msra.mxu0 0.0
  %4619 = vmatpush.msra.mxu0 0.0
  %4620 = vmatpush.msra.mxu0 0.0
  %4621 = vmatpush.msra.mxu0 0.0
  %4622 = vmatpush.msra.mxu0 %v3904
  %4623 = vmatpush.msra.mxu0 %v3899
  %4624 = vmatpush.msra.mxu0 %v3894
  %4625 = vmatpush.msra.mxu0 %v3889
  %4626 = vmatpush.msra.mxu0 %v3884
  %4627 = vmatpush.msra.mxu0 %v3879
  %4628 = vmatpush.msra.mxu0 %v3874
  %4629 = vmatpush.msra.mxu0 %v3869
  %4630 = vmatmul.f32.gmra.mxu0 %v3996
  %v4631 = vpop.f32.mrf.mxu0
  %v4632 = vadd.f32 %v4600, %v4631
  %4633 = vmatmul.f32.gmra.mxu0 %v3998
  %v4634 = vpop.f32.mrf.mxu0
  %v4635 = vadd.f32 %v4603, %v4634
  %4636 = vmatmul.f32.gmra.mxu0 %v4000
  %v4637 = vpop.f32.mrf.mxu0
  %v4638 = vadd.f32 %v4606, %v4637
  %4639 = vmatmul.f32.gmra.mxu0 %v4002
  %v4640 = vpop.f32.mrf.mxu0
  %v4641 = vadd.f32 %v4609, %v4640
  %4642 = vmatmul.f32.gmra.mxu0 %v4004
  %v4643 = vpop.f32.mrf.mxu0
  %v4644 = vadd.f32 %v4612, %v4643
  %4645 = vdwg.mxu0
  %4646 = vmatpush.msra.mxu0 %v3625
  %4647 = vmatpush.msra.mxu0 %v3620
  %4648 = vmatpush.msra.mxu0 %v3615
  %4649 = vmatpush.msra.mxu0 %v3610
  %4650 = vmatpush.msra.mxu0 %v3605
  %4651 = vmatpush.msra.mxu0 %v3600
  %4652 = vmatpush.msra.mxu0 %v3595
  %4653 = vmatpush.msra.mxu0 %v3590
  %4654 = vmatpush.msra.mxu0 %v3585
  %4655 = vmatpush.msra.mxu0 %v3580
  %4656 = vmatpush.msra.mxu0 %v3575
  %4657 = vmatpush.msra.mxu0 %v3570
  %4658 = vmatpush.msra.mxu0 %v3565
  %4659 = vmatpush.msra.mxu0 %v3560
  %4660 = vmatpush.msra.mxu0 %v3555
  %4661 = vmatpush.msra.mxu0 %v3550
  %4662 = vmatmul.f32.gmra.mxu0 %v3933
  %v4663 = vpop.f32.mrf.mxu0
  %v4664 = vadd.f32 0.0, %v4663
  %4665 = vmatmul.f32.gmra.mxu0 %v3947
  %v4666 = vpop.f32.mrf.mxu0
  %v4667 = vadd.f32 0.0, %v4666
  %4668 = vmatmul.f32.gmra.mxu0 %v3957
  %v4669 = vpop.f32.mrf.mxu0
  %v4670 = vadd.f32 0.0, %v4669
  %4671 = vmatmul.f32.gmra.mxu0 %v3967
  %v4672 = vpop.f32.mrf.mxu0
  %v4673 = vadd.f32 0.0, %v4672
  %4674 = vmatmul.f32.gmra.mxu0 %v3966
  %v4675 = vpop.f32.mrf.mxu0
  %v4676 = vadd.f32 0.0, %v4675
  %4677 = vdwg.mxu0
  %4678 = vmatpush.msra.mxu0 %v3705
  %4679 = vmatpush.msra.mxu0 %v3700
  %4680 = vmatpush.msra.mxu0 %v3695
  %4681 = vmatpush.msra.mxu0 %v3690
  %4682 = vmatpush.msra.mxu0 %v3685
  %4683 = vmatpush.msra.mxu0 %v3680
  %4684 = vmatpush.msra.mxu0 %v3675
  %4685 = vmatpush.msra.mxu0 %v3670
  %4686 = vmatpush.msra.mxu0 %v3665
  %4687 = vmatpush.msra.mxu0 %v3660
  %4688 = vmatpush.msra.mxu0 %v3655
  %4689 = vmatpush.msra.mxu0 %v3650
  %4690 = vmatpush.msra.mxu0 %v3645
  %4691 = vmatpush.msra.mxu0 %v3640
  %4692 = vmatpush.msra.mxu0 %v3635
  %4693 = vmatpush.msra.mxu0 %v3630
  %4694 = vmatmul.f32.gmra.mxu0 %v3936
  %v4695 = vpop.f32.mrf.mxu0
  %v4696 = vadd.f32 %v4664, %v4695
  %4697 = vmatmul.f32.gmra.mxu0 %v3949
  %v4698 = vpop.f32.mrf.mxu0
  %v4699 = vadd.f32 %v4667, %v4698
  %4700 = vmatmul.f32.gmra.mxu0 %v3959
  %v4701 = vpop.f32.mrf.mxu0
  %v4702 = vadd.f32 %v4670, %v4701
  %4703 = vmatmul.f32.gmra.mxu0 %v3969
  %v4704 = vpop.f32.mrf.mxu0
  %v4705 = vadd.f32 %v4673, %v4704
  %4706 = vmatmul.f32.gmra.mxu0 %v3968
  %v4707 = vpop.f32.mrf.mxu0
  %v4708 = vadd.f32 %v4676, %v4707
  %4709 = vdwg.mxu0
  %4710 = vmatpush.msra.mxu0 %v3785
  %4711 = vmatpush.msra.mxu0 %v3780
  %4712 = vmatpush.msra.mxu0 %v3775
  %4713 = vmatpush.msra.mxu0 %v3770
  %4714 = vmatpush.msra.mxu0 %v3765
  %4715 = vmatpush.msra.mxu0 %v3760
  %4716 = vmatpush.msra.mxu0 %v3755
  %4717 = vmatpush.msra.mxu0 %v3750
  %4718 = vmatpush.msra.mxu0 %v3745
  %4719 = vmatpush.msra.mxu0 %v3740
  %4720 = vmatpush.msra.mxu0 %v3735
  %4721 = vmatpush.msra.mxu0 %v3730
  %4722 = vmatpush.msra.mxu0 %v3725
  %4723 = vmatpush.msra.mxu0 %v3720
  %4724 = vmatpush.msra.mxu0 %v3715
  %4725 = vmatpush.msra.mxu0 %v3710
  %4726 = vmatmul.f32.gmra.mxu0 %v3939
  %v4727 = vpop.f32.mrf.mxu0
  %v4728 = vadd.f32 %v4696, %v4727
  %4729 = vmatmul.f32.gmra.mxu0 %v3951
  %v4730 = vpop.f32.mrf.mxu0
  %v4731 = vadd.f32 %v4699, %v4730
  %4732 = vmatmul.f32.gmra.mxu0 %v3961
  %v4733 = vpop.f32.mrf.mxu0
  %v4734 = vadd.f32 %v4702, %v4733
  %4735 = vmatmul.f32.gmra.mxu0 %v3971
  %v4736 = vpop.f32.mrf.mxu0
  %v4737 = vadd.f32 %v4705, %v4736
  %4738 = vmatmul.f32.gmra.mxu0 %v3970
  %v4739 = vpop.f32.mrf.mxu0
  %v4740 = vadd.f32 %v4708, %v4739
  %4741 = vdwg.mxu0
  %4742 = vmatpush.msra.mxu0 %v3865
  %4743 = vmatpush.msra.mxu0 %v3860
  %4744 = vmatpush.msra.mxu0 %v3855
  %4745 = vmatpush.msra.mxu0 %v3850
  %4746 = vmatpush.msra.mxu0 %v3845
  %4747 = vmatpush.msra.mxu0 %v3840
  %4748 = vmatpush.msra.mxu0 %v3835
  %4749 = vmatpush.msra.mxu0 %v3830
  %4750 = vmatpush.msra.mxu0 %v3825
  %4751 = vmatpush.msra.mxu0 %v3820
  %4752 = vmatpush.msra.mxu0 %v3815
  %4753 = vmatpush.msra.mxu0 %v3810
  %4754 = vmatpush.msra.mxu0 %v3805
  %4755 = vmatpush.msra.mxu0 %v3800
  %4756 = vmatpush.msra.mxu0 %v3795
  %4757 = vmatpush.msra.mxu0 %v3790
  %4758 = vmatmul.f32.gmra.mxu0 %v3942
  %v4759 = vpop.f32.mrf.mxu0
  %v4760 = vadd.f32 %v4728, %v4759
  %4761 = vmatmul.f32.gmra.mxu0 %v3953
  %v4762 = vpop.f32.mrf.mxu0
  %v4763 = vadd.f32 %v4731, %v4762
  %4764 = vmatmul.f32.gmra.mxu0 %v3963
  %v4765 = vpop.f32.mrf.mxu0
  %v4766 = vadd.f32 %v4734, %v4765
  %4767 = vmatmul.f32.gmra.mxu0 %v3973
  %v4768 = vpop.f32.mrf.mxu0
  %v4769 = vadd.f32 %v4737, %v4768
  %4770 = vmatmul.f32.gmra.mxu0 %v3972
  %v4771 = vpop.f32.mrf.mxu0
  %v4772 = vadd.f32 %v4740, %v4771
  %4773 = vdwg.mxu0
  %4774 = vmatpush.msra.mxu0 0.0
  %4775 = vmatpush.msra.mxu0 0.0
  %4776 = vmatpush.msra.mxu0 0.0
  %4777 = vmatpush.msra.mxu0 0.0
  %4778 = vmatpush.msra.mxu0 0.0
  %4779 = vmatpush.msra.mxu0 0.0
  %4780 = vmatpush.msra.mxu0 0.0
  %4781 = vmatpush.msra.mxu0 0.0
  %4782 = vmatpush.msra.mxu0 %v3905
  %4783 = vmatpush.msra.mxu0 %v3900
  %4784 = vmatpush.msra.mxu0 %v3895
  %4785 = vmatpush.msra.mxu0 %v3890
  %4786 = vmatpush.msra.mxu0 %v3885
  %4787 = vmatpush.msra.mxu0 %v3880
  %4788 = vmatpush.msra.mxu0 %v3875
  %4789 = vmatpush.msra.mxu0 %v3870
  %4790 = vmatmul.f32.gmra.mxu0 %v3996
  %v4791 = vpop.f32.mrf.mxu0
  %v4792 = vadd.f32 %v4760, %v4791
  %4793 = vmatmul.f32.gmra.mxu0 %v3998
  %v4794 = vpop.f32.mrf.mxu0
  %v4795 = vadd.f32 %v4763, %v4794
  %4796 = vmatmul.f32.gmra.mxu0 %v4000
  %v4797 = vpop.f32.mrf.mxu0
  %v4798 = vadd.f32 %v4766, %v4797
  %4799 = vmatmul.f32.gmra.mxu0 %v4002
  %v4800 = vpop.f32.mrf.mxu0
  %v4801 = vadd.f32 %v4769, %v4800
  %4802 = vmatmul.f32.gmra.mxu0 %v4004
  %v4803 = vpop.f32.mrf.mxu0
  %v4804 = vadd.f32 %v4772, %v4803
  %4805 = vdwg.mxu0
  %v4807 = vsel %vm3132, %v3154, 0
  %v4809 = vsel %vm3132, %v3159, 0
  %v4811 = vsel %vm3132, %v3164, 0
  %v4813 = vsel %vm3132, %v3169, 0
  %v4816 = vsel %vm3132, %v3174, 0
  %4818 = vmatpush.msra.mxu0 %v3250
  %4819 = vmatpush.msra.mxu0 %v3245
  %4820 = vmatpush.msra.mxu0 %v3240
  %4821 = vmatpush.msra.mxu0 %v3235
  %4822 = vmatpush.msra.mxu0 %v3230
  %4823 = vmatpush.msra.mxu0 %v3225
  %4824 = vmatpush.msra.mxu0 %v3220
  %4825 = vmatpush.msra.mxu0 %v3215
  %4826 = vmatpush.msra.mxu0 %v3210
  %4827 = vmatpush.msra.mxu0 %v3205
  %4828 = vmatpush.msra.mxu0 %v3200
  %4829 = vmatpush.msra.mxu0 %v3195
  %4830 = vmatpush.msra.mxu0 %v3190
  %4831 = vmatpush.msra.mxu0 %v3185
  %4832 = vmatpush.msra.mxu0 %v3180
  %4833 = vmatpush.msra.mxu0 %v3175
  %4834 = vmatmul.f32.gmra.mxu0 %v3150
  %v4835 = vpop.f32.mrf.mxu0
  %v4836 = vadd.f32 %v4152, %v4835
  %4837 = vmatmul.f32.gmra.mxu0 %v3155
  %v4838 = vpop.f32.mrf.mxu0
  %v4839 = vadd.f32 %v4155, %v4838
  %4840 = vmatmul.f32.gmra.mxu0 %v3160
  %v4841 = vpop.f32.mrf.mxu0
  %v4842 = vadd.f32 %v4158, %v4841
  %4843 = vmatmul.f32.gmra.mxu0 %v3165
  %v4844 = vpop.f32.mrf.mxu0
  %v4845 = vadd.f32 %v4161, %v4844
  %4846 = vmatmul.f32.gmra.mxu0 %v3170
  %v4847 = vpop.f32.mrf.mxu0
  %v4848 = vadd.f32 %v4164, %v4847
  %4849 = vdwg.mxu0
  %4850 = vmatpush.msra.mxu0 %v3330
  %4851 = vmatpush.msra.mxu0 %v3325
  %4852 = vmatpush.msra.mxu0 %v3320
  %4853 = vmatpush.msra.mxu0 %v3315
  %4854 = vmatpush.msra.mxu0 %v3310
  %4855 = vmatpush.msra.mxu0 %v3305
  %4856 = vmatpush.msra.mxu0 %v3300
  %4857 = vmatpush.msra.mxu0 %v3295
  %4858 = vmatpush.msra.mxu0 %v3290
  %4859 = vmatpush.msra.mxu0 %v3285
  %4860 = vmatpush.msra.mxu0 %v3280
  %4861 = vmatpush.msra.mxu0 %v3275
  %4862 = vmatpush.msra.mxu0 %v3270
  %4863 = vmatpush.msra.mxu0 %v3265
  %4864 = vmatpush.msra.mxu0 %v3260
  %4865 = vmatpush.msra.mxu0 %v3255
  %4866 = vmatmul.f32.gmra.mxu0 %v3151
  %v4867 = vpop.f32.mrf.mxu0
  %v4868 = vadd.f32 %v4836, %v4867
  %4869 = vmatmul.f32.gmra.mxu0 %v3156
  %v4870 = vpop.f32.mrf.mxu0
  %v4871 = vadd.f32 %v4839, %v4870
  %4872 = vmatmul.f32.gmra.mxu0 %v3161
  %v4873 = vpop.f32.mrf.mxu0
  %v4874 = vadd.f32 %v4842, %v4873
  %4875 = vmatmul.f32.gmra.mxu0 %v3166
  %v4876 = vpop.f32.mrf.mxu0
  %v4877 = vadd.f32 %v4845, %v4876
  %4878 = vmatmul.f32.gmra.mxu0 %v3171
  %v4879 = vpop.f32.mrf.mxu0
  %v4880 = vadd.f32 %v4848, %v4879
  %4881 = vdwg.mxu0
  %4882 = vmatpush.msra.mxu0 %v3410
  %4883 = vmatpush.msra.mxu0 %v3405
  %4884 = vmatpush.msra.mxu0 %v3400
  %4885 = vmatpush.msra.mxu0 %v3395
  %4886 = vmatpush.msra.mxu0 %v3390
  %4887 = vmatpush.msra.mxu0 %v3385
  %4888 = vmatpush.msra.mxu0 %v3380
  %4889 = vmatpush.msra.mxu0 %v3375
  %4890 = vmatpush.msra.mxu0 %v3370
  %4891 = vmatpush.msra.mxu0 %v3365
  %4892 = vmatpush.msra.mxu0 %v3360
  %4893 = vmatpush.msra.mxu0 %v3355
  %4894 = vmatpush.msra.mxu0 %v3350
  %4895 = vmatpush.msra.mxu0 %v3345
  %4896 = vmatpush.msra.mxu0 %v3340
  %4897 = vmatpush.msra.mxu0 %v3335
  %4898 = vmatmul.f32.gmra.mxu0 %v3152
  %v4899 = vpop.f32.mrf.mxu0
  %v4900 = vadd.f32 %v4868, %v4899
  %4901 = vmatmul.f32.gmra.mxu0 %v3157
  %v4902 = vpop.f32.mrf.mxu0
  %v4903 = vadd.f32 %v4871, %v4902
  %4904 = vmatmul.f32.gmra.mxu0 %v3162
  %v4905 = vpop.f32.mrf.mxu0
  %v4906 = vadd.f32 %v4874, %v4905
  %4907 = vmatmul.f32.gmra.mxu0 %v3167
  %v4908 = vpop.f32.mrf.mxu0
  %v4909 = vadd.f32 %v4877, %v4908
  %4910 = vmatmul.f32.gmra.mxu0 %v3172
  %v4911 = vpop.f32.mrf.mxu0
  %v4912 = vadd.f32 %v4880, %v4911
  %4913 = vdwg.mxu0
  %4914 = vmatpush.msra.mxu0 %v3490
  %4915 = vmatpush.msra.mxu0 %v3485
  %4916 = vmatpush.msra.mxu0 %v3480
  %4917 = vmatpush.msra.mxu0 %v3475
  %4918 = vmatpush.msra.mxu0 %v3470
  %4919 = vmatpush.msra.mxu0 %v3465
  %4920 = vmatpush.msra.mxu0 %v3460
  %4921 = vmatpush.msra.mxu0 %v3455
  %4922 = vmatpush.msra.mxu0 %v3450
  %4923 = vmatpush.msra.mxu0 %v3445
  %4924 = vmatpush.msra.mxu0 %v3440
  %4925 = vmatpush.msra.mxu0 %v3435
  %4926 = vmatpush.msra.mxu0 %v3430
  %4927 = vmatpush.msra.mxu0 %v3425
  %4928 = vmatpush.msra.mxu0 %v3420
  %4929 = vmatpush.msra.mxu0 %v3415
  %4930 = vmatmul.f32.gmra.mxu0 %v3153
  %v4931 = vpop.f32.mrf.mxu0
  %v4932 = vadd.f32 %v4900, %v4931
  %4933 = vmatmul.f32.gmra.mxu0 %v3158
  %v4934 = vpop.f32.mrf.mxu0
  %v4935 = vadd.f32 %v4903, %v4934
  %4936 = vmatmul.f32.gmra.mxu0 %v3163
  %v4937 = vpop.f32.mrf.mxu0
  %v4938 = vadd.f32 %v4906, %v4937
  %4939 = vmatmul.f32.gmra.mxu0 %v3168
  %v4940 = vpop.f32.mrf.mxu0
  %v4941 = vadd.f32 %v4909, %v4940
  %4942 = vmatmul.f32.gmra.mxu0 %v3173
  %v4943 = vpop.f32.mrf.mxu0
  %v4944 = vadd.f32 %v4912, %v4943
  %4945 = vdwg.mxu0
  %4946 = vmatpush.msra.mxu0 0.0
  %4947 = vmatpush.msra.mxu0 0.0
  %4948 = vmatpush.msra.mxu0 0.0
  %4949 = vmatpush.msra.mxu0 0.0
  %4950 = vmatpush.msra.mxu0 0.0
  %4951 = vmatpush.msra.mxu0 0.0
  %4952 = vmatpush.msra.mxu0 0.0
  %4953 = vmatpush.msra.mxu0 0.0
  %4954 = vmatpush.msra.mxu0 %v3530
  %4955 = vmatpush.msra.mxu0 %v3525
  %4956 = vmatpush.msra.mxu0 %v3520
  %4957 = vmatpush.msra.mxu0 %v3515
  %4958 = vmatpush.msra.mxu0 %v3510
  %4959 = vmatpush.msra.mxu0 %v3505
  %4960 = vmatpush.msra.mxu0 %v3500
  %4961 = vmatpush.msra.mxu0 %v3495
  %4962 = vmatmul.f32.gmra.mxu0 %v4807
  %v4963 = vpop.f32.mrf.mxu0
  %v4964 = vadd.f32 %v4932, %v4963
  %4965 = vmatmul.f32.gmra.mxu0 %v4809
  %v4966 = vpop.f32.mrf.mxu0
  %v4967 = vadd.f32 %v4935, %v4966
  %4968 = vmatmul.f32.gmra.mxu0 %v4811
  %v4969 = vpop.f32.mrf.mxu0
  %v4970 = vadd.f32 %v4938, %v4969
  %4971 = vmatmul.f32.gmra.mxu0 %v4813
  %v4972 = vpop.f32.mrf.mxu0
  %v4973 = vadd.f32 %v4941, %v4972
  %4974 = vmatmul.f32.gmra.mxu0 %v4816
  %v4975 = vpop.f32.mrf.mxu0
  %v4976 = vadd.f32 %v4944, %v4975
  %4977 = vdwg.mxu0
  %4978 = vmatpush.msra.mxu0 %v3251
  %4979 = vmatpush.msra.mxu0 %v3246
  %4980 = vmatpush.msra.mxu0 %v3241
  %4981 = vmatpush.msra.mxu0 %v3236
  %4982 = vmatpush.msra.mxu0 %v3231
  %4983 = vmatpush.msra.mxu0 %v3226
  %4984 = vmatpush.msra.mxu0 %v3221
  %4985 = vmatpush.msra.mxu0 %v3216
  %4986 = vmatpush.msra.mxu0 %v3211
  %4987 = vmatpush.msra.mxu0 %v3206
  %4988 = vmatpush.msra.mxu0 %v3201
  %4989 = vmatpush.msra.mxu0 %v3196
  %4990 = vmatpush.msra.mxu0 %v3191
  %4991 = vmatpush.msra.mxu0 %v3186
  %4992 = vmatpush.msra.mxu0 %v3181
  %4993 = vmatpush.msra.mxu0 %v3176
  %4994 = vmatmul.f32.gmra.mxu0 %v3150
  %v4995 = vpop.f32.mrf.mxu0
  %v4996 = vadd.f32 %v4312, %v4995
  %4997 = vmatmul.f32.gmra.mxu0 %v3155
  %v4998 = vpop.f32.mrf.mxu0
  %v4999 = vadd.f32 %v4315, %v4998
  %5000 = vmatmul.f32.gmra.mxu0 %v3160
  %v5001 = vpop.f32.mrf.mxu0
  %v5002 = vadd.f32 %v4318, %v5001
  %5003 = vmatmul.f32.gmra.mxu0 %v3165
  %v5004 = vpop.f32.mrf.mxu0
  %v5005 = vadd.f32 %v4321, %v5004
  %5006 = vmatmul.f32.gmra.mxu0 %v3170
  %v5007 = vpop.f32.mrf.mxu0
  %v5008 = vadd.f32 %v4324, %v5007
  %5009 = vdwg.mxu0
  %5010 = vmatpush.msra.mxu0 %v3331
  %5011 = vmatpush.msra.mxu0 %v3326
  %5012 = vmatpush.msra.mxu0 %v3321
  %5013 = vmatpush.msra.mxu0 %v3316
  %5014 = vmatpush.msra.mxu0 %v3311
  %5015 = vmatpush.msra.mxu0 %v3306
  %5016 = vmatpush.msra.mxu0 %v3301
  %5017 = vmatpush.msra.mxu0 %v3296
  %5018 = vmatpush.msra.mxu0 %v3291
  %5019 = vmatpush.msra.mxu0 %v3286
  %5020 = vmatpush.msra.mxu0 %v3281
  %5021 = vmatpush.msra.mxu0 %v3276
  %5022 = vmatpush.msra.mxu0 %v3271
  %5023 = vmatpush.msra.mxu0 %v3266
  %5024 = vmatpush.msra.mxu0 %v3261
  %5025 = vmatpush.msra.mxu0 %v3256
  %5026 = vmatmul.f32.gmra.mxu0 %v3151
  %v5027 = vpop.f32.mrf.mxu0
  %v5028 = vadd.f32 %v4996, %v5027
  %5029 = vmatmul.f32.gmra.mxu0 %v3156
  %v5030 = vpop.f32.mrf.mxu0
  %v5031 = vadd.f32 %v4999, %v5030
  %5032 = vmatmul.f32.gmra.mxu0 %v3161
  %v5033 = vpop.f32.mrf.mxu0
  %v5034 = vadd.f32 %v5002, %v5033
  %5035 = vmatmul.f32.gmra.mxu0 %v3166
  %v5036 = vpop.f32.mrf.mxu0
  %v5037 = vadd.f32 %v5005, %v5036
  %5038 = vmatmul.f32.gmra.mxu0 %v3171
  %v5039 = vpop.f32.mrf.mxu0
  %v5040 = vadd.f32 %v5008, %v5039
  %5041 = vdwg.mxu0
  %5042 = vmatpush.msra.mxu0 %v3411
  %5043 = vmatpush.msra.mxu0 %v3406
  %5044 = vmatpush.msra.mxu0 %v3401
  %5045 = vmatpush.msra.mxu0 %v3396
  %5046 = vmatpush.msra.mxu0 %v3391
  %5047 = vmatpush.msra.mxu0 %v3386
  %5048 = vmatpush.msra.mxu0 %v3381
  %5049 = vmatpush.msra.mxu0 %v3376
  %5050 = vmatpush.msra.mxu0 %v3371
  %5051 = vmatpush.msra.mxu0 %v3366
  %5052 = vmatpush.msra.mxu0 %v3361
  %5053 = vmatpush.msra.mxu0 %v3356
  %5054 = vmatpush.msra.mxu0 %v3351
  %5055 = vmatpush.msra.mxu0 %v3346
  %5056 = vmatpush.msra.mxu0 %v3341
  %5057 = vmatpush.msra.mxu0 %v3336
  %5058 = vmatmul.f32.gmra.mxu0 %v3152
  %v5059 = vpop.f32.mrf.mxu0
  %v5060 = vadd.f32 %v5028, %v5059
  %5061 = vmatmul.f32.gmra.mxu0 %v3157
  %v5062 = vpop.f32.mrf.mxu0
  %v5063 = vadd.f32 %v5031, %v5062
  %5064 = vmatmul.f32.gmra.mxu0 %v3162
  %v5065 = vpop.f32.mrf.mxu0
  %v5066 = vadd.f32 %v5034, %v5065
  %5067 = vmatmul.f32.gmra.mxu0 %v3167
  %v5068 = vpop.f32.mrf.mxu0
  %v5069 = vadd.f32 %v5037, %v5068
  %5070 = vmatmul.f32.gmra.mxu0 %v3172
  %v5071 = vpop.f32.mrf.mxu0
  %v5072 = vadd.f32 %v5040, %v5071
  %5073 = vdwg.mxu0
  %5074 = vmatpush.msra.mxu0 %v3491
  %5075 = vmatpush.msra.mxu0 %v3486
  %5076 = vmatpush.msra.mxu0 %v3481
  %5077 = vmatpush.msra.mxu0 %v3476
  %5078 = vmatpush.msra.mxu0 %v3471
  %5079 = vmatpush.msra.mxu0 %v3466
  %5080 = vmatpush.msra.mxu0 %v3461
  %5081 = vmatpush.msra.mxu0 %v3456
  %5082 = vmatpush.msra.mxu0 %v3451
  %5083 = vmatpush.msra.mxu0 %v3446
  %5084 = vmatpush.msra.mxu0 %v3441
  %5085 = vmatpush.msra.mxu0 %v3436
  %5086 = vmatpush.msra.mxu0 %v3431
  %5087 = vmatpush.msra.mxu0 %v3426
  %5088 = vmatpush.msra.mxu0 %v3421
  %5089 = vmatpush.msra.mxu0 %v3416
  %5090 = vmatmul.f32.gmra.mxu0 %v3153
  %v5091 = vpop.f32.mrf.mxu0
  %v5092 = vadd.f32 %v5060, %v5091
  %5093 = vmatmul.f32.gmra.mxu0 %v3158
  %v5094 = vpop.f32.mrf.mxu0
  %v5095 = vadd.f32 %v5063, %v5094
  %5096 = vmatmul.f32.gmra.mxu0 %v3163
  %v5097 = vpop.f32.mrf.mxu0
  %v5098 = vadd.f32 %v5066, %v5097
  %5099 = vmatmul.f32.gmra.mxu0 %v3168
  %v5100 = vpop.f32.mrf.mxu0
  %v5101 = vadd.f32 %v5069, %v5100
  %5102 = vmatmul.f32.gmra.mxu0 %v3173
  %v5103 = vpop.f32.mrf.mxu0
  %v5104 = vadd.f32 %v5072, %v5103
  %5105 = vdwg.mxu0
  %5106 = vmatpush.msra.mxu0 0.0
  %5107 = vmatpush.msra.mxu0 0.0
  %5108 = vmatpush.msra.mxu0 0.0
  %5109 = vmatpush.msra.mxu0 0.0
  %5110 = vmatpush.msra.mxu0 0.0
  %5111 = vmatpush.msra.mxu0 0.0
  %5112 = vmatpush.msra.mxu0 0.0
  %5113 = vmatpush.msra.mxu0 0.0
  %5114 = vmatpush.msra.mxu0 %v3531
  %5115 = vmatpush.msra.mxu0 %v3526
  %5116 = vmatpush.msra.mxu0 %v3521
  %5117 = vmatpush.msra.mxu0 %v3516
  %5118 = vmatpush.msra.mxu0 %v3511
  %5119 = vmatpush.msra.mxu0 %v3506
  %5120 = vmatpush.msra.mxu0 %v3501
  %5121 = vmatpush.msra.mxu0 %v3496
  %5122 = vmatmul.f32.gmra.mxu0 %v4807
  %v5123 = vpop.f32.mrf.mxu0
  %v5124 = vadd.f32 %v5092, %v5123
  %5125 = vmatmul.f32.gmra.mxu0 %v4809
  %v5126 = vpop.f32.mrf.mxu0
  %v5127 = vadd.f32 %v5095, %v5126
  %5128 = vmatmul.f32.gmra.mxu0 %v4811
  %v5129 = vpop.f32.mrf.mxu0
  %v5130 = vadd.f32 %v5098, %v5129
  %5131 = vmatmul.f32.gmra.mxu0 %v4813
  %v5132 = vpop.f32.mrf.mxu0
  %v5133 = vadd.f32 %v5101, %v5132
  %5134 = vmatmul.f32.gmra.mxu0 %v4816
  %v5135 = vpop.f32.mrf.mxu0
  %v5136 = vadd.f32 %v5104, %v5135
  %5137 = vdwg.mxu0
  %5138 = vmatpush.msra.mxu0 %v3252
  %5139 = vmatpush.msra.mxu0 %v3247
  %5140 = vmatpush.msra.mxu0 %v3242
  %5141 = vmatpush.msra.mxu0 %v3237
  %5142 = vmatpush.msra.mxu0 %v3232
  %5143 = vmatpush.msra.mxu0 %v3227
  %5144 = vmatpush.msra.mxu0 %v3222
  %5145 = vmatpush.msra.mxu0 %v3217
  %5146 = vmatpush.msra.mxu0 %v3212
  %5147 = vmatpush.msra.mxu0 %v3207
  %5148 = vmatpush.msra.mxu0 %v3202
  %5149 = vmatpush.msra.mxu0 %v3197
  %5150 = vmatpush.msra.mxu0 %v3192
  %5151 = vmatpush.msra.mxu0 %v3187
  %5152 = vmatpush.msra.mxu0 %v3182
  %5153 = vmatpush.msra.mxu0 %v3177
  %5154 = vmatmul.f32.gmra.mxu0 %v3150
  %v5155 = vpop.f32.mrf.mxu0
  %v5156 = vadd.f32 %v4472, %v5155
  %5157 = vmatmul.f32.gmra.mxu0 %v3155
  %v5158 = vpop.f32.mrf.mxu0
  %v5159 = vadd.f32 %v4475, %v5158
  %5160 = vmatmul.f32.gmra.mxu0 %v3160
  %v5161 = vpop.f32.mrf.mxu0
  %v5162 = vadd.f32 %v4478, %v5161
  %5163 = vmatmul.f32.gmra.mxu0 %v3165
  %v5164 = vpop.f32.mrf.mxu0
  %v5165 = vadd.f32 %v4481, %v5164
  %5166 = vmatmul.f32.gmra.mxu0 %v3170
  %v5167 = vpop.f32.mrf.mxu0
  %v5168 = vadd.f32 %v4484, %v5167
  %5169 = vdwg.mxu0
  %5170 = vmatpush.msra.mxu0 %v3332
  %5171 = vmatpush.msra.mxu0 %v3327
  %5172 = vmatpush.msra.mxu0 %v3322
  %5173 = vmatpush.msra.mxu0 %v3317
  %5174 = vmatpush.msra.mxu0 %v3312
  %5175 = vmatpush.msra.mxu0 %v3307
  %5176 = vmatpush.msra.mxu0 %v3302
  %5177 = vmatpush.msra.mxu0 %v3297
  %5178 = vmatpush.msra.mxu0 %v3292
  %5179 = vmatpush.msra.mxu0 %v3287
  %5180 = vmatpush.msra.mxu0 %v3282
  %5181 = vmatpush.msra.mxu0 %v3277
  %5182 = vmatpush.msra.mxu0 %v3272
  %5183 = vmatpush.msra.mxu0 %v3267
  %5184 = vmatpush.msra.mxu0 %v3262
  %5185 = vmatpush.msra.mxu0 %v3257
  %5186 = vmatmul.f32.gmra.mxu0 %v3151
  %v5187 = vpop.f32.mrf.mxu0
  %v5188 = vadd.f32 %v5156, %v5187
  %5189 = vmatmul.f32.gmra.mxu0 %v3156
  %v5190 = vpop.f32.mrf.mxu0
  %v5191 = vadd.f32 %v5159, %v5190
  %5192 = vmatmul.f32.gmra.mxu0 %v3161
  %v5193 = vpop.f32.mrf.mxu0
  %v5194 = vadd.f32 %v5162, %v5193
  %5195 = vmatmul.f32.gmra.mxu0 %v3166
  %v5196 = vpop.f32.mrf.mxu0
  %v5197 = vadd.f32 %v5165, %v5196
  %5198 = vmatmul.f32.gmra.mxu0 %v3171
  %v5199 = vpop.f32.mrf.mxu0
  %v5200 = vadd.f32 %v5168, %v5199
  %5201 = vdwg.mxu0
  %5202 = vmatpush.msra.mxu0 %v3412
  %5203 = vmatpush.msra.mxu0 %v3407
  %5204 = vmatpush.msra.mxu0 %v3402
  %5205 = vmatpush.msra.mxu0 %v3397
  %5206 = vmatpush.msra.mxu0 %v3392
  %5207 = vmatpush.msra.mxu0 %v3387
  %5208 = vmatpush.msra.mxu0 %v3382
  %5209 = vmatpush.msra.mxu0 %v3377
  %5210 = vmatpush.msra.mxu0 %v3372
  %5211 = vmatpush.msra.mxu0 %v3367
  %5212 = vmatpush.msra.mxu0 %v3362
  %5213 = vmatpush.msra.mxu0 %v3357
  %5214 = vmatpush.msra.mxu0 %v3352
  %5215 = vmatpush.msra.mxu0 %v3347
  %5216 = vmatpush.msra.mxu0 %v3342
  %5217 = vmatpush.msra.mxu0 %v3337
  %5218 = vmatmul.f32.gmra.mxu0 %v3152
  %v5219 = vpop.f32.mrf.mxu0
  %v5220 = vadd.f32 %v5188, %v5219
  %5221 = vmatmul.f32.gmra.mxu0 %v3157
  %v5222 = vpop.f32.mrf.mxu0
  %v5223 = vadd.f32 %v5191, %v5222
  %5224 = vmatmul.f32.gmra.mxu0 %v3162
  %v5225 = vpop.f32.mrf.mxu0
  %v5226 = vadd.f32 %v5194, %v5225
  %5227 = vmatmul.f32.gmra.mxu0 %v3167
  %v5228 = vpop.f32.mrf.mxu0
  %v5229 = vadd.f32 %v5197, %v5228
  %5230 = vmatmul.f32.gmra.mxu0 %v3172
  %v5231 = vpop.f32.mrf.mxu0
  %v5232 = vadd.f32 %v5200, %v5231
  %5233 = vdwg.mxu0
  %5234 = vmatpush.msra.mxu0 %v3492
  %5235 = vmatpush.msra.mxu0 %v3487
  %5236 = vmatpush.msra.mxu0 %v3482
  %5237 = vmatpush.msra.mxu0 %v3477
  %5238 = vmatpush.msra.mxu0 %v3472
  %5239 = vmatpush.msra.mxu0 %v3467
  %5240 = vmatpush.msra.mxu0 %v3462
  %5241 = vmatpush.msra.mxu0 %v3457
  %5242 = vmatpush.msra.mxu0 %v3452
  %5243 = vmatpush.msra.mxu0 %v3447
  %5244 = vmatpush.msra.mxu0 %v3442
  %5245 = vmatpush.msra.mxu0 %v3437
  %5246 = vmatpush.msra.mxu0 %v3432
  %5247 = vmatpush.msra.mxu0 %v3427
  %5248 = vmatpush.msra.mxu0 %v3422
  %5249 = vmatpush.msra.mxu0 %v3417
  %5250 = vmatmul.f32.gmra.mxu0 %v3153
  %v5251 = vpop.f32.mrf.mxu0
  %v5252 = vadd.f32 %v5220, %v5251
  %5253 = vmatmul.f32.gmra.mxu0 %v3158
  %v5254 = vpop.f32.mrf.mxu0
  %v5255 = vadd.f32 %v5223, %v5254
  %5256 = vmatmul.f32.gmra.mxu0 %v3163
  %v5257 = vpop.f32.mrf.mxu0
  %v5258 = vadd.f32 %v5226, %v5257
  %5259 = vmatmul.f32.gmra.mxu0 %v3168
  %v5260 = vpop.f32.mrf.mxu0
  %v5261 = vadd.f32 %v5229, %v5260
  %5262 = vmatmul.f32.gmra.mxu0 %v3173
  %v5263 = vpop.f32.mrf.mxu0
  %v5264 = vadd.f32 %v5232, %v5263
  %5265 = vdwg.mxu0
  %5266 = vmatpush.msra.mxu0 0.0
  %5267 = vmatpush.msra.mxu0 0.0
  %5268 = vmatpush.msra.mxu0 0.0
  %5269 = vmatpush.msra.mxu0 0.0
  %5270 = vmatpush.msra.mxu0 0.0
  %5271 = vmatpush.msra.mxu0 0.0
  %5272 = vmatpush.msra.mxu0 0.0
  %5273 = vmatpush.msra.mxu0 0.0
  %5274 = vmatpush.msra.mxu0 %v3532
  %5275 = vmatpush.msra.mxu0 %v3527
  %5276 = vmatpush.msra.mxu0 %v3522
  %5277 = vmatpush.msra.mxu0 %v3517
  %5278 = vmatpush.msra.mxu0 %v3512
  %5279 = vmatpush.msra.mxu0 %v3507
  %5280 = vmatpush.msra.mxu0 %v3502
  %5281 = vmatpush.msra.mxu0 %v3497
  %5282 = vmatmul.f32.gmra.mxu0 %v4807
  %v5283 = vpop.f32.mrf.mxu0
  %v5284 = vadd.f32 %v5252, %v5283
  %5285 = vmatmul.f32.gmra.mxu0 %v4809
  %v5286 = vpop.f32.mrf.mxu0
  %v5287 = vadd.f32 %v5255, %v5286
  %5288 = vmatmul.f32.gmra.mxu0 %v4811
  %v5289 = vpop.f32.mrf.mxu0
  %v5290 = vadd.f32 %v5258, %v5289
  %5291 = vmatmul.f32.gmra.mxu0 %v4813
  %v5292 = vpop.f32.mrf.mxu0
  %v5293 = vadd.f32 %v5261, %v5292
  %5294 = vmatmul.f32.gmra.mxu0 %v4816
  %v5295 = vpop.f32.mrf.mxu0
  %v5296 = vadd.f32 %v5264, %v5295
  %5297 = vdwg.mxu0
  %5298 = vmatpush.msra.mxu0 %v3253
  %5299 = vmatpush.msra.mxu0 %v3248
  %5300 = vmatpush.msra.mxu0 %v3243
  %5301 = vmatpush.msra.mxu0 %v3238
  %5302 = vmatpush.msra.mxu0 %v3233
  %5303 = vmatpush.msra.mxu0 %v3228
  %5304 = vmatpush.msra.mxu0 %v3223
  %5305 = vmatpush.msra.mxu0 %v3218
  %5306 = vmatpush.msra.mxu0 %v3213
  %5307 = vmatpush.msra.mxu0 %v3208
  %5308 = vmatpush.msra.mxu0 %v3203
  %5309 = vmatpush.msra.mxu0 %v3198
  %5310 = vmatpush.msra.mxu0 %v3193
  %5311 = vmatpush.msra.mxu0 %v3188
  %5312 = vmatpush.msra.mxu0 %v3183
  %5313 = vmatpush.msra.mxu0 %v3178
  %5314 = vmatmul.f32.gmra.mxu0 %v3150
  %v5315 = vpop.f32.mrf.mxu0
  %v5316 = vadd.f32 %v4632, %v5315
  %5317 = vmatmul.f32.gmra.mxu0 %v3155
  %v5318 = vpop.f32.mrf.mxu0
  %v5319 = vadd.f32 %v4635, %v5318
  %5320 = vmatmul.f32.gmra.mxu0 %v3160
  %v5321 = vpop.f32.mrf.mxu0
  %v5322 = vadd.f32 %v4638, %v5321
  %5323 = vmatmul.f32.gmra.mxu0 %v3165
  %v5324 = vpop.f32.mrf.mxu0
  %v5325 = vadd.f32 %v4641, %v5324
  %5326 = vmatmul.f32.gmra.mxu0 %v3170
  %v5327 = vpop.f32.mrf.mxu0
  %v5328 = vadd.f32 %v4644, %v5327
  %5329 = vdwg.mxu0
  %5330 = vmatpush.msra.mxu0 %v3333
  %5331 = vmatpush.msra.mxu0 %v3328
  %5332 = vmatpush.msra.mxu0 %v3323
  %5333 = vmatpush.msra.mxu0 %v3318
  %5334 = vmatpush.msra.mxu0 %v3313
  %5335 = vmatpush.msra.mxu0 %v3308
  %5336 = vmatpush.msra.mxu0 %v3303
  %5337 = vmatpush.msra.mxu0 %v3298
  %5338 = vmatpush.msra.mxu0 %v3293
  %5339 = vmatpush.msra.mxu0 %v3288
  %5340 = vmatpush.msra.mxu0 %v3283
  %5341 = vmatpush.msra.mxu0 %v3278
  %5342 = vmatpush.msra.mxu0 %v3273
  %5343 = vmatpush.msra.mxu0 %v3268
  %5344 = vmatpush.msra.mxu0 %v3263
  %5345 = vmatpush.msra.mxu0 %v3258
  %5346 = vmatmul.f32.gmra.mxu0 %v3151
  %v5347 = vpop.f32.mrf.mxu0
  %v5348 = vadd.f32 %v5316, %v5347
  %5349 = vmatmul.f32.gmra.mxu0 %v3156
  %v5350 = vpop.f32.mrf.mxu0
  %v5351 = vadd.f32 %v5319, %v5350
  %5352 = vmatmul.f32.gmra.mxu0 %v3161
  %v5353 = vpop.f32.mrf.mxu0
  %v5354 = vadd.f32 %v5322, %v5353
  %5355 = vmatmul.f32.gmra.mxu0 %v3166
  %v5356 = vpop.f32.mrf.mxu0
  %v5357 = vadd.f32 %v5325, %v5356
  %5358 = vmatmul.f32.gmra.mxu0 %v3171
  %v5359 = vpop.f32.mrf.mxu0
  %v5360 = vadd.f32 %v5328, %v5359
  %5361 = vdwg.mxu0
  %5362 = vmatpush.msra.mxu0 %v3413
  %5363 = vmatpush.msra.mxu0 %v3408
  %5364 = vmatpush.msra.mxu0 %v3403
  %5365 = vmatpush.msra.mxu0 %v3398
  %5366 = vmatpush.msra.mxu0 %v3393
  %5367 = vmatpush.msra.mxu0 %v3388
  %5368 = vmatpush.msra.mxu0 %v3383
  %5369 = vmatpush.msra.mxu0 %v3378
  %5370 = vmatpush.msra.mxu0 %v3373
  %5371 = vmatpush.msra.mxu0 %v3368
  %5372 = vmatpush.msra.mxu0 %v3363
  %5373 = vmatpush.msra.mxu0 %v3358
  %5374 = vmatpush.msra.mxu0 %v3353
  %5375 = vmatpush.msra.mxu0 %v3348
  %5376 = vmatpush.msra.mxu0 %v3343
  %5377 = vmatpush.msra.mxu0 %v3338
  %5378 = vmatmul.f32.gmra.mxu0 %v3152
  %v5379 = vpop.f32.mrf.mxu0
  %v5380 = vadd.f32 %v5348, %v5379
  %5381 = vmatmul.f32.gmra.mxu0 %v3157
  %v5382 = vpop.f32.mrf.mxu0
  %v5383 = vadd.f32 %v5351, %v5382
  %5384 = vmatmul.f32.gmra.mxu0 %v3162
  %v5385 = vpop.f32.mrf.mxu0
  %v5386 = vadd.f32 %v5354, %v5385
  %5387 = vmatmul.f32.gmra.mxu0 %v3167
  %v5388 = vpop.f32.mrf.mxu0
  %v5389 = vadd.f32 %v5357, %v5388
  %5390 = vmatmul.f32.gmra.mxu0 %v3172
  %v5391 = vpop.f32.mrf.mxu0
  %v5392 = vadd.f32 %v5360, %v5391
  %5393 = vdwg.mxu0
  %5394 = vmatpush.msra.mxu0 %v3493
  %5395 = vmatpush.msra.mxu0 %v3488
  %5396 = vmatpush.msra.mxu0 %v3483
  %5397 = vmatpush.msra.mxu0 %v3478
  %5398 = vmatpush.msra.mxu0 %v3473
  %5399 = vmatpush.msra.mxu0 %v3468
  %5400 = vmatpush.msra.mxu0 %v3463
  %5401 = vmatpush.msra.mxu0 %v3458
  %5402 = vmatpush.msra.mxu0 %v3453
  %5403 = vmatpush.msra.mxu0 %v3448
  %5404 = vmatpush.msra.mxu0 %v3443
  %5405 = vmatpush.msra.mxu0 %v3438
  %5406 = vmatpush.msra.mxu0 %v3433
  %5407 = vmatpush.msra.mxu0 %v3428
  %5408 = vmatpush.msra.mxu0 %v3423
  %5409 = vmatpush.msra.mxu0 %v3418
  %5410 = vmatmul.f32.gmra.mxu0 %v3153
  %v5411 = vpop.f32.mrf.mxu0
  %v5412 = vadd.f32 %v5380, %v5411
  %5413 = vmatmul.f32.gmra.mxu0 %v3158
  %v5414 = vpop.f32.mrf.mxu0
  %v5415 = vadd.f32 %v5383, %v5414
  %5416 = vmatmul.f32.gmra.mxu0 %v3163
  %v5417 = vpop.f32.mrf.mxu0
  %v5418 = vadd.f32 %v5386, %v5417
  %5419 = vmatmul.f32.gmra.mxu0 %v3168
  %v5420 = vpop.f32.mrf.mxu0
  %v5421 = vadd.f32 %v5389, %v5420
  %5422 = vmatmul.f32.gmra.mxu0 %v3173
  %v5423 = vpop.f32.mrf.mxu0
  %v5424 = vadd.f32 %v5392, %v5423
  %5425 = vdwg.mxu0
  %5426 = vmatpush.msra.mxu0 0.0
  %5427 = vmatpush.msra.mxu0 0.0
  %5428 = vmatpush.msra.mxu0 0.0
  %5429 = vmatpush.msra.mxu0 0.0
  %5430 = vmatpush.msra.mxu0 0.0
  %5431 = vmatpush.msra.mxu0 0.0
  %5432 = vmatpush.msra.mxu0 0.0
  %5433 = vmatpush.msra.mxu0 0.0
  %5434 = vmatpush.msra.mxu0 %v3533
  %5435 = vmatpush.msra.mxu0 %v3528
  %5436 = vmatpush.msra.mxu0 %v3523
  %5437 = vmatpush.msra.mxu0 %v3518
  %5438 = vmatpush.msra.mxu0 %v3513
  %5439 = vmatpush.msra.mxu0 %v3508
  %5440 = vmatpush.msra.mxu0 %v3503
  %5441 = vmatpush.msra.mxu0 %v3498
  %5442 = vmatmul.f32.gmra.mxu0 %v4807
  %v5443 = vpop.f32.mrf.mxu0
  %v5444 = vadd.f32 %v5412, %v5443
  %5445 = vmatmul.f32.gmra.mxu0 %v4809
  %v5446 = vpop.f32.mrf.mxu0
  %v5447 = vadd.f32 %v5415, %v5446
  %5448 = vmatmul.f32.gmra.mxu0 %v4811
  %v5449 = vpop.f32.mrf.mxu0
  %v5450 = vadd.f32 %v5418, %v5449
  %5451 = vmatmul.f32.gmra.mxu0 %v4813
  %v5452 = vpop.f32.mrf.mxu0
  %v5453 = vadd.f32 %v5421, %v5452
  %5454 = vmatmul.f32.gmra.mxu0 %v4816
  %v5455 = vpop.f32.mrf.mxu0
  %v5456 = vadd.f32 %v5424, %v5455
  %5457 = vdwg.mxu0
  %5458 = vmatpush.msra.mxu0 %v3254
  %5459 = vmatpush.msra.mxu0 %v3249
  %5460 = vmatpush.msra.mxu0 %v3244
  %5461 = vmatpush.msra.mxu0 %v3239
  %5462 = vmatpush.msra.mxu0 %v3234
  %5463 = vmatpush.msra.mxu0 %v3229
  %5464 = vmatpush.msra.mxu0 %v3224
  %5465 = vmatpush.msra.mxu0 %v3219
  %5466 = vmatpush.msra.mxu0 %v3214
  %5467 = vmatpush.msra.mxu0 %v3209
  %5468 = vmatpush.msra.mxu0 %v3204
  %5469 = vmatpush.msra.mxu0 %v3199
  %5470 = vmatpush.msra.mxu0 %v3194
  %5471 = vmatpush.msra.mxu0 %v3189
  %5472 = vmatpush.msra.mxu0 %v3184
  %5473 = vmatpush.msra.mxu0 %v3179
  %5474 = vmatmul.f32.gmra.mxu0 %v3150
  %v5475 = vpop.f32.mrf.mxu0
  %v5476 = vadd.f32 %v4792, %v5475
  %5477 = vmatmul.f32.gmra.mxu0 %v3155
  %v5478 = vpop.f32.mrf.mxu0
  %v5479 = vadd.f32 %v4795, %v5478
  %5480 = vmatmul.f32.gmra.mxu0 %v3160
  %v5481 = vpop.f32.mrf.mxu0
  %v5482 = vadd.f32 %v4798, %v5481
  %5483 = vmatmul.f32.gmra.mxu0 %v3165
  %v5484 = vpop.f32.mrf.mxu0
  %v5485 = vadd.f32 %v4801, %v5484
  %5486 = vmatmul.f32.gmra.mxu0 %v3170
  %v5487 = vpop.f32.mrf.mxu0
  %v5488 = vadd.f32 %v4804, %v5487
  %5489 = vdwg.mxu0
  %5490 = vmatpush.msra.mxu0 %v3334
  %5491 = vmatpush.msra.mxu0 %v3329
  %5492 = vmatpush.msra.mxu0 %v3324
  %5493 = vmatpush.msra.mxu0 %v3319
  %5494 = vmatpush.msra.mxu0 %v3314
  %5495 = vmatpush.msra.mxu0 %v3309
  %5496 = vmatpush.msra.mxu0 %v3304
  %5497 = vmatpush.msra.mxu0 %v3299
  %5498 = vmatpush.msra.mxu0 %v3294
  %5499 = vmatpush.msra.mxu0 %v3289
  %5500 = vmatpush.msra.mxu0 %v3284
  %5501 = vmatpush.msra.mxu0 %v3279
  %5502 = vmatpush.msra.mxu0 %v3274
  %5503 = vmatpush.msra.mxu0 %v3269
  %5504 = vmatpush.msra.mxu0 %v3264
  %5505 = vmatpush.msra.mxu0 %v3259
  %5506 = vmatmul.f32.gmra.mxu0 %v3151
  %v5507 = vpop.f32.mrf.mxu0
  %v5508 = vadd.f32 %v5476, %v5507
  %5509 = vmatmul.f32.gmra.mxu0 %v3156
  %v5510 = vpop.f32.mrf.mxu0
  %v5511 = vadd.f32 %v5479, %v5510
  %5512 = vmatmul.f32.gmra.mxu0 %v3161
  %v5513 = vpop.f32.mrf.mxu0
  %v5514 = vadd.f32 %v5482, %v5513
  %5515 = vmatmul.f32.gmra.mxu0 %v3166
  %v5516 = vpop.f32.mrf.mxu0
  %v5517 = vadd.f32 %v5485, %v5516
  %5518 = vmatmul.f32.gmra.mxu0 %v3171
  %v5519 = vpop.f32.mrf.mxu0
  %v5520 = vadd.f32 %v5488, %v5519
  %5521 = vdwg.mxu0
  %5522 = vmatpush.msra.mxu0 %v3414
  %5523 = vmatpush.msra.mxu0 %v3409
  %5524 = vmatpush.msra.mxu0 %v3404
  %5525 = vmatpush.msra.mxu0 %v3399
  %5526 = vmatpush.msra.mxu0 %v3394
  %5527 = vmatpush.msra.mxu0 %v3389
  %5528 = vmatpush.msra.mxu0 %v3384
  %5529 = vmatpush.msra.mxu0 %v3379
  %5530 = vmatpush.msra.mxu0 %v3374
  %5531 = vmatpush.msra.mxu0 %v3369
  %5532 = vmatpush.msra.mxu0 %v3364
  %5533 = vmatpush.msra.mxu0 %v3359
  %5534 = vmatpush.msra.mxu0 %v3354
  %5535 = vmatpush.msra.mxu0 %v3349
  %5536 = vmatpush.msra.mxu0 %v3344
  %5537 = vmatpush.msra.mxu0 %v3339
  %5538 = vmatmul.f32.gmra.mxu0 %v3152
  %v5539 = vpop.f32.mrf.mxu0
  %v5540 = vadd.f32 %v5508, %v5539
  %5541 = vmatmul.f32.gmra.mxu0 %v3157
  %v5542 = vpop.f32.mrf.mxu0
  %v5543 = vadd.f32 %v5511, %v5542
  %5544 = vmatmul.f32.gmra.mxu0 %v3162
  %v5545 = vpop.f32.mrf.mxu0
  %v5546 = vadd.f32 %v5514, %v5545
  %5547 = vmatmul.f32.gmra.mxu0 %v3167
  %v5548 = vpop.f32.mrf.mxu0
  %v5549 = vadd.f32 %v5517, %v5548
  %5550 = vmatmul.f32.gmra.mxu0 %v3172
  %v5551 = vpop.f32.mrf.mxu0
  %v5552 = vadd.f32 %v5520, %v5551
  %5553 = vdwg.mxu0
  %5554 = vmatpush.msra.mxu0 %v3494
  %5555 = vmatpush.msra.mxu0 %v3489
  %5556 = vmatpush.msra.mxu0 %v3484
  %5557 = vmatpush.msra.mxu0 %v3479
  %5558 = vmatpush.msra.mxu0 %v3474
  %5559 = vmatpush.msra.mxu0 %v3469
  %5560 = vmatpush.msra.mxu0 %v3464
  %5561 = vmatpush.msra.mxu0 %v3459
  %5562 = vmatpush.msra.mxu0 %v3454
  %5563 = vmatpush.msra.mxu0 %v3449
  %5564 = vmatpush.msra.mxu0 %v3444
  %5565 = vmatpush.msra.mxu0 %v3439
  %5566 = vmatpush.msra.mxu0 %v3434
  %5567 = vmatpush.msra.mxu0 %v3429
  %5568 = vmatpush.msra.mxu0 %v3424
  %5569 = vmatpush.msra.mxu0 %v3419
  %5570 = vmatmul.f32.gmra.mxu0 %v3153
  %v5571 = vpop.f32.mrf.mxu0
  %v5572 = vadd.f32 %v5540, %v5571
  %5573 = vmatmul.f32.gmra.mxu0 %v3158
  %v5574 = vpop.f32.mrf.mxu0
  %v5575 = vadd.f32 %v5543, %v5574
  %5576 = vmatmul.f32.gmra.mxu0 %v3163
  %v5577 = vpop.f32.mrf.mxu0
  %v5578 = vadd.f32 %v5546, %v5577
  %5579 = vmatmul.f32.gmra.mxu0 %v3168
  %v5580 = vpop.f32.mrf.mxu0
  %v5581 = vadd.f32 %v5549, %v5580
  %5582 = vmatmul.f32.gmra.mxu0 %v3173
  %v5583 = vpop.f32.mrf.mxu0
  %v5584 = vadd.f32 %v5552, %v5583
  %5585 = vdwg.mxu0
  %5586 = vmatpush.msra.mxu0 0.0
  %5587 = vmatpush.msra.mxu0 0.0
  %5588 = vmatpush.msra.mxu0 0.0
  %5589 = vmatpush.msra.mxu0 0.0
  %5590 = vmatpush.msra.mxu0 0.0
  %5591 = vmatpush.msra.mxu0 0.0
  %5592 = vmatpush.msra.mxu0 0.0
  %5593 = vmatpush.msra.mxu0 0.0
  %5594 = vmatpush.msra.mxu0 %v3534
  %5595 = vmatpush.msra.mxu0 %v3529
  %5596 = vmatpush.msra.mxu0 %v3524
  %5597 = vmatpush.msra.mxu0 %v3519
  %5598 = vmatpush.msra.mxu0 %v3514
  %5599 = vmatpush.msra.mxu0 %v3509
  %5600 = vmatpush.msra.mxu0 %v3504
  %5601 = vmatpush.msra.mxu0 %v3499
  %5602 = vmatmul.f32.gmra.mxu0 %v4807
  %v5603 = vpop.f32.mrf.mxu0
  %v5604 = vadd.f32 %v5572, %v5603
  %5605 = vmatmul.f32.gmra.mxu0 %v4809
  %v5606 = vpop.f32.mrf.mxu0
  %v5607 = vadd.f32 %v5575, %v5606
  %5608 = vmatmul.f32.gmra.mxu0 %v4811
  %v5609 = vpop.f32.mrf.mxu0
  %v5610 = vadd.f32 %v5578, %v5609
  %5611 = vmatmul.f32.gmra.mxu0 %v4813
  %v5612 = vpop.f32.mrf.mxu0
  %v5613 = vadd.f32 %v5581, %v5612
  %5614 = vmatmul.f32.gmra.mxu0 %v4816
  %v5615 = vpop.f32.mrf.mxu0
  %v5616 = vadd.f32 %v5584, %v5615
  %5617 = vdwg.mxu0
  %v5618 = vld [vmem:[#allocation3] sm:$0xfc]
  %v5619 = vld [vmem:[#allocation3 + $0x8] sm:$0xfc]
  %v5620 = vld [vmem:[#allocation3 + $0x10] sm:$0xfc]
  %v5621 = vld [vmem:[#allocation3 + $0x18] sm:$0xfc]
  %v5622 = vld [vmem:[#allocation3 + $0x20] sm:$0xfc]
  %v5623 = vld [vmem:[#allocation3 + $0xa0] sm:$0x3f]
  %v5624 = vld [vmem:[#allocation3 + $0xa8] sm:$0x3f]
  %v5625 = vld [vmem:[#allocation3 + $0xb0] sm:$0x3f]
  %v5626 = vld [vmem:[#allocation3 + $0xb8] sm:$0x3f]
  %v5627 = vld [vmem:[#allocation3 + $0xc0] sm:$0x3f]
  %s5628 = scalar_lea.vmem %s5, 5760
  %v5629 = vld [vmem:[%s5628] sm:$0xff]
  %v5630 = vld [vmem:[%s5628 + $0x8] sm:$0xff]
  %v5631 = vld [vmem:[%s5628 + $0x10] sm:$0xff]
  %v5632 = vld [vmem:[%s5628 + $0x18] sm:$0xff]
  %v5633 = vld [vmem:[%s5628 + $0x20] sm:$0xff]
  %v5634 = vld [vmem:[%s5628 + $0x28] sm:$0xff]
  %v5635 = vld [vmem:[%s5628 + $0x30] sm:$0xff]
  %v5636 = vld [vmem:[%s5628 + $0x38] sm:$0xff]
  %v5637 = vld [vmem:[%s5628 + $0x40] sm:$0xff]
  %v5638 = vld [vmem:[%s5628 + $0x48] sm:$0xff]
  %v5639 = vld [vmem:[%s5628 + $0x50] sm:$0xff]
  %v5640 = vld [vmem:[%s5628 + $0x58] sm:$0xff]
  %v5641 = vld [vmem:[%s5628 + $0x60] sm:$0xff]
  %v5642 = vld [vmem:[%s5628 + $0x68] sm:$0xff]
  %v5643 = vld [vmem:[%s5628 + $0x70] sm:$0xff]
  %v5644 = vld [vmem:[%s5628 + $0x78] sm:$0xff]
  %v5645 = vld [vmem:[%s5628 + $0x80] sm:$0xff]
  %v5646 = vld [vmem:[%s5628 + $0x88] sm:$0xff]
  %v5647 = vld [vmem:[%s5628 + $0x90] sm:$0xff]
  %v5648 = vld [vmem:[%s5628 + $0x98] sm:$0xff]
  %v5649 = vld [vmem:[%s5628 + $0xa0] sm:$0xff]
  %v5650 = vld [vmem:[%s5628 + $0xa8] sm:$0xff]
  %v5651 = vld [vmem:[%s5628 + $0xb0] sm:$0xff]
  %v5652 = vld [vmem:[%s5628 + $0xb8] sm:$0xff]
  %v5653 = vld [vmem:[%s5628 + $0xc0] sm:$0xff]
  %v5654 = vld [vmem:[%s5628 + $0xc8] sm:$0xff]
  %v5655 = vld [vmem:[%s5628 + $0xd0] sm:$0xff]
  %v5656 = vld [vmem:[%s5628 + $0xd8] sm:$0xff]
  %v5657 = vld [vmem:[%s5628 + $0xe0] sm:$0xff]
  %v5658 = vld [vmem:[%s5628 + $0xe8] sm:$0xff]
  %v5659 = vld [vmem:[%s5628 + $0xf0] sm:$0xff]
  %v5660 = vld [vmem:[%s5628 + $0xf8] sm:$0xff]
  %v5661 = vld [vmem:[%s5628 + $0x100] sm:$0xff]
  %v5662 = vld [vmem:[%s5628 + $0x108] sm:$0xff]
  %v5663 = vld [vmem:[%s5628 + $0x110] sm:$0xff]
  %v5664 = vld [vmem:[%s5628 + $0x118] sm:$0xff]
  %v5665 = vld [vmem:[%s5628 + $0x120] sm:$0xff]
  %v5666 = vld [vmem:[%s5628 + $0x128] sm:$0xff]
  %v5667 = vld [vmem:[%s5628 + $0x130] sm:$0xff]
  %v5668 = vld [vmem:[%s5628 + $0x138] sm:$0xff]
  %v5669 = vld [vmem:[%s5628 + $0x140] sm:$0xff]
  %v5670 = vld [vmem:[%s5628 + $0x148] sm:$0xff]
  %v5671 = vld [vmem:[%s5628 + $0x150] sm:$0xff]
  %v5672 = vld [vmem:[%s5628 + $0x158] sm:$0xff]
  %v5673 = vld [vmem:[%s5628 + $0x160] sm:$0xff]
  %v5674 = vld [vmem:[%s5628 + $0x168] sm:$0xff]
  %v5675 = vld [vmem:[%s5628 + $0x170] sm:$0xff]
  %v5676 = vld [vmem:[%s5628 + $0x178] sm:$0xff]
  %v5677 = vld [vmem:[%s5628 + $0x180] sm:$0xff]
  %v5678 = vld [vmem:[%s5628 + $0x188] sm:$0xff]
  %v5679 = vld [vmem:[%s5628 + $0x190] sm:$0xff]
  %v5680 = vld [vmem:[%s5628 + $0x198] sm:$0xff]
  %v5681 = vld [vmem:[%s5628 + $0x1a0] sm:$0xff]
  %v5682 = vld [vmem:[%s5628 + $0x1a8] sm:$0xff]
  %v5683 = vld [vmem:[%s5628 + $0x1b0] sm:$0xff]
  %v5684 = vld [vmem:[%s5628 + $0x1b8] sm:$0xff]
  %v5685 = vld [vmem:[%s5628 + $0x1c0] sm:$0xff]
  %v5686 = vld [vmem:[%s5628 + $0x1c8] sm:$0xff]
  %v5687 = vld [vmem:[%s5628 + $0x1d0] sm:$0xff]
  %v5688 = vld [vmem:[%s5628 + $0x1d8] sm:$0xff]
  %v5689 = vld [vmem:[%s5628 + $0x1e0] sm:$0xff]
  %v5690 = vld [vmem:[%s5628 + $0x1e8] sm:$0xff]
  %v5691 = vld [vmem:[%s5628 + $0x1f0] sm:$0xff]
  %v5692 = vld [vmem:[%s5628 + $0x1f8] sm:$0xff]
  %v5693 = vld [vmem:[%s5628 + $0x200] sm:$0xff]
  %v5694 = vld [vmem:[%s5628 + $0x208] sm:$0xff]
  %v5695 = vld [vmem:[%s5628 + $0x210] sm:$0xff]
  %v5696 = vld [vmem:[%s5628 + $0x218] sm:$0xff]
  %v5697 = vld [vmem:[%s5628 + $0x220] sm:$0xff]
  %v5698 = vld [vmem:[%s5628 + $0x228] sm:$0xff]
  %v5699 = vld [vmem:[%s5628 + $0x230] sm:$0xff]
  %v5700 = vld [vmem:[%s5628 + $0x238] sm:$0xff]
  %v5701 = vld [vmem:[%s5628 + $0x240] sm:$0xff]
  %v5702 = vld [vmem:[%s5628 + $0x248] sm:$0xff]
  %v5703 = vld [vmem:[%s5628 + $0x250] sm:$0xff]
  %v5704 = vld [vmem:[%s5628 + $0x258] sm:$0xff]
  %v5705 = vld [vmem:[%s5628 + $0x260] sm:$0xff]
  %v5706 = vld [vmem:[%s5628 + $0x268] sm:$0xff]
  %v5707 = vld [vmem:[%s5628 + $0x270] sm:$0xff]
  %v5708 = vld [vmem:[%s5628 + $0x278] sm:$0xff]
  %v5709 = vld [vmem:[%s5628 + $0x280] sm:$0xff]
  %v5710 = vld [vmem:[%s5628 + $0x288] sm:$0xff]
  %v5711 = vld [vmem:[%s5628 + $0x290] sm:$0xff]
  %v5712 = vld [vmem:[%s5628 + $0x298] sm:$0xff]
  %v5713 = vld [vmem:[%s5628 + $0x2a0] sm:$0xff]
  %v5714 = vld [vmem:[%s5628 + $0x2a8] sm:$0xff]
  %v5715 = vld [vmem:[%s5628 + $0x2b0] sm:$0xff]
  %v5716 = vld [vmem:[%s5628 + $0x2b8] sm:$0xff]
  %v5717 = vld [vmem:[%s5628 + $0x2c0] sm:$0xff]
  %v5718 = vld [vmem:[%s5628 + $0x2c8] sm:$0xff]
  %v5719 = vld [vmem:[%s5628 + $0x2d0] sm:$0xff]
  %v5720 = vld [vmem:[%s5628 + $0x2d8] sm:$0xff]
  %v5721 = vld [vmem:[%s5628 + $0x2e0] sm:$0xff]
  %v5722 = vld [vmem:[%s5628 + $0x2e8] sm:$0xff]
  %v5723 = vld [vmem:[%s5628 + $0x2f0] sm:$0xff]
  %v5724 = vld [vmem:[%s5628 + $0x2f8] sm:$0xff]
  %v5725 = vld [vmem:[%s5628 + $0x300] sm:$0xff]
  %v5726 = vld [vmem:[%s5628 + $0x308] sm:$0xff]
  %v5727 = vld [vmem:[%s5628 + $0x310] sm:$0xff]
  %v5728 = vld [vmem:[%s5628 + $0x318] sm:$0xff]
  %v5729 = vld [vmem:[%s5628 + $0x320] sm:$0xff]
  %v5730 = vld [vmem:[%s5628 + $0x328] sm:$0xff]
  %v5731 = vld [vmem:[%s5628 + $0x330] sm:$0xff]
  %v5732 = vld [vmem:[%s5628 + $0x338] sm:$0xff]
  %v5733 = vld [vmem:[%s5628 + $0x340] sm:$0xff]
  %v5734 = vld [vmem:[%s5628 + $0x348] sm:$0xff]
  %v5735 = vld [vmem:[%s5628 + $0x350] sm:$0xff]
  %v5736 = vld [vmem:[%s5628 + $0x358] sm:$0xff]
  %v5737 = vld [vmem:[%s5628 + $0x360] sm:$0xff]
  %v5738 = vld [vmem:[%s5628 + $0x368] sm:$0xff]
  %v5739 = vld [vmem:[%s5628 + $0x370] sm:$0xff]
  %v5740 = vld [vmem:[%s5628 + $0x378] sm:$0xff]
  %v5741 = vld [vmem:[%s5628 + $0x380] sm:$0xff]
  %v5742 = vld [vmem:[%s5628 + $0x388] sm:$0xff]
  %v5743 = vld [vmem:[%s5628 + $0x390] sm:$0xff]
  %v5744 = vld [vmem:[%s5628 + $0x398] sm:$0xff]
  %v5745 = vld [vmem:[%s5628 + $0x3a0] sm:$0xff]
  %v5746 = vld [vmem:[%s5628 + $0x3a8] sm:$0xff]
  %v5747 = vld [vmem:[%s5628 + $0x3b0] sm:$0xff]
  %v5748 = vld [vmem:[%s5628 + $0x3b8] sm:$0xff]
  %v5749 = vld [vmem:[%s5628 + $0x3c0] sm:$0xff]
  %v5750 = vld [vmem:[%s5628 + $0x3c8] sm:$0xff]
  %v5751 = vld [vmem:[%s5628 + $0x3d0] sm:$0xff]
  %v5752 = vld [vmem:[%s5628 + $0x3d8] sm:$0xff]
  %v5753 = vld [vmem:[%s5628 + $0x3e0] sm:$0xff]
  %v5754 = vld [vmem:[%s5628 + $0x3e8] sm:$0xff]
  %v5755 = vld [vmem:[%s5628 + $0x3f0] sm:$0xff]
  %v5756 = vld [vmem:[%s5628 + $0x3f8] sm:$0xff]
  %v5757 = vld [vmem:[%s5628 + $0x400] sm:$0xff]
  %v5758 = vld [vmem:[%s5628 + $0x408] sm:$0xff]
  %v5759 = vld [vmem:[%s5628 + $0x410] sm:$0xff]
  %v5760 = vld [vmem:[%s5628 + $0x418] sm:$0xff]
  %v5761 = vld [vmem:[%s5628 + $0x420] sm:$0xff]
  %v5762 = vld [vmem:[%s5628 + $0x428] sm:$0xff]
  %v5763 = vld [vmem:[%s5628 + $0x430] sm:$0xff]
  %v5764 = vld [vmem:[%s5628 + $0x438] sm:$0xff]
  %v5765 = vld [vmem:[%s5628 + $0x440] sm:$0xff]
  %v5766 = vld [vmem:[%s5628 + $0x448] sm:$0xff]
  %v5767 = vld [vmem:[%s5628 + $0x450] sm:$0xff]
  %v5768 = vld [vmem:[%s5628 + $0x458] sm:$0xff]
  %v5769 = vld [vmem:[%s5628 + $0x460] sm:$0xff]
  %v5770 = vld [vmem:[%s5628 + $0x468] sm:$0xff]
  %v5771 = vld [vmem:[%s5628 + $0x470] sm:$0xff]
  %v5772 = vld [vmem:[%s5628 + $0x478] sm:$0xff]
  %v5773 = vld [vmem:[%s5628 + $0x480] sm:$0xff]
  %v5774 = vld [vmem:[%s5628 + $0x488] sm:$0xff]
  %v5775 = vld [vmem:[%s5628 + $0x490] sm:$0xff]
  %v5776 = vld [vmem:[%s5628 + $0x498] sm:$0xff]
  %v5777 = vld [vmem:[%s5628 + $0x4a0] sm:$0xff]
  %v5778 = vld [vmem:[%s5628 + $0x4a8] sm:$0xff]
  %v5779 = vld [vmem:[%s5628 + $0x4b0] sm:$0xff]
  %v5780 = vld [vmem:[%s5628 + $0x4b8] sm:$0xff]
  %v5781 = vld [vmem:[%s5628 + $0x4c0] sm:$0xff]
  %v5782 = vld [vmem:[%s5628 + $0x4c8] sm:$0xff]
  %v5783 = vld [vmem:[%s5628 + $0x4d0] sm:$0xff]
  %v5784 = vld [vmem:[%s5628 + $0x4d8] sm:$0xff]
  %v5785 = vld [vmem:[%s5628 + $0x4e0] sm:$0xff]
  %v5786 = vld [vmem:[%s5628 + $0x4e8] sm:$0xff]
  %v5787 = vld [vmem:[%s5628 + $0x4f0] sm:$0xff]
  %v5788 = vld [vmem:[%s5628 + $0x4f8] sm:$0xff]
  %v5789 = vld [vmem:[%s5628 + $0x500] sm:$0xff]
  %v5790 = vld [vmem:[%s5628 + $0x508] sm:$0xff]
  %v5791 = vld [vmem:[%s5628 + $0x510] sm:$0xff]
  %v5792 = vld [vmem:[%s5628 + $0x518] sm:$0xff]
  %v5793 = vld [vmem:[%s5628 + $0x520] sm:$0xff]
  %v5794 = vld [vmem:[%s5628 + $0x528] sm:$0xff]
  %v5795 = vld [vmem:[%s5628 + $0x530] sm:$0xff]
  %v5796 = vld [vmem:[%s5628 + $0x538] sm:$0xff]
  %v5797 = vld [vmem:[%s5628 + $0x540] sm:$0xff]
  %v5798 = vld [vmem:[%s5628 + $0x548] sm:$0xff]
  %v5799 = vld [vmem:[%s5628 + $0x550] sm:$0xff]
  %v5800 = vld [vmem:[%s5628 + $0x558] sm:$0xff]
  %v5801 = vld [vmem:[%s5628 + $0x560] sm:$0xff]
  %v5802 = vld [vmem:[%s5628 + $0x568] sm:$0xff]
  %v5803 = vld [vmem:[%s5628 + $0x570] sm:$0xff]
  %v5804 = vld [vmem:[%s5628 + $0x578] sm:$0xff]
  %v5805 = vld [vmem:[%s5628 + $0x580] sm:$0xff]
  %v5806 = vld [vmem:[%s5628 + $0x588] sm:$0xff]
  %v5807 = vld [vmem:[%s5628 + $0x590] sm:$0xff]
  %v5808 = vld [vmem:[%s5628 + $0x598] sm:$0xff]
  %v5809 = vld [vmem:[%s5628 + $0x5a0] sm:$0xff]
  %v5810 = vld [vmem:[%s5628 + $0x5a8] sm:$0xff]
  %v5811 = vld [vmem:[%s5628 + $0x5b0] sm:$0xff]
  %v5812 = vld [vmem:[%s5628 + $0x5b8] sm:$0xff]
  %v5813 = vld [vmem:[%s5628 + $0x5c0] sm:$0xff]
  %v5814 = vld [vmem:[%s5628 + $0x5c8] sm:$0xff]
  %v5815 = vld [vmem:[%s5628 + $0x5d0] sm:$0xff]
  %v5816 = vld [vmem:[%s5628 + $0x5d8] sm:$0xff]
  %v5817 = vld [vmem:[%s5628 + $0x5e0] sm:$0xff]
  %v5818 = vld [vmem:[%s5628 + $0x5e8] sm:$0xff]
  %v5819 = vld [vmem:[%s5628 + $0x5f0] sm:$0xff]
  %v5820 = vld [vmem:[%s5628 + $0x5f8] sm:$0xff]
  %v5821 = vld [vmem:[%s5628 + $0x600] sm:$0xff]
  %v5822 = vld [vmem:[%s5628 + $0x608] sm:$0xff]
  %v5823 = vld [vmem:[%s5628 + $0x610] sm:$0xff]
  %v5824 = vld [vmem:[%s5628 + $0x618] sm:$0xff]
  %v5825 = vld [vmem:[%s5628 + $0x620] sm:$0xff]
  %v5826 = vld [vmem:[%s5628 + $0x628] sm:$0xff]
  %v5827 = vld [vmem:[%s5628 + $0x630] sm:$0xff]
  %v5828 = vld [vmem:[%s5628 + $0x638] sm:$0xff]
  %v5829 = vld [vmem:[%s5628 + $0x640] sm:$0xff]
  %v5830 = vld [vmem:[%s5628 + $0x648] sm:$0xff]
  %v5831 = vld [vmem:[%s5628 + $0x650] sm:$0xff]
  %v5832 = vld [vmem:[%s5628 + $0x658] sm:$0xff]
  %v5833 = vld [vmem:[%s5628 + $0x660] sm:$0xff]
  %v5834 = vld [vmem:[%s5628 + $0x668] sm:$0xff]
  %v5835 = vld [vmem:[%s5628 + $0x670] sm:$0xff]
  %v5836 = vld [vmem:[%s5628 + $0x678] sm:$0xff]
  %v5837 = vld [vmem:[%s5628 + $0x680] sm:$0xff]
  %v5838 = vld [vmem:[%s5628 + $0x688] sm:$0xff]
  %v5839 = vld [vmem:[%s5628 + $0x690] sm:$0xff]
  %v5840 = vld [vmem:[%s5628 + $0x698] sm:$0xff]
  %v5841 = vld [vmem:[%s5628 + $0x6a0] sm:$0xff]
  %v5842 = vld [vmem:[%s5628 + $0x6a8] sm:$0xff]
  %v5843 = vld [vmem:[%s5628 + $0x6b0] sm:$0xff]
  %v5844 = vld [vmem:[%s5628 + $0x6b8] sm:$0xff]
  %v5845 = vld [vmem:[%s5628 + $0x6c0] sm:$0xff]
  %v5846 = vld [vmem:[%s5628 + $0x6c8] sm:$0xff]
  %v5847 = vld [vmem:[%s5628 + $0x6d0] sm:$0xff]
  %v5848 = vld [vmem:[%s5628 + $0x6d8] sm:$0xff]
  %v5849 = vld [vmem:[%s5628 + $0x6e0] sm:$0xff]
  %v5850 = vld [vmem:[%s5628 + $0x6e8] sm:$0xff]
  %v5851 = vld [vmem:[%s5628 + $0x6f0] sm:$0xff]
  %v5852 = vld [vmem:[%s5628 + $0x6f8] sm:$0xff]
  %v5853 = vld [vmem:[%s5628 + $0x700] sm:$0xff]
  %v5854 = vld [vmem:[%s5628 + $0x708] sm:$0xff]
  %v5855 = vld [vmem:[%s5628 + $0x710] sm:$0xff]
  %v5856 = vld [vmem:[%s5628 + $0x718] sm:$0xff]
  %v5857 = vld [vmem:[%s5628 + $0x720] sm:$0xff]
  %v5858 = vld [vmem:[%s5628 + $0x728] sm:$0xff]
  %v5859 = vld [vmem:[%s5628 + $0x730] sm:$0xff]
  %v5860 = vld [vmem:[%s5628 + $0x738] sm:$0xff]
  %v5861 = vld [vmem:[%s5628 + $0x740] sm:$0xff]
  %v5862 = vld [vmem:[%s5628 + $0x748] sm:$0xff]
  %v5863 = vld [vmem:[%s5628 + $0x750] sm:$0xff]
  %v5864 = vld [vmem:[%s5628 + $0x758] sm:$0xff]
  %v5865 = vld [vmem:[%s5628 + $0x760] sm:$0xff]
  %v5866 = vld [vmem:[%s5628 + $0x768] sm:$0xff]
  %v5867 = vld [vmem:[%s5628 + $0x770] sm:$0xff]
  %v5868 = vld [vmem:[%s5628 + $0x778] sm:$0xff]
  %v5869 = vld [vmem:[%s5628 + $0x780] sm:$0xff]
  %v5870 = vld [vmem:[%s5628 + $0x788] sm:$0xff]
  %v5871 = vld [vmem:[%s5628 + $0x790] sm:$0xff]
  %v5872 = vld [vmem:[%s5628 + $0x798] sm:$0xff]
  %v5873 = vld [vmem:[%s5628 + $0x7a0] sm:$0xff]
  %v5874 = vld [vmem:[%s5628 + $0x7a8] sm:$0xff]
  %v5875 = vld [vmem:[%s5628 + $0x7b0] sm:$0xff]
  %v5876 = vld [vmem:[%s5628 + $0x7b8] sm:$0xff]
  %v5877 = vld [vmem:[%s5628 + $0x7c0] sm:$0xff]
  %v5878 = vld [vmem:[%s5628 + $0x7c8] sm:$0xff]
  %v5879 = vld [vmem:[%s5628 + $0x7d0] sm:$0xff]
  %v5880 = vld [vmem:[%s5628 + $0x7d8] sm:$0xff]
  %v5881 = vld [vmem:[%s5628 + $0x7e0] sm:$0xff]
  %v5882 = vld [vmem:[%s5628 + $0x7e8] sm:$0xff]
  %v5883 = vld [vmem:[%s5628 + $0x7f0] sm:$0xff]
  %v5884 = vld [vmem:[%s5628 + $0x7f8] sm:$0xff]
  %v5885 = vld [vmem:[%s5628 + $0x800] sm:$0xff]
  %v5886 = vld [vmem:[%s5628 + $0x808] sm:$0xff]
  %v5887 = vld [vmem:[%s5628 + $0x810] sm:$0xff]
  %v5888 = vld [vmem:[%s5628 + $0x818] sm:$0xff]
  %v5889 = vld [vmem:[%s5628 + $0x820] sm:$0xff]
  %v5890 = vld [vmem:[%s5628 + $0x828] sm:$0xff]
  %v5891 = vld [vmem:[%s5628 + $0x830] sm:$0xff]
  %v5892 = vld [vmem:[%s5628 + $0x838] sm:$0xff]
  %v5893 = vld [vmem:[%s5628 + $0x840] sm:$0xff]
  %v5894 = vld [vmem:[%s5628 + $0x848] sm:$0xff]
  %v5895 = vld [vmem:[%s5628 + $0x850] sm:$0xff]
  %v5896 = vld [vmem:[%s5628 + $0x858] sm:$0xff]
  %v5897 = vld [vmem:[%s5628 + $0x860] sm:$0xff]
  %v5898 = vld [vmem:[%s5628 + $0x868] sm:$0xff]
  %v5899 = vld [vmem:[%s5628 + $0x870] sm:$0xff]
  %v5900 = vld [vmem:[%s5628 + $0x878] sm:$0xff]
  %v5901 = vld [vmem:[%s5628 + $0x880] sm:$0xff]
  %v5902 = vld [vmem:[%s5628 + $0x888] sm:$0xff]
  %v5903 = vld [vmem:[%s5628 + $0x890] sm:$0xff]
  %v5904 = vld [vmem:[%s5628 + $0x898] sm:$0xff]
  %v5905 = vld [vmem:[%s5628 + $0x8a0] sm:$0xff]
  %v5906 = vld [vmem:[%s5628 + $0x8a8] sm:$0xff]
  %v5907 = vld [vmem:[%s5628 + $0x8b0] sm:$0xff]
  %v5908 = vld [vmem:[%s5628 + $0x8b8] sm:$0xff]
  %v5909 = vld [vmem:[%s5628 + $0x8c0] sm:$0xff]
  %v5910 = vld [vmem:[%s5628 + $0x8c8] sm:$0xff]
  %v5911 = vld [vmem:[%s5628 + $0x8d0] sm:$0xff]
  %v5912 = vld [vmem:[%s5628 + $0x8d8] sm:$0xff]
  %v5913 = vld [vmem:[%s5628 + $0x8e0] sm:$0xff]
  %v5914 = vld [vmem:[%s5628 + $0x8e8] sm:$0xff]
  %v5915 = vld [vmem:[%s5628 + $0x8f0] sm:$0xff]
  %v5916 = vld [vmem:[%s5628 + $0x8f8] sm:$0xff]
  %v5917 = vld [vmem:[%s5628 + $0x900] sm:$0xff]
  %v5918 = vld [vmem:[%s5628 + $0x908] sm:$0xff]
  %v5919 = vld [vmem:[%s5628 + $0x910] sm:$0xff]
  %v5920 = vld [vmem:[%s5628 + $0x918] sm:$0xff]
  %v5921 = vld [vmem:[%s5628 + $0x920] sm:$0xff]
  %v5922 = vld [vmem:[%s5628 + $0x928] sm:$0xff]
  %v5923 = vld [vmem:[%s5628 + $0x930] sm:$0xff]
  %v5924 = vld [vmem:[%s5628 + $0x938] sm:$0xff]
  %v5925 = vld [vmem:[%s5628 + $0x940] sm:$0xff]
  %v5926 = vld [vmem:[%s5628 + $0x948] sm:$0xff]
  %v5927 = vld [vmem:[%s5628 + $0x950] sm:$0xff]
  %v5928 = vld [vmem:[%s5628 + $0x958] sm:$0xff]
  %v5929 = vld [vmem:[%s5628 + $0x960] sm:$0xff]
  %v5930 = vld [vmem:[%s5628 + $0x968] sm:$0xff]
  %v5931 = vld [vmem:[%s5628 + $0x970] sm:$0xff]
  %v5932 = vld [vmem:[%s5628 + $0x978] sm:$0xff]
  %v5933 = vld [vmem:[%s5628 + $0x980] sm:$0xff]
  %v5934 = vld [vmem:[%s5628 + $0x988] sm:$0xff]
  %v5935 = vld [vmem:[%s5628 + $0x990] sm:$0xff]
  %v5936 = vld [vmem:[%s5628 + $0x998] sm:$0xff]
  %v5937 = vld [vmem:[%s5628 + $0x9a0] sm:$0xff]
  %v5938 = vld [vmem:[%s5628 + $0x9a8] sm:$0xff]
  %v5939 = vld [vmem:[%s5628 + $0x9b0] sm:$0xff]
  %v5940 = vld [vmem:[%s5628 + $0x9b8] sm:$0xff]
  %v5941 = vld [vmem:[%s5628 + $0x9c0] sm:$0xff]
  %v5942 = vld [vmem:[%s5628 + $0x9c8] sm:$0xff]
  %v5943 = vld [vmem:[%s5628 + $0x9d0] sm:$0xff]
  %v5944 = vld [vmem:[%s5628 + $0x9d8] sm:$0xff]
  %v5945 = vld [vmem:[%s5628 + $0x9e0] sm:$0xff]
  %v5946 = vld [vmem:[%s5628 + $0x9e8] sm:$0xff]
  %v5947 = vld [vmem:[%s5628 + $0x9f0] sm:$0xff]
  %v5948 = vld [vmem:[%s5628 + $0x9f8] sm:$0xff]
  %v5949 = vld [vmem:[%s5628 + $0xa00] sm:$0xff]
  %v5950 = vld [vmem:[%s5628 + $0xa08] sm:$0xff]
  %v5951 = vld [vmem:[%s5628 + $0xa10] sm:$0xff]
  %v5952 = vld [vmem:[%s5628 + $0xa18] sm:$0xff]
  %v5953 = vld [vmem:[%s5628 + $0xa20] sm:$0xff]
  %v5954 = vld [vmem:[%s5628 + $0xa28] sm:$0xff]
  %v5955 = vld [vmem:[%s5628 + $0xa30] sm:$0xff]
  %v5956 = vld [vmem:[%s5628 + $0xa38] sm:$0xff]
  %v5957 = vld [vmem:[%s5628 + $0xa40] sm:$0xff]
  %v5958 = vld [vmem:[%s5628 + $0xa48] sm:$0xff]
  %v5959 = vld [vmem:[%s5628 + $0xa50] sm:$0xff]
  %v5960 = vld [vmem:[%s5628 + $0xa58] sm:$0xff]
  %v5961 = vld [vmem:[%s5628 + $0xa60] sm:$0xff]
  %v5962 = vld [vmem:[%s5628 + $0xa68] sm:$0xff]
  %v5963 = vld [vmem:[%s5628 + $0xa70] sm:$0xff]
  %v5964 = vld [vmem:[%s5628 + $0xa78] sm:$0xff]
  %v5965 = vld [vmem:[%s5628 + $0xa80] sm:$0xff]
  %v5966 = vld [vmem:[%s5628 + $0xa88] sm:$0xff]
  %v5967 = vld [vmem:[%s5628 + $0xa90] sm:$0xff]
  %v5968 = vld [vmem:[%s5628 + $0xa98] sm:$0xff]
  %v5969 = vld [vmem:[%s5628 + $0xaa0] sm:$0xff]
  %v5970 = vld [vmem:[%s5628 + $0xaa8] sm:$0xff]
  %v5971 = vld [vmem:[%s5628 + $0xab0] sm:$0xff]
  %v5972 = vld [vmem:[%s5628 + $0xab8] sm:$0xff]
  %v5973 = vld [vmem:[%s5628 + $0xac0] sm:$0xff]
  %v5974 = vld [vmem:[%s5628 + $0xac8] sm:$0xff]
  %v5975 = vld [vmem:[%s5628 + $0xad0] sm:$0xff]
  %v5976 = vld [vmem:[%s5628 + $0xad8] sm:$0xff]
  %v5977 = vld [vmem:[%s5628 + $0xae0] sm:$0xff]
  %v5978 = vld [vmem:[%s5628 + $0xae8] sm:$0xff]
  %v5979 = vld [vmem:[%s5628 + $0xaf0] sm:$0xff]
  %v5980 = vld [vmem:[%s5628 + $0xaf8] sm:$0xff]
  %v5981 = vld [vmem:[%s5628 + $0xb00] sm:$0xff]
  %v5982 = vld [vmem:[%s5628 + $0xb08] sm:$0xff]
  %v5983 = vld [vmem:[%s5628 + $0xb10] sm:$0xff]
  %v5984 = vld [vmem:[%s5628 + $0xb18] sm:$0xff]
  %v5985 = vld [vmem:[%s5628 + $0xb20] sm:$0xff]
  %v5986 = vld [vmem:[%s5628 + $0xb28] sm:$0xff]
  %v5987 = vld [vmem:[%s5628 + $0xb30] sm:$0xff]
  %v5988 = vld [vmem:[%s5628 + $0xb38] sm:$0xff]
  %v5999 = vrot.slane %v5618, 2
  %v6000 = vrot.slane %v3155, 2
  %v6001 = vsel %vm156, %v5999, %v6000
  %v6002 = vrot.slane %v5619, 2
  %v6003 = vrot.slane %v3156, 2
  %v6004 = vsel %vm156, %v6002, %v6003
  %v6005 = vrot.slane %v5620, 2
  %v6006 = vrot.slane %v3157, 2
  %v6007 = vsel %vm156, %v6005, %v6006
  %v6008 = vrot.slane %v5621, 2
  %v6009 = vrot.slane %v3158, 2
  %v6010 = vsel %vm156, %v6008, %v6009
  %v6011 = vrot.slane %v5622, 2
  %v6012 = vrot.slane %v3159, 2
  %v6013 = vsel %vm156, %v6011, %v6012
  %v6014 = vrot.slane %v3160, 2
  %v6015 = vsel %vm156, %v6000, %v6014
  %v6016 = vrot.slane %v3161, 2
  %v6017 = vsel %vm156, %v6003, %v6016
  %v6018 = vrot.slane %v3162, 2
  %v6019 = vsel %vm156, %v6006, %v6018
  %v6020 = vrot.slane %v3163, 2
  %v6021 = vsel %vm156, %v6009, %v6020
  %v6022 = vrot.slane %v3164, 2
  %v6023 = vsel %vm156, %v6012, %v6022
  %v6024 = vrot.slane %v3165, 2
  %v6025 = vsel %vm156, %v6014, %v6024
  %v6026 = vrot.slane %v3166, 2
  %v6027 = vsel %vm156, %v6016, %v6026
  %v6028 = vrot.slane %v3167, 2
  %v6029 = vsel %vm156, %v6018, %v6028
  %v6030 = vrot.slane %v3168, 2
  %v6031 = vsel %vm156, %v6020, %v6030
  %v6032 = vrot.slane %v3169, 2
  %v6033 = vsel %vm156, %v6022, %v6032
  %v6034 = vrot.slane %v5623, 2
  %v6035 = vsel %vm156, %v6024, %v6034
  %v6036 = vrot.slane %v5624, 2
  %v6037 = vsel %vm156, %v6026, %v6036
  %v6038 = vrot.slane %v5625, 2
  %v6039 = vsel %vm156, %v6028, %v6038
  %v6040 = vrot.slane %v5626, 2
  %v6041 = vsel %vm156, %v6030, %v6040
  %v6042 = vrot.slane %v5627, 2
  %v6043 = vsel %vm156, %v6032, %v6042
  %v6064 = vsel %vm3132, %v6013, 0
  %v6066 = vsel %vm3132, %v6023, 0
  %v6068 = vsel %vm3132, %v6033, 0
  %v6070 = vsel %vm3132, %v6043, 0
  %v6072 = vsel %vm3132, %v6042, 0
  %6074 = vmatpush.msra.mxu0 %v5704
  %6075 = vmatpush.msra.mxu0 %v5699
  %6076 = vmatpush.msra.mxu0 %v5694
  %6077 = vmatpush.msra.mxu0 %v5689
  %6078 = vmatpush.msra.mxu0 %v5684
  %6079 = vmatpush.msra.mxu0 %v5679
  %6080 = vmatpush.msra.mxu0 %v5674
  %6081 = vmatpush.msra.mxu0 %v5669
  %6082 = vmatpush.msra.mxu0 %v5664
  %6083 = vmatpush.msra.mxu0 %v5659
  %6084 = vmatpush.msra.mxu0 %v5654
  %6085 = vmatpush.msra.mxu0 %v5649
  %6086 = vmatpush.msra.mxu0 %v5644
  %6087 = vmatpush.msra.mxu0 %v5639
  %6088 = vmatpush.msra.mxu0 %v5634
  %6089 = vmatpush.msra.mxu0 %v5629
  %6090 = vmatmul.f32.gmra.mxu0 %v6001
  %v6091 = vpop.f32.mrf.mxu0
  %v6092 = vadd.f32 0.0, %v6091
  %6093 = vmatmul.f32.gmra.mxu0 %v6015
  %v6094 = vpop.f32.mrf.mxu0
  %v6095 = vadd.f32 0.0, %v6094
  %6096 = vmatmul.f32.gmra.mxu0 %v6025
  %v6097 = vpop.f32.mrf.mxu0
  %v6098 = vadd.f32 0.0, %v6097
  %6099 = vmatmul.f32.gmra.mxu0 %v6035
  %v6100 = vpop.f32.mrf.mxu0
  %v6101 = vadd.f32 0.0, %v6100
  %6102 = vmatmul.f32.gmra.mxu0 %v6034
  %v6103 = vpop.f32.mrf.mxu0
  %v6104 = vadd.f32 0.0, %v6103
  %6105 = vdwg.mxu0
  %6106 = vmatpush.msra.mxu0 %v5784
  %6107 = vmatpush.msra.mxu0 %v5779
  %6108 = vmatpush.msra.mxu0 %v5774
  %6109 = vmatpush.msra.mxu0 %v5769
  %6110 = vmatpush.msra.mxu0 %v5764
  %6111 = vmatpush.msra.mxu0 %v5759
  %6112 = vmatpush.msra.mxu0 %v5754
  %6113 = vmatpush.msra.mxu0 %v5749
  %6114 = vmatpush.msra.mxu0 %v5744
  %6115 = vmatpush.msra.mxu0 %v5739
  %6116 = vmatpush.msra.mxu0 %v5734
  %6117 = vmatpush.msra.mxu0 %v5729
  %6118 = vmatpush.msra.mxu0 %v5724
  %6119 = vmatpush.msra.mxu0 %v5719
  %6120 = vmatpush.msra.mxu0 %v5714
  %6121 = vmatpush.msra.mxu0 %v5709
  %6122 = vmatmul.f32.gmra.mxu0 %v6004
  %v6123 = vpop.f32.mrf.mxu0
  %v6124 = vadd.f32 %v6092, %v6123
  %6125 = vmatmul.f32.gmra.mxu0 %v6017
  %v6126 = vpop.f32.mrf.mxu0
  %v6127 = vadd.f32 %v6095, %v6126
  %6128 = vmatmul.f32.gmra.mxu0 %v6027
  %v6129 = vpop.f32.mrf.mxu0
  %v6130 = vadd.f32 %v6098, %v6129
  %6131 = vmatmul.f32.gmra.mxu0 %v6037
  %v6132 = vpop.f32.mrf.mxu0
  %v6133 = vadd.f32 %v6101, %v6132
  %6134 = vmatmul.f32.gmra.mxu0 %v6036
  %v6135 = vpop.f32.mrf.mxu0
  %v6136 = vadd.f32 %v6104, %v6135
  %6137 = vdwg.mxu0
  %6138 = vmatpush.msra.mxu0 %v5864
  %6139 = vmatpush.msra.mxu0 %v5859
  %6140 = vmatpush.msra.mxu0 %v5854
  %6141 = vmatpush.msra.mxu0 %v5849
  %6142 = vmatpush.msra.mxu0 %v5844
  %6143 = vmatpush.msra.mxu0 %v5839
  %6144 = vmatpush.msra.mxu0 %v5834
  %6145 = vmatpush.msra.mxu0 %v5829
  %6146 = vmatpush.msra.mxu0 %v5824
  %6147 = vmatpush.msra.mxu0 %v5819
  %6148 = vmatpush.msra.mxu0 %v5814
  %6149 = vmatpush.msra.mxu0 %v5809
  %6150 = vmatpush.msra.mxu0 %v5804
  %6151 = vmatpush.msra.mxu0 %v5799
  %6152 = vmatpush.msra.mxu0 %v5794
  %6153 = vmatpush.msra.mxu0 %v5789
  %6154 = vmatmul.f32.gmra.mxu0 %v6007
  %v6155 = vpop.f32.mrf.mxu0
  %v6156 = vadd.f32 %v6124, %v6155
  %6157 = vmatmul.f32.gmra.mxu0 %v6019
  %v6158 = vpop.f32.mrf.mxu0
  %v6159 = vadd.f32 %v6127, %v6158
  %6160 = vmatmul.f32.gmra.mxu0 %v6029
  %v6161 = vpop.f32.mrf.mxu0
  %v6162 = vadd.f32 %v6130, %v6161
  %6163 = vmatmul.f32.gmra.mxu0 %v6039
  %v6164 = vpop.f32.mrf.mxu0
  %v6165 = vadd.f32 %v6133, %v6164
  %6166 = vmatmul.f32.gmra.mxu0 %v6038
  %v6167 = vpop.f32.mrf.mxu0
  %v6168 = vadd.f32 %v6136, %v6167
  %6169 = vdwg.mxu0
  %6170 = vmatpush.msra.mxu0 %v5944
  %6171 = vmatpush.msra.mxu0 %v5939
  %6172 = vmatpush.msra.mxu0 %v5934
  %6173 = vmatpush.msra.mxu0 %v5929
  %6174 = vmatpush.msra.mxu0 %v5924
  %6175 = vmatpush.msra.mxu0 %v5919
  %6176 = vmatpush.msra.mxu0 %v5914
  %6177 = vmatpush.msra.mxu0 %v5909
  %6178 = vmatpush.msra.mxu0 %v5904
  %6179 = vmatpush.msra.mxu0 %v5899
  %6180 = vmatpush.msra.mxu0 %v5894
  %6181 = vmatpush.msra.mxu0 %v5889
  %6182 = vmatpush.msra.mxu0 %v5884
  %6183 = vmatpush.msra.mxu0 %v5879
  %6184 = vmatpush.msra.mxu0 %v5874
  %6185 = vmatpush.msra.mxu0 %v5869
  %6186 = vmatmul.f32.gmra.mxu0 %v6010
  %v6187 = vpop.f32.mrf.mxu0
  %v6188 = vadd.f32 %v6156, %v6187
  %6189 = vmatmul.f32.gmra.mxu0 %v6021
  %v6190 = vpop.f32.mrf.mxu0
  %v6191 = vadd.f32 %v6159, %v6190
  %6192 = vmatmul.f32.gmra.mxu0 %v6031
  %v6193 = vpop.f32.mrf.mxu0
  %v6194 = vadd.f32 %v6162, %v6193
  %6195 = vmatmul.f32.gmra.mxu0 %v6041
  %v6196 = vpop.f32.mrf.mxu0
  %v6197 = vadd.f32 %v6165, %v6196
  %6198 = vmatmul.f32.gmra.mxu0 %v6040
  %v6199 = vpop.f32.mrf.mxu0
  %v6200 = vadd.f32 %v6168, %v6199
  %6201 = vdwg.mxu0
  %6202 = vmatpush.msra.mxu0 0.0
  %6203 = vmatpush.msra.mxu0 0.0
  %6204 = vmatpush.msra.mxu0 0.0
  %6205 = vmatpush.msra.mxu0 0.0
  %6206 = vmatpush.msra.mxu0 0.0
  %6207 = vmatpush.msra.mxu0 0.0
  %6208 = vmatpush.msra.mxu0 0.0
  %6209 = vmatpush.msra.mxu0 0.0
  %6210 = vmatpush.msra.mxu0 %v5984
  %6211 = vmatpush.msra.mxu0 %v5979
  %6212 = vmatpush.msra.mxu0 %v5974
  %6213 = vmatpush.msra.mxu0 %v5969
  %6214 = vmatpush.msra.mxu0 %v5964
  %6215 = vmatpush.msra.mxu0 %v5959
  %6216 = vmatpush.msra.mxu0 %v5954
  %6217 = vmatpush.msra.mxu0 %v5949
  %6218 = vmatmul.f32.gmra.mxu0 %v6064
  %v6219 = vpop.f32.mrf.mxu0
  %v6220 = vadd.f32 %v6188, %v6219
  %6221 = vmatmul.f32.gmra.mxu0 %v6066
  %v6222 = vpop.f32.mrf.mxu0
  %v6223 = vadd.f32 %v6191, %v6222
  %6224 = vmatmul.f32.gmra.mxu0 %v6068
  %v6225 = vpop.f32.mrf.mxu0
  %v6226 = vadd.f32 %v6194, %v6225
  %6227 = vmatmul.f32.gmra.mxu0 %v6070
  %v6228 = vpop.f32.mrf.mxu0
  %v6229 = vadd.f32 %v6197, %v6228
  %6230 = vmatmul.f32.gmra.mxu0 %v6072
  %v6231 = vpop.f32.mrf.mxu0
  %v6232 = vadd.f32 %v6200, %v6231
  %6233 = vdwg.mxu0
  %6234 = vmatpush.msra.mxu0 %v5705
  %6235 = vmatpush.msra.mxu0 %v5700
  %6236 = vmatpush.msra.mxu0 %v5695
  %6237 = vmatpush.msra.mxu0 %v5690
  %6238 = vmatpush.msra.mxu0 %v5685
  %6239 = vmatpush.msra.mxu0 %v5680
  %6240 = vmatpush.msra.mxu0 %v5675
  %6241 = vmatpush.msra.mxu0 %v5670
  %6242 = vmatpush.msra.mxu0 %v5665
  %6243 = vmatpush.msra.mxu0 %v5660
  %6244 = vmatpush.msra.mxu0 %v5655
  %6245 = vmatpush.msra.mxu0 %v5650
  %6246 = vmatpush.msra.mxu0 %v5645
  %6247 = vmatpush.msra.mxu0 %v5640
  %6248 = vmatpush.msra.mxu0 %v5635
  %6249 = vmatpush.msra.mxu0 %v5630
  %6250 = vmatmul.f32.gmra.mxu0 %v6001
  %v6251 = vpop.f32.mrf.mxu0
  %v6252 = vadd.f32 0.0, %v6251
  %6253 = vmatmul.f32.gmra.mxu0 %v6015
  %v6254 = vpop.f32.mrf.mxu0
  %v6255 = vadd.f32 0.0, %v6254
  %6256 = vmatmul.f32.gmra.mxu0 %v6025
  %v6257 = vpop.f32.mrf.mxu0
  %v6258 = vadd.f32 0.0, %v6257
  %6259 = vmatmul.f32.gmra.mxu0 %v6035
  %v6260 = vpop.f32.mrf.mxu0
  %v6261 = vadd.f32 0.0, %v6260
  %6262 = vmatmul.f32.gmra.mxu0 %v6034
  %v6263 = vpop.f32.mrf.mxu0
  %v6264 = vadd.f32 0.0, %v6263
  %6265 = vdwg.mxu0
  %6266 = vmatpush.msra.mxu0 %v5785
  %6267 = vmatpush.msra.mxu0 %v5780
  %6268 = vmatpush.msra.mxu0 %v5775
  %6269 = vmatpush.msra.mxu0 %v5770
  %6270 = vmatpush.msra.mxu0 %v5765
  %6271 = vmatpush.msra.mxu0 %v5760
  %6272 = vmatpush.msra.mxu0 %v5755
  %6273 = vmatpush.msra.mxu0 %v5750
  %6274 = vmatpush.msra.mxu0 %v5745
  %6275 = vmatpush.msra.mxu0 %v5740
  %6276 = vmatpush.msra.mxu0 %v5735
  %6277 = vmatpush.msra.mxu0 %v5730
  %6278 = vmatpush.msra.mxu0 %v5725
  %6279 = vmatpush.msra.mxu0 %v5720
  %6280 = vmatpush.msra.mxu0 %v5715
  %6281 = vmatpush.msra.mxu0 %v5710
  %6282 = vmatmul.f32.gmra.mxu0 %v6004
  %v6283 = vpop.f32.mrf.mxu0
  %v6284 = vadd.f32 %v6252, %v6283
  %6285 = vmatmul.f32.gmra.mxu0 %v6017
  %v6286 = vpop.f32.mrf.mxu0
  %v6287 = vadd.f32 %v6255, %v6286
  %6288 = vmatmul.f32.gmra.mxu0 %v6027
  %v6289 = vpop.f32.mrf.mxu0
  %v6290 = vadd.f32 %v6258, %v6289
  %6291 = vmatmul.f32.gmra.mxu0 %v6037
  %v6292 = vpop.f32.mrf.mxu0
  %v6293 = vadd.f32 %v6261, %v6292
  %6294 = vmatmul.f32.gmra.mxu0 %v6036
  %v6295 = vpop.f32.mrf.mxu0
  %v6296 = vadd.f32 %v6264, %v6295
  %6297 = vdwg.mxu0
  %6298 = vmatpush.msra.mxu0 %v5865
  %6299 = vmatpush.msra.mxu0 %v5860
  %6300 = vmatpush.msra.mxu0 %v5855
  %6301 = vmatpush.msra.mxu0 %v5850
  %6302 = vmatpush.msra.mxu0 %v5845
  %6303 = vmatpush.msra.mxu0 %v5840
  %6304 = vmatpush.msra.mxu0 %v5835
  %6305 = vmatpush.msra.mxu0 %v5830
  %6306 = vmatpush.msra.mxu0 %v5825
  %6307 = vmatpush.msra.mxu0 %v5820
  %6308 = vmatpush.msra.mxu0 %v5815
  %6309 = vmatpush.msra.mxu0 %v5810
  %6310 = vmatpush.msra.mxu0 %v5805
  %6311 = vmatpush.msra.mxu0 %v5800
  %6312 = vmatpush.msra.mxu0 %v5795
  %6313 = vmatpush.msra.mxu0 %v5790
  %6314 = vmatmul.f32.gmra.mxu0 %v6007
  %v6315 = vpop.f32.mrf.mxu0
  %v6316 = vadd.f32 %v6284, %v6315
  %6317 = vmatmul.f32.gmra.mxu0 %v6019
  %v6318 = vpop.f32.mrf.mxu0
  %v6319 = vadd.f32 %v6287, %v6318
  %6320 = vmatmul.f32.gmra.mxu0 %v6029
  %v6321 = vpop.f32.mrf.mxu0
  %v6322 = vadd.f32 %v6290, %v6321
  %6323 = vmatmul.f32.gmra.mxu0 %v6039
  %v6324 = vpop.f32.mrf.mxu0
  %v6325 = vadd.f32 %v6293, %v6324
  %6326 = vmatmul.f32.gmra.mxu0 %v6038
  %v6327 = vpop.f32.mrf.mxu0
  %v6328 = vadd.f32 %v6296, %v6327
  %6329 = vdwg.mxu0
  %6330 = vmatpush.msra.mxu0 %v5945
  %6331 = vmatpush.msra.mxu0 %v5940
  %6332 = vmatpush.msra.mxu0 %v5935
  %6333 = vmatpush.msra.mxu0 %v5930
  %6334 = vmatpush.msra.mxu0 %v5925
  %6335 = vmatpush.msra.mxu0 %v5920
  %6336 = vmatpush.msra.mxu0 %v5915
  %6337 = vmatpush.msra.mxu0 %v5910
  %6338 = vmatpush.msra.mxu0 %v5905
  %6339 = vmatpush.msra.mxu0 %v5900
  %6340 = vmatpush.msra.mxu0 %v5895
  %6341 = vmatpush.msra.mxu0 %v5890
  %6342 = vmatpush.msra.mxu0 %v5885
  %6343 = vmatpush.msra.mxu0 %v5880
  %6344 = vmatpush.msra.mxu0 %v5875
  %6345 = vmatpush.msra.mxu0 %v5870
  %6346 = vmatmul.f32.gmra.mxu0 %v6010
  %v6347 = vpop.f32.mrf.mxu0
  %v6348 = vadd.f32 %v6316, %v6347
  %6349 = vmatmul.f32.gmra.mxu0 %v6021
  %v6350 = vpop.f32.mrf.mxu0
  %v6351 = vadd.f32 %v6319, %v6350
  %6352 = vmatmul.f32.gmra.mxu0 %v6031
  %v6353 = vpop.f32.mrf.mxu0
  %v6354 = vadd.f32 %v6322, %v6353
  %6355 = vmatmul.f32.gmra.mxu0 %v6041
  %v6356 = vpop.f32.mrf.mxu0
  %v6357 = vadd.f32 %v6325, %v6356
  %6358 = vmatmul.f32.gmra.mxu0 %v6040
  %v6359 = vpop.f32.mrf.mxu0
  %v6360 = vadd.f32 %v6328, %v6359
  %6361 = vdwg.mxu0
  %6362 = vmatpush.msra.mxu0 0.0
  %6363 = vmatpush.msra.mxu0 0.0
  %6364 = vmatpush.msra.mxu0 0.0
  %6365 = vmatpush.msra.mxu0 0.0
  %6366 = vmatpush.msra.mxu0 0.0
  %6367 = vmatpush.msra.mxu0 0.0
  %6368 = vmatpush.msra.mxu0 0.0
  %6369 = vmatpush.msra.mxu0 0.0
  %6370 = vmatpush.msra.mxu0 %v5985
  %6371 = vmatpush.msra.mxu0 %v5980
  %6372 = vmatpush.msra.mxu0 %v5975
  %6373 = vmatpush.msra.mxu0 %v5970
  %6374 = vmatpush.msra.mxu0 %v5965
  %6375 = vmatpush.msra.mxu0 %v5960
  %6376 = vmatpush.msra.mxu0 %v5955
  %6377 = vmatpush.msra.mxu0 %v5950
  %6378 = vmatmul.f32.gmra.mxu0 %v6064
  %v6379 = vpop.f32.mrf.mxu0
  %v6380 = vadd.f32 %v6348, %v6379
  %6381 = vmatmul.f32.gmra.mxu0 %v6066
  %v6382 = vpop.f32.mrf.mxu0
  %v6383 = vadd.f32 %v6351, %v6382
  %6384 = vmatmul.f32.gmra.mxu0 %v6068
  %v6385 = vpop.f32.mrf.mxu0
  %v6386 = vadd.f32 %v6354, %v6385
  %6387 = vmatmul.f32.gmra.mxu0 %v6070
  %v6388 = vpop.f32.mrf.mxu0
  %v6389 = vadd.f32 %v6357, %v6388
  %6390 = vmatmul.f32.gmra.mxu0 %v6072
  %v6391 = vpop.f32.mrf.mxu0
  %v6392 = vadd.f32 %v6360, %v6391
  %6393 = vdwg.mxu0
  %6394 = vmatpush.msra.mxu0 %v5706
  %6395 = vmatpush.msra.mxu0 %v5701
  %6396 = vmatpush.msra.mxu0 %v5696
  %6397 = vmatpush.msra.mxu0 %v5691
  %6398 = vmatpush.msra.mxu0 %v5686
  %6399 = vmatpush.msra.mxu0 %v5681
  %6400 = vmatpush.msra.mxu0 %v5676
  %6401 = vmatpush.msra.mxu0 %v5671
  %6402 = vmatpush.msra.mxu0 %v5666
  %6403 = vmatpush.msra.mxu0 %v5661
  %6404 = vmatpush.msra.mxu0 %v5656
  %6405 = vmatpush.msra.mxu0 %v5651
  %6406 = vmatpush.msra.mxu0 %v5646
  %6407 = vmatpush.msra.mxu0 %v5641
  %6408 = vmatpush.msra.mxu0 %v5636
  %6409 = vmatpush.msra.mxu0 %v5631
  %6410 = vmatmul.f32.gmra.mxu0 %v6001
  %v6411 = vpop.f32.mrf.mxu0
  %v6412 = vadd.f32 0.0, %v6411
  %6413 = vmatmul.f32.gmra.mxu0 %v6015
  %v6414 = vpop.f32.mrf.mxu0
  %v6415 = vadd.f32 0.0, %v6414
  %6416 = vmatmul.f32.gmra.mxu0 %v6025
  %v6417 = vpop.f32.mrf.mxu0
  %v6418 = vadd.f32 0.0, %v6417
  %6419 = vmatmul.f32.gmra.mxu0 %v6035
  %v6420 = vpop.f32.mrf.mxu0
  %v6421 = vadd.f32 0.0, %v6420
  %6422 = vmatmul.f32.gmra.mxu0 %v6034
  %v6423 = vpop.f32.mrf.mxu0
  %v6424 = vadd.f32 0.0, %v6423
  %6425 = vdwg.mxu0
  %6426 = vmatpush.msra.mxu0 %v5786
  %6427 = vmatpush.msra.mxu0 %v5781
  %6428 = vmatpush.msra.mxu0 %v5776
  %6429 = vmatpush.msra.mxu0 %v5771
  %6430 = vmatpush.msra.mxu0 %v5766
  %6431 = vmatpush.msra.mxu0 %v5761
  %6432 = vmatpush.msra.mxu0 %v5756
  %6433 = vmatpush.msra.mxu0 %v5751
  %6434 = vmatpush.msra.mxu0 %v5746
  %6435 = vmatpush.msra.mxu0 %v5741
  %6436 = vmatpush.msra.mxu0 %v5736
  %6437 = vmatpush.msra.mxu0 %v5731
  %6438 = vmatpush.msra.mxu0 %v5726
  %6439 = vmatpush.msra.mxu0 %v5721
  %6440 = vmatpush.msra.mxu0 %v5716
  %6441 = vmatpush.msra.mxu0 %v5711
  %6442 = vmatmul.f32.gmra.mxu0 %v6004
  %v6443 = vpop.f32.mrf.mxu0
  %v6444 = vadd.f32 %v6412, %v6443
  %6445 = vmatmul.f32.gmra.mxu0 %v6017
  %v6446 = vpop.f32.mrf.mxu0
  %v6447 = vadd.f32 %v6415, %v6446
  %6448 = vmatmul.f32.gmra.mxu0 %v6027
  %v6449 = vpop.f32.mrf.mxu0
  %v6450 = vadd.f32 %v6418, %v6449
  %6451 = vmatmul.f32.gmra.mxu0 %v6037
  %v6452 = vpop.f32.mrf.mxu0
  %v6453 = vadd.f32 %v6421, %v6452
  %6454 = vmatmul.f32.gmra.mxu0 %v6036
  %v6455 = vpop.f32.mrf.mxu0
  %v6456 = vadd.f32 %v6424, %v6455
  %6457 = vdwg.mxu0
  %6458 = vmatpush.msra.mxu0 %v5866
  %6459 = vmatpush.msra.mxu0 %v5861
  %6460 = vmatpush.msra.mxu0 %v5856
  %6461 = vmatpush.msra.mxu0 %v5851
  %6462 = vmatpush.msra.mxu0 %v5846
  %6463 = vmatpush.msra.mxu0 %v5841
  %6464 = vmatpush.msra.mxu0 %v5836
  %6465 = vmatpush.msra.mxu0 %v5831
  %6466 = vmatpush.msra.mxu0 %v5826
  %6467 = vmatpush.msra.mxu0 %v5821
  %6468 = vmatpush.msra.mxu0 %v5816
  %6469 = vmatpush.msra.mxu0 %v5811
  %6470 = vmatpush.msra.mxu0 %v5806
  %6471 = vmatpush.msra.mxu0 %v5801
  %6472 = vmatpush.msra.mxu0 %v5796
  %6473 = vmatpush.msra.mxu0 %v5791
  %6474 = vmatmul.f32.gmra.mxu0 %v6007
  %v6475 = vpop.f32.mrf.mxu0
  %v6476 = vadd.f32 %v6444, %v6475
  %6477 = vmatmul.f32.gmra.mxu0 %v6019
  %v6478 = vpop.f32.mrf.mxu0
  %v6479 = vadd.f32 %v6447, %v6478
  %6480 = vmatmul.f32.gmra.mxu0 %v6029
  %v6481 = vpop.f32.mrf.mxu0
  %v6482 = vadd.f32 %v6450, %v6481
  %6483 = vmatmul.f32.gmra.mxu0 %v6039
  %v6484 = vpop.f32.mrf.mxu0
  %v6485 = vadd.f32 %v6453, %v6484
  %6486 = vmatmul.f32.gmra.mxu0 %v6038
  %v6487 = vpop.f32.mrf.mxu0
  %v6488 = vadd.f32 %v6456, %v6487
  %6489 = vdwg.mxu0
  %6490 = vmatpush.msra.mxu0 %v5946
  %6491 = vmatpush.msra.mxu0 %v5941
  %6492 = vmatpush.msra.mxu0 %v5936
  %6493 = vmatpush.msra.mxu0 %v5931
  %6494 = vmatpush.msra.mxu0 %v5926
  %6495 = vmatpush.msra.mxu0 %v5921
  %6496 = vmatpush.msra.mxu0 %v5916
  %6497 = vmatpush.msra.mxu0 %v5911
  %6498 = vmatpush.msra.mxu0 %v5906
  %6499 = vmatpush.msra.mxu0 %v5901
  %6500 = vmatpush.msra.mxu0 %v5896
  %6501 = vmatpush.msra.mxu0 %v5891
  %6502 = vmatpush.msra.mxu0 %v5886
  %6503 = vmatpush.msra.mxu0 %v5881
  %6504 = vmatpush.msra.mxu0 %v5876
  %6505 = vmatpush.msra.mxu0 %v5871
  %6506 = vmatmul.f32.gmra.mxu0 %v6010
  %v6507 = vpop.f32.mrf.mxu0
  %v6508 = vadd.f32 %v6476, %v6507
  %6509 = vmatmul.f32.gmra.mxu0 %v6021
  %v6510 = vpop.f32.mrf.mxu0
  %v6511 = vadd.f32 %v6479, %v6510
  %6512 = vmatmul.f32.gmra.mxu0 %v6031
  %v6513 = vpop.f32.mrf.mxu0
  %v6514 = vadd.f32 %v6482, %v6513
  %6515 = vmatmul.f32.gmra.mxu0 %v6041
  %v6516 = vpop.f32.mrf.mxu0
  %v6517 = vadd.f32 %v6485, %v6516
  %6518 = vmatmul.f32.gmra.mxu0 %v6040
  %v6519 = vpop.f32.mrf.mxu0
  %v6520 = vadd.f32 %v6488, %v6519
  %6521 = vdwg.mxu0
  %6522 = vmatpush.msra.mxu0 0.0
  %6523 = vmatpush.msra.mxu0 0.0
  %6524 = vmatpush.msra.mxu0 0.0
  %6525 = vmatpush.msra.mxu0 0.0
  %6526 = vmatpush.msra.mxu0 0.0
  %6527 = vmatpush.msra.mxu0 0.0
  %6528 = vmatpush.msra.mxu0 0.0
  %6529 = vmatpush.msra.mxu0 0.0
  %6530 = vmatpush.msra.mxu0 %v5986
  %6531 = vmatpush.msra.mxu0 %v5981
  %6532 = vmatpush.msra.mxu0 %v5976
  %6533 = vmatpush.msra.mxu0 %v5971
  %6534 = vmatpush.msra.mxu0 %v5966
  %6535 = vmatpush.msra.mxu0 %v5961
  %6536 = vmatpush.msra.mxu0 %v5956
  %6537 = vmatpush.msra.mxu0 %v5951
  %6538 = vmatmul.f32.gmra.mxu0 %v6064
  %v6539 = vpop.f32.mrf.mxu0
  %v6540 = vadd.f32 %v6508, %v6539
  %6541 = vmatmul.f32.gmra.mxu0 %v6066
  %v6542 = vpop.f32.mrf.mxu0
  %v6543 = vadd.f32 %v6511, %v6542
  %6544 = vmatmul.f32.gmra.mxu0 %v6068
  %v6545 = vpop.f32.mrf.mxu0
  %v6546 = vadd.f32 %v6514, %v6545
  %6547 = vmatmul.f32.gmra.mxu0 %v6070
  %v6548 = vpop.f32.mrf.mxu0
  %v6549 = vadd.f32 %v6517, %v6548
  %6550 = vmatmul.f32.gmra.mxu0 %v6072
  %v6551 = vpop.f32.mrf.mxu0
  %v6552 = vadd.f32 %v6520, %v6551
  %6553 = vdwg.mxu0
  %6554 = vmatpush.msra.mxu0 %v5707
  %6555 = vmatpush.msra.mxu0 %v5702
  %6556 = vmatpush.msra.mxu0 %v5697
  %6557 = vmatpush.msra.mxu0 %v5692
  %6558 = vmatpush.msra.mxu0 %v5687
  %6559 = vmatpush.msra.mxu0 %v5682
  %6560 = vmatpush.msra.mxu0 %v5677
  %6561 = vmatpush.msra.mxu0 %v5672
  %6562 = vmatpush.msra.mxu0 %v5667
  %6563 = vmatpush.msra.mxu0 %v5662
  %6564 = vmatpush.msra.mxu0 %v5657
  %6565 = vmatpush.msra.mxu0 %v5652
  %6566 = vmatpush.msra.mxu0 %v5647
  %6567 = vmatpush.msra.mxu0 %v5642
  %6568 = vmatpush.msra.mxu0 %v5637
  %6569 = vmatpush.msra.mxu0 %v5632
  %6570 = vmatmul.f32.gmra.mxu0 %v6001
  %v6571 = vpop.f32.mrf.mxu0
  %v6572 = vadd.f32 0.0, %v6571
  %6573 = vmatmul.f32.gmra.mxu0 %v6015
  %v6574 = vpop.f32.mrf.mxu0
  %v6575 = vadd.f32 0.0, %v6574
  %6576 = vmatmul.f32.gmra.mxu0 %v6025
  %v6577 = vpop.f32.mrf.mxu0
  %v6578 = vadd.f32 0.0, %v6577
  %6579 = vmatmul.f32.gmra.mxu0 %v6035
  %v6580 = vpop.f32.mrf.mxu0
  %v6581 = vadd.f32 0.0, %v6580
  %6582 = vmatmul.f32.gmra.mxu0 %v6034
  %v6583 = vpop.f32.mrf.mxu0
  %v6584 = vadd.f32 0.0, %v6583
  %6585 = vdwg.mxu0
  %6586 = vmatpush.msra.mxu0 %v5787
  %6587 = vmatpush.msra.mxu0 %v5782
  %6588 = vmatpush.msra.mxu0 %v5777
  %6589 = vmatpush.msra.mxu0 %v5772
  %6590 = vmatpush.msra.mxu0 %v5767
  %6591 = vmatpush.msra.mxu0 %v5762
  %6592 = vmatpush.msra.mxu0 %v5757
  %6593 = vmatpush.msra.mxu0 %v5752
  %6594 = vmatpush.msra.mxu0 %v5747
  %6595 = vmatpush.msra.mxu0 %v5742
  %6596 = vmatpush.msra.mxu0 %v5737
  %6597 = vmatpush.msra.mxu0 %v5732
  %6598 = vmatpush.msra.mxu0 %v5727
  %6599 = vmatpush.msra.mxu0 %v5722
  %6600 = vmatpush.msra.mxu0 %v5717
  %6601 = vmatpush.msra.mxu0 %v5712
  %6602 = vmatmul.f32.gmra.mxu0 %v6004
  %v6603 = vpop.f32.mrf.mxu0
  %v6604 = vadd.f32 %v6572, %v6603
  %6605 = vmatmul.f32.gmra.mxu0 %v6017
  %v6606 = vpop.f32.mrf.mxu0
  %v6607 = vadd.f32 %v6575, %v6606
  %6608 = vmatmul.f32.gmra.mxu0 %v6027
  %v6609 = vpop.f32.mrf.mxu0
  %v6610 = vadd.f32 %v6578, %v6609
  %6611 = vmatmul.f32.gmra.mxu0 %v6037
  %v6612 = vpop.f32.mrf.mxu0
  %v6613 = vadd.f32 %v6581, %v6612
  %6614 = vmatmul.f32.gmra.mxu0 %v6036
  %v6615 = vpop.f32.mrf.mxu0
  %v6616 = vadd.f32 %v6584, %v6615
  %6617 = vdwg.mxu0
  %6618 = vmatpush.msra.mxu0 %v5867
  %6619 = vmatpush.msra.mxu0 %v5862
  %6620 = vmatpush.msra.mxu0 %v5857
  %6621 = vmatpush.msra.mxu0 %v5852
  %6622 = vmatpush.msra.mxu0 %v5847
  %6623 = vmatpush.msra.mxu0 %v5842
  %6624 = vmatpush.msra.mxu0 %v5837
  %6625 = vmatpush.msra.mxu0 %v5832
  %6626 = vmatpush.msra.mxu0 %v5827
  %6627 = vmatpush.msra.mxu0 %v5822
  %6628 = vmatpush.msra.mxu0 %v5817
  %6629 = vmatpush.msra.mxu0 %v5812
  %6630 = vmatpush.msra.mxu0 %v5807
  %6631 = vmatpush.msra.mxu0 %v5802
  %6632 = vmatpush.msra.mxu0 %v5797
  %6633 = vmatpush.msra.mxu0 %v5792
  %6634 = vmatmul.f32.gmra.mxu0 %v6007
  %v6635 = vpop.f32.mrf.mxu0
  %v6636 = vadd.f32 %v6604, %v6635
  %6637 = vmatmul.f32.gmra.mxu0 %v6019
  %v6638 = vpop.f32.mrf.mxu0
  %v6639 = vadd.f32 %v6607, %v6638
  %6640 = vmatmul.f32.gmra.mxu0 %v6029
  %v6641 = vpop.f32.mrf.mxu0
  %v6642 = vadd.f32 %v6610, %v6641
  %6643 = vmatmul.f32.gmra.mxu0 %v6039
  %v6644 = vpop.f32.mrf.mxu0
  %v6645 = vadd.f32 %v6613, %v6644
  %6646 = vmatmul.f32.gmra.mxu0 %v6038
  %v6647 = vpop.f32.mrf.mxu0
  %v6648 = vadd.f32 %v6616, %v6647
  %6649 = vdwg.mxu0
  %6650 = vmatpush.msra.mxu0 %v5947
  %6651 = vmatpush.msra.mxu0 %v5942
  %6652 = vmatpush.msra.mxu0 %v5937
  %6653 = vmatpush.msra.mxu0 %v5932
  %6654 = vmatpush.msra.mxu0 %v5927
  %6655 = vmatpush.msra.mxu0 %v5922
  %6656 = vmatpush.msra.mxu0 %v5917
  %6657 = vmatpush.msra.mxu0 %v5912
  %6658 = vmatpush.msra.mxu0 %v5907
  %6659 = vmatpush.msra.mxu0 %v5902
  %6660 = vmatpush.msra.mxu0 %v5897
  %6661 = vmatpush.msra.mxu0 %v5892
  %6662 = vmatpush.msra.mxu0 %v5887
  %6663 = vmatpush.msra.mxu0 %v5882
  %6664 = vmatpush.msra.mxu0 %v5877
  %6665 = vmatpush.msra.mxu0 %v5872
  %6666 = vmatmul.f32.gmra.mxu0 %v6010
  %v6667 = vpop.f32.mrf.mxu0
  %v6668 = vadd.f32 %v6636, %v6667
  %6669 = vmatmul.f32.gmra.mxu0 %v6021
  %v6670 = vpop.f32.mrf.mxu0
  %v6671 = vadd.f32 %v6639, %v6670
  %6672 = vmatmul.f32.gmra.mxu0 %v6031
  %v6673 = vpop.f32.mrf.mxu0
  %v6674 = vadd.f32 %v6642, %v6673
  %6675 = vmatmul.f32.gmra.mxu0 %v6041
  %v6676 = vpop.f32.mrf.mxu0
  %v6677 = vadd.f32 %v6645, %v6676
  %6678 = vmatmul.f32.gmra.mxu0 %v6040
  %v6679 = vpop.f32.mrf.mxu0
  %v6680 = vadd.f32 %v6648, %v6679
  %6681 = vdwg.mxu0
  %6682 = vmatpush.msra.mxu0 0.0
  %6683 = vmatpush.msra.mxu0 0.0
  %6684 = vmatpush.msra.mxu0 0.0
  %6685 = vmatpush.msra.mxu0 0.0
  %6686 = vmatpush.msra.mxu0 0.0
  %6687 = vmatpush.msra.mxu0 0.0
  %6688 = vmatpush.msra.mxu0 0.0
  %6689 = vmatpush.msra.mxu0 0.0
  %6690 = vmatpush.msra.mxu0 %v5987
  %6691 = vmatpush.msra.mxu0 %v5982
  %6692 = vmatpush.msra.mxu0 %v5977
  %6693 = vmatpush.msra.mxu0 %v5972
  %6694 = vmatpush.msra.mxu0 %v5967
  %6695 = vmatpush.msra.mxu0 %v5962
  %6696 = vmatpush.msra.mxu0 %v5957
  %6697 = vmatpush.msra.mxu0 %v5952
  %6698 = vmatmul.f32.gmra.mxu0 %v6064
  %v6699 = vpop.f32.mrf.mxu0
  %v6700 = vadd.f32 %v6668, %v6699
  %6701 = vmatmul.f32.gmra.mxu0 %v6066
  %v6702 = vpop.f32.mrf.mxu0
  %v6703 = vadd.f32 %v6671, %v6702
  %6704 = vmatmul.f32.gmra.mxu0 %v6068
  %v6705 = vpop.f32.mrf.mxu0
  %v6706 = vadd.f32 %v6674, %v6705
  %6707 = vmatmul.f32.gmra.mxu0 %v6070
  %v6708 = vpop.f32.mrf.mxu0
  %v6709 = vadd.f32 %v6677, %v6708
  %6710 = vmatmul.f32.gmra.mxu0 %v6072
  %v6711 = vpop.f32.mrf.mxu0
  %v6712 = vadd.f32 %v6680, %v6711
  %6713 = vdwg.mxu0
  %6714 = vmatpush.msra.mxu0 %v5708
  %6715 = vmatpush.msra.mxu0 %v5703
  %6716 = vmatpush.msra.mxu0 %v5698
  %6717 = vmatpush.msra.mxu0 %v5693
  %6718 = vmatpush.msra.mxu0 %v5688
  %6719 = vmatpush.msra.mxu0 %v5683
  %6720 = vmatpush.msra.mxu0 %v5678
  %6721 = vmatpush.msra.mxu0 %v5673
  %6722 = vmatpush.msra.mxu0 %v5668
  %6723 = vmatpush.msra.mxu0 %v5663
  %6724 = vmatpush.msra.mxu0 %v5658
  %6725 = vmatpush.msra.mxu0 %v5653
  %6726 = vmatpush.msra.mxu0 %v5648
  %6727 = vmatpush.msra.mxu0 %v5643
  %6728 = vmatpush.msra.mxu0 %v5638
  %6729 = vmatpush.msra.mxu0 %v5633
  %6730 = vmatmul.f32.gmra.mxu0 %v6001
  %v6731 = vpop.f32.mrf.mxu0
  %v6732 = vadd.f32 0.0, %v6731
  %6733 = vmatmul.f32.gmra.mxu0 %v6015
  %v6734 = vpop.f32.mrf.mxu0
  %v6735 = vadd.f32 0.0, %v6734
  %6736 = vmatmul.f32.gmra.mxu0 %v6025
  %v6737 = vpop.f32.mrf.mxu0
  %v6738 = vadd.f32 0.0, %v6737
  %6739 = vmatmul.f32.gmra.mxu0 %v6035
  %v6740 = vpop.f32.mrf.mxu0
  %v6741 = vadd.f32 0.0, %v6740
  %6742 = vmatmul.f32.gmra.mxu0 %v6034
  %v6743 = vpop.f32.mrf.mxu0
  %v6744 = vadd.f32 0.0, %v6743
  %6745 = vdwg.mxu0
  %6746 = vmatpush.msra.mxu0 %v5788
  %6747 = vmatpush.msra.mxu0 %v5783
  %6748 = vmatpush.msra.mxu0 %v5778
  %6749 = vmatpush.msra.mxu0 %v5773
  %6750 = vmatpush.msra.mxu0 %v5768
  %6751 = vmatpush.msra.mxu0 %v5763
  %6752 = vmatpush.msra.mxu0 %v5758
  %6753 = vmatpush.msra.mxu0 %v5753
  %6754 = vmatpush.msra.mxu0 %v5748
  %6755 = vmatpush.msra.mxu0 %v5743
  %6756 = vmatpush.msra.mxu0 %v5738
  %6757 = vmatpush.msra.mxu0 %v5733
  %6758 = vmatpush.msra.mxu0 %v5728
  %6759 = vmatpush.msra.mxu0 %v5723
  %6760 = vmatpush.msra.mxu0 %v5718
  %6761 = vmatpush.msra.mxu0 %v5713
  %6762 = vmatmul.f32.gmra.mxu0 %v6004
  %v6763 = vpop.f32.mrf.mxu0
  %v6764 = vadd.f32 %v6732, %v6763
  %6765 = vmatmul.f32.gmra.mxu0 %v6017
  %v6766 = vpop.f32.mrf.mxu0
  %v6767 = vadd.f32 %v6735, %v6766
  %6768 = vmatmul.f32.gmra.mxu0 %v6027
  %v6769 = vpop.f32.mrf.mxu0
  %v6770 = vadd.f32 %v6738, %v6769
  %6771 = vmatmul.f32.gmra.mxu0 %v6037
  %v6772 = vpop.f32.mrf.mxu0
  %v6773 = vadd.f32 %v6741, %v6772
  %6774 = vmatmul.f32.gmra.mxu0 %v6036
  %v6775 = vpop.f32.mrf.mxu0
  %v6776 = vadd.f32 %v6744, %v6775
  %6777 = vdwg.mxu0
  %6778 = vmatpush.msra.mxu0 %v5868
  %6779 = vmatpush.msra.mxu0 %v5863
  %6780 = vmatpush.msra.mxu0 %v5858
  %6781 = vmatpush.msra.mxu0 %v5853
  %6782 = vmatpush.msra.mxu0 %v5848
  %6783 = vmatpush.msra.mxu0 %v5843
  %6784 = vmatpush.msra.mxu0 %v5838
  %6785 = vmatpush.msra.mxu0 %v5833
  %6786 = vmatpush.msra.mxu0 %v5828
  %6787 = vmatpush.msra.mxu0 %v5823
  %6788 = vmatpush.msra.mxu0 %v5818
  %6789 = vmatpush.msra.mxu0 %v5813
  %6790 = vmatpush.msra.mxu0 %v5808
  %6791 = vmatpush.msra.mxu0 %v5803
  %6792 = vmatpush.msra.mxu0 %v5798
  %6793 = vmatpush.msra.mxu0 %v5793
  %6794 = vmatmul.f32.gmra.mxu0 %v6007
  %v6795 = vpop.f32.mrf.mxu0
  %v6796 = vadd.f32 %v6764, %v6795
  %6797 = vmatmul.f32.gmra.mxu0 %v6019
  %v6798 = vpop.f32.mrf.mxu0
  %v6799 = vadd.f32 %v6767, %v6798
  %6800 = vmatmul.f32.gmra.mxu0 %v6029
  %v6801 = vpop.f32.mrf.mxu0
  %v6802 = vadd.f32 %v6770, %v6801
  %6803 = vmatmul.f32.gmra.mxu0 %v6039
  %v6804 = vpop.f32.mrf.mxu0
  %v6805 = vadd.f32 %v6773, %v6804
  %6806 = vmatmul.f32.gmra.mxu0 %v6038
  %v6807 = vpop.f32.mrf.mxu0
  %v6808 = vadd.f32 %v6776, %v6807
  %6809 = vdwg.mxu0
  %6810 = vmatpush.msra.mxu0 %v5948
  %6811 = vmatpush.msra.mxu0 %v5943
  %6812 = vmatpush.msra.mxu0 %v5938
  %6813 = vmatpush.msra.mxu0 %v5933
  %6814 = vmatpush.msra.mxu0 %v5928
  %6815 = vmatpush.msra.mxu0 %v5923
  %6816 = vmatpush.msra.mxu0 %v5918
  %6817 = vmatpush.msra.mxu0 %v5913
  %6818 = vmatpush.msra.mxu0 %v5908
  %6819 = vmatpush.msra.mxu0 %v5903
  %6820 = vmatpush.msra.mxu0 %v5898
  %6821 = vmatpush.msra.mxu0 %v5893
  %6822 = vmatpush.msra.mxu0 %v5888
  %6823 = vmatpush.msra.mxu0 %v5883
  %6824 = vmatpush.msra.mxu0 %v5878
  %6825 = vmatpush.msra.mxu0 %v5873
  %6826 = vmatmul.f32.gmra.mxu0 %v6010
  %v6827 = vpop.f32.mrf.mxu0
  %v6828 = vadd.f32 %v6796, %v6827
  %6829 = vmatmul.f32.gmra.mxu0 %v6021
  %v6830 = vpop.f32.mrf.mxu0
  %v6831 = vadd.f32 %v6799, %v6830
  %6832 = vmatmul.f32.gmra.mxu0 %v6031
  %v6833 = vpop.f32.mrf.mxu0
  %v6834 = vadd.f32 %v6802, %v6833
  %6835 = vmatmul.f32.gmra.mxu0 %v6041
  %v6836 = vpop.f32.mrf.mxu0
  %v6837 = vadd.f32 %v6805, %v6836
  %6838 = vmatmul.f32.gmra.mxu0 %v6040
  %v6839 = vpop.f32.mrf.mxu0
  %v6840 = vadd.f32 %v6808, %v6839
  %6841 = vdwg.mxu0
  %6842 = vmatpush.msra.mxu0 0.0
  %6843 = vmatpush.msra.mxu0 0.0
  %6844 = vmatpush.msra.mxu0 0.0
  %6845 = vmatpush.msra.mxu0 0.0
  %6846 = vmatpush.msra.mxu0 0.0
  %6847 = vmatpush.msra.mxu0 0.0
  %6848 = vmatpush.msra.mxu0 0.0
  %6849 = vmatpush.msra.mxu0 0.0
  %6850 = vmatpush.msra.mxu0 %v5988
  %6851 = vmatpush.msra.mxu0 %v5983
  %6852 = vmatpush.msra.mxu0 %v5978
  %6853 = vmatpush.msra.mxu0 %v5973
  %6854 = vmatpush.msra.mxu0 %v5968
  %6855 = vmatpush.msra.mxu0 %v5963
  %6856 = vmatpush.msra.mxu0 %v5958
  %6857 = vmatpush.msra.mxu0 %v5953
  %6858 = vmatmul.f32.gmra.mxu0 %v6064
  %v6859 = vpop.f32.mrf.mxu0
  %v6860 = vadd.f32 %v6828, %v6859
  %6861 = vmatmul.f32.gmra.mxu0 %v6066
  %v6862 = vpop.f32.mrf.mxu0
  %v6863 = vadd.f32 %v6831, %v6862
  %6864 = vmatmul.f32.gmra.mxu0 %v6068
  %v6865 = vpop.f32.mrf.mxu0
  %v6866 = vadd.f32 %v6834, %v6865
  %6867 = vmatmul.f32.gmra.mxu0 %v6070
  %v6868 = vpop.f32.mrf.mxu0
  %v6869 = vadd.f32 %v6837, %v6868
  %6870 = vmatmul.f32.gmra.mxu0 %v6072
  %v6871 = vpop.f32.mrf.mxu0
  %v6872 = vadd.f32 %v6840, %v6871
  %6873 = vdwg.mxu0
  %v6874 = vadd.f32 %v4964, %v6220
  %v6875 = vadd.f32 %v5124, %v6380
  %v6876 = vadd.f32 %v5284, %v6540
  %v6877 = vadd.f32 %v5444, %v6700
  %v6878 = vadd.f32 %v5604, %v6860
  %v6879 = vadd.f32 %v4967, %v6223
  %v6880 = vadd.f32 %v5127, %v6383
  %v6881 = vadd.f32 %v5287, %v6543
  %v6882 = vadd.f32 %v5447, %v6703
  %v6883 = vadd.f32 %v5607, %v6863
  %v6884 = vadd.f32 %v4970, %v6226
  %v6885 = vadd.f32 %v5130, %v6386
  %v6886 = vadd.f32 %v5290, %v6546
  %v6887 = vadd.f32 %v5450, %v6706
  %v6888 = vadd.f32 %v5610, %v6866
  %v6889 = vadd.f32 %v4973, %v6229
  %v6890 = vadd.f32 %v5133, %v6389
  %v6891 = vadd.f32 %v5293, %v6549
  %v6892 = vadd.f32 %v5453, %v6709
  %v6893 = vadd.f32 %v5613, %v6869
  %v6894 = vadd.f32 %v4976, %v6232
  %v6895 = vadd.f32 %v5136, %v6392
  %v6896 = vadd.f32 %v5296, %v6552
  %v6897 = vadd.f32 %v5456, %v6712
  %v6898 = vadd.f32 %v5616, %v6872
  %v6899 = vld [vmem:[%s6] sm:$0x1f]
  %v6901 = vperm.slane %v6899, 0
  %v6902 = vperm.slane %v6899, 1
  %v6903 = vperm.slane %v6899, 2
  %v6904 = vperm.slane %v6899, 3
  %v6905 = vperm.slane %v6899, 4
  %v6911 = vadd.f32 %v6874, %v6901
  %v6912 = vadd.f32 %v6875, %v6902
  %v6913 = vadd.f32 %v6876, %v6903
  %v6914 = vadd.f32 %v6877, %v6904
  %v6915 = vadd.f32 %v6878, %v6905
  %v6916 = vadd.f32 %v6879, %v6901
  %v6917 = vadd.f32 %v6880, %v6902
  %v6918 = vadd.f32 %v6881, %v6903
  %v6919 = vadd.f32 %v6882, %v6904
  %v6920 = vadd.f32 %v6883, %v6905
  %v6921 = vadd.f32 %v6884, %v6901
  %v6922 = vadd.f32 %v6885, %v6902
  %v6923 = vadd.f32 %v6886, %v6903
  %v6924 = vadd.f32 %v6887, %v6904
  %v6925 = vadd.f32 %v6888, %v6905
  %v6926 = vadd.f32 %v6889, %v6901
  %v6927 = vadd.f32 %v6890, %v6902
  %v6928 = vadd.f32 %v6891, %v6903
  %v6929 = vadd.f32 %v6892, %v6904
  %v6930 = vadd.f32 %v6893, %v6905
  %v6931 = vadd.f32 %v6894, %v6901
  %v6932 = vadd.f32 %v6895, %v6902
  %v6933 = vadd.f32 %v6896, %v6903
  %v6934 = vadd.f32 %v6897, %v6904
  %v6935 = vadd.f32 %v6898, %v6905
  %v6936 = vmul.f32 %v6911, %v570
  %v6937 = vmul.f32 %v6912, %v570
  %v6938 = vmul.f32 %v6913, %v570
  %v6939 = vmul.f32 %v6914, %v570
  %v6940 = vmul.f32 %v6915, %v570
  %v6941 = vmul.f32 %v6916, %v575
  %v6942 = vmul.f32 %v6917, %v575
  %v6943 = vmul.f32 %v6918, %v575
  %v6944 = vmul.f32 %v6919, %v575
  %v6945 = vmul.f32 %v6920, %v575
  %v6946 = vmul.f32 %v6921, %v580
  %v6947 = vmul.f32 %v6922, %v580
  %v6948 = vmul.f32 %v6923, %v580
  %v6949 = vmul.f32 %v6924, %v580
  %v6950 = vmul.f32 %v6925, %v580
  %v6951 = vmul.f32 %v6926, %v585
  %v6952 = vmul.f32 %v6927, %v585
  %v6953 = vmul.f32 %v6928, %v585
  %v6954 = vmul.f32 %v6929, %v585
  %v6955 = vmul.f32 %v6930, %v585
  %v6956 = vmul.f32 %v6931, %v590
  %v6957 = vmul.f32 %v6932, %v590
  %v6958 = vmul.f32 %v6933, %v590
  %v6959 = vmul.f32 %v6934, %v590
  %v6960 = vmul.f32 %v6935, %v590
  %v6961 = vadd.f32 %v6936, %v6941
  %v6962 = vadd.f32 %v6961, %v6946
  %v6963 = vadd.f32 %v6962, %v6951
  %vm6964 = vcmask 1043456
  %v6965 = vsel %vm6964, %v6956, 0.0
  %v6966 = vadd.f32 %v6963, %v6965
  %v6967 = vrot.slane %v6966, 4
  %v6968 = vadd.f32 %v6966, %v6967
  %v6969 = vrot.slane %v6968, 2
  %v6970 = vadd.f32 %v6968, %v6969
  %v6971 = vrot.slane %v6970, 1
  %v6972 = vadd.f32 %v6970, %v6971
  %v6973 = vadd.f32 %v6937, %v6942
  %v6974 = vadd.f32 %v6973, %v6947
  %v6975 = vadd.f32 %v6974, %v6952
  %v6976 = vsel %vm6964, %v6957, 0.0
  %v6977 = vadd.f32 %v6975, %v6976
  %v6978 = vrot.slane %v6977, 4
  %v6979 = vadd.f32 %v6977, %v6978
  %v6980 = vrot.slane %v6979, 2
  %v6981 = vadd.f32 %v6979, %v6980
  %v6982 = vrot.slane %v6981, 1
  %v6983 = vadd.f32 %v6981, %v6982
  %v6984 = vadd.f32 %v6938, %v6943
  %v6985 = vadd.f32 %v6984, %v6948
  %v6986 = vadd.f32 %v6985, %v6953
  %v6987 = vsel %vm6964, %v6958, 0.0
  %v6988 = vadd.f32 %v6986, %v6987
  %v6989 = vrot.slane %v6988, 4
  %v6990 = vadd.f32 %v6988, %v6989
  %v6991 = vrot.slane %v6990, 2
  %v6992 = vadd.f32 %v6990, %v6991
  %v6993 = vrot.slane %v6992, 1
  %v6994 = vadd.f32 %v6992, %v6993
  %v6995 = vadd.f32 %v6939, %v6944
  %v6996 = vadd.f32 %v6995, %v6949
  %v6997 = vadd.f32 %v6996, %v6954
  %v6998 = vsel %vm6964, %v6959, 0.0
  %v6999 = vadd.f32 %v6997, %v6998
  %v7000 = vrot.slane %v6999, 4
  %v7001 = vadd.f32 %v6999, %v7000
  %v7002 = vrot.slane %v7001, 2
  %v7003 = vadd.f32 %v7001, %v7002
  %v7004 = vrot.slane %v7003, 1
  %v7005 = vadd.f32 %v7003, %v7004
  %v7006 = vsel %vm3132, %v6940, 0.0
  %v7007 = vsel %vm3132, %v6945, 0.0
  %v7008 = vadd.f32 %v7006, %v7007
  %v7009 = vsel %vm3132, %v6950, 0.0
  %v7010 = vadd.f32 %v7008, %v7009
  %v7011 = vsel %vm3132, %v6955, 0.0
  %v7012 = vadd.f32 %v7010, %v7011
  %vm7013 = vcmask 519168
  %v7014 = vsel %vm7013, %v6960, 0.0
  %v7015 = vadd.f32 %v7012, %v7014
  %v7016 = vrot.slane %v7015, 4
  %v7017 = vadd.f32 %v7015, %v7016
  %v7018 = vrot.slane %v7017, 2
  %v7019 = vadd.f32 %v7017, %v7018
  %v7020 = vrot.slane %v7019, 1
  %v7021 = vadd.f32 %v7019, %v7020
  %v7022 = vmul.f32 %v6936, %v6936
  %v7023 = vmul.f32 %v6937, %v6937
  %v7024 = vmul.f32 %v6938, %v6938
  %v7025 = vmul.f32 %v6939, %v6939
  %v7026 = vmul.f32 %v6940, %v6940
  %v7027 = vmul.f32 %v6941, %v6941
  %v7028 = vmul.f32 %v6942, %v6942
  %v7029 = vmul.f32 %v6943, %v6943
  %v7030 = vmul.f32 %v6944, %v6944
  %v7031 = vmul.f32 %v6945, %v6945
  %v7032 = vmul.f32 %v6946, %v6946
  %v7033 = vmul.f32 %v6947, %v6947
  %v7034 = vmul.f32 %v6948, %v6948
  %v7035 = vmul.f32 %v6949, %v6949
  %v7036 = vmul.f32 %v6950, %v6950
  %v7037 = vmul.f32 %v6951, %v6951
  %v7038 = vmul.f32 %v6952, %v6952
  %v7039 = vmul.f32 %v6953, %v6953
  %v7040 = vmul.f32 %v6954, %v6954
  %v7041 = vmul.f32 %v6955, %v6955
  %v7042 = vmul.f32 %v6956, %v6956
  %v7043 = vmul.f32 %v6957, %v6957
  %v7044 = vmul.f32 %v6958, %v6958
  %v7045 = vmul.f32 %v6959, %v6959
  %v7046 = vmul.f32 %v6960, %v6960
  %v7047 = vadd.f32 %v7022, %v7027
  %v7048 = vadd.f32 %v7047, %v7032
  %v7049 = vadd.f32 %v7048, %v7037
  %v7050 = vsel %vm6964, %v7042, 0.0
  %v7051 = vadd.f32 %v7049, %v7050
  %v7052 = vrot.slane %v7051, 4
  %v7053 = vadd.f32 %v7051, %v7052
  %v7054 = vrot.slane %v7053, 2
  %v7055 = vadd.f32 %v7053, %v7054
  %v7056 = vrot.slane %v7055, 1
  %v7057 = vadd.f32 %v7055, %v7056
  %v7058 = vadd.f32 %v7023, %v7028
  %v7059 = vadd.f32 %v7058, %v7033
  %v7060 = vadd.f32 %v7059, %v7038
  %v7061 = vsel %vm6964, %v7043, 0.0
  %v7062 = vadd.f32 %v7060, %v7061
  %v7063 = vrot.slane %v7062, 4
  %v7064 = vadd.f32 %v7062, %v7063
  %v7065 = vrot.slane %v7064, 2
  %v7066 = vadd.f32 %v7064, %v7065
  %v7067 = vrot.slane %v7066, 1
  %v7068 = vadd.f32 %v7066, %v7067
  %v7069 = vadd.f32 %v7024, %v7029
  %v7070 = vadd.f32 %v7069, %v7034
  %v7071 = vadd.f32 %v7070, %v7039
  %v7072 = vsel %vm6964, %v7044, 0.0
  %v7073 = vadd.f32 %v7071, %v7072
  %v7074 = vrot.slane %v7073, 4
  %v7075 = vadd.f32 %v7073, %v7074
  %v7076 = vrot.slane %v7075, 2
  %v7077 = vadd.f32 %v7075, %v7076
  %v7078 = vrot.slane %v7077, 1
  %v7079 = vadd.f32 %v7077, %v7078
  %v7080 = vadd.f32 %v7025, %v7030
  %v7081 = vadd.f32 %v7080, %v7035
  %v7082 = vadd.f32 %v7081, %v7040
  %v7083 = vsel %vm6964, %v7045, 0.0
  %v7084 = vadd.f32 %v7082, %v7083
  %v7085 = vrot.slane %v7084, 4
  %v7086 = vadd.f32 %v7084, %v7085
  %v7087 = vrot.slane %v7086, 2
  %v7088 = vadd.f32 %v7086, %v7087
  %v7089 = vrot.slane %v7088, 1
  %v7090 = vadd.f32 %v7088, %v7089
  %v7091 = vsel %vm3132, %v7026, 0.0
  %v7092 = vsel %vm3132, %v7031, 0.0
  %v7093 = vadd.f32 %v7091, %v7092
  %v7094 = vsel %vm3132, %v7036, 0.0
  %v7095 = vadd.f32 %v7093, %v7094
  %v7096 = vsel %vm3132, %v7041, 0.0
  %v7097 = vadd.f32 %v7095, %v7096
  %v7098 = vsel %vm7013, %v7046, 0.0
  %v7099 = vadd.f32 %v7097, %v7098
  %v7100 = vrot.slane %v7099, 4
  %v7101 = vadd.f32 %v7099, %v7100
  %v7102 = vrot.slane %v7101, 2
  %v7103 = vadd.f32 %v7101, %v7102
  %v7104 = vrot.slane %v7103, 1
  %v7105 = vadd.f32 %v7103, %v7104
  %v7106 = vld [vmem:[%s17] sm:$0xff]
  %v7107 = vld [vmem:[%s17 + $0x8] sm:$0xff]
  %v7108 = vld [vmem:[%s17 + $0x10] sm:$0xff]
  %v7109 = vld [vmem:[%s17 + $0x18] sm:$0xff]
  %v7110 = vld [vmem:[%s17 + $0x20] sm:$0xff]
  %v7111 = vld [vmem:[%s17 + $0x28] sm:$0xff]
  %v7112 = vld [vmem:[%s17 + $0x30] sm:$0xff]
  %v7113 = vld [vmem:[%s17 + $0x38] sm:$0xff]
  %v7114 = vld [vmem:[%s17 + $0x40] sm:$0xff]
  %v7115 = vld [vmem:[%s17 + $0x48] sm:$0xff]
  %v7116 = vld [vmem:[%s17 + $0x50] sm:$0xff]
  %v7117 = vld [vmem:[%s17 + $0x58] sm:$0xff]
  %v7118 = vld [vmem:[%s17 + $0x60] sm:$0xff]
  %v7119 = vld [vmem:[%s17 + $0x68] sm:$0xff]
  %v7120 = vld [vmem:[%s17 + $0x70] sm:$0xff]
  %v7121 = vld [vmem:[%s17 + $0x78] sm:$0xff]
  %v7122 = vld [vmem:[%s17 + $0x80] sm:$0xff]
  %v7123 = vld [vmem:[%s17 + $0x88] sm:$0xff]
  %v7124 = vld [vmem:[%s17 + $0x90] sm:$0xff]
  %v7125 = vld [vmem:[%s17 + $0x98] sm:$0xff]
  %v7126 = vld [vmem:[%s17 + $0xa0] sm:$0xff]
  %v7127 = vld [vmem:[%s17 + $0xa8] sm:$0xff]
  %v7128 = vld [vmem:[%s17 + $0xb0] sm:$0xff]
  %v7129 = vld [vmem:[%s17 + $0xb8] sm:$0xff]
  %v7130 = vld [vmem:[%s17 + $0xc0] sm:$0xff]
  %v7131 = vld [vmem:[%s17 + $0xc8] sm:$0xff]
  %v7132 = vld [vmem:[%s17 + $0xd0] sm:$0xff]
  %v7133 = vld [vmem:[%s17 + $0xd8] sm:$0xff]
  %v7134 = vld [vmem:[%s17 + $0xe0] sm:$0xff]
  %v7135 = vld [vmem:[%s17 + $0xe8] sm:$0xff]
  %v7136 = vld [vmem:[%s17 + $0xf0] sm:$0xff]
  %v7137 = vld [vmem:[%s17 + $0xf8] sm:$0xff]
  %v7138 = vld [vmem:[%s17 + $0x100] sm:$0xff]
  %v7139 = vld [vmem:[%s17 + $0x108] sm:$0xff]
  %v7140 = vld [vmem:[%s17 + $0x110] sm:$0xff]
  %v7141 = vld [vmem:[%s17 + $0x118] sm:$0xff]
  %v7142 = vld [vmem:[%s17 + $0x120] sm:$0xff]
  %v7143 = vld [vmem:[%s17 + $0x128] sm:$0xff]
  %v7144 = vld [vmem:[%s17 + $0x130] sm:$0xff]
  %v7145 = vld [vmem:[%s17 + $0x138] sm:$0xff]
  %v7146 = vld [vmem:[%s17 + $0x140] sm:$0xff]
  %v7147 = vld [vmem:[%s17 + $0x148] sm:$0xff]
  %v7148 = vld [vmem:[%s17 + $0x150] sm:$0xff]
  %v7149 = vld [vmem:[%s17 + $0x158] sm:$0xff]
  %v7150 = vld [vmem:[%s17 + $0x160] sm:$0xff]
  %v7151 = vld [vmem:[%s17 + $0x168] sm:$0xff]
  %v7152 = vld [vmem:[%s17 + $0x170] sm:$0xff]
  %v7153 = vld [vmem:[%s17 + $0x178] sm:$0xff]
  %v7154 = vld [vmem:[%s17 + $0x180] sm:$0xff]
  %v7155 = vld [vmem:[%s17 + $0x188] sm:$0xff]
  %v7156 = vld [vmem:[%s17 + $0x190] sm:$0xff]
  %v7157 = vld [vmem:[%s17 + $0x198] sm:$0xff]
  %v7158 = vld [vmem:[%s17 + $0x1a0] sm:$0xff]
  %v7159 = vld [vmem:[%s17 + $0x1a8] sm:$0xff]
  %v7160 = vld [vmem:[%s17 + $0x1b0] sm:$0xff]
  %v7161 = vld [vmem:[%s17 + $0x1b8] sm:$0xff]
  %v7162 = vld [vmem:[%s17 + $0x1c0] sm:$0xff]
  %v7163 = vld [vmem:[%s17 + $0x1c8] sm:$0xff]
  %v7164 = vld [vmem:[%s17 + $0x1d0] sm:$0xff]
  %v7165 = vld [vmem:[%s17 + $0x1d8] sm:$0xff]
  %v7166 = vld [vmem:[%s17 + $0x1e0] sm:$0xff]
  %v7167 = vld [vmem:[%s17 + $0x1e8] sm:$0xff]
  %v7168 = vld [vmem:[%s17 + $0x1f0] sm:$0xff]
  %v7169 = vld [vmem:[%s17 + $0x1f8] sm:$0xff]
  %v7170 = vld [vmem:[%s17 + $0x200] sm:$0xff]
  %v7171 = vld [vmem:[%s17 + $0x208] sm:$0xff]
  %v7172 = vld [vmem:[%s17 + $0x210] sm:$0xff]
  %v7173 = vld [vmem:[%s17 + $0x218] sm:$0xff]
  %v7174 = vld [vmem:[%s17 + $0x220] sm:$0xff]
  %v7175 = vld [vmem:[%s17 + $0x228] sm:$0xff]
  %v7176 = vld [vmem:[%s17 + $0x230] sm:$0xff]
  %v7177 = vld [vmem:[%s17 + $0x238] sm:$0xff]
  %v7179 = vsel %vm3132, %v7021, 0
  %7181 = vmatpush.msra.mxu0 %v7121
  %7182 = vmatpush.msra.mxu0 %v7120
  %7183 = vmatpush.msra.mxu0 %v7119
  %7184 = vmatpush.msra.mxu0 %v7118
  %7185 = vmatpush.msra.mxu0 %v7117
  %7186 = vmatpush.msra.mxu0 %v7116
  %7187 = vmatpush.msra.mxu0 %v7115
  %7188 = vmatpush.msra.mxu0 %v7114
  %7189 = vmatpush.msra.mxu0 %v7113
  %7190 = vmatpush.msra.mxu0 %v7112
  %7191 = vmatpush.msra.mxu0 %v7111
  %7192 = vmatpush.msra.mxu0 %v7110
  %7193 = vmatpush.msra.mxu0 %v7109
  %7194 = vmatpush.msra.mxu0 %v7108
  %7195 = vmatpush.msra.mxu0 %v7107
  %7196 = vmatpush.msra.mxu0 %v7106
  %7197 = vmatmul.f32.gmra.mxu0 %v6972
  %v7198 = vpop.f32.mrf.mxu0
  %v7199 = vadd.f32 0.0, %v7198
  %7200 = vdwg.mxu0
  %7201 = vmatpush.msra.mxu0 %v7137
  %7202 = vmatpush.msra.mxu0 %v7136
  %7203 = vmatpush.msra.mxu0 %v7135
  %7204 = vmatpush.msra.mxu0 %v7134
  %7205 = vmatpush.msra.mxu0 %v7133
  %7206 = vmatpush.msra.mxu0 %v7132
  %7207 = vmatpush.msra.mxu0 %v7131
  %7208 = vmatpush.msra.mxu0 %v7130
  %7209 = vmatpush.msra.mxu0 %v7129
  %7210 = vmatpush.msra.mxu0 %v7128
  %7211 = vmatpush.msra.mxu0 %v7127
  %7212 = vmatpush.msra.mxu0 %v7126
  %7213 = vmatpush.msra.mxu0 %v7125
  %7214 = vmatpush.msra.mxu0 %v7124
  %7215 = vmatpush.msra.mxu0 %v7123
  %7216 = vmatpush.msra.mxu0 %v7122
  %7217 = vmatmul.f32.gmra.mxu0 %v6983
  %v7218 = vpop.f32.mrf.mxu0
  %v7219 = vadd.f32 %v7199, %v7218
  %7220 = vdwg.mxu0
  %7221 = vmatpush.msra.mxu0 %v7153
  %7222 = vmatpush.msra.mxu0 %v7152
  %7223 = vmatpush.msra.mxu0 %v7151
  %7224 = vmatpush.msra.mxu0 %v7150
  %7225 = vmatpush.msra.mxu0 %v7149
  %7226 = vmatpush.msra.mxu0 %v7148
  %7227 = vmatpush.msra.mxu0 %v7147
  %7228 = vmatpush.msra.mxu0 %v7146
  %7229 = vmatpush.msra.mxu0 %v7145
  %7230 = vmatpush.msra.mxu0 %v7144
  %7231 = vmatpush.msra.mxu0 %v7143
  %7232 = vmatpush.msra.mxu0 %v7142
  %7233 = vmatpush.msra.mxu0 %v7141
  %7234 = vmatpush.msra.mxu0 %v7140
  %7235 = vmatpush.msra.mxu0 %v7139
  %7236 = vmatpush.msra.mxu0 %v7138
  %7237 = vmatmul.f32.gmra.mxu0 %v6994
  %v7238 = vpop.f32.mrf.mxu0
  %v7239 = vadd.f32 %v7219, %v7238
  %7240 = vdwg.mxu0
  %7241 = vmatpush.msra.mxu0 %v7169
  %7242 = vmatpush.msra.mxu0 %v7168
  %7243 = vmatpush.msra.mxu0 %v7167
  %7244 = vmatpush.msra.mxu0 %v7166
  %7245 = vmatpush.msra.mxu0 %v7165
  %7246 = vmatpush.msra.mxu0 %v7164
  %7247 = vmatpush.msra.mxu0 %v7163
  %7248 = vmatpush.msra.mxu0 %v7162
  %7249 = vmatpush.msra.mxu0 %v7161
  %7250 = vmatpush.msra.mxu0 %v7160
  %7251 = vmatpush.msra.mxu0 %v7159
  %7252 = vmatpush.msra.mxu0 %v7158
  %7253 = vmatpush.msra.mxu0 %v7157
  %7254 = vmatpush.msra.mxu0 %v7156
  %7255 = vmatpush.msra.mxu0 %v7155
  %7256 = vmatpush.msra.mxu0 %v7154
  %7257 = vmatmul.f32.gmra.mxu0 %v7005
  %v7258 = vpop.f32.mrf.mxu0
  %v7259 = vadd.f32 %v7239, %v7258
  %7260 = vdwg.mxu0
  %7261 = vmatpush.msra.mxu0 0.0
  %7262 = vmatpush.msra.mxu0 0.0
  %7263 = vmatpush.msra.mxu0 0.0
  %7264 = vmatpush.msra.mxu0 0.0
  %7265 = vmatpush.msra.mxu0 0.0
  %7266 = vmatpush.msra.mxu0 0.0
  %7267 = vmatpush.msra.mxu0 0.0
  %7268 = vmatpush.msra.mxu0 0.0
  %7269 = vmatpush.msra.mxu0 %v7177
  %7270 = vmatpush.msra.mxu0 %v7176
  %7271 = vmatpush.msra.mxu0 %v7175
  %7272 = vmatpush.msra.mxu0 %v7174
  %7273 = vmatpush.msra.mxu0 %v7173
  %7274 = vmatpush.msra.mxu0 %v7172
  %7275 = vmatpush.msra.mxu0 %v7171
  %7276 = vmatpush.msra.mxu0 %v7170
  %7277 = vmatmul.f32.gmra.mxu0 %v7179
  %v7278 = vpop.f32.mrf.mxu0
  %v7279 = vadd.f32 %v7259, %v7278
  %7280 = vdwg.mxu0
  %v7282 = vsel %vm3132, %v7105, 0
  %7284 = vmatpush.msra.mxu0 %v7121
  %7285 = vmatpush.msra.mxu0 %v7120
  %7286 = vmatpush.msra.mxu0 %v7119
  %7287 = vmatpush.msra.mxu0 %v7118
  %7288 = vmatpush.msra.mxu0 %v7117
  %7289 = vmatpush.msra.mxu0 %v7116
  %7290 = vmatpush.msra.mxu0 %v7115
  %7291 = vmatpush.msra.mxu0 %v7114
  %7292 = vmatpush.msra.mxu0 %v7113
  %7293 = vmatpush.msra.mxu0 %v7112
  %7294 = vmatpush.msra.mxu0 %v7111
  %7295 = vmatpush.msra.mxu0 %v7110
  %7296 = vmatpush.msra.mxu0 %v7109
  %7297 = vmatpush.msra.mxu0 %v7108
  %7298 = vmatpush.msra.mxu0 %v7107
  %7299 = vmatpush.msra.mxu0 %v7106
  %7300 = vmatmul.f32.gmra.mxu0 %v7057
  %v7301 = vpop.f32.mrf.mxu0
  %v7302 = vadd.f32 0.0, %v7301
  %7303 = vdwg.mxu0
  %7304 = vmatpush.msra.mxu0 %v7137
  %7305 = vmatpush.msra.mxu0 %v7136
  %7306 = vmatpush.msra.mxu0 %v7135
  %7307 = vmatpush.msra.mxu0 %v7134
  %7308 = vmatpush.msra.mxu0 %v7133
  %7309 = vmatpush.msra.mxu0 %v7132
  %7310 = vmatpush.msra.mxu0 %v7131
  %7311 = vmatpush.msra.mxu0 %v7130
  %7312 = vmatpush.msra.mxu0 %v7129
  %7313 = vmatpush.msra.mxu0 %v7128
  %7314 = vmatpush.msra.mxu0 %v7127
  %7315 = vmatpush.msra.mxu0 %v7126
  %7316 = vmatpush.msra.mxu0 %v7125
  %7317 = vmatpush.msra.mxu0 %v7124
  %7318 = vmatpush.msra.mxu0 %v7123
  %7319 = vmatpush.msra.mxu0 %v7122
  %7320 = vmatmul.f32.gmra.mxu0 %v7068
  %v7321 = vpop.f32.mrf.mxu0
  %v7322 = vadd.f32 %v7302, %v7321
  %7323 = vdwg.mxu0
  %7324 = vmatpush.msra.mxu0 %v7153
  %7325 = vmatpush.msra.mxu0 %v7152
  %7326 = vmatpush.msra.mxu0 %v7151
  %7327 = vmatpush.msra.mxu0 %v7150
  %7328 = vmatpush.msra.mxu0 %v7149
  %7329 = vmatpush.msra.mxu0 %v7148
  %7330 = vmatpush.msra.mxu0 %v7147
  %7331 = vmatpush.msra.mxu0 %v7146
  %7332 = vmatpush.msra.mxu0 %v7145
  %7333 = vmatpush.msra.mxu0 %v7144
  %7334 = vmatpush.msra.mxu0 %v7143
  %7335 = vmatpush.msra.mxu0 %v7142
  %7336 = vmatpush.msra.mxu0 %v7141
  %7337 = vmatpush.msra.mxu0 %v7140
  %7338 = vmatpush.msra.mxu0 %v7139
  %7339 = vmatpush.msra.mxu0 %v7138
  %7340 = vmatmul.f32.gmra.mxu0 %v7079
  %v7341 = vpop.f32.mrf.mxu0
  %v7342 = vadd.f32 %v7322, %v7341
  %7343 = vdwg.mxu0
  %7344 = vmatpush.msra.mxu0 %v7169
  %7345 = vmatpush.msra.mxu0 %v7168
  %7346 = vmatpush.msra.mxu0 %v7167
  %7347 = vmatpush.msra.mxu0 %v7166
  %7348 = vmatpush.msra.mxu0 %v7165
  %7349 = vmatpush.msra.mxu0 %v7164
  %7350 = vmatpush.msra.mxu0 %v7163
  %7351 = vmatpush.msra.mxu0 %v7162
  %7352 = vmatpush.msra.mxu0 %v7161
  %7353 = vmatpush.msra.mxu0 %v7160
  %7354 = vmatpush.msra.mxu0 %v7159
  %7355 = vmatpush.msra.mxu0 %v7158
  %7356 = vmatpush.msra.mxu0 %v7157
  %7357 = vmatpush.msra.mxu0 %v7156
  %7358 = vmatpush.msra.mxu0 %v7155
  %7359 = vmatpush.msra.mxu0 %v7154
  %7360 = vmatmul.f32.gmra.mxu0 %v7090
  %v7361 = vpop.f32.mrf.mxu0
  %v7362 = vadd.f32 %v7342, %v7361
  %7363 = vdwg.mxu0
  %7364 = vmatpush.msra.mxu0 0.0
  %7365 = vmatpush.msra.mxu0 0.0
  %7366 = vmatpush.msra.mxu0 0.0
  %7367 = vmatpush.msra.mxu0 0.0
  %7368 = vmatpush.msra.mxu0 0.0
  %7369 = vmatpush.msra.mxu0 0.0
  %7370 = vmatpush.msra.mxu0 0.0
  %7371 = vmatpush.msra.mxu0 0.0
  %7372 = vmatpush.msra.mxu0 %v7177
  %7373 = vmatpush.msra.mxu0 %v7176
  %7374 = vmatpush.msra.mxu0 %v7175
  %7375 = vmatpush.msra.mxu0 %v7174
  %7376 = vmatpush.msra.mxu0 %v7173
  %7377 = vmatpush.msra.mxu0 %v7172
  %7378 = vmatpush.msra.mxu0 %v7171
  %7379 = vmatpush.msra.mxu0 %v7170
  %7380 = vmatmul.f32.gmra.mxu0 %v7282
  %v7381 = vpop.f32.mrf.mxu0
  %v7382 = vadd.f32 %v7362, %v7381
  %7383 = vdwg.mxu0
  %v7384 = vmul.f32 %v7279, 0.001953125
  %v7385 = vmul.f32 %v7382, 0.001953125
  %v7386 = vmul.f32 %v7384, %v7384
  %v7387 = vsub.f32 %v7385, %v7386
  %v7388 = vld [vmem:[%s11] sm:$0x1]
  %v7389 = vadd.f32 %v7387, 1e-05
  %v7390 = vrsqrt.pop %v7389
  %v7391 = vmul.f32 %v7390, %v7389
  %v7392 = vmul.f32 %v7391, %v7390
  %v7393 = vmul.f32 0.5, %v7392
  %v7394 = vsub.f32 1.5, %v7393
  %v7395 = vmul.f32 %v7390, %v7394
  %vm7396 = vweird.f32 %v7389
  %vm7397 = vweird.f32 %v7390
  %vm7398 = vmor %vm7396, %vm7397
  %v7399 = vsel %vm7398, %v7390, %v7395
  %v7400 = vmul.f32 %v7388, %v7399
  %v7401 = vld [vmem:[%s12] sm:$0x1]
  %v7402 = vmul.f32 %v7384, %v7400
  %v7403 = vsub.f32 %v7401, %v7402
  %v7404 = vld [vmem:[%s18] sm:$0xff]
  %v7405 = vld [vmem:[%s18 + $0x8] sm:$0xff]
  %v7406 = vld [vmem:[%s18 + $0x10] sm:$0xff]
  %v7407 = vld [vmem:[%s18 + $0x18] sm:$0xff]
  %v7408 = vld [vmem:[%s18 + $0x20] sm:$0xff]
  %v7409 = vld [vmem:[%s18 + $0x28] sm:$0xff]
  %v7410 = vld [vmem:[%s18 + $0x30] sm:$0xff]
  %v7411 = vld [vmem:[%s18 + $0x38] sm:$0xff]
  %v7412 = vld [vmem:[%s18 + $0x40] sm:$0xff]
  %v7413 = vld [vmem:[%s18 + $0x48] sm:$0xff]
  %v7414 = vld [vmem:[%s18 + $0x50] sm:$0xff]
  %v7415 = vld [vmem:[%s18 + $0x58] sm:$0xff]
  %v7416 = vld [vmem:[%s18 + $0x60] sm:$0xff]
  %v7417 = vld [vmem:[%s18 + $0x68] sm:$0xff]
  %v7418 = vld [vmem:[%s18 + $0x70] sm:$0xff]
  %v7419 = vld [vmem:[%s18 + $0x78] sm:$0xff]
  %v7420 = vld [vmem:[%s18 + $0x80] sm:$0xff]
  %v7421 = vld [vmem:[%s18 + $0x88] sm:$0xff]
  %v7422 = vld [vmem:[%s18 + $0x90] sm:$0xff]
  %v7423 = vld [vmem:[%s18 + $0x98] sm:$0xff]
  %v7425 = vsel %vm716, %v7400, 0
  %7427 = vmatpush.msra.mxu0 0.0
  %7428 = vmatpush.msra.mxu0 0.0
  %7429 = vmatpush.msra.mxu0 0.0
  %7430 = vmatpush.msra.mxu0 0.0
  %7431 = vmatpush.msra.mxu0 0.0
  %7432 = vmatpush.msra.mxu0 0.0
  %7433 = vmatpush.msra.mxu0 0.0
  %7434 = vmatpush.msra.mxu0 0.0
  %7435 = vmatpush.msra.mxu0 0.0
  %7436 = vmatpush.msra.mxu0 0.0
  %7437 = vmatpush.msra.mxu0 0.0
  %7438 = vmatpush.msra.mxu0 0.0
  %7439 = vmatpush.msra.mxu0 %v7419
  %7440 = vmatpush.msra.mxu0 %v7414
  %7441 = vmatpush.msra.mxu0 %v7409
  %7442 = vmatpush.msra.mxu0 %v7404
  %7443 = vmatmul.f32.gmra.mxu0 %v7425
  %v7444 = vpop.f32.mrf.mxu0
  %v7445 = vadd.f32 0.0, %v7444
  %7446 = vdwg.mxu0
  %7447 = vmatpush.msra.mxu0 0.0
  %7448 = vmatpush.msra.mxu0 0.0
  %7449 = vmatpush.msra.mxu0 0.0
  %7450 = vmatpush.msra.mxu0 0.0
  %7451 = vmatpush.msra.mxu0 0.0
  %7452 = vmatpush.msra.mxu0 0.0
  %7453 = vmatpush.msra.mxu0 0.0
  %7454 = vmatpush.msra.mxu0 0.0
  %7455 = vmatpush.msra.mxu0 0.0
  %7456 = vmatpush.msra.mxu0 0.0
  %7457 = vmatpush.msra.mxu0 0.0
  %7458 = vmatpush.msra.mxu0 0.0
  %7459 = vmatpush.msra.mxu0 %v7420
  %7460 = vmatpush.msra.mxu0 %v7415
  %7461 = vmatpush.msra.mxu0 %v7410
  %7462 = vmatpush.msra.mxu0 %v7405
  %7463 = vmatmul.f32.gmra.mxu0 %v7425
  %v7464 = vpop.f32.mrf.mxu0
  %v7465 = vadd.f32 0.0, %v7464
  %7466 = vdwg.mxu0
  %7467 = vmatpush.msra.mxu0 0.0
  %7468 = vmatpush.msra.mxu0 0.0
  %7469 = vmatpush.msra.mxu0 0.0
  %7470 = vmatpush.msra.mxu0 0.0
  %7471 = vmatpush.msra.mxu0 0.0
  %7472 = vmatpush.msra.mxu0 0.0
  %7473 = vmatpush.msra.mxu0 0.0
  %7474 = vmatpush.msra.mxu0 0.0
  %7475 = vmatpush.msra.mxu0 0.0
  %7476 = vmatpush.msra.mxu0 0.0
  %7477 = vmatpush.msra.mxu0 0.0
  %7478 = vmatpush.msra.mxu0 0.0
  %7479 = vmatpush.msra.mxu0 %v7421
  %7480 = vmatpush.msra.mxu0 %v7416
  %7481 = vmatpush.msra.mxu0 %v7411
  %7482 = vmatpush.msra.mxu0 %v7406
  %7483 = vmatmul.f32.gmra.mxu0 %v7425
  %v7484 = vpop.f32.mrf.mxu0
  %v7485 = vadd.f32 0.0, %v7484
  %7486 = vdwg.mxu0
  %7487 = vmatpush.msra.mxu0 0.0
  %7488 = vmatpush.msra.mxu0 0.0
  %7489 = vmatpush.msra.mxu0 0.0
  %7490 = vmatpush.msra.mxu0 0.0
  %7491 = vmatpush.msra.mxu0 0.0
  %7492 = vmatpush.msra.mxu0 0.0
  %7493 = vmatpush.msra.mxu0 0.0
  %7494 = vmatpush.msra.mxu0 0.0
  %7495 = vmatpush.msra.mxu0 0.0
  %7496 = vmatpush.msra.mxu0 0.0
  %7497 = vmatpush.msra.mxu0 0.0
  %7498 = vmatpush.msra.mxu0 0.0
  %7499 = vmatpush.msra.mxu0 %v7422
  %7500 = vmatpush.msra.mxu0 %v7417
  %7501 = vmatpush.msra.mxu0 %v7412
  %7502 = vmatpush.msra.mxu0 %v7407
  %7503 = vmatmul.f32.gmra.mxu0 %v7425
  %v7504 = vpop.f32.mrf.mxu0
  %v7505 = vadd.f32 0.0, %v7504
  %7506 = vdwg.mxu0
  %7507 = vmatpush.msra.mxu0 0.0
  %7508 = vmatpush.msra.mxu0 0.0
  %7509 = vmatpush.msra.mxu0 0.0
  %7510 = vmatpush.msra.mxu0 0.0
  %7511 = vmatpush.msra.mxu0 0.0
  %7512 = vmatpush.msra.mxu0 0.0
  %7513 = vmatpush.msra.mxu0 0.0
  %7514 = vmatpush.msra.mxu0 0.0
  %7515 = vmatpush.msra.mxu0 0.0
  %7516 = vmatpush.msra.mxu0 0.0
  %7517 = vmatpush.msra.mxu0 0.0
  %7518 = vmatpush.msra.mxu0 0.0
  %7519 = vmatpush.msra.mxu0 %v7423
  %7520 = vmatpush.msra.mxu0 %v7418
  %7521 = vmatpush.msra.mxu0 %v7413
  %7522 = vmatpush.msra.mxu0 %v7408
  %7523 = vmatmul.f32.gmra.mxu0 %v7425
  %v7524 = vpop.f32.mrf.mxu0
  %v7525 = vadd.f32 0.0, %v7524
  %7526 = vdwg.mxu0
  %v7528 = vsel %vm716, %v7403, 0
  %7530 = vmatpush.msra.mxu0 0.0
  %7531 = vmatpush.msra.mxu0 0.0
  %7532 = vmatpush.msra.mxu0 0.0
  %7533 = vmatpush.msra.mxu0 0.0
  %7534 = vmatpush.msra.mxu0 0.0
  %7535 = vmatpush.msra.mxu0 0.0
  %7536 = vmatpush.msra.mxu0 0.0
  %7537 = vmatpush.msra.mxu0 0.0
  %7538 = vmatpush.msra.mxu0 0.0
  %7539 = vmatpush.msra.mxu0 0.0
  %7540 = vmatpush.msra.mxu0 0.0
  %7541 = vmatpush.msra.mxu0 0.0
  %7542 = vmatpush.msra.mxu0 %v7419
  %7543 = vmatpush.msra.mxu0 %v7414
  %7544 = vmatpush.msra.mxu0 %v7409
  %7545 = vmatpush.msra.mxu0 %v7404
  %7546 = vmatmul.f32.gmra.mxu0 %v7528
  %v7547 = vpop.f32.mrf.mxu0
  %v7548 = vadd.f32 0.0, %v7547
  %7549 = vdwg.mxu0
  %7550 = vmatpush.msra.mxu0 0.0
  %7551 = vmatpush.msra.mxu0 0.0
  %7552 = vmatpush.msra.mxu0 0.0
  %7553 = vmatpush.msra.mxu0 0.0
  %7554 = vmatpush.msra.mxu0 0.0
  %7555 = vmatpush.msra.mxu0 0.0
  %7556 = vmatpush.msra.mxu0 0.0
  %7557 = vmatpush.msra.mxu0 0.0
  %7558 = vmatpush.msra.mxu0 0.0
  %7559 = vmatpush.msra.mxu0 0.0
  %7560 = vmatpush.msra.mxu0 0.0
  %7561 = vmatpush.msra.mxu0 0.0
  %7562 = vmatpush.msra.mxu0 %v7420
  %7563 = vmatpush.msra.mxu0 %v7415
  %7564 = vmatpush.msra.mxu0 %v7410
  %7565 = vmatpush.msra.mxu0 %v7405
  %7566 = vmatmul.f32.gmra.mxu0 %v7528
  %v7567 = vpop.f32.mrf.mxu0
  %v7568 = vadd.f32 0.0, %v7567
  %7569 = vdwg.mxu0
  %7570 = vmatpush.msra.mxu0 0.0
  %7571 = vmatpush.msra.mxu0 0.0
  %7572 = vmatpush.msra.mxu0 0.0
  %7573 = vmatpush.msra.mxu0 0.0
  %7574 = vmatpush.msra.mxu0 0.0
  %7575 = vmatpush.msra.mxu0 0.0
  %7576 = vmatpush.msra.mxu0 0.0
  %7577 = vmatpush.msra.mxu0 0.0
  %7578 = vmatpush.msra.mxu0 0.0
  %7579 = vmatpush.msra.mxu0 0.0
  %7580 = vmatpush.msra.mxu0 0.0
  %7581 = vmatpush.msra.mxu0 0.0
  %7582 = vmatpush.msra.mxu0 %v7421
  %7583 = vmatpush.msra.mxu0 %v7416
  %7584 = vmatpush.msra.mxu0 %v7411
  %7585 = vmatpush.msra.mxu0 %v7406
  %7586 = vmatmul.f32.gmra.mxu0 %v7528
  %v7587 = vpop.f32.mrf.mxu0
  %v7588 = vadd.f32 0.0, %v7587
  %7589 = vdwg.mxu0
  %7590 = vmatpush.msra.mxu0 0.0
  %7591 = vmatpush.msra.mxu0 0.0
  %7592 = vmatpush.msra.mxu0 0.0
  %7593 = vmatpush.msra.mxu0 0.0
  %7594 = vmatpush.msra.mxu0 0.0
  %7595 = vmatpush.msra.mxu0 0.0
  %7596 = vmatpush.msra.mxu0 0.0
  %7597 = vmatpush.msra.mxu0 0.0
  %7598 = vmatpush.msra.mxu0 0.0
  %7599 = vmatpush.msra.mxu0 0.0
  %7600 = vmatpush.msra.mxu0 0.0
  %7601 = vmatpush.msra.mxu0 0.0
  %7602 = vmatpush.msra.mxu0 %v7422
  %7603 = vmatpush.msra.mxu0 %v7417
  %7604 = vmatpush.msra.mxu0 %v7412
  %7605 = vmatpush.msra.mxu0 %v7407
  %7606 = vmatmul.f32.gmra.mxu0 %v7528
  %v7607 = vpop.f32.mrf.mxu0
  %v7608 = vadd.f32 0.0, %v7607
  %7609 = vdwg.mxu0
  %7610 = vmatpush.msra.mxu0 0.0
  %7611 = vmatpush.msra.mxu0 0.0
  %7612 = vmatpush.msra.mxu0 0.0
  %7613 = vmatpush.msra.mxu0 0.0
  %7614 = vmatpush.msra.mxu0 0.0
  %7615 = vmatpush.msra.mxu0 0.0
  %7616 = vmatpush.msra.mxu0 0.0
  %7617 = vmatpush.msra.mxu0 0.0
  %7618 = vmatpush.msra.mxu0 0.0
  %7619 = vmatpush.msra.mxu0 0.0
  %7620 = vmatpush.msra.mxu0 0.0
  %7621 = vmatpush.msra.mxu0 0.0
  %7622 = vmatpush.msra.mxu0 %v7423
  %7623 = vmatpush.msra.mxu0 %v7418
  %7624 = vmatpush.msra.mxu0 %v7413
  %7625 = vmatpush.msra.mxu0 %v7408
  %7626 = vmatmul.f32.gmra.mxu0 %v7528
  %v7627 = vpop.f32.mrf.mxu0
  %v7628 = vadd.f32 0.0, %v7627
  %7629 = vdwg.mxu0
  %v7630 = vperm.slane %v7445, 0
  %v7631 = vperm.slane %v7465, 0
  %v7632 = vperm.slane %v7485, 0
  %v7633 = vperm.slane %v7505, 0
  %v7634 = vperm.slane %v7525, 0
  %v7635 = vmul.f32 %v6936, %v7630
  %v7636 = vmul.f32 %v6937, %v7631
  %v7637 = vmul.f32 %v6938, %v7632
  %v7638 = vmul.f32 %v6939, %v7633
  %v7639 = vmul.f32 %v6940, %v7634
  %v7640 = vmul.f32 %v6941, %v7630
  %v7641 = vmul.f32 %v6942, %v7631
  %v7642 = vmul.f32 %v6943, %v7632
  %v7643 = vmul.f32 %v6944, %v7633
  %v7644 = vmul.f32 %v6945, %v7634
  %v7645 = vmul.f32 %v6946, %v7630
  %v7646 = vmul.f32 %v6947, %v7631
  %v7647 = vmul.f32 %v6948, %v7632
  %v7648 = vmul.f32 %v6949, %v7633
  %v7649 = vmul.f32 %v6950, %v7634
  %v7650 = vmul.f32 %v6951, %v7630
  %v7651 = vmul.f32 %v6952, %v7631
  %v7652 = vmul.f32 %v6953, %v7632
  %v7653 = vmul.f32 %v6954, %v7633
  %v7654 = vmul.f32 %v6955, %v7634
  %v7655 = vmul.f32 %v6956, %v7630
  %v7656 = vmul.f32 %v6957, %v7631
  %v7657 = vmul.f32 %v6958, %v7632
  %v7658 = vmul.f32 %v6959, %v7633
  %v7659 = vmul.f32 %v6960, %v7634
  %v7660 = vperm.slane %v7548, 0
  %v7661 = vperm.slane %v7568, 0
  %v7662 = vperm.slane %v7588, 0
  %v7663 = vperm.slane %v7608, 0
  %v7664 = vperm.slane %v7628, 0
  %v7665 = vadd.f32 %v7635, %v7660
  %v7666 = vadd.f32 %v7636, %v7661
  %v7667 = vadd.f32 %v7637, %v7662
  %v7668 = vadd.f32 %v7638, %v7663
  %v7669 = vadd.f32 %v7639, %v7664
  %v7670 = vadd.f32 %v7640, %v7660
  %v7671 = vadd.f32 %v7641, %v7661
  %v7672 = vadd.f32 %v7642, %v7662
  %v7673 = vadd.f32 %v7643, %v7663
  %v7674 = vadd.f32 %v7644, %v7664
  %v7675 = vadd.f32 %v7645, %v7660
  %v7676 = vadd.f32 %v7646, %v7661
  %v7677 = vadd.f32 %v7647, %v7662
  %v7678 = vadd.f32 %v7648, %v7663
  %v7679 = vadd.f32 %v7649, %v7664
  %v7680 = vadd.f32 %v7650, %v7660
  %v7681 = vadd.f32 %v7651, %v7661
  %v7682 = vadd.f32 %v7652, %v7662
  %v7683 = vadd.f32 %v7653, %v7663
  %v7684 = vadd.f32 %v7654, %v7664
  %v7685 = vadd.f32 %v7655, %v7660
  %v7686 = vadd.f32 %v7656, %v7661
  %v7687 = vadd.f32 %v7657, %v7662
  %v7688 = vadd.f32 %v7658, %v7663
  %v7689 = vadd.f32 %v7659, %v7664
  %vm7690 = vcmp.gt.f32.partialorder %v7665, 0.0
  %vm7691 = vcmp.gt.f32.partialorder %v7666, 0.0
  %vm7692 = vcmp.gt.f32.partialorder %v7667, 0.0
  %vm7693 = vcmp.gt.f32.partialorder %v7668, 0.0
  %vm7694 = vcmp.gt.f32.partialorder %v7669, 0.0
  %vm7695 = vcmp.gt.f32.partialorder %v7670, 0.0
  %vm7696 = vcmp.gt.f32.partialorder %v7671, 0.0
  %vm7697 = vcmp.gt.f32.partialorder %v7672, 0.0
  %vm7698 = vcmp.gt.f32.partialorder %v7673, 0.0
  %vm7699 = vcmp.gt.f32.partialorder %v7674, 0.0
  %vm7700 = vcmp.gt.f32.partialorder %v7675, 0.0
  %vm7701 = vcmp.gt.f32.partialorder %v7676, 0.0
  %vm7702 = vcmp.gt.f32.partialorder %v7677, 0.0
  %vm7703 = vcmp.gt.f32.partialorder %v7678, 0.0
  %vm7704 = vcmp.gt.f32.partialorder %v7679, 0.0
  %vm7705 = vcmp.gt.f32.partialorder %v7680, 0.0
  %vm7706 = vcmp.gt.f32.partialorder %v7681, 0.0
  %vm7707 = vcmp.gt.f32.partialorder %v7682, 0.0
  %vm7708 = vcmp.gt.f32.partialorder %v7683, 0.0
  %vm7709 = vcmp.gt.f32.partialorder %v7684, 0.0
  %vm7710 = vcmp.gt.f32.partialorder %v7685, 0.0
  %vm7711 = vcmp.gt.f32.partialorder %v7686, 0.0
  %vm7712 = vcmp.gt.f32.partialorder %v7687, 0.0
  %vm7713 = vcmp.gt.f32.partialorder %v7688, 0.0
  %vm7714 = vcmp.gt.f32.partialorder %v7689, 0.0
  %v7715 = vmul.f32 %v7665, 0.2
  %v7716 = vmul.f32 %v7666, 0.2
  %v7717 = vmul.f32 %v7667, 0.2
  %v7718 = vmul.f32 %v7668, 0.2
  %v7719 = vmul.f32 %v7669, 0.2
  %v7720 = vmul.f32 %v7670, 0.2
  %v7721 = vmul.f32 %v7671, 0.2
  %v7722 = vmul.f32 %v7672, 0.2
  %v7723 = vmul.f32 %v7673, 0.2
  %v7724 = vmul.f32 %v7674, 0.2
  %v7725 = vmul.f32 %v7675, 0.2
  %v7726 = vmul.f32 %v7676, 0.2
  %v7727 = vmul.f32 %v7677, 0.2
  %v7728 = vmul.f32 %v7678, 0.2
  %v7729 = vmul.f32 %v7679, 0.2
  %v7730 = vmul.f32 %v7680, 0.2
  %v7731 = vmul.f32 %v7681, 0.2
  %v7732 = vmul.f32 %v7682, 0.2
  %v7733 = vmul.f32 %v7683, 0.2
  %v7734 = vmul.f32 %v7684, 0.2
  %v7735 = vmul.f32 %v7685, 0.2
  %v7736 = vmul.f32 %v7686, 0.2
  %v7737 = vmul.f32 %v7687, 0.2
  %v7738 = vmul.f32 %v7688, 0.2
  %v7739 = vmul.f32 %v7689, 0.2
  %v7740 = vsel %vm7690, %v7665, %v7715
  %v7741 = vsel %vm7691, %v7666, %v7716
  %v7742 = vsel %vm7692, %v7667, %v7717
  %v7743 = vsel %vm7693, %v7668, %v7718
  %v7744 = vsel %vm7694, %v7669, %v7719
  %v7745 = vsel %vm7695, %v7670, %v7720
  %v7746 = vsel %vm7696, %v7671, %v7721
  %v7747 = vsel %vm7697, %v7672, %v7722
  %v7748 = vsel %vm7698, %v7673, %v7723
  %v7749 = vsel %vm7699, %v7674, %v7724
  %v7750 = vsel %vm7700, %v7675, %v7725
  %v7751 = vsel %vm7701, %v7676, %v7726
  %v7752 = vsel %vm7702, %v7677, %v7727
  %v7753 = vsel %vm7703, %v7678, %v7728
  %v7754 = vsel %vm7704, %v7679, %v7729
  %v7755 = vsel %vm7705, %v7680, %v7730
  %v7756 = vsel %vm7706, %v7681, %v7731
  %v7757 = vsel %vm7707, %v7682, %v7732
  %v7758 = vsel %vm7708, %v7683, %v7733
  %v7759 = vsel %vm7709, %v7684, %v7734
  %v7760 = vsel %vm7710, %v7685, %v7735
  %v7761 = vsel %vm7711, %v7686, %v7736
  %v7762 = vsel %vm7712, %v7687, %v7737
  %v7763 = vsel %vm7713, %v7688, %v7738
  %v7764 = vsel %vm7714, %v7689, %v7739
  %v7765 = vmul.f32 %v7740, %v570
  %v7766 = vmul.f32 %v7741, %v570
  %v7767 = vmul.f32 %v7742, %v570
  %v7768 = vmul.f32 %v7743, %v570
  %v7769 = vmul.f32 %v7744, %v570
  %v7770 = vmul.f32 %v7745, %v575
  %v7771 = vmul.f32 %v7746, %v575
  %v7772 = vmul.f32 %v7747, %v575
  %v7773 = vmul.f32 %v7748, %v575
  %v7774 = vmul.f32 %v7749, %v575
  %v7775 = vmul.f32 %v7750, %v580
  %v7776 = vmul.f32 %v7751, %v580
  %v7777 = vmul.f32 %v7752, %v580
  %v7778 = vmul.f32 %v7753, %v580
  %v7779 = vmul.f32 %v7754, %v580
  %v7780 = vmul.f32 %v7755, %v585
  %v7781 = vmul.f32 %v7756, %v585
  %v7782 = vmul.f32 %v7757, %v585
  %v7783 = vmul.f32 %v7758, %v585
  %v7784 = vmul.f32 %v7759, %v585
  %v7785 = vmul.f32 %v7760, %v590
  %v7786 = vmul.f32 %v7761, %v590
  %v7787 = vmul.f32 %v7762, %v590
  %v7788 = vmul.f32 %v7763, %v590
  %v7789 = vmul.f32 %v7764, %v590
  %v7790 = vld [vmem:[%s16] sm:$0x1f]
  %v7792 = vperm.slane %v7790, 0
  %v7793 = vperm.slane %v7790, 1
  %v7794 = vperm.slane %v7790, 2
  %v7795 = vperm.slane %v7790, 3
  %v7796 = vperm.slane %v7790, 4
  %v7802 = vmul.f32 %v7765, %v7792
  %v7803 = vmul.f32 %v7766, %v7793
  %v7804 = vmul.f32 %v7767, %v7794
  %v7805 = vmul.f32 %v7768, %v7795
  %v7806 = vmul.f32 %v7769, %v7796
  %v7807 = vmul.f32 %v7770, %v7792
  %v7808 = vmul.f32 %v7771, %v7793
  %v7809 = vmul.f32 %v7772, %v7794
  %v7810 = vmul.f32 %v7773, %v7795
  %v7811 = vmul.f32 %v7774, %v7796
  %v7812 = vmul.f32 %v7775, %v7792
  %v7813 = vmul.f32 %v7776, %v7793
  %v7814 = vmul.f32 %v7777, %v7794
  %v7815 = vmul.f32 %v7778, %v7795
  %v7816 = vmul.f32 %v7779, %v7796
  %v7817 = vmul.f32 %v7780, %v7792
  %v7818 = vmul.f32 %v7781, %v7793
  %v7819 = vmul.f32 %v7782, %v7794
  %v7820 = vmul.f32 %v7783, %v7795
  %v7821 = vmul.f32 %v7784, %v7796
  %v7822 = vmul.f32 %v7785, %v7792
  %v7823 = vmul.f32 %v7786, %v7793
  %v7824 = vmul.f32 %v7787, %v7794
  %v7825 = vmul.f32 %v7788, %v7795
  %v7826 = vmul.f32 %v7789, %v7796
  %v7852 = vrot.slane %v7802, 7
  %v7853 = vrot.slane %v7803, 7
  %v7854 = vrot.slane %v7804, 7
  %v7855 = vrot.slane %v7805, 7
  %v7856 = vrot.slane %v7806, 7
  %v7857 = vrot.slane %v7807, 7
  %v7858 = vsel %vm667, %v7852, %v7857
  %v7859 = vrot.slane %v7808, 7
  %v7860 = vsel %vm667, %v7853, %v7859
  %v7861 = vrot.slane %v7809, 7
  %v7862 = vsel %vm667, %v7854, %v7861
  %v7863 = vrot.slane %v7810, 7
  %v7864 = vsel %vm667, %v7855, %v7863
  %v7865 = vrot.slane %v7811, 7
  %v7866 = vsel %vm667, %v7856, %v7865
  %v7867 = vrot.slane %v7812, 7
  %v7868 = vsel %vm667, %v7857, %v7867
  %v7869 = vrot.slane %v7813, 7
  %v7870 = vsel %vm667, %v7859, %v7869
  %v7871 = vrot.slane %v7814, 7
  %v7872 = vsel %vm667, %v7861, %v7871
  %v7873 = vrot.slane %v7815, 7
  %v7874 = vsel %vm667, %v7863, %v7873
  %v7875 = vrot.slane %v7816, 7
  %v7876 = vsel %vm667, %v7865, %v7875
  %v7877 = vrot.slane %v7817, 7
  %v7878 = vsel %vm667, %v7867, %v7877
  %v7879 = vrot.slane %v7818, 7
  %v7880 = vsel %vm667, %v7869, %v7879
  %v7881 = vrot.slane %v7819, 7
  %v7882 = vsel %vm667, %v7871, %v7881
  %v7883 = vrot.slane %v7820, 7
  %v7884 = vsel %vm667, %v7873, %v7883
  %v7885 = vrot.slane %v7821, 7
  %v7886 = vsel %vm667, %v7875, %v7885
  %v7887 = vrot.slane %v7822, 7
  %v7888 = vsel %vm667, %v7877, %v7887
  %v7889 = vrot.slane %v7823, 7
  %v7890 = vsel %vm667, %v7879, %v7889
  %v7891 = vrot.slane %v7824, 7
  %v7892 = vsel %vm667, %v7881, %v7891
  %v7893 = vrot.slane %v7825, 7
  %v7894 = vsel %vm667, %v7883, %v7893
  %v7895 = vrot.slane %v7826, 7
  %v7896 = vsel %vm667, %v7885, %v7895
  %7922 = vst [vmem:[#allocation2] sm:$0xfe] %v7852
  %7923 = vst [vmem:[#allocation2 + $0x8] sm:$0xfe] %v7853
  %7924 = vst [vmem:[#allocation2 + $0x10] sm:$0xfe] %v7854
  %7925 = vst [vmem:[#allocation2 + $0x18] sm:$0xfe] %v7855
  %7926 = vst.msk [vmem:[#allocation2 + $0x20] sm:$0xfe] %vm3126, %v7856
  %7927 = vst [vmem:[#allocation2 + $0x28] sm:$0xff] %v7858
  %7928 = vst [vmem:[#allocation2 + $0x30] sm:$0xff] %v7860
  %7929 = vst [vmem:[#allocation2 + $0x38] sm:$0xff] %v7862
  %7930 = vst [vmem:[#allocation2 + $0x40] sm:$0xff] %v7864
  %7931 = vst.msk [vmem:[#allocation2 + $0x48] sm:$0xff] %vm3132, %v7866
  %7932 = vst [vmem:[#allocation2 + $0x50] sm:$0xff] %v7868
  %7933 = vst [vmem:[#allocation2 + $0x58] sm:$0xff] %v7870
  %7934 = vst [vmem:[#allocation2 + $0x60] sm:$0xff] %v7872
  %7935 = vst [vmem:[#allocation2 + $0x68] sm:$0xff] %v7874
  %7936 = vst.msk [vmem:[#allocation2 + $0x70] sm:$0xff] %vm3132, %v7876
  %7937 = vst [vmem:[#allocation2 + $0x78] sm:$0xff] %v7878
  %7938 = vst [vmem:[#allocation2 + $0x80] sm:$0xff] %v7880
  %7939 = vst [vmem:[#allocation2 + $0x88] sm:$0xff] %v7882
  %7940 = vst [vmem:[#allocation2 + $0x90] sm:$0xff] %v7884
  %7941 = vst.msk [vmem:[#allocation2 + $0x98] sm:$0xff] %vm3132, %v7886
  %7942 = vst [vmem:[#allocation2 + $0xa0] sm:$0x1f] %v7888
  %7943 = vst [vmem:[#allocation2 + $0xa8] sm:$0x1f] %v7890
  %7944 = vst [vmem:[#allocation2 + $0xb0] sm:$0x1f] %v7892
  %7945 = vst [vmem:[#allocation2 + $0xb8] sm:$0x1f] %v7894
  %7946 = vst.msk [vmem:[#allocation2 + $0xc0] sm:$0x1f] %vm3148, %v7896
  %v7947 = vld [vmem:[#allocation2] sm:$0xff]
  %v7948 = vld [vmem:[#allocation2 + $0x8] sm:$0xff]
  %v7949 = vld [vmem:[#allocation2 + $0x10] sm:$0xff]
  %v7950 = vld [vmem:[#allocation2 + $0x18] sm:$0xff]
  %v7951 = vld [vmem:[#allocation2 + $0x20] sm:$0xff]
  %v7952 = vld [vmem:[#allocation2 + $0x28] sm:$0xff]
  %v7953 = vld [vmem:[#allocation2 + $0x30] sm:$0xff]
  %v7954 = vld [vmem:[#allocation2 + $0x38] sm:$0xff]
  %v7955 = vld [vmem:[#allocation2 + $0x40] sm:$0xff]
  %v7956 = vld [vmem:[#allocation2 + $0x48] sm:$0xff]
  %v7957 = vld [vmem:[#allocation2 + $0x50] sm:$0xff]
  %v7958 = vld [vmem:[#allocation2 + $0x58] sm:$0xff]
  %v7959 = vld [vmem:[#allocation2 + $0x60] sm:$0xff]
  %v7960 = vld [vmem:[#allocation2 + $0x68] sm:$0xff]
  %v7961 = vld [vmem:[#allocation2 + $0x70] sm:$0xff]
  %v7962 = vld [vmem:[#allocation2 + $0x78] sm:$0xff]
  %v7963 = vld [vmem:[#allocation2 + $0x80] sm:$0xff]
  %v7964 = vld [vmem:[#allocation2 + $0x88] sm:$0xff]
  %v7965 = vld [vmem:[#allocation2 + $0x90] sm:$0xff]
  %v7966 = vld [vmem:[#allocation2 + $0x98] sm:$0xff]
  %v7967 = vld [vmem:[#allocation2 + $0xa0] sm:$0xf]
  %v7968 = vld [vmem:[#allocation2 + $0xa8] sm:$0xf]
  %v7969 = vld [vmem:[#allocation2 + $0xb0] sm:$0xf]
  %v7970 = vld [vmem:[#allocation2 + $0xb8] sm:$0xf]
  %v7971 = vld [vmem:[#allocation2 + $0xc0] sm:$0xf]
  %v7972 = vld [vmem:[%s7] sm:$0xff]
  %v7973 = vld [vmem:[%s7 + $0x8] sm:$0xff]
  %v7974 = vld [vmem:[%s7 + $0x10] sm:$0xff]
  %v7975 = vld [vmem:[%s7 + $0x18] sm:$0xff]
  %v7976 = vld [vmem:[%s7 + $0x20] sm:$0xff]
  %v7977 = vld [vmem:[%s7 + $0x28] sm:$0xff]
  %v7978 = vld [vmem:[%s7 + $0x30] sm:$0xff]
  %v7979 = vld [vmem:[%s7 + $0x38] sm:$0xff]
  %v7980 = vld [vmem:[%s7 + $0x40] sm:$0xff]
  %v7981 = vld [vmem:[%s7 + $0x48] sm:$0xff]
  %v7982 = vld [vmem:[%s7 + $0x50] sm:$0xff]
  %v7983 = vld [vmem:[%s7 + $0x58] sm:$0xff]
  %v7984 = vld [vmem:[%s7 + $0x60] sm:$0xff]
  %v7985 = vld [vmem:[%s7 + $0x68] sm:$0xff]
  %v7986 = vld [vmem:[%s7 + $0x70] sm:$0xff]
  %v7987 = vld [vmem:[%s7 + $0x78] sm:$0xff]
  %v7988 = vld [vmem:[%s7 + $0x80] sm:$0xff]
  %v7989 = vld [vmem:[%s7 + $0x88] sm:$0xff]
  %v7990 = vld [vmem:[%s7 + $0x90] sm:$0xff]
  %v7991 = vld [vmem:[%s7 + $0x98] sm:$0xff]
  %v7992 = vld [vmem:[%s7 + $0xa0] sm:$0xff]
  %v7993 = vld [vmem:[%s7 + $0xa8] sm:$0xff]
  %v7994 = vld [vmem:[%s7 + $0xb0] sm:$0xff]
  %v7995 = vld [vmem:[%s7 + $0xb8] sm:$0xff]
  %v7996 = vld [vmem:[%s7 + $0xc0] sm:$0xff]
  %v7997 = vld [vmem:[%s7 + $0xc8] sm:$0xff]
  %v7998 = vld [vmem:[%s7 + $0xd0] sm:$0xff]
  %v7999 = vld [vmem:[%s7 + $0xd8] sm:$0xff]
  %v8000 = vld [vmem:[%s7 + $0xe0] sm:$0xff]
  %v8001 = vld [vmem:[%s7 + $0xe8] sm:$0xff]
  %v8002 = vld [vmem:[%s7 + $0xf0] sm:$0xff]
  %v8003 = vld [vmem:[%s7 + $0xf8] sm:$0xff]
  %v8004 = vld [vmem:[%s7 + $0x100] sm:$0xff]
  %v8005 = vld [vmem:[%s7 + $0x108] sm:$0xff]
  %v8006 = vld [vmem:[%s7 + $0x110] sm:$0xff]
  %v8007 = vld [vmem:[%s7 + $0x118] sm:$0xff]
  %v8008 = vld [vmem:[%s7 + $0x120] sm:$0xff]
  %v8009 = vld [vmem:[%s7 + $0x128] sm:$0xff]
  %v8010 = vld [vmem:[%s7 + $0x130] sm:$0xff]
  %v8011 = vld [vmem:[%s7 + $0x138] sm:$0xff]
  %v8012 = vld [vmem:[%s7 + $0x140] sm:$0xff]
  %v8013 = vld [vmem:[%s7 + $0x148] sm:$0xff]
  %v8014 = vld [vmem:[%s7 + $0x150] sm:$0xff]
  %v8015 = vld [vmem:[%s7 + $0x158] sm:$0xff]
  %v8016 = vld [vmem:[%s7 + $0x160] sm:$0xff]
  %v8017 = vld [vmem:[%s7 + $0x168] sm:$0xff]
  %v8018 = vld [vmem:[%s7 + $0x170] sm:$0xff]
  %v8019 = vld [vmem:[%s7 + $0x178] sm:$0xff]
  %v8020 = vld [vmem:[%s7 + $0x180] sm:$0xff]
  %v8021 = vld [vmem:[%s7 + $0x188] sm:$0xff]
  %v8022 = vld [vmem:[%s7 + $0x190] sm:$0xff]
  %v8023 = vld [vmem:[%s7 + $0x198] sm:$0xff]
  %v8024 = vld [vmem:[%s7 + $0x1a0] sm:$0xff]
  %v8025 = vld [vmem:[%s7 + $0x1a8] sm:$0xff]
  %v8026 = vld [vmem:[%s7 + $0x1b0] sm:$0xff]
  %v8027 = vld [vmem:[%s7 + $0x1b8] sm:$0xff]
  %v8028 = vld [vmem:[%s7 + $0x1c0] sm:$0xff]
  %v8029 = vld [vmem:[%s7 + $0x1c8] sm:$0xff]
  %v8030 = vld [vmem:[%s7 + $0x1d0] sm:$0xff]
  %v8031 = vld [vmem:[%s7 + $0x1d8] sm:$0xff]
  %v8032 = vld [vmem:[%s7 + $0x1e0] sm:$0xff]
  %v8033 = vld [vmem:[%s7 + $0x1e8] sm:$0xff]
  %v8034 = vld [vmem:[%s7 + $0x1f0] sm:$0xff]
  %v8035 = vld [vmem:[%s7 + $0x1f8] sm:$0xff]
  %v8036 = vld [vmem:[%s7 + $0x200] sm:$0xff]
  %v8037 = vld [vmem:[%s7 + $0x208] sm:$0xff]
  %v8038 = vld [vmem:[%s7 + $0x210] sm:$0xff]
  %v8039 = vld [vmem:[%s7 + $0x218] sm:$0xff]
  %v8040 = vld [vmem:[%s7 + $0x220] sm:$0xff]
  %v8041 = vld [vmem:[%s7 + $0x228] sm:$0xff]
  %v8042 = vld [vmem:[%s7 + $0x230] sm:$0xff]
  %v8043 = vld [vmem:[%s7 + $0x238] sm:$0xff]
  %v8044 = vld [vmem:[%s7 + $0x240] sm:$0xff]
  %v8045 = vld [vmem:[%s7 + $0x248] sm:$0xff]
  %v8046 = vld [vmem:[%s7 + $0x250] sm:$0xff]
  %v8047 = vld [vmem:[%s7 + $0x258] sm:$0xff]
  %v8048 = vld [vmem:[%s7 + $0x260] sm:$0xff]
  %v8049 = vld [vmem:[%s7 + $0x268] sm:$0xff]
  %v8050 = vld [vmem:[%s7 + $0x270] sm:$0xff]
  %v8051 = vld [vmem:[%s7 + $0x278] sm:$0xff]
  %v8052 = vld [vmem:[%s7 + $0x280] sm:$0xff]
  %v8053 = vld [vmem:[%s7 + $0x288] sm:$0xff]
  %v8054 = vld [vmem:[%s7 + $0x290] sm:$0xff]
  %v8055 = vld [vmem:[%s7 + $0x298] sm:$0xff]
  %v8056 = vld [vmem:[%s7 + $0x2a0] sm:$0xff]
  %v8057 = vld [vmem:[%s7 + $0x2a8] sm:$0xff]
  %v8058 = vld [vmem:[%s7 + $0x2b0] sm:$0xff]
  %v8059 = vld [vmem:[%s7 + $0x2b8] sm:$0xff]
  %v8060 = vld [vmem:[%s7 + $0x2c0] sm:$0xff]
  %v8061 = vld [vmem:[%s7 + $0x2c8] sm:$0xff]
  %v8062 = vld [vmem:[%s7 + $0x2d0] sm:$0xff]
  %v8063 = vld [vmem:[%s7 + $0x2d8] sm:$0xff]
  %v8064 = vld [vmem:[%s7 + $0x2e0] sm:$0xff]
  %v8065 = vld [vmem:[%s7 + $0x2e8] sm:$0xff]
  %v8066 = vld [vmem:[%s7 + $0x2f0] sm:$0xff]
  %v8067 = vld [vmem:[%s7 + $0x2f8] sm:$0xff]
  %v8068 = vld [vmem:[%s7 + $0x300] sm:$0xff]
  %v8069 = vld [vmem:[%s7 + $0x308] sm:$0xff]
  %v8070 = vld [vmem:[%s7 + $0x310] sm:$0xff]
  %v8071 = vld [vmem:[%s7 + $0x318] sm:$0xff]
  %v8072 = vld [vmem:[%s7 + $0x320] sm:$0xff]
  %v8073 = vld [vmem:[%s7 + $0x328] sm:$0xff]
  %v8074 = vld [vmem:[%s7 + $0x330] sm:$0xff]
  %v8075 = vld [vmem:[%s7 + $0x338] sm:$0xff]
  %v8076 = vld [vmem:[%s7 + $0x340] sm:$0xff]
  %v8077 = vld [vmem:[%s7 + $0x348] sm:$0xff]
  %v8078 = vld [vmem:[%s7 + $0x350] sm:$0xff]
  %v8079 = vld [vmem:[%s7 + $0x358] sm:$0xff]
  %v8080 = vld [vmem:[%s7 + $0x360] sm:$0xff]
  %v8081 = vld [vmem:[%s7 + $0x368] sm:$0xff]
  %v8082 = vld [vmem:[%s7 + $0x370] sm:$0xff]
  %v8083 = vld [vmem:[%s7 + $0x378] sm:$0xff]
  %v8084 = vld [vmem:[%s7 + $0x380] sm:$0xff]
  %v8085 = vld [vmem:[%s7 + $0x388] sm:$0xff]
  %v8086 = vld [vmem:[%s7 + $0x390] sm:$0xff]
  %v8087 = vld [vmem:[%s7 + $0x398] sm:$0xff]
  %v8088 = vld [vmem:[%s7 + $0x3a0] sm:$0xff]
  %v8089 = vld [vmem:[%s7 + $0x3a8] sm:$0xff]
  %v8090 = vld [vmem:[%s7 + $0x3b0] sm:$0xff]
  %v8091 = vld [vmem:[%s7 + $0x3b8] sm:$0xff]
  %v8092 = vld [vmem:[%s7 + $0x3c0] sm:$0xff]
  %v8093 = vld [vmem:[%s7 + $0x3c8] sm:$0xff]
  %v8094 = vld [vmem:[%s7 + $0x3d0] sm:$0xff]
  %v8095 = vld [vmem:[%s7 + $0x3d8] sm:$0xff]
  %v8096 = vld [vmem:[%s7 + $0x3e0] sm:$0xff]
  %v8097 = vld [vmem:[%s7 + $0x3e8] sm:$0xff]
  %v8098 = vld [vmem:[%s7 + $0x3f0] sm:$0xff]
  %v8099 = vld [vmem:[%s7 + $0x3f8] sm:$0xff]
  %v8100 = vld [vmem:[%s7 + $0x400] sm:$0xff]
  %v8101 = vld [vmem:[%s7 + $0x408] sm:$0xff]
  %v8102 = vld [vmem:[%s7 + $0x410] sm:$0xff]
  %v8103 = vld [vmem:[%s7 + $0x418] sm:$0xff]
  %v8104 = vld [vmem:[%s7 + $0x420] sm:$0xff]
  %v8105 = vld [vmem:[%s7 + $0x428] sm:$0xff]
  %v8106 = vld [vmem:[%s7 + $0x430] sm:$0xff]
  %v8107 = vld [vmem:[%s7 + $0x438] sm:$0xff]
  %v8108 = vld [vmem:[%s7 + $0x440] sm:$0xff]
  %v8109 = vld [vmem:[%s7 + $0x448] sm:$0xff]
  %v8110 = vld [vmem:[%s7 + $0x450] sm:$0xff]
  %v8111 = vld [vmem:[%s7 + $0x458] sm:$0xff]
  %v8112 = vld [vmem:[%s7 + $0x460] sm:$0xff]
  %v8113 = vld [vmem:[%s7 + $0x468] sm:$0xff]
  %v8114 = vld [vmem:[%s7 + $0x470] sm:$0xff]
  %v8115 = vld [vmem:[%s7 + $0x478] sm:$0xff]
  %v8116 = vld [vmem:[%s7 + $0x480] sm:$0xff]
  %v8117 = vld [vmem:[%s7 + $0x488] sm:$0xff]
  %v8118 = vld [vmem:[%s7 + $0x490] sm:$0xff]
  %v8119 = vld [vmem:[%s7 + $0x498] sm:$0xff]
  %v8120 = vld [vmem:[%s7 + $0x4a0] sm:$0xff]
  %v8121 = vld [vmem:[%s7 + $0x4a8] sm:$0xff]
  %v8122 = vld [vmem:[%s7 + $0x4b0] sm:$0xff]
  %v8123 = vld [vmem:[%s7 + $0x4b8] sm:$0xff]
  %v8124 = vld [vmem:[%s7 + $0x4c0] sm:$0xff]
  %v8125 = vld [vmem:[%s7 + $0x4c8] sm:$0xff]
  %v8126 = vld [vmem:[%s7 + $0x4d0] sm:$0xff]
  %v8127 = vld [vmem:[%s7 + $0x4d8] sm:$0xff]
  %v8128 = vld [vmem:[%s7 + $0x4e0] sm:$0xff]
  %v8129 = vld [vmem:[%s7 + $0x4e8] sm:$0xff]
  %v8130 = vld [vmem:[%s7 + $0x4f0] sm:$0xff]
  %v8131 = vld [vmem:[%s7 + $0x4f8] sm:$0xff]
  %v8132 = vld [vmem:[%s7 + $0x500] sm:$0xff]
  %v8133 = vld [vmem:[%s7 + $0x508] sm:$0xff]
  %v8134 = vld [vmem:[%s7 + $0x510] sm:$0xff]
  %v8135 = vld [vmem:[%s7 + $0x518] sm:$0xff]
  %v8136 = vld [vmem:[%s7 + $0x520] sm:$0xff]
  %v8137 = vld [vmem:[%s7 + $0x528] sm:$0xff]
  %v8138 = vld [vmem:[%s7 + $0x530] sm:$0xff]
  %v8139 = vld [vmem:[%s7 + $0x538] sm:$0xff]
  %v8140 = vld [vmem:[%s7 + $0x540] sm:$0xff]
  %v8141 = vld [vmem:[%s7 + $0x548] sm:$0xff]
  %v8142 = vld [vmem:[%s7 + $0x550] sm:$0xff]
  %v8143 = vld [vmem:[%s7 + $0x558] sm:$0xff]
  %v8144 = vld [vmem:[%s7 + $0x560] sm:$0xff]
  %v8145 = vld [vmem:[%s7 + $0x568] sm:$0xff]
  %v8146 = vld [vmem:[%s7 + $0x570] sm:$0xff]
  %v8147 = vld [vmem:[%s7 + $0x578] sm:$0xff]
  %v8148 = vld [vmem:[%s7 + $0x580] sm:$0xff]
  %v8149 = vld [vmem:[%s7 + $0x588] sm:$0xff]
  %v8150 = vld [vmem:[%s7 + $0x590] sm:$0xff]
  %v8151 = vld [vmem:[%s7 + $0x598] sm:$0xff]
  %v8152 = vld [vmem:[%s7 + $0x5a0] sm:$0xff]
  %v8153 = vld [vmem:[%s7 + $0x5a8] sm:$0xff]
  %v8154 = vld [vmem:[%s7 + $0x5b0] sm:$0xff]
  %v8155 = vld [vmem:[%s7 + $0x5b8] sm:$0xff]
  %v8156 = vld [vmem:[%s7 + $0x5c0] sm:$0xff]
  %v8157 = vld [vmem:[%s7 + $0x5c8] sm:$0xff]
  %v8158 = vld [vmem:[%s7 + $0x5d0] sm:$0xff]
  %v8159 = vld [vmem:[%s7 + $0x5d8] sm:$0xff]
  %v8160 = vld [vmem:[%s7 + $0x5e0] sm:$0xff]
  %v8161 = vld [vmem:[%s7 + $0x5e8] sm:$0xff]
  %v8162 = vld [vmem:[%s7 + $0x5f0] sm:$0xff]
  %v8163 = vld [vmem:[%s7 + $0x5f8] sm:$0xff]
  %v8164 = vld [vmem:[%s7 + $0x600] sm:$0xff]
  %v8165 = vld [vmem:[%s7 + $0x608] sm:$0xff]
  %v8166 = vld [vmem:[%s7 + $0x610] sm:$0xff]
  %v8167 = vld [vmem:[%s7 + $0x618] sm:$0xff]
  %v8168 = vld [vmem:[%s7 + $0x620] sm:$0xff]
  %v8169 = vld [vmem:[%s7 + $0x628] sm:$0xff]
  %v8170 = vld [vmem:[%s7 + $0x630] sm:$0xff]
  %v8171 = vld [vmem:[%s7 + $0x638] sm:$0xff]
  %v8172 = vld [vmem:[%s7 + $0x640] sm:$0xff]
  %v8173 = vld [vmem:[%s7 + $0x648] sm:$0xff]
  %v8174 = vld [vmem:[%s7 + $0x650] sm:$0xff]
  %v8175 = vld [vmem:[%s7 + $0x658] sm:$0xff]
  %v8176 = vld [vmem:[%s7 + $0x660] sm:$0xff]
  %v8177 = vld [vmem:[%s7 + $0x668] sm:$0xff]
  %v8178 = vld [vmem:[%s7 + $0x670] sm:$0xff]
  %v8179 = vld [vmem:[%s7 + $0x678] sm:$0xff]
  %v8180 = vld [vmem:[%s7 + $0x680] sm:$0xff]
  %v8181 = vld [vmem:[%s7 + $0x688] sm:$0xff]
  %v8182 = vld [vmem:[%s7 + $0x690] sm:$0xff]
  %v8183 = vld [vmem:[%s7 + $0x698] sm:$0xff]
  %v8184 = vld [vmem:[%s7 + $0x6a0] sm:$0xff]
  %v8185 = vld [vmem:[%s7 + $0x6a8] sm:$0xff]
  %v8186 = vld [vmem:[%s7 + $0x6b0] sm:$0xff]
  %v8187 = vld [vmem:[%s7 + $0x6b8] sm:$0xff]
  %v8188 = vld [vmem:[#allocation2] sm:$0xfe]
  %v8189 = vld [vmem:[#allocation2 + $0x8] sm:$0xfe]
  %v8190 = vld [vmem:[#allocation2 + $0x10] sm:$0xfe]
  %v8191 = vld [vmem:[#allocation2 + $0x18] sm:$0xfe]
  %v8192 = vld [vmem:[#allocation2 + $0x20] sm:$0xfe]
  %v8193 = vld [vmem:[#allocation2 + $0xa0] sm:$0x1f]
  %v8194 = vld [vmem:[#allocation2 + $0xa8] sm:$0x1f]
  %v8195 = vld [vmem:[#allocation2 + $0xb0] sm:$0x1f]
  %v8196 = vld [vmem:[#allocation2 + $0xb8] sm:$0x1f]
  %v8197 = vld [vmem:[#allocation2 + $0xc0] sm:$0x1f]
  %s8198 = scalar_lea.vmem %s7, 1728
  %v8199 = vld [vmem:[%s8198] sm:$0xff]
  %v8200 = vld [vmem:[%s8198 + $0x8] sm:$0xff]
  %v8201 = vld [vmem:[%s8198 + $0x10] sm:$0xff]
  %v8202 = vld [vmem:[%s8198 + $0x18] sm:$0xff]
  %v8203 = vld [vmem:[%s8198 + $0x20] sm:$0xff]
  %v8204 = vld [vmem:[%s8198 + $0x28] sm:$0xff]
  %v8205 = vld [vmem:[%s8198 + $0x30] sm:$0xff]
  %v8206 = vld [vmem:[%s8198 + $0x38] sm:$0xff]
  %v8207 = vld [vmem:[%s8198 + $0x40] sm:$0xff]
  %v8208 = vld [vmem:[%s8198 + $0x48] sm:$0xff]
  %v8209 = vld [vmem:[%s8198 + $0x50] sm:$0xff]
  %v8210 = vld [vmem:[%s8198 + $0x58] sm:$0xff]
  %v8211 = vld [vmem:[%s8198 + $0x60] sm:$0xff]
  %v8212 = vld [vmem:[%s8198 + $0x68] sm:$0xff]
  %v8213 = vld [vmem:[%s8198 + $0x70] sm:$0xff]
  %v8214 = vld [vmem:[%s8198 + $0x78] sm:$0xff]
  %v8215 = vld [vmem:[%s8198 + $0x80] sm:$0xff]
  %v8216 = vld [vmem:[%s8198 + $0x88] sm:$0xff]
  %v8217 = vld [vmem:[%s8198 + $0x90] sm:$0xff]
  %v8218 = vld [vmem:[%s8198 + $0x98] sm:$0xff]
  %v8219 = vld [vmem:[%s8198 + $0xa0] sm:$0xff]
  %v8220 = vld [vmem:[%s8198 + $0xa8] sm:$0xff]
  %v8221 = vld [vmem:[%s8198 + $0xb0] sm:$0xff]
  %v8222 = vld [vmem:[%s8198 + $0xb8] sm:$0xff]
  %v8223 = vld [vmem:[%s8198 + $0xc0] sm:$0xff]
  %v8224 = vld [vmem:[%s8198 + $0xc8] sm:$0xff]
  %v8225 = vld [vmem:[%s8198 + $0xd0] sm:$0xff]
  %v8226 = vld [vmem:[%s8198 + $0xd8] sm:$0xff]
  %v8227 = vld [vmem:[%s8198 + $0xe0] sm:$0xff]
  %v8228 = vld [vmem:[%s8198 + $0xe8] sm:$0xff]
  %v8229 = vld [vmem:[%s8198 + $0xf0] sm:$0xff]
  %v8230 = vld [vmem:[%s8198 + $0xf8] sm:$0xff]
  %v8231 = vld [vmem:[%s8198 + $0x100] sm:$0xff]
  %v8232 = vld [vmem:[%s8198 + $0x108] sm:$0xff]
  %v8233 = vld [vmem:[%s8198 + $0x110] sm:$0xff]
  %v8234 = vld [vmem:[%s8198 + $0x118] sm:$0xff]
  %v8235 = vld [vmem:[%s8198 + $0x120] sm:$0xff]
  %v8236 = vld [vmem:[%s8198 + $0x128] sm:$0xff]
  %v8237 = vld [vmem:[%s8198 + $0x130] sm:$0xff]
  %v8238 = vld [vmem:[%s8198 + $0x138] sm:$0xff]
  %v8239 = vld [vmem:[%s8198 + $0x140] sm:$0xff]
  %v8240 = vld [vmem:[%s8198 + $0x148] sm:$0xff]
  %v8241 = vld [vmem:[%s8198 + $0x150] sm:$0xff]
  %v8242 = vld [vmem:[%s8198 + $0x158] sm:$0xff]
  %v8243 = vld [vmem:[%s8198 + $0x160] sm:$0xff]
  %v8244 = vld [vmem:[%s8198 + $0x168] sm:$0xff]
  %v8245 = vld [vmem:[%s8198 + $0x170] sm:$0xff]
  %v8246 = vld [vmem:[%s8198 + $0x178] sm:$0xff]
  %v8247 = vld [vmem:[%s8198 + $0x180] sm:$0xff]
  %v8248 = vld [vmem:[%s8198 + $0x188] sm:$0xff]
  %v8249 = vld [vmem:[%s8198 + $0x190] sm:$0xff]
  %v8250 = vld [vmem:[%s8198 + $0x198] sm:$0xff]
  %v8251 = vld [vmem:[%s8198 + $0x1a0] sm:$0xff]
  %v8252 = vld [vmem:[%s8198 + $0x1a8] sm:$0xff]
  %v8253 = vld [vmem:[%s8198 + $0x1b0] sm:$0xff]
  %v8254 = vld [vmem:[%s8198 + $0x1b8] sm:$0xff]
  %v8255 = vld [vmem:[%s8198 + $0x1c0] sm:$0xff]
  %v8256 = vld [vmem:[%s8198 + $0x1c8] sm:$0xff]
  %v8257 = vld [vmem:[%s8198 + $0x1d0] sm:$0xff]
  %v8258 = vld [vmem:[%s8198 + $0x1d8] sm:$0xff]
  %v8259 = vld [vmem:[%s8198 + $0x1e0] sm:$0xff]
  %v8260 = vld [vmem:[%s8198 + $0x1e8] sm:$0xff]
  %v8261 = vld [vmem:[%s8198 + $0x1f0] sm:$0xff]
  %v8262 = vld [vmem:[%s8198 + $0x1f8] sm:$0xff]
  %v8263 = vld [vmem:[%s8198 + $0x200] sm:$0xff]
  %v8264 = vld [vmem:[%s8198 + $0x208] sm:$0xff]
  %v8265 = vld [vmem:[%s8198 + $0x210] sm:$0xff]
  %v8266 = vld [vmem:[%s8198 + $0x218] sm:$0xff]
  %v8267 = vld [vmem:[%s8198 + $0x220] sm:$0xff]
  %v8268 = vld [vmem:[%s8198 + $0x228] sm:$0xff]
  %v8269 = vld [vmem:[%s8198 + $0x230] sm:$0xff]
  %v8270 = vld [vmem:[%s8198 + $0x238] sm:$0xff]
  %v8271 = vld [vmem:[%s8198 + $0x240] sm:$0xff]
  %v8272 = vld [vmem:[%s8198 + $0x248] sm:$0xff]
  %v8273 = vld [vmem:[%s8198 + $0x250] sm:$0xff]
  %v8274 = vld [vmem:[%s8198 + $0x258] sm:$0xff]
  %v8275 = vld [vmem:[%s8198 + $0x260] sm:$0xff]
  %v8276 = vld [vmem:[%s8198 + $0x268] sm:$0xff]
  %v8277 = vld [vmem:[%s8198 + $0x270] sm:$0xff]
  %v8278 = vld [vmem:[%s8198 + $0x278] sm:$0xff]
  %v8279 = vld [vmem:[%s8198 + $0x280] sm:$0xff]
  %v8280 = vld [vmem:[%s8198 + $0x288] sm:$0xff]
  %v8281 = vld [vmem:[%s8198 + $0x290] sm:$0xff]
  %v8282 = vld [vmem:[%s8198 + $0x298] sm:$0xff]
  %v8283 = vld [vmem:[%s8198 + $0x2a0] sm:$0xff]
  %v8284 = vld [vmem:[%s8198 + $0x2a8] sm:$0xff]
  %v8285 = vld [vmem:[%s8198 + $0x2b0] sm:$0xff]
  %v8286 = vld [vmem:[%s8198 + $0x2b8] sm:$0xff]
  %v8287 = vld [vmem:[%s8198 + $0x2c0] sm:$0xff]
  %v8288 = vld [vmem:[%s8198 + $0x2c8] sm:$0xff]
  %v8289 = vld [vmem:[%s8198 + $0x2d0] sm:$0xff]
  %v8290 = vld [vmem:[%s8198 + $0x2d8] sm:$0xff]
  %v8291 = vld [vmem:[%s8198 + $0x2e0] sm:$0xff]
  %v8292 = vld [vmem:[%s8198 + $0x2e8] sm:$0xff]
  %v8293 = vld [vmem:[%s8198 + $0x2f0] sm:$0xff]
  %v8294 = vld [vmem:[%s8198 + $0x2f8] sm:$0xff]
  %v8295 = vld [vmem:[%s8198 + $0x300] sm:$0xff]
  %v8296 = vld [vmem:[%s8198 + $0x308] sm:$0xff]
  %v8297 = vld [vmem:[%s8198 + $0x310] sm:$0xff]
  %v8298 = vld [vmem:[%s8198 + $0x318] sm:$0xff]
  %v8299 = vld [vmem:[%s8198 + $0x320] sm:$0xff]
  %v8300 = vld [vmem:[%s8198 + $0x328] sm:$0xff]
  %v8301 = vld [vmem:[%s8198 + $0x330] sm:$0xff]
  %v8302 = vld [vmem:[%s8198 + $0x338] sm:$0xff]
  %v8303 = vld [vmem:[%s8198 + $0x340] sm:$0xff]
  %v8304 = vld [vmem:[%s8198 + $0x348] sm:$0xff]
  %v8305 = vld [vmem:[%s8198 + $0x350] sm:$0xff]
  %v8306 = vld [vmem:[%s8198 + $0x358] sm:$0xff]
  %v8307 = vld [vmem:[%s8198 + $0x360] sm:$0xff]
  %v8308 = vld [vmem:[%s8198 + $0x368] sm:$0xff]
  %v8309 = vld [vmem:[%s8198 + $0x370] sm:$0xff]
  %v8310 = vld [vmem:[%s8198 + $0x378] sm:$0xff]
  %v8311 = vld [vmem:[%s8198 + $0x380] sm:$0xff]
  %v8312 = vld [vmem:[%s8198 + $0x388] sm:$0xff]
  %v8313 = vld [vmem:[%s8198 + $0x390] sm:$0xff]
  %v8314 = vld [vmem:[%s8198 + $0x398] sm:$0xff]
  %v8315 = vld [vmem:[%s8198 + $0x3a0] sm:$0xff]
  %v8316 = vld [vmem:[%s8198 + $0x3a8] sm:$0xff]
  %v8317 = vld [vmem:[%s8198 + $0x3b0] sm:$0xff]
  %v8318 = vld [vmem:[%s8198 + $0x3b8] sm:$0xff]
  %v8319 = vld [vmem:[%s8198 + $0x3c0] sm:$0xff]
  %v8320 = vld [vmem:[%s8198 + $0x3c8] sm:$0xff]
  %v8321 = vld [vmem:[%s8198 + $0x3d0] sm:$0xff]
  %v8322 = vld [vmem:[%s8198 + $0x3d8] sm:$0xff]
  %v8323 = vld [vmem:[%s8198 + $0x3e0] sm:$0xff]
  %v8324 = vld [vmem:[%s8198 + $0x3e8] sm:$0xff]
  %v8325 = vld [vmem:[%s8198 + $0x3f0] sm:$0xff]
  %v8326 = vld [vmem:[%s8198 + $0x3f8] sm:$0xff]
  %v8327 = vld [vmem:[%s8198 + $0x400] sm:$0xff]
  %v8328 = vld [vmem:[%s8198 + $0x408] sm:$0xff]
  %v8329 = vld [vmem:[%s8198 + $0x410] sm:$0xff]
  %v8330 = vld [vmem:[%s8198 + $0x418] sm:$0xff]
  %v8331 = vld [vmem:[%s8198 + $0x420] sm:$0xff]
  %v8332 = vld [vmem:[%s8198 + $0x428] sm:$0xff]
  %v8333 = vld [vmem:[%s8198 + $0x430] sm:$0xff]
  %v8334 = vld [vmem:[%s8198 + $0x438] sm:$0xff]
  %v8335 = vld [vmem:[%s8198 + $0x440] sm:$0xff]
  %v8336 = vld [vmem:[%s8198 + $0x448] sm:$0xff]
  %v8337 = vld [vmem:[%s8198 + $0x450] sm:$0xff]
  %v8338 = vld [vmem:[%s8198 + $0x458] sm:$0xff]
  %v8339 = vld [vmem:[%s8198 + $0x460] sm:$0xff]
  %v8340 = vld [vmem:[%s8198 + $0x468] sm:$0xff]
  %v8341 = vld [vmem:[%s8198 + $0x470] sm:$0xff]
  %v8342 = vld [vmem:[%s8198 + $0x478] sm:$0xff]
  %v8343 = vld [vmem:[%s8198 + $0x480] sm:$0xff]
  %v8344 = vld [vmem:[%s8198 + $0x488] sm:$0xff]
  %v8345 = vld [vmem:[%s8198 + $0x490] sm:$0xff]
  %v8346 = vld [vmem:[%s8198 + $0x498] sm:$0xff]
  %v8347 = vld [vmem:[%s8198 + $0x4a0] sm:$0xff]
  %v8348 = vld [vmem:[%s8198 + $0x4a8] sm:$0xff]
  %v8349 = vld [vmem:[%s8198 + $0x4b0] sm:$0xff]
  %v8350 = vld [vmem:[%s8198 + $0x4b8] sm:$0xff]
  %v8351 = vld [vmem:[%s8198 + $0x4c0] sm:$0xff]
  %v8352 = vld [vmem:[%s8198 + $0x4c8] sm:$0xff]
  %v8353 = vld [vmem:[%s8198 + $0x4d0] sm:$0xff]
  %v8354 = vld [vmem:[%s8198 + $0x4d8] sm:$0xff]
  %v8355 = vld [vmem:[%s8198 + $0x4e0] sm:$0xff]
  %v8356 = vld [vmem:[%s8198 + $0x4e8] sm:$0xff]
  %v8357 = vld [vmem:[%s8198 + $0x4f0] sm:$0xff]
  %v8358 = vld [vmem:[%s8198 + $0x4f8] sm:$0xff]
  %v8359 = vld [vmem:[%s8198 + $0x500] sm:$0xff]
  %v8360 = vld [vmem:[%s8198 + $0x508] sm:$0xff]
  %v8361 = vld [vmem:[%s8198 + $0x510] sm:$0xff]
  %v8362 = vld [vmem:[%s8198 + $0x518] sm:$0xff]
  %v8363 = vld [vmem:[%s8198 + $0x520] sm:$0xff]
  %v8364 = vld [vmem:[%s8198 + $0x528] sm:$0xff]
  %v8365 = vld [vmem:[%s8198 + $0x530] sm:$0xff]
  %v8366 = vld [vmem:[%s8198 + $0x538] sm:$0xff]
  %v8367 = vld [vmem:[%s8198 + $0x540] sm:$0xff]
  %v8368 = vld [vmem:[%s8198 + $0x548] sm:$0xff]
  %v8369 = vld [vmem:[%s8198 + $0x550] sm:$0xff]
  %v8370 = vld [vmem:[%s8198 + $0x558] sm:$0xff]
  %v8371 = vld [vmem:[%s8198 + $0x560] sm:$0xff]
  %v8372 = vld [vmem:[%s8198 + $0x568] sm:$0xff]
  %v8373 = vld [vmem:[%s8198 + $0x570] sm:$0xff]
  %v8374 = vld [vmem:[%s8198 + $0x578] sm:$0xff]
  %v8375 = vld [vmem:[%s8198 + $0x580] sm:$0xff]
  %v8376 = vld [vmem:[%s8198 + $0x588] sm:$0xff]
  %v8377 = vld [vmem:[%s8198 + $0x590] sm:$0xff]
  %v8378 = vld [vmem:[%s8198 + $0x598] sm:$0xff]
  %v8379 = vld [vmem:[%s8198 + $0x5a0] sm:$0xff]
  %v8380 = vld [vmem:[%s8198 + $0x5a8] sm:$0xff]
  %v8381 = vld [vmem:[%s8198 + $0x5b0] sm:$0xff]
  %v8382 = vld [vmem:[%s8198 + $0x5b8] sm:$0xff]
  %v8383 = vld [vmem:[%s8198 + $0x5c0] sm:$0xff]
  %v8384 = vld [vmem:[%s8198 + $0x5c8] sm:$0xff]
  %v8385 = vld [vmem:[%s8198 + $0x5d0] sm:$0xff]
  %v8386 = vld [vmem:[%s8198 + $0x5d8] sm:$0xff]
  %v8387 = vld [vmem:[%s8198 + $0x5e0] sm:$0xff]
  %v8388 = vld [vmem:[%s8198 + $0x5e8] sm:$0xff]
  %v8389 = vld [vmem:[%s8198 + $0x5f0] sm:$0xff]
  %v8390 = vld [vmem:[%s8198 + $0x5f8] sm:$0xff]
  %v8391 = vld [vmem:[%s8198 + $0x600] sm:$0xff]
  %v8392 = vld [vmem:[%s8198 + $0x608] sm:$0xff]
  %v8393 = vld [vmem:[%s8198 + $0x610] sm:$0xff]
  %v8394 = vld [vmem:[%s8198 + $0x618] sm:$0xff]
  %v8395 = vld [vmem:[%s8198 + $0x620] sm:$0xff]
  %v8396 = vld [vmem:[%s8198 + $0x628] sm:$0xff]
  %v8397 = vld [vmem:[%s8198 + $0x630] sm:$0xff]
  %v8398 = vld [vmem:[%s8198 + $0x638] sm:$0xff]
  %v8399 = vld [vmem:[%s8198 + $0x640] sm:$0xff]
  %v8400 = vld [vmem:[%s8198 + $0x648] sm:$0xff]
  %v8401 = vld [vmem:[%s8198 + $0x650] sm:$0xff]
  %v8402 = vld [vmem:[%s8198 + $0x658] sm:$0xff]
  %v8403 = vld [vmem:[%s8198 + $0x660] sm:$0xff]
  %v8404 = vld [vmem:[%s8198 + $0x668] sm:$0xff]
  %v8405 = vld [vmem:[%s8198 + $0x670] sm:$0xff]
  %v8406 = vld [vmem:[%s8198 + $0x678] sm:$0xff]
  %v8407 = vld [vmem:[%s8198 + $0x680] sm:$0xff]
  %v8408 = vld [vmem:[%s8198 + $0x688] sm:$0xff]
  %v8409 = vld [vmem:[%s8198 + $0x690] sm:$0xff]
  %v8410 = vld [vmem:[%s8198 + $0x698] sm:$0xff]
  %v8411 = vld [vmem:[%s8198 + $0x6a0] sm:$0xff]
  %v8412 = vld [vmem:[%s8198 + $0x6a8] sm:$0xff]
  %v8413 = vld [vmem:[%s8198 + $0x6b0] sm:$0xff]
  %v8414 = vld [vmem:[%s8198 + $0x6b8] sm:$0xff]
  %v8440 = vrot.slane %v8188, 1
  %v8441 = vrot.slane %v7952, 1
  %v8442 = vsel %vm1125, %v8440, %v8441
  %v8443 = vrot.slane %v8189, 1
  %v8444 = vrot.slane %v7953, 1
  %v8445 = vsel %vm1125, %v8443, %v8444
  %v8446 = vrot.slane %v8190, 1
  %v8447 = vrot.slane %v7954, 1
  %v8448 = vsel %vm1125, %v8446, %v8447
  %v8449 = vrot.slane %v8191, 1
  %v8450 = vrot.slane %v7955, 1
  %v8451 = vsel %vm1125, %v8449, %v8450
  %v8452 = vrot.slane %v8192, 1
  %v8453 = vrot.slane %v7956, 1
  %v8454 = vsel %vm1125, %v8452, %v8453
  %v8455 = vrot.slane %v7957, 1
  %v8456 = vsel %vm1125, %v8441, %v8455
  %v8457 = vrot.slane %v7958, 1
  %v8458 = vsel %vm1125, %v8444, %v8457
  %v8459 = vrot.slane %v7959, 1
  %v8460 = vsel %vm1125, %v8447, %v8459
  %v8461 = vrot.slane %v7960, 1
  %v8462 = vsel %vm1125, %v8450, %v8461
  %v8463 = vrot.slane %v7961, 1
  %v8464 = vsel %vm1125, %v8453, %v8463
  %v8465 = vrot.slane %v7962, 1
  %v8466 = vsel %vm1125, %v8455, %v8465
  %v8467 = vrot.slane %v7963, 1
  %v8468 = vsel %vm1125, %v8457, %v8467
  %v8469 = vrot.slane %v7964, 1
  %v8470 = vsel %vm1125, %v8459, %v8469
  %v8471 = vrot.slane %v7965, 1
  %v8472 = vsel %vm1125, %v8461, %v8471
  %v8473 = vrot.slane %v7966, 1
  %v8474 = vsel %vm1125, %v8463, %v8473
  %v8475 = vrot.slane %v8193, 1
  %v8476 = vsel %vm1125, %v8465, %v8475
  %v8477 = vrot.slane %v8194, 1
  %v8478 = vsel %vm1125, %v8467, %v8477
  %v8479 = vrot.slane %v8195, 1
  %v8480 = vsel %vm1125, %v8469, %v8479
  %v8481 = vrot.slane %v8196, 1
  %v8482 = vsel %vm1125, %v8471, %v8481
  %v8483 = vrot.slane %v8197, 1
  %v8484 = vsel %vm1125, %v8473, %v8483
  %v8505 = vsel %vm3132, %v8454, 0
  %v8507 = vsel %vm3132, %v8464, 0
  %v8509 = vsel %vm3132, %v8474, 0
  %v8511 = vsel %vm3132, %v8484, 0
  %v8513 = vsel %vm3132, %v8483, 0
  %8515 = vmatpush.msra.mxu0 %v8244
  %8516 = vmatpush.msra.mxu0 %v8241
  %8517 = vmatpush.msra.mxu0 %v8238
  %8518 = vmatpush.msra.mxu0 %v8235
  %8519 = vmatpush.msra.mxu0 %v8232
  %8520 = vmatpush.msra.mxu0 %v8229
  %8521 = vmatpush.msra.mxu0 %v8226
  %8522 = vmatpush.msra.mxu0 %v8223
  %8523 = vmatpush.msra.mxu0 %v8220
  %8524 = vmatpush.msra.mxu0 %v8217
  %8525 = vmatpush.msra.mxu0 %v8214
  %8526 = vmatpush.msra.mxu0 %v8211
  %8527 = vmatpush.msra.mxu0 %v8208
  %8528 = vmatpush.msra.mxu0 %v8205
  %8529 = vmatpush.msra.mxu0 %v8202
  %8530 = vmatpush.msra.mxu0 %v8199
  %8531 = vmatmul.f32.gmra.mxu0 %v8442
  %v8532 = vpop.f32.mrf.mxu0
  %v8533 = vadd.f32 0.0, %v8532
  %8534 = vmatmul.f32.gmra.mxu0 %v8456
  %v8535 = vpop.f32.mrf.mxu0
  %v8536 = vadd.f32 0.0, %v8535
  %8537 = vmatmul.f32.gmra.mxu0 %v8466
  %v8538 = vpop.f32.mrf.mxu0
  %v8539 = vadd.f32 0.0, %v8538
  %8540 = vmatmul.f32.gmra.mxu0 %v8476
  %v8541 = vpop.f32.mrf.mxu0
  %v8542 = vadd.f32 0.0, %v8541
  %8543 = vmatmul.f32.gmra.mxu0 %v8475
  %v8544 = vpop.f32.mrf.mxu0
  %v8545 = vadd.f32 0.0, %v8544
  %8546 = vdwg.mxu0
  %8547 = vmatpush.msra.mxu0 %v8292
  %8548 = vmatpush.msra.mxu0 %v8289
  %8549 = vmatpush.msra.mxu0 %v8286
  %8550 = vmatpush.msra.mxu0 %v8283
  %8551 = vmatpush.msra.mxu0 %v8280
  %8552 = vmatpush.msra.mxu0 %v8277
  %8553 = vmatpush.msra.mxu0 %v8274
  %8554 = vmatpush.msra.mxu0 %v8271
  %8555 = vmatpush.msra.mxu0 %v8268
  %8556 = vmatpush.msra.mxu0 %v8265
  %8557 = vmatpush.msra.mxu0 %v8262
  %8558 = vmatpush.msra.mxu0 %v8259
  %8559 = vmatpush.msra.mxu0 %v8256
  %8560 = vmatpush.msra.mxu0 %v8253
  %8561 = vmatpush.msra.mxu0 %v8250
  %8562 = vmatpush.msra.mxu0 %v8247
  %8563 = vmatmul.f32.gmra.mxu0 %v8445
  %v8564 = vpop.f32.mrf.mxu0
  %v8565 = vadd.f32 %v8533, %v8564
  %8566 = vmatmul.f32.gmra.mxu0 %v8458
  %v8567 = vpop.f32.mrf.mxu0
  %v8568 = vadd.f32 %v8536, %v8567
  %8569 = vmatmul.f32.gmra.mxu0 %v8468
  %v8570 = vpop.f32.mrf.mxu0
  %v8571 = vadd.f32 %v8539, %v8570
  %8572 = vmatmul.f32.gmra.mxu0 %v8478
  %v8573 = vpop.f32.mrf.mxu0
  %v8574 = vadd.f32 %v8542, %v8573
  %8575 = vmatmul.f32.gmra.mxu0 %v8477
  %v8576 = vpop.f32.mrf.mxu0
  %v8577 = vadd.f32 %v8545, %v8576
  %8578 = vdwg.mxu0
  %8579 = vmatpush.msra.mxu0 %v8340
  %8580 = vmatpush.msra.mxu0 %v8337
  %8581 = vmatpush.msra.mxu0 %v8334
  %8582 = vmatpush.msra.mxu0 %v8331
  %8583 = vmatpush.msra.mxu0 %v8328
  %8584 = vmatpush.msra.mxu0 %v8325
  %8585 = vmatpush.msra.mxu0 %v8322
  %8586 = vmatpush.msra.mxu0 %v8319
  %8587 = vmatpush.msra.mxu0 %v8316
  %8588 = vmatpush.msra.mxu0 %v8313
  %8589 = vmatpush.msra.mxu0 %v8310
  %8590 = vmatpush.msra.mxu0 %v8307
  %8591 = vmatpush.msra.mxu0 %v8304
  %8592 = vmatpush.msra.mxu0 %v8301
  %8593 = vmatpush.msra.mxu0 %v8298
  %8594 = vmatpush.msra.mxu0 %v8295
  %8595 = vmatmul.f32.gmra.mxu0 %v8448
  %v8596 = vpop.f32.mrf.mxu0
  %v8597 = vadd.f32 %v8565, %v8596
  %8598 = vmatmul.f32.gmra.mxu0 %v8460
  %v8599 = vpop.f32.mrf.mxu0
  %v8600 = vadd.f32 %v8568, %v8599
  %8601 = vmatmul.f32.gmra.mxu0 %v8470
  %v8602 = vpop.f32.mrf.mxu0
  %v8603 = vadd.f32 %v8571, %v8602
  %8604 = vmatmul.f32.gmra.mxu0 %v8480
  %v8605 = vpop.f32.mrf.mxu0
  %v8606 = vadd.f32 %v8574, %v8605
  %8607 = vmatmul.f32.gmra.mxu0 %v8479
  %v8608 = vpop.f32.mrf.mxu0
  %v8609 = vadd.f32 %v8577, %v8608
  %8610 = vdwg.mxu0
  %8611 = vmatpush.msra.mxu0 %v8388
  %8612 = vmatpush.msra.mxu0 %v8385
  %8613 = vmatpush.msra.mxu0 %v8382
  %8614 = vmatpush.msra.mxu0 %v8379
  %8615 = vmatpush.msra.mxu0 %v8376
  %8616 = vmatpush.msra.mxu0 %v8373
  %8617 = vmatpush.msra.mxu0 %v8370
  %8618 = vmatpush.msra.mxu0 %v8367
  %8619 = vmatpush.msra.mxu0 %v8364
  %8620 = vmatpush.msra.mxu0 %v8361
  %8621 = vmatpush.msra.mxu0 %v8358
  %8622 = vmatpush.msra.mxu0 %v8355
  %8623 = vmatpush.msra.mxu0 %v8352
  %8624 = vmatpush.msra.mxu0 %v8349
  %8625 = vmatpush.msra.mxu0 %v8346
  %8626 = vmatpush.msra.mxu0 %v8343
  %8627 = vmatmul.f32.gmra.mxu0 %v8451
  %v8628 = vpop.f32.mrf.mxu0
  %v8629 = vadd.f32 %v8597, %v8628
  %8630 = vmatmul.f32.gmra.mxu0 %v8462
  %v8631 = vpop.f32.mrf.mxu0
  %v8632 = vadd.f32 %v8600, %v8631
  %8633 = vmatmul.f32.gmra.mxu0 %v8472
  %v8634 = vpop.f32.mrf.mxu0
  %v8635 = vadd.f32 %v8603, %v8634
  %8636 = vmatmul.f32.gmra.mxu0 %v8482
  %v8637 = vpop.f32.mrf.mxu0
  %v8638 = vadd.f32 %v8606, %v8637
  %8639 = vmatmul.f32.gmra.mxu0 %v8481
  %v8640 = vpop.f32.mrf.mxu0
  %v8641 = vadd.f32 %v8609, %v8640
  %8642 = vdwg.mxu0
  %8643 = vmatpush.msra.mxu0 0.0
  %8644 = vmatpush.msra.mxu0 0.0
  %8645 = vmatpush.msra.mxu0 0.0
  %8646 = vmatpush.msra.mxu0 0.0
  %8647 = vmatpush.msra.mxu0 0.0
  %8648 = vmatpush.msra.mxu0 0.0
  %8649 = vmatpush.msra.mxu0 0.0
  %8650 = vmatpush.msra.mxu0 0.0
  %8651 = vmatpush.msra.mxu0 %v8412
  %8652 = vmatpush.msra.mxu0 %v8409
  %8653 = vmatpush.msra.mxu0 %v8406
  %8654 = vmatpush.msra.mxu0 %v8403
  %8655 = vmatpush.msra.mxu0 %v8400
  %8656 = vmatpush.msra.mxu0 %v8397
  %8657 = vmatpush.msra.mxu0 %v8394
  %8658 = vmatpush.msra.mxu0 %v8391
  %8659 = vmatmul.f32.gmra.mxu0 %v8505
  %v8660 = vpop.f32.mrf.mxu0
  %v8661 = vadd.f32 %v8629, %v8660
  %8662 = vmatmul.f32.gmra.mxu0 %v8507
  %v8663 = vpop.f32.mrf.mxu0
  %v8664 = vadd.f32 %v8632, %v8663
  %8665 = vmatmul.f32.gmra.mxu0 %v8509
  %v8666 = vpop.f32.mrf.mxu0
  %v8667 = vadd.f32 %v8635, %v8666
  %8668 = vmatmul.f32.gmra.mxu0 %v8511
  %v8669 = vpop.f32.mrf.mxu0
  %v8670 = vadd.f32 %v8638, %v8669
  %8671 = vmatmul.f32.gmra.mxu0 %v8513
  %v8672 = vpop.f32.mrf.mxu0
  %v8673 = vadd.f32 %v8641, %v8672
  %8674 = vdwg.mxu0
  %8675 = vmatpush.msra.mxu0 %v8245
  %8676 = vmatpush.msra.mxu0 %v8242
  %8677 = vmatpush.msra.mxu0 %v8239
  %8678 = vmatpush.msra.mxu0 %v8236
  %8679 = vmatpush.msra.mxu0 %v8233
  %8680 = vmatpush.msra.mxu0 %v8230
  %8681 = vmatpush.msra.mxu0 %v8227
  %8682 = vmatpush.msra.mxu0 %v8224
  %8683 = vmatpush.msra.mxu0 %v8221
  %8684 = vmatpush.msra.mxu0 %v8218
  %8685 = vmatpush.msra.mxu0 %v8215
  %8686 = vmatpush.msra.mxu0 %v8212
  %8687 = vmatpush.msra.mxu0 %v8209
  %8688 = vmatpush.msra.mxu0 %v8206
  %8689 = vmatpush.msra.mxu0 %v8203
  %8690 = vmatpush.msra.mxu0 %v8200
  %8691 = vmatmul.f32.gmra.mxu0 %v8442
  %v8692 = vpop.f32.mrf.mxu0
  %v8693 = vadd.f32 0.0, %v8692
  %8694 = vmatmul.f32.gmra.mxu0 %v8456
  %v8695 = vpop.f32.mrf.mxu0
  %v8696 = vadd.f32 0.0, %v8695
  %8697 = vmatmul.f32.gmra.mxu0 %v8466
  %v8698 = vpop.f32.mrf.mxu0
  %v8699 = vadd.f32 0.0, %v8698
  %8700 = vmatmul.f32.gmra.mxu0 %v8476
  %v8701 = vpop.f32.mrf.mxu0
  %v8702 = vadd.f32 0.0, %v8701
  %8703 = vmatmul.f32.gmra.mxu0 %v8475
  %v8704 = vpop.f32.mrf.mxu0
  %v8705 = vadd.f32 0.0, %v8704
  %8706 = vdwg.mxu0
  %8707 = vmatpush.msra.mxu0 %v8293
  %8708 = vmatpush.msra.mxu0 %v8290
  %8709 = vmatpush.msra.mxu0 %v8287
  %8710 = vmatpush.msra.mxu0 %v8284
  %8711 = vmatpush.msra.mxu0 %v8281
  %8712 = vmatpush.msra.mxu0 %v8278
  %8713 = vmatpush.msra.mxu0 %v8275
  %8714 = vmatpush.msra.mxu0 %v8272
  %8715 = vmatpush.msra.mxu0 %v8269
  %8716 = vmatpush.msra.mxu0 %v8266
  %8717 = vmatpush.msra.mxu0 %v8263
  %8718 = vmatpush.msra.mxu0 %v8260
  %8719 = vmatpush.msra.mxu0 %v8257
  %8720 = vmatpush.msra.mxu0 %v8254
  %8721 = vmatpush.msra.mxu0 %v8251
  %8722 = vmatpush.msra.mxu0 %v8248
  %8723 = vmatmul.f32.gmra.mxu0 %v8445
  %v8724 = vpop.f32.mrf.mxu0
  %v8725 = vadd.f32 %v8693, %v8724
  %8726 = vmatmul.f32.gmra.mxu0 %v8458
  %v8727 = vpop.f32.mrf.mxu0
  %v8728 = vadd.f32 %v8696, %v8727
  %8729 = vmatmul.f32.gmra.mxu0 %v8468
  %v8730 = vpop.f32.mrf.mxu0
  %v8731 = vadd.f32 %v8699, %v8730
  %8732 = vmatmul.f32.gmra.mxu0 %v8478
  %v8733 = vpop.f32.mrf.mxu0
  %v8734 = vadd.f32 %v8702, %v8733
  %8735 = vmatmul.f32.gmra.mxu0 %v8477
  %v8736 = vpop.f32.mrf.mxu0
  %v8737 = vadd.f32 %v8705, %v8736
  %8738 = vdwg.mxu0
  %8739 = vmatpush.msra.mxu0 %v8341
  %8740 = vmatpush.msra.mxu0 %v8338
  %8741 = vmatpush.msra.mxu0 %v8335
  %8742 = vmatpush.msra.mxu0 %v8332
  %8743 = vmatpush.msra.mxu0 %v8329
  %8744 = vmatpush.msra.mxu0 %v8326
  %8745 = vmatpush.msra.mxu0 %v8323
  %8746 = vmatpush.msra.mxu0 %v8320
  %8747 = vmatpush.msra.mxu0 %v8317
  %8748 = vmatpush.msra.mxu0 %v8314
  %8749 = vmatpush.msra.mxu0 %v8311
  %8750 = vmatpush.msra.mxu0 %v8308
  %8751 = vmatpush.msra.mxu0 %v8305
  %8752 = vmatpush.msra.mxu0 %v8302
  %8753 = vmatpush.msra.mxu0 %v8299
  %8754 = vmatpush.msra.mxu0 %v8296
  %8755 = vmatmul.f32.gmra.mxu0 %v8448
  %v8756 = vpop.f32.mrf.mxu0
  %v8757 = vadd.f32 %v8725, %v8756
  %8758 = vmatmul.f32.gmra.mxu0 %v8460
  %v8759 = vpop.f32.mrf.mxu0
  %v8760 = vadd.f32 %v8728, %v8759
  %8761 = vmatmul.f32.gmra.mxu0 %v8470
  %v8762 = vpop.f32.mrf.mxu0
  %v8763 = vadd.f32 %v8731, %v8762
  %8764 = vmatmul.f32.gmra.mxu0 %v8480
  %v8765 = vpop.f32.mrf.mxu0
  %v8766 = vadd.f32 %v8734, %v8765
  %8767 = vmatmul.f32.gmra.mxu0 %v8479
  %v8768 = vpop.f32.mrf.mxu0
  %v8769 = vadd.f32 %v8737, %v8768
  %8770 = vdwg.mxu0
  %8771 = vmatpush.msra.mxu0 %v8389
  %8772 = vmatpush.msra.mxu0 %v8386
  %8773 = vmatpush.msra.mxu0 %v8383
  %8774 = vmatpush.msra.mxu0 %v8380
  %8775 = vmatpush.msra.mxu0 %v8377
  %8776 = vmatpush.msra.mxu0 %v8374
  %8777 = vmatpush.msra.mxu0 %v8371
  %8778 = vmatpush.msra.mxu0 %v8368
  %8779 = vmatpush.msra.mxu0 %v8365
  %8780 = vmatpush.msra.mxu0 %v8362
  %8781 = vmatpush.msra.mxu0 %v8359
  %8782 = vmatpush.msra.mxu0 %v8356
  %8783 = vmatpush.msra.mxu0 %v8353
  %8784 = vmatpush.msra.mxu0 %v8350
  %8785 = vmatpush.msra.mxu0 %v8347
  %8786 = vmatpush.msra.mxu0 %v8344
  %8787 = vmatmul.f32.gmra.mxu0 %v8451
  %v8788 = vpop.f32.mrf.mxu0
  %v8789 = vadd.f32 %v8757, %v8788
  %8790 = vmatmul.f32.gmra.mxu0 %v8462
  %v8791 = vpop.f32.mrf.mxu0
  %v8792 = vadd.f32 %v8760, %v8791
  %8793 = vmatmul.f32.gmra.mxu0 %v8472
  %v8794 = vpop.f32.mrf.mxu0
  %v8795 = vadd.f32 %v8763, %v8794
  %8796 = vmatmul.f32.gmra.mxu0 %v8482
  %v8797 = vpop.f32.mrf.mxu0
  %v8798 = vadd.f32 %v8766, %v8797
  %8799 = vmatmul.f32.gmra.mxu0 %v8481
  %v8800 = vpop.f32.mrf.mxu0
  %v8801 = vadd.f32 %v8769, %v8800
  %8802 = vdwg.mxu0
  %8803 = vmatpush.msra.mxu0 0.0
  %8804 = vmatpush.msra.mxu0 0.0
  %8805 = vmatpush.msra.mxu0 0.0
  %8806 = vmatpush.msra.mxu0 0.0
  %8807 = vmatpush.msra.mxu0 0.0
  %8808 = vmatpush.msra.mxu0 0.0
  %8809 = vmatpush.msra.mxu0 0.0
  %8810 = vmatpush.msra.mxu0 0.0
  %8811 = vmatpush.msra.mxu0 %v8413
  %8812 = vmatpush.msra.mxu0 %v8410
  %8813 = vmatpush.msra.mxu0 %v8407
  %8814 = vmatpush.msra.mxu0 %v8404
  %8815 = vmatpush.msra.mxu0 %v8401
  %8816 = vmatpush.msra.mxu0 %v8398
  %8817 = vmatpush.msra.mxu0 %v8395
  %8818 = vmatpush.msra.mxu0 %v8392
  %8819 = vmatmul.f32.gmra.mxu0 %v8505
  %v8820 = vpop.f32.mrf.mxu0
  %v8821 = vadd.f32 %v8789, %v8820
  %8822 = vmatmul.f32.gmra.mxu0 %v8507
  %v8823 = vpop.f32.mrf.mxu0
  %v8824 = vadd.f32 %v8792, %v8823
  %8825 = vmatmul.f32.gmra.mxu0 %v8509
  %v8826 = vpop.f32.mrf.mxu0
  %v8827 = vadd.f32 %v8795, %v8826
  %8828 = vmatmul.f32.gmra.mxu0 %v8511
  %v8829 = vpop.f32.mrf.mxu0
  %v8830 = vadd.f32 %v8798, %v8829
  %8831 = vmatmul.f32.gmra.mxu0 %v8513
  %v8832 = vpop.f32.mrf.mxu0
  %v8833 = vadd.f32 %v8801, %v8832
  %8834 = vdwg.mxu0
  %8835 = vmatpush.msra.mxu0 %v8246
  %8836 = vmatpush.msra.mxu0 %v8243
  %8837 = vmatpush.msra.mxu0 %v8240
  %8838 = vmatpush.msra.mxu0 %v8237
  %8839 = vmatpush.msra.mxu0 %v8234
  %8840 = vmatpush.msra.mxu0 %v8231
  %8841 = vmatpush.msra.mxu0 %v8228
  %8842 = vmatpush.msra.mxu0 %v8225
  %8843 = vmatpush.msra.mxu0 %v8222
  %8844 = vmatpush.msra.mxu0 %v8219
  %8845 = vmatpush.msra.mxu0 %v8216
  %8846 = vmatpush.msra.mxu0 %v8213
  %8847 = vmatpush.msra.mxu0 %v8210
  %8848 = vmatpush.msra.mxu0 %v8207
  %8849 = vmatpush.msra.mxu0 %v8204
  %8850 = vmatpush.msra.mxu0 %v8201
  %8851 = vmatmul.f32.gmra.mxu0 %v8442
  %v8852 = vpop.f32.mrf.mxu0
  %v8853 = vadd.f32 0.0, %v8852
  %8854 = vmatmul.f32.gmra.mxu0 %v8456
  %v8855 = vpop.f32.mrf.mxu0
  %v8856 = vadd.f32 0.0, %v8855
  %8857 = vmatmul.f32.gmra.mxu0 %v8466
  %v8858 = vpop.f32.mrf.mxu0
  %v8859 = vadd.f32 0.0, %v8858
  %8860 = vmatmul.f32.gmra.mxu0 %v8476
  %v8861 = vpop.f32.mrf.mxu0
  %v8862 = vadd.f32 0.0, %v8861
  %8863 = vmatmul.f32.gmra.mxu0 %v8475
  %v8864 = vpop.f32.mrf.mxu0
  %v8865 = vadd.f32 0.0, %v8864
  %8866 = vdwg.mxu0
  %8867 = vmatpush.msra.mxu0 %v8294
  %8868 = vmatpush.msra.mxu0 %v8291
  %8869 = vmatpush.msra.mxu0 %v8288
  %8870 = vmatpush.msra.mxu0 %v8285
  %8871 = vmatpush.msra.mxu0 %v8282
  %8872 = vmatpush.msra.mxu0 %v8279
  %8873 = vmatpush.msra.mxu0 %v8276
  %8874 = vmatpush.msra.mxu0 %v8273
  %8875 = vmatpush.msra.mxu0 %v8270
  %8876 = vmatpush.msra.mxu0 %v8267
  %8877 = vmatpush.msra.mxu0 %v8264
  %8878 = vmatpush.msra.mxu0 %v8261
  %8879 = vmatpush.msra.mxu0 %v8258
  %8880 = vmatpush.msra.mxu0 %v8255
  %8881 = vmatpush.msra.mxu0 %v8252
  %8882 = vmatpush.msra.mxu0 %v8249
  %8883 = vmatmul.f32.gmra.mxu0 %v8445
  %v8884 = vpop.f32.mrf.mxu0
  %v8885 = vadd.f32 %v8853, %v8884
  %8886 = vmatmul.f32.gmra.mxu0 %v8458
  %v8887 = vpop.f32.mrf.mxu0
  %v8888 = vadd.f32 %v8856, %v8887
  %8889 = vmatmul.f32.gmra.mxu0 %v8468
  %v8890 = vpop.f32.mrf.mxu0
  %v8891 = vadd.f32 %v8859, %v8890
  %8892 = vmatmul.f32.gmra.mxu0 %v8478
  %v8893 = vpop.f32.mrf.mxu0
  %v8894 = vadd.f32 %v8862, %v8893
  %8895 = vmatmul.f32.gmra.mxu0 %v8477
  %v8896 = vpop.f32.mrf.mxu0
  %v8897 = vadd.f32 %v8865, %v8896
  %8898 = vdwg.mxu0
  %8899 = vmatpush.msra.mxu0 %v8342
  %8900 = vmatpush.msra.mxu0 %v8339
  %8901 = vmatpush.msra.mxu0 %v8336
  %8902 = vmatpush.msra.mxu0 %v8333
  %8903 = vmatpush.msra.mxu0 %v8330
  %8904 = vmatpush.msra.mxu0 %v8327
  %8905 = vmatpush.msra.mxu0 %v8324
  %8906 = vmatpush.msra.mxu0 %v8321
  %8907 = vmatpush.msra.mxu0 %v8318
  %8908 = vmatpush.msra.mxu0 %v8315
  %8909 = vmatpush.msra.mxu0 %v8312
  %8910 = vmatpush.msra.mxu0 %v8309
  %8911 = vmatpush.msra.mxu0 %v8306
  %8912 = vmatpush.msra.mxu0 %v8303
  %8913 = vmatpush.msra.mxu0 %v8300
  %8914 = vmatpush.msra.mxu0 %v8297
  %8915 = vmatmul.f32.gmra.mxu0 %v8448
  %v8916 = vpop.f32.mrf.mxu0
  %v8917 = vadd.f32 %v8885, %v8916
  %8918 = vmatmul.f32.gmra.mxu0 %v8460
  %v8919 = vpop.f32.mrf.mxu0
  %v8920 = vadd.f32 %v8888, %v8919
  %8921 = vmatmul.f32.gmra.mxu0 %v8470
  %v8922 = vpop.f32.mrf.mxu0
  %v8923 = vadd.f32 %v8891, %v8922
  %8924 = vmatmul.f32.gmra.mxu0 %v8480
  %v8925 = vpop.f32.mrf.mxu0
  %v8926 = vadd.f32 %v8894, %v8925
  %8927 = vmatmul.f32.gmra.mxu0 %v8479
  %v8928 = vpop.f32.mrf.mxu0
  %v8929 = vadd.f32 %v8897, %v8928
  %8930 = vdwg.mxu0
  %8931 = vmatpush.msra.mxu0 %v8390
  %8932 = vmatpush.msra.mxu0 %v8387
  %8933 = vmatpush.msra.mxu0 %v8384
  %8934 = vmatpush.msra.mxu0 %v8381
  %8935 = vmatpush.msra.mxu0 %v8378
  %8936 = vmatpush.msra.mxu0 %v8375
  %8937 = vmatpush.msra.mxu0 %v8372
  %8938 = vmatpush.msra.mxu0 %v8369
  %8939 = vmatpush.msra.mxu0 %v8366
  %8940 = vmatpush.msra.mxu0 %v8363
  %8941 = vmatpush.msra.mxu0 %v8360
  %8942 = vmatpush.msra.mxu0 %v8357
  %8943 = vmatpush.msra.mxu0 %v8354
  %8944 = vmatpush.msra.mxu0 %v8351
  %8945 = vmatpush.msra.mxu0 %v8348
  %8946 = vmatpush.msra.mxu0 %v8345
  %8947 = vmatmul.f32.gmra.mxu0 %v8451
  %v8948 = vpop.f32.mrf.mxu0
  %v8949 = vadd.f32 %v8917, %v8948
  %8950 = vmatmul.f32.gmra.mxu0 %v8462
  %v8951 = vpop.f32.mrf.mxu0
  %v8952 = vadd.f32 %v8920, %v8951
  %8953 = vmatmul.f32.gmra.mxu0 %v8472
  %v8954 = vpop.f32.mrf.mxu0
  %v8955 = vadd.f32 %v8923, %v8954
  %8956 = vmatmul.f32.gmra.mxu0 %v8482
  %v8957 = vpop.f32.mrf.mxu0
  %v8958 = vadd.f32 %v8926, %v8957
  %8959 = vmatmul.f32.gmra.mxu0 %v8481
  %v8960 = vpop.f32.mrf.mxu0
  %v8961 = vadd.f32 %v8929, %v8960
  %8962 = vdwg.mxu0
  %8963 = vmatpush.msra.mxu0 0.0
  %8964 = vmatpush.msra.mxu0 0.0
  %8965 = vmatpush.msra.mxu0 0.0
  %8966 = vmatpush.msra.mxu0 0.0
  %8967 = vmatpush.msra.mxu0 0.0
  %8968 = vmatpush.msra.mxu0 0.0
  %8969 = vmatpush.msra.mxu0 0.0
  %8970 = vmatpush.msra.mxu0 0.0
  %8971 = vmatpush.msra.mxu0 %v8414
  %8972 = vmatpush.msra.mxu0 %v8411
  %8973 = vmatpush.msra.mxu0 %v8408
  %8974 = vmatpush.msra.mxu0 %v8405
  %8975 = vmatpush.msra.mxu0 %v8402
  %8976 = vmatpush.msra.mxu0 %v8399
  %8977 = vmatpush.msra.mxu0 %v8396
  %8978 = vmatpush.msra.mxu0 %v8393
  %8979 = vmatmul.f32.gmra.mxu0 %v8505
  %v8980 = vpop.f32.mrf.mxu0
  %v8981 = vadd.f32 %v8949, %v8980
  %8982 = vmatmul.f32.gmra.mxu0 %v8507
  %v8983 = vpop.f32.mrf.mxu0
  %v8984 = vadd.f32 %v8952, %v8983
  %8985 = vmatmul.f32.gmra.mxu0 %v8509
  %v8986 = vpop.f32.mrf.mxu0
  %v8987 = vadd.f32 %v8955, %v8986
  %8988 = vmatmul.f32.gmra.mxu0 %v8511
  %v8989 = vpop.f32.mrf.mxu0
  %v8990 = vadd.f32 %v8958, %v8989
  %8991 = vmatmul.f32.gmra.mxu0 %v8513
  %v8992 = vpop.f32.mrf.mxu0
  %v8993 = vadd.f32 %v8961, %v8992
  %8994 = vdwg.mxu0
  %v8996 = vsel %vm3132, %v7951, 0
  %v8998 = vsel %vm3132, %v7956, 0
  %v9000 = vsel %vm3132, %v7961, 0
  %v9002 = vsel %vm3132, %v7966, 0
  %v9005 = vsel %vm3132, %v7971, 0
  %9007 = vmatpush.msra.mxu0 %v8017
  %9008 = vmatpush.msra.mxu0 %v8014
  %9009 = vmatpush.msra.mxu0 %v8011
  %9010 = vmatpush.msra.mxu0 %v8008
  %9011 = vmatpush.msra.mxu0 %v8005
  %9012 = vmatpush.msra.mxu0 %v8002
  %9013 = vmatpush.msra.mxu0 %v7999
  %9014 = vmatpush.msra.mxu0 %v7996
  %9015 = vmatpush.msra.mxu0 %v7993
  %9016 = vmatpush.msra.mxu0 %v7990
  %9017 = vmatpush.msra.mxu0 %v7987
  %9018 = vmatpush.msra.mxu0 %v7984
  %9019 = vmatpush.msra.mxu0 %v7981
  %9020 = vmatpush.msra.mxu0 %v7978
  %9021 = vmatpush.msra.mxu0 %v7975
  %9022 = vmatpush.msra.mxu0 %v7972
  %9023 = vmatmul.f32.gmra.mxu0 %v7947
  %v9024 = vpop.f32.mrf.mxu0
  %v9025 = vadd.f32 %v8661, %v9024
  %9026 = vmatmul.f32.gmra.mxu0 %v7952
  %v9027 = vpop.f32.mrf.mxu0
  %v9028 = vadd.f32 %v8664, %v9027
  %9029 = vmatmul.f32.gmra.mxu0 %v7957
  %v9030 = vpop.f32.mrf.mxu0
  %v9031 = vadd.f32 %v8667, %v9030
  %9032 = vmatmul.f32.gmra.mxu0 %v7962
  %v9033 = vpop.f32.mrf.mxu0
  %v9034 = vadd.f32 %v8670, %v9033
  %9035 = vmatmul.f32.gmra.mxu0 %v7967
  %v9036 = vpop.f32.mrf.mxu0
  %v9037 = vadd.f32 %v8673, %v9036
  %9038 = vdwg.mxu0
  %9039 = vmatpush.msra.mxu0 %v8065
  %9040 = vmatpush.msra.mxu0 %v8062
  %9041 = vmatpush.msra.mxu0 %v8059
  %9042 = vmatpush.msra.mxu0 %v8056
  %9043 = vmatpush.msra.mxu0 %v8053
  %9044 = vmatpush.msra.mxu0 %v8050
  %9045 = vmatpush.msra.mxu0 %v8047
  %9046 = vmatpush.msra.mxu0 %v8044
  %9047 = vmatpush.msra.mxu0 %v8041
  %9048 = vmatpush.msra.mxu0 %v8038
  %9049 = vmatpush.msra.mxu0 %v8035
  %9050 = vmatpush.msra.mxu0 %v8032
  %9051 = vmatpush.msra.mxu0 %v8029
  %9052 = vmatpush.msra.mxu0 %v8026
  %9053 = vmatpush.msra.mxu0 %v8023
  %9054 = vmatpush.msra.mxu0 %v8020
  %9055 = vmatmul.f32.gmra.mxu0 %v7948
  %v9056 = vpop.f32.mrf.mxu0
  %v9057 = vadd.f32 %v9025, %v9056
  %9058 = vmatmul.f32.gmra.mxu0 %v7953
  %v9059 = vpop.f32.mrf.mxu0
  %v9060 = vadd.f32 %v9028, %v9059
  %9061 = vmatmul.f32.gmra.mxu0 %v7958
  %v9062 = vpop.f32.mrf.mxu0
  %v9063 = vadd.f32 %v9031, %v9062
  %9064 = vmatmul.f32.gmra.mxu0 %v7963
  %v9065 = vpop.f32.mrf.mxu0
  %v9066 = vadd.f32 %v9034, %v9065
  %9067 = vmatmul.f32.gmra.mxu0 %v7968
  %v9068 = vpop.f32.mrf.mxu0
  %v9069 = vadd.f32 %v9037, %v9068
  %9070 = vdwg.mxu0
  %9071 = vmatpush.msra.mxu0 %v8113
  %9072 = vmatpush.msra.mxu0 %v8110
  %9073 = vmatpush.msra.mxu0 %v8107
  %9074 = vmatpush.msra.mxu0 %v8104
  %9075 = vmatpush.msra.mxu0 %v8101
  %9076 = vmatpush.msra.mxu0 %v8098
  %9077 = vmatpush.msra.mxu0 %v8095
  %9078 = vmatpush.msra.mxu0 %v8092
  %9079 = vmatpush.msra.mxu0 %v8089
  %9080 = vmatpush.msra.mxu0 %v8086
  %9081 = vmatpush.msra.mxu0 %v8083
  %9082 = vmatpush.msra.mxu0 %v8080
  %9083 = vmatpush.msra.mxu0 %v8077
  %9084 = vmatpush.msra.mxu0 %v8074
  %9085 = vmatpush.msra.mxu0 %v8071
  %9086 = vmatpush.msra.mxu0 %v8068
  %9087 = vmatmul.f32.gmra.mxu0 %v7949
  %v9088 = vpop.f32.mrf.mxu0
  %v9089 = vadd.f32 %v9057, %v9088
  %9090 = vmatmul.f32.gmra.mxu0 %v7954
  %v9091 = vpop.f32.mrf.mxu0
  %v9092 = vadd.f32 %v9060, %v9091
  %9093 = vmatmul.f32.gmra.mxu0 %v7959
  %v9094 = vpop.f32.mrf.mxu0
  %v9095 = vadd.f32 %v9063, %v9094
  %9096 = vmatmul.f32.gmra.mxu0 %v7964
  %v9097 = vpop.f32.mrf.mxu0
  %v9098 = vadd.f32 %v9066, %v9097
  %9099 = vmatmul.f32.gmra.mxu0 %v7969
  %v9100 = vpop.f32.mrf.mxu0
  %v9101 = vadd.f32 %v9069, %v9100
  %9102 = vdwg.mxu0
  %9103 = vmatpush.msra.mxu0 %v8161
  %9104 = vmatpush.msra.mxu0 %v8158
  %9105 = vmatpush.msra.mxu0 %v8155
  %9106 = vmatpush.msra.mxu0 %v8152
  %9107 = vmatpush.msra.mxu0 %v8149
  %9108 = vmatpush.msra.mxu0 %v8146
  %9109 = vmatpush.msra.mxu0 %v8143
  %9110 = vmatpush.msra.mxu0 %v8140
  %9111 = vmatpush.msra.mxu0 %v8137
  %9112 = vmatpush.msra.mxu0 %v8134
  %9113 = vmatpush.msra.mxu0 %v8131
  %9114 = vmatpush.msra.mxu0 %v8128
  %9115 = vmatpush.msra.mxu0 %v8125
  %9116 = vmatpush.msra.mxu0 %v8122
  %9117 = vmatpush.msra.mxu0 %v8119
  %9118 = vmatpush.msra.mxu0 %v8116
  %9119 = vmatmul.f32.gmra.mxu0 %v7950
  %v9120 = vpop.f32.mrf.mxu0
  %v9121 = vadd.f32 %v9089, %v9120
  %9122 = vmatmul.f32.gmra.mxu0 %v7955
  %v9123 = vpop.f32.mrf.mxu0
  %v9124 = vadd.f32 %v9092, %v9123
  %9125 = vmatmul.f32.gmra.mxu0 %v7960
  %v9126 = vpop.f32.mrf.mxu0
  %v9127 = vadd.f32 %v9095, %v9126
  %9128 = vmatmul.f32.gmra.mxu0 %v7965
  %v9129 = vpop.f32.mrf.mxu0
  %v9130 = vadd.f32 %v9098, %v9129
  %9131 = vmatmul.f32.gmra.mxu0 %v7970
  %v9132 = vpop.f32.mrf.mxu0
  %v9133 = vadd.f32 %v9101, %v9132
  %9134 = vdwg.mxu0
  %9135 = vmatpush.msra.mxu0 0.0
  %9136 = vmatpush.msra.mxu0 0.0
  %9137 = vmatpush.msra.mxu0 0.0
  %9138 = vmatpush.msra.mxu0 0.0
  %9139 = vmatpush.msra.mxu0 0.0
  %9140 = vmatpush.msra.mxu0 0.0
  %9141 = vmatpush.msra.mxu0 0.0
  %9142 = vmatpush.msra.mxu0 0.0
  %9143 = vmatpush.msra.mxu0 %v8185
  %9144 = vmatpush.msra.mxu0 %v8182
  %9145 = vmatpush.msra.mxu0 %v8179
  %9146 = vmatpush.msra.mxu0 %v8176
  %9147 = vmatpush.msra.mxu0 %v8173
  %9148 = vmatpush.msra.mxu0 %v8170
  %9149 = vmatpush.msra.mxu0 %v8167
  %9150 = vmatpush.msra.mxu0 %v8164
  %9151 = vmatmul.f32.gmra.mxu0 %v8996
  %v9152 = vpop.f32.mrf.mxu0
  %v9153 = vadd.f32 %v9121, %v9152
  %9154 = vmatmul.f32.gmra.mxu0 %v8998
  %v9155 = vpop.f32.mrf.mxu0
  %v9156 = vadd.f32 %v9124, %v9155
  %9157 = vmatmul.f32.gmra.mxu0 %v9000
  %v9158 = vpop.f32.mrf.mxu0
  %v9159 = vadd.f32 %v9127, %v9158
  %9160 = vmatmul.f32.gmra.mxu0 %v9002
  %v9161 = vpop.f32.mrf.mxu0
  %v9162 = vadd.f32 %v9130, %v9161
  %9163 = vmatmul.f32.gmra.mxu0 %v9005
  %v9164 = vpop.f32.mrf.mxu0
  %v9165 = vadd.f32 %v9133, %v9164
  %9166 = vdwg.mxu0
  %9167 = vmatpush.msra.mxu0 %v8018
  %9168 = vmatpush.msra.mxu0 %v8015
  %9169 = vmatpush.msra.mxu0 %v8012
  %9170 = vmatpush.msra.mxu0 %v8009
  %9171 = vmatpush.msra.mxu0 %v8006
  %9172 = vmatpush.msra.mxu0 %v8003
  %9173 = vmatpush.msra.mxu0 %v8000
  %9174 = vmatpush.msra.mxu0 %v7997
  %9175 = vmatpush.msra.mxu0 %v7994
  %9176 = vmatpush.msra.mxu0 %v7991
  %9177 = vmatpush.msra.mxu0 %v7988
  %9178 = vmatpush.msra.mxu0 %v7985
  %9179 = vmatpush.msra.mxu0 %v7982
  %9180 = vmatpush.msra.mxu0 %v7979
  %9181 = vmatpush.msra.mxu0 %v7976
  %9182 = vmatpush.msra.mxu0 %v7973
  %9183 = vmatmul.f32.gmra.mxu0 %v7947
  %v9184 = vpop.f32.mrf.mxu0
  %v9185 = vadd.f32 %v8821, %v9184
  %9186 = vmatmul.f32.gmra.mxu0 %v7952
  %v9187 = vpop.f32.mrf.mxu0
  %v9188 = vadd.f32 %v8824, %v9187
  %9189 = vmatmul.f32.gmra.mxu0 %v7957
  %v9190 = vpop.f32.mrf.mxu0
  %v9191 = vadd.f32 %v8827, %v9190
  %9192 = vmatmul.f32.gmra.mxu0 %v7962
  %v9193 = vpop.f32.mrf.mxu0
  %v9194 = vadd.f32 %v8830, %v9193
  %9195 = vmatmul.f32.gmra.mxu0 %v7967
  %v9196 = vpop.f32.mrf.mxu0
  %v9197 = vadd.f32 %v8833, %v9196
  %9198 = vdwg.mxu0
  %9199 = vmatpush.msra.mxu0 %v8066
  %9200 = vmatpush.msra.mxu0 %v8063
  %9201 = vmatpush.msra.mxu0 %v8060
  %9202 = vmatpush.msra.mxu0 %v8057
  %9203 = vmatpush.msra.mxu0 %v8054
  %9204 = vmatpush.msra.mxu0 %v8051
  %9205 = vmatpush.msra.mxu0 %v8048
  %9206 = vmatpush.msra.mxu0 %v8045
  %9207 = vmatpush.msra.mxu0 %v8042
  %9208 = vmatpush.msra.mxu0 %v8039
  %9209 = vmatpush.msra.mxu0 %v8036
  %9210 = vmatpush.msra.mxu0 %v8033
  %9211 = vmatpush.msra.mxu0 %v8030
  %9212 = vmatpush.msra.mxu0 %v8027
  %9213 = vmatpush.msra.mxu0 %v8024
  %9214 = vmatpush.msra.mxu0 %v8021
  %9215 = vmatmul.f32.gmra.mxu0 %v7948
  %v9216 = vpop.f32.mrf.mxu0
  %v9217 = vadd.f32 %v9185, %v9216
  %9218 = vmatmul.f32.gmra.mxu0 %v7953
  %v9219 = vpop.f32.mrf.mxu0
  %v9220 = vadd.f32 %v9188, %v9219
  %9221 = vmatmul.f32.gmra.mxu0 %v7958
  %v9222 = vpop.f32.mrf.mxu0
  %v9223 = vadd.f32 %v9191, %v9222
  %9224 = vmatmul.f32.gmra.mxu0 %v7963
  %v9225 = vpop.f32.mrf.mxu0
  %v9226 = vadd.f32 %v9194, %v9225
  %9227 = vmatmul.f32.gmra.mxu0 %v7968
  %v9228 = vpop.f32.mrf.mxu0
  %v9229 = vadd.f32 %v9197, %v9228
  %9230 = vdwg.mxu0
  %9231 = vmatpush.msra.mxu0 %v8114
  %9232 = vmatpush.msra.mxu0 %v8111
  %9233 = vmatpush.msra.mxu0 %v8108
  %9234 = vmatpush.msra.mxu0 %v8105
  %9235 = vmatpush.msra.mxu0 %v8102
  %9236 = vmatpush.msra.mxu0 %v8099
  %9237 = vmatpush.msra.mxu0 %v8096
  %9238 = vmatpush.msra.mxu0 %v8093
  %9239 = vmatpush.msra.mxu0 %v8090
  %9240 = vmatpush.msra.mxu0 %v8087
  %9241 = vmatpush.msra.mxu0 %v8084
  %9242 = vmatpush.msra.mxu0 %v8081
  %9243 = vmatpush.msra.mxu0 %v8078
  %9244 = vmatpush.msra.mxu0 %v8075
  %9245 = vmatpush.msra.mxu0 %v8072
  %9246 = vmatpush.msra.mxu0 %v8069
  %9247 = vmatmul.f32.gmra.mxu0 %v7949
  %v9248 = vpop.f32.mrf.mxu0
  %v9249 = vadd.f32 %v9217, %v9248
  %9250 = vmatmul.f32.gmra.mxu0 %v7954
  %v9251 = vpop.f32.mrf.mxu0
  %v9252 = vadd.f32 %v9220, %v9251
  %9253 = vmatmul.f32.gmra.mxu0 %v7959
  %v9254 = vpop.f32.mrf.mxu0
  %v9255 = vadd.f32 %v9223, %v9254
  %9256 = vmatmul.f32.gmra.mxu0 %v7964
  %v9257 = vpop.f32.mrf.mxu0
  %v9258 = vadd.f32 %v9226, %v9257
  %9259 = vmatmul.f32.gmra.mxu0 %v7969
  %v9260 = vpop.f32.mrf.mxu0
  %v9261 = vadd.f32 %v9229, %v9260
  %9262 = vdwg.mxu0
  %9263 = vmatpush.msra.mxu0 %v8162
  %9264 = vmatpush.msra.mxu0 %v8159
  %9265 = vmatpush.msra.mxu0 %v8156
  %9266 = vmatpush.msra.mxu0 %v8153
  %9267 = vmatpush.msra.mxu0 %v8150
  %9268 = vmatpush.msra.mxu0 %v8147
  %9269 = vmatpush.msra.mxu0 %v8144
  %9270 = vmatpush.msra.mxu0 %v8141
  %9271 = vmatpush.msra.mxu0 %v8138
  %9272 = vmatpush.msra.mxu0 %v8135
  %9273 = vmatpush.msra.mxu0 %v8132
  %9274 = vmatpush.msra.mxu0 %v8129
  %9275 = vmatpush.msra.mxu0 %v8126
  %9276 = vmatpush.msra.mxu0 %v8123
  %9277 = vmatpush.msra.mxu0 %v8120
  %9278 = vmatpush.msra.mxu0 %v8117
  %9279 = vmatmul.f32.gmra.mxu0 %v7950
  %v9280 = vpop.f32.mrf.mxu0
  %v9281 = vadd.f32 %v9249, %v9280
  %9282 = vmatmul.f32.gmra.mxu0 %v7955
  %v9283 = vpop.f32.mrf.mxu0
  %v9284 = vadd.f32 %v9252, %v9283
  %9285 = vmatmul.f32.gmra.mxu0 %v7960
  %v9286 = vpop.f32.mrf.mxu0
  %v9287 = vadd.f32 %v9255, %v9286
  %9288 = vmatmul.f32.gmra.mxu0 %v7965
  %v9289 = vpop.f32.mrf.mxu0
  %v9290 = vadd.f32 %v9258, %v9289
  %9291 = vmatmul.f32.gmra.mxu0 %v7970
  %v9292 = vpop.f32.mrf.mxu0
  %v9293 = vadd.f32 %v9261, %v9292
  %9294 = vdwg.mxu0
  %9295 = vmatpush.msra.mxu0 0.0
  %9296 = vmatpush.msra.mxu0 0.0
  %9297 = vmatpush.msra.mxu0 0.0
  %9298 = vmatpush.msra.mxu0 0.0
  %9299 = vmatpush.msra.mxu0 0.0
  %9300 = vmatpush.msra.mxu0 0.0
  %9301 = vmatpush.msra.mxu0 0.0
  %9302 = vmatpush.msra.mxu0 0.0
  %9303 = vmatpush.msra.mxu0 %v8186
  %9304 = vmatpush.msra.mxu0 %v8183
  %9305 = vmatpush.msra.mxu0 %v8180
  %9306 = vmatpush.msra.mxu0 %v8177
  %9307 = vmatpush.msra.mxu0 %v8174
  %9308 = vmatpush.msra.mxu0 %v8171
  %9309 = vmatpush.msra.mxu0 %v8168
  %9310 = vmatpush.msra.mxu0 %v8165
  %9311 = vmatmul.f32.gmra.mxu0 %v8996
  %v9312 = vpop.f32.mrf.mxu0
  %v9313 = vadd.f32 %v9281, %v9312
  %9314 = vmatmul.f32.gmra.mxu0 %v8998
  %v9315 = vpop.f32.mrf.mxu0
  %v9316 = vadd.f32 %v9284, %v9315
  %9317 = vmatmul.f32.gmra.mxu0 %v9000
  %v9318 = vpop.f32.mrf.mxu0
  %v9319 = vadd.f32 %v9287, %v9318
  %9320 = vmatmul.f32.gmra.mxu0 %v9002
  %v9321 = vpop.f32.mrf.mxu0
  %v9322 = vadd.f32 %v9290, %v9321
  %9323 = vmatmul.f32.gmra.mxu0 %v9005
  %v9324 = vpop.f32.mrf.mxu0
  %v9325 = vadd.f32 %v9293, %v9324
  %9326 = vdwg.mxu0
  %9327 = vmatpush.msra.mxu0 %v8019
  %9328 = vmatpush.msra.mxu0 %v8016
  %9329 = vmatpush.msra.mxu0 %v8013
  %9330 = vmatpush.msra.mxu0 %v8010
  %9331 = vmatpush.msra.mxu0 %v8007
  %9332 = vmatpush.msra.mxu0 %v8004
  %9333 = vmatpush.msra.mxu0 %v8001
  %9334 = vmatpush.msra.mxu0 %v7998
  %9335 = vmatpush.msra.mxu0 %v7995
  %9336 = vmatpush.msra.mxu0 %v7992
  %9337 = vmatpush.msra.mxu0 %v7989
  %9338 = vmatpush.msra.mxu0 %v7986
  %9339 = vmatpush.msra.mxu0 %v7983
  %9340 = vmatpush.msra.mxu0 %v7980
  %9341 = vmatpush.msra.mxu0 %v7977
  %9342 = vmatpush.msra.mxu0 %v7974
  %9343 = vmatmul.f32.gmra.mxu0 %v7947
  %v9344 = vpop.f32.mrf.mxu0
  %v9345 = vadd.f32 %v8981, %v9344
  %9346 = vmatmul.f32.gmra.mxu0 %v7952
  %v9347 = vpop.f32.mrf.mxu0
  %v9348 = vadd.f32 %v8984, %v9347
  %9349 = vmatmul.f32.gmra.mxu0 %v7957
  %v9350 = vpop.f32.mrf.mxu0
  %v9351 = vadd.f32 %v8987, %v9350
  %9352 = vmatmul.f32.gmra.mxu0 %v7962
  %v9353 = vpop.f32.mrf.mxu0
  %v9354 = vadd.f32 %v8990, %v9353
  %9355 = vmatmul.f32.gmra.mxu0 %v7967
  %v9356 = vpop.f32.mrf.mxu0
  %v9357 = vadd.f32 %v8993, %v9356
  %9358 = vdwg.mxu0
  %9359 = vmatpush.msra.mxu0 %v8067
  %9360 = vmatpush.msra.mxu0 %v8064
  %9361 = vmatpush.msra.mxu0 %v8061
  %9362 = vmatpush.msra.mxu0 %v8058
  %9363 = vmatpush.msra.mxu0 %v8055
  %9364 = vmatpush.msra.mxu0 %v8052
  %9365 = vmatpush.msra.mxu0 %v8049
  %9366 = vmatpush.msra.mxu0 %v8046
  %9367 = vmatpush.msra.mxu0 %v8043
  %9368 = vmatpush.msra.mxu0 %v8040
  %9369 = vmatpush.msra.mxu0 %v8037
  %9370 = vmatpush.msra.mxu0 %v8034
  %9371 = vmatpush.msra.mxu0 %v8031
  %9372 = vmatpush.msra.mxu0 %v8028
  %9373 = vmatpush.msra.mxu0 %v8025
  %9374 = vmatpush.msra.mxu0 %v8022
  %9375 = vmatmul.f32.gmra.mxu0 %v7948
  %v9376 = vpop.f32.mrf.mxu0
  %v9377 = vadd.f32 %v9345, %v9376
  %9378 = vmatmul.f32.gmra.mxu0 %v7953
  %v9379 = vpop.f32.mrf.mxu0
  %v9380 = vadd.f32 %v9348, %v9379
  %9381 = vmatmul.f32.gmra.mxu0 %v7958
  %v9382 = vpop.f32.mrf.mxu0
  %v9383 = vadd.f32 %v9351, %v9382
  %9384 = vmatmul.f32.gmra.mxu0 %v7963
  %v9385 = vpop.f32.mrf.mxu0
  %v9386 = vadd.f32 %v9354, %v9385
  %9387 = vmatmul.f32.gmra.mxu0 %v7968
  %v9388 = vpop.f32.mrf.mxu0
  %v9389 = vadd.f32 %v9357, %v9388
  %9390 = vdwg.mxu0
  %9391 = vmatpush.msra.mxu0 %v8115
  %9392 = vmatpush.msra.mxu0 %v8112
  %9393 = vmatpush.msra.mxu0 %v8109
  %9394 = vmatpush.msra.mxu0 %v8106
  %9395 = vmatpush.msra.mxu0 %v8103
  %9396 = vmatpush.msra.mxu0 %v8100
  %9397 = vmatpush.msra.mxu0 %v8097
  %9398 = vmatpush.msra.mxu0 %v8094
  %9399 = vmatpush.msra.mxu0 %v8091
  %9400 = vmatpush.msra.mxu0 %v8088
  %9401 = vmatpush.msra.mxu0 %v8085
  %9402 = vmatpush.msra.mxu0 %v8082
  %9403 = vmatpush.msra.mxu0 %v8079
  %9404 = vmatpush.msra.mxu0 %v8076
  %9405 = vmatpush.msra.mxu0 %v8073
  %9406 = vmatpush.msra.mxu0 %v8070
  %9407 = vmatmul.f32.gmra.mxu0 %v7949
  %v9408 = vpop.f32.mrf.mxu0
  %v9409 = vadd.f32 %v9377, %v9408
  %9410 = vmatmul.f32.gmra.mxu0 %v7954
  %v9411 = vpop.f32.mrf.mxu0
  %v9412 = vadd.f32 %v9380, %v9411
  %9413 = vmatmul.f32.gmra.mxu0 %v7959
  %v9414 = vpop.f32.mrf.mxu0
  %v9415 = vadd.f32 %v9383, %v9414
  %9416 = vmatmul.f32.gmra.mxu0 %v7964
  %v9417 = vpop.f32.mrf.mxu0
  %v9418 = vadd.f32 %v9386, %v9417
  %9419 = vmatmul.f32.gmra.mxu0 %v7969
  %v9420 = vpop.f32.mrf.mxu0
  %v9421 = vadd.f32 %v9389, %v9420
  %9422 = vdwg.mxu0
  %9423 = vmatpush.msra.mxu0 %v8163
  %9424 = vmatpush.msra.mxu0 %v8160
  %9425 = vmatpush.msra.mxu0 %v8157
  %9426 = vmatpush.msra.mxu0 %v8154
  %9427 = vmatpush.msra.mxu0 %v8151
  %9428 = vmatpush.msra.mxu0 %v8148
  %9429 = vmatpush.msra.mxu0 %v8145
  %9430 = vmatpush.msra.mxu0 %v8142
  %9431 = vmatpush.msra.mxu0 %v8139
  %9432 = vmatpush.msra.mxu0 %v8136
  %9433 = vmatpush.msra.mxu0 %v8133
  %9434 = vmatpush.msra.mxu0 %v8130
  %9435 = vmatpush.msra.mxu0 %v8127
  %9436 = vmatpush.msra.mxu0 %v8124
  %9437 = vmatpush.msra.mxu0 %v8121
  %9438 = vmatpush.msra.mxu0 %v8118
  %9439 = vmatmul.f32.gmra.mxu0 %v7950
  %v9440 = vpop.f32.mrf.mxu0
  %v9441 = vadd.f32 %v9409, %v9440
  %9442 = vmatmul.f32.gmra.mxu0 %v7955
  %v9443 = vpop.f32.mrf.mxu0
  %v9444 = vadd.f32 %v9412, %v9443
  %9445 = vmatmul.f32.gmra.mxu0 %v7960
  %v9446 = vpop.f32.mrf.mxu0
  %v9447 = vadd.f32 %v9415, %v9446
  %9448 = vmatmul.f32.gmra.mxu0 %v7965
  %v9449 = vpop.f32.mrf.mxu0
  %v9450 = vadd.f32 %v9418, %v9449
  %9451 = vmatmul.f32.gmra.mxu0 %v7970
  %v9452 = vpop.f32.mrf.mxu0
  %v9453 = vadd.f32 %v9421, %v9452
  %9454 = vdwg.mxu0
  %9455 = vmatpush.msra.mxu0 0.0
  %9456 = vmatpush.msra.mxu0 0.0
  %9457 = vmatpush.msra.mxu0 0.0
  %9458 = vmatpush.msra.mxu0 0.0
  %9459 = vmatpush.msra.mxu0 0.0
  %9460 = vmatpush.msra.mxu0 0.0
  %9461 = vmatpush.msra.mxu0 0.0
  %9462 = vmatpush.msra.mxu0 0.0
  %9463 = vmatpush.msra.mxu0 %v8187
  %9464 = vmatpush.msra.mxu0 %v8184
  %9465 = vmatpush.msra.mxu0 %v8181
  %9466 = vmatpush.msra.mxu0 %v8178
  %9467 = vmatpush.msra.mxu0 %v8175
  %9468 = vmatpush.msra.mxu0 %v8172
  %9469 = vmatpush.msra.mxu0 %v8169
  %9470 = vmatpush.msra.mxu0 %v8166
  %9471 = vmatmul.f32.gmra.mxu0 %v8996
  %v9472 = vpop.f32.mrf.mxu0
  %v9473 = vadd.f32 %v9441, %v9472
  %9474 = vmatmul.f32.gmra.mxu0 %v8998
  %v9475 = vpop.f32.mrf.mxu0
  %v9476 = vadd.f32 %v9444, %v9475
  %9477 = vmatmul.f32.gmra.mxu0 %v9000
  %v9478 = vpop.f32.mrf.mxu0
  %v9479 = vadd.f32 %v9447, %v9478
  %9480 = vmatmul.f32.gmra.mxu0 %v9002
  %v9481 = vpop.f32.mrf.mxu0
  %v9482 = vadd.f32 %v9450, %v9481
  %9483 = vmatmul.f32.gmra.mxu0 %v9005
  %v9484 = vpop.f32.mrf.mxu0
  %v9485 = vadd.f32 %v9453, %v9484
  %9486 = vdwg.mxu0
  %v9487 = vld [vmem:[#allocation2] sm:$0xfc]
  %v9488 = vld [vmem:[#allocation2 + $0x8] sm:$0xfc]
  %v9489 = vld [vmem:[#allocation2 + $0x10] sm:$0xfc]
  %v9490 = vld [vmem:[#allocation2 + $0x18] sm:$0xfc]
  %v9491 = vld [vmem:[#allocation2 + $0x20] sm:$0xfc]
  %v9492 = vld [vmem:[#allocation2 + $0xa0] sm:$0x3f]
  %v9493 = vld [vmem:[#allocation2 + $0xa8] sm:$0x3f]
  %v9494 = vld [vmem:[#allocation2 + $0xb0] sm:$0x3f]
  %v9495 = vld [vmem:[#allocation2 + $0xb8] sm:$0x3f]
  %v9496 = vld [vmem:[#allocation2 + $0xc0] sm:$0x3f]
  %s9497 = scalar_lea.vmem %s7, 3456
  %v9498 = vld [vmem:[%s9497] sm:$0xff]
  %v9499 = vld [vmem:[%s9497 + $0x8] sm:$0xff]
  %v9500 = vld [vmem:[%s9497 + $0x10] sm:$0xff]
  %v9501 = vld [vmem:[%s9497 + $0x18] sm:$0xff]
  %v9502 = vld [vmem:[%s9497 + $0x20] sm:$0xff]
  %v9503 = vld [vmem:[%s9497 + $0x28] sm:$0xff]
  %v9504 = vld [vmem:[%s9497 + $0x30] sm:$0xff]
  %v9505 = vld [vmem:[%s9497 + $0x38] sm:$0xff]
  %v9506 = vld [vmem:[%s9497 + $0x40] sm:$0xff]
  %v9507 = vld [vmem:[%s9497 + $0x48] sm:$0xff]
  %v9508 = vld [vmem:[%s9497 + $0x50] sm:$0xff]
  %v9509 = vld [vmem:[%s9497 + $0x58] sm:$0xff]
  %v9510 = vld [vmem:[%s9497 + $0x60] sm:$0xff]
  %v9511 = vld [vmem:[%s9497 + $0x68] sm:$0xff]
  %v9512 = vld [vmem:[%s9497 + $0x70] sm:$0xff]
  %v9513 = vld [vmem:[%s9497 + $0x78] sm:$0xff]
  %v9514 = vld [vmem:[%s9497 + $0x80] sm:$0xff]
  %v9515 = vld [vmem:[%s9497 + $0x88] sm:$0xff]
  %v9516 = vld [vmem:[%s9497 + $0x90] sm:$0xff]
  %v9517 = vld [vmem:[%s9497 + $0x98] sm:$0xff]
  %v9518 = vld [vmem:[%s9497 + $0xa0] sm:$0xff]
  %v9519 = vld [vmem:[%s9497 + $0xa8] sm:$0xff]
  %v9520 = vld [vmem:[%s9497 + $0xb0] sm:$0xff]
  %v9521 = vld [vmem:[%s9497 + $0xb8] sm:$0xff]
  %v9522 = vld [vmem:[%s9497 + $0xc0] sm:$0xff]
  %v9523 = vld [vmem:[%s9497 + $0xc8] sm:$0xff]
  %v9524 = vld [vmem:[%s9497 + $0xd0] sm:$0xff]
  %v9525 = vld [vmem:[%s9497 + $0xd8] sm:$0xff]
  %v9526 = vld [vmem:[%s9497 + $0xe0] sm:$0xff]
  %v9527 = vld [vmem:[%s9497 + $0xe8] sm:$0xff]
  %v9528 = vld [vmem:[%s9497 + $0xf0] sm:$0xff]
  %v9529 = vld [vmem:[%s9497 + $0xf8] sm:$0xff]
  %v9530 = vld [vmem:[%s9497 + $0x100] sm:$0xff]
  %v9531 = vld [vmem:[%s9497 + $0x108] sm:$0xff]
  %v9532 = vld [vmem:[%s9497 + $0x110] sm:$0xff]
  %v9533 = vld [vmem:[%s9497 + $0x118] sm:$0xff]
  %v9534 = vld [vmem:[%s9497 + $0x120] sm:$0xff]
  %v9535 = vld [vmem:[%s9497 + $0x128] sm:$0xff]
  %v9536 = vld [vmem:[%s9497 + $0x130] sm:$0xff]
  %v9537 = vld [vmem:[%s9497 + $0x138] sm:$0xff]
  %v9538 = vld [vmem:[%s9497 + $0x140] sm:$0xff]
  %v9539 = vld [vmem:[%s9497 + $0x148] sm:$0xff]
  %v9540 = vld [vmem:[%s9497 + $0x150] sm:$0xff]
  %v9541 = vld [vmem:[%s9497 + $0x158] sm:$0xff]
  %v9542 = vld [vmem:[%s9497 + $0x160] sm:$0xff]
  %v9543 = vld [vmem:[%s9497 + $0x168] sm:$0xff]
  %v9544 = vld [vmem:[%s9497 + $0x170] sm:$0xff]
  %v9545 = vld [vmem:[%s9497 + $0x178] sm:$0xff]
  %v9546 = vld [vmem:[%s9497 + $0x180] sm:$0xff]
  %v9547 = vld [vmem:[%s9497 + $0x188] sm:$0xff]
  %v9548 = vld [vmem:[%s9497 + $0x190] sm:$0xff]
  %v9549 = vld [vmem:[%s9497 + $0x198] sm:$0xff]
  %v9550 = vld [vmem:[%s9497 + $0x1a0] sm:$0xff]
  %v9551 = vld [vmem:[%s9497 + $0x1a8] sm:$0xff]
  %v9552 = vld [vmem:[%s9497 + $0x1b0] sm:$0xff]
  %v9553 = vld [vmem:[%s9497 + $0x1b8] sm:$0xff]
  %v9554 = vld [vmem:[%s9497 + $0x1c0] sm:$0xff]
  %v9555 = vld [vmem:[%s9497 + $0x1c8] sm:$0xff]
  %v9556 = vld [vmem:[%s9497 + $0x1d0] sm:$0xff]
  %v9557 = vld [vmem:[%s9497 + $0x1d8] sm:$0xff]
  %v9558 = vld [vmem:[%s9497 + $0x1e0] sm:$0xff]
  %v9559 = vld [vmem:[%s9497 + $0x1e8] sm:$0xff]
  %v9560 = vld [vmem:[%s9497 + $0x1f0] sm:$0xff]
  %v9561 = vld [vmem:[%s9497 + $0x1f8] sm:$0xff]
  %v9562 = vld [vmem:[%s9497 + $0x200] sm:$0xff]
  %v9563 = vld [vmem:[%s9497 + $0x208] sm:$0xff]
  %v9564 = vld [vmem:[%s9497 + $0x210] sm:$0xff]
  %v9565 = vld [vmem:[%s9497 + $0x218] sm:$0xff]
  %v9566 = vld [vmem:[%s9497 + $0x220] sm:$0xff]
  %v9567 = vld [vmem:[%s9497 + $0x228] sm:$0xff]
  %v9568 = vld [vmem:[%s9497 + $0x230] sm:$0xff]
  %v9569 = vld [vmem:[%s9497 + $0x238] sm:$0xff]
  %v9570 = vld [vmem:[%s9497 + $0x240] sm:$0xff]
  %v9571 = vld [vmem:[%s9497 + $0x248] sm:$0xff]
  %v9572 = vld [vmem:[%s9497 + $0x250] sm:$0xff]
  %v9573 = vld [vmem:[%s9497 + $0x258] sm:$0xff]
  %v9574 = vld [vmem:[%s9497 + $0x260] sm:$0xff]
  %v9575 = vld [vmem:[%s9497 + $0x268] sm:$0xff]
  %v9576 = vld [vmem:[%s9497 + $0x270] sm:$0xff]
  %v9577 = vld [vmem:[%s9497 + $0x278] sm:$0xff]
  %v9578 = vld [vmem:[%s9497 + $0x280] sm:$0xff]
  %v9579 = vld [vmem:[%s9497 + $0x288] sm:$0xff]
  %v9580 = vld [vmem:[%s9497 + $0x290] sm:$0xff]
  %v9581 = vld [vmem:[%s9497 + $0x298] sm:$0xff]
  %v9582 = vld [vmem:[%s9497 + $0x2a0] sm:$0xff]
  %v9583 = vld [vmem:[%s9497 + $0x2a8] sm:$0xff]
  %v9584 = vld [vmem:[%s9497 + $0x2b0] sm:$0xff]
  %v9585 = vld [vmem:[%s9497 + $0x2b8] sm:$0xff]
  %v9586 = vld [vmem:[%s9497 + $0x2c0] sm:$0xff]
  %v9587 = vld [vmem:[%s9497 + $0x2c8] sm:$0xff]
  %v9588 = vld [vmem:[%s9497 + $0x2d0] sm:$0xff]
  %v9589 = vld [vmem:[%s9497 + $0x2d8] sm:$0xff]
  %v9590 = vld [vmem:[%s9497 + $0x2e0] sm:$0xff]
  %v9591 = vld [vmem:[%s9497 + $0x2e8] sm:$0xff]
  %v9592 = vld [vmem:[%s9497 + $0x2f0] sm:$0xff]
  %v9593 = vld [vmem:[%s9497 + $0x2f8] sm:$0xff]
  %v9594 = vld [vmem:[%s9497 + $0x300] sm:$0xff]
  %v9595 = vld [vmem:[%s9497 + $0x308] sm:$0xff]
  %v9596 = vld [vmem:[%s9497 + $0x310] sm:$0xff]
  %v9597 = vld [vmem:[%s9497 + $0x318] sm:$0xff]
  %v9598 = vld [vmem:[%s9497 + $0x320] sm:$0xff]
  %v9599 = vld [vmem:[%s9497 + $0x328] sm:$0xff]
  %v9600 = vld [vmem:[%s9497 + $0x330] sm:$0xff]
  %v9601 = vld [vmem:[%s9497 + $0x338] sm:$0xff]
  %v9602 = vld [vmem:[%s9497 + $0x340] sm:$0xff]
  %v9603 = vld [vmem:[%s9497 + $0x348] sm:$0xff]
  %v9604 = vld [vmem:[%s9497 + $0x350] sm:$0xff]
  %v9605 = vld [vmem:[%s9497 + $0x358] sm:$0xff]
  %v9606 = vld [vmem:[%s9497 + $0x360] sm:$0xff]
  %v9607 = vld [vmem:[%s9497 + $0x368] sm:$0xff]
  %v9608 = vld [vmem:[%s9497 + $0x370] sm:$0xff]
  %v9609 = vld [vmem:[%s9497 + $0x378] sm:$0xff]
  %v9610 = vld [vmem:[%s9497 + $0x380] sm:$0xff]
  %v9611 = vld [vmem:[%s9497 + $0x388] sm:$0xff]
  %v9612 = vld [vmem:[%s9497 + $0x390] sm:$0xff]
  %v9613 = vld [vmem:[%s9497 + $0x398] sm:$0xff]
  %v9614 = vld [vmem:[%s9497 + $0x3a0] sm:$0xff]
  %v9615 = vld [vmem:[%s9497 + $0x3a8] sm:$0xff]
  %v9616 = vld [vmem:[%s9497 + $0x3b0] sm:$0xff]
  %v9617 = vld [vmem:[%s9497 + $0x3b8] sm:$0xff]
  %v9618 = vld [vmem:[%s9497 + $0x3c0] sm:$0xff]
  %v9619 = vld [vmem:[%s9497 + $0x3c8] sm:$0xff]
  %v9620 = vld [vmem:[%s9497 + $0x3d0] sm:$0xff]
  %v9621 = vld [vmem:[%s9497 + $0x3d8] sm:$0xff]
  %v9622 = vld [vmem:[%s9497 + $0x3e0] sm:$0xff]
  %v9623 = vld [vmem:[%s9497 + $0x3e8] sm:$0xff]
  %v9624 = vld [vmem:[%s9497 + $0x3f0] sm:$0xff]
  %v9625 = vld [vmem:[%s9497 + $0x3f8] sm:$0xff]
  %v9626 = vld [vmem:[%s9497 + $0x400] sm:$0xff]
  %v9627 = vld [vmem:[%s9497 + $0x408] sm:$0xff]
  %v9628 = vld [vmem:[%s9497 + $0x410] sm:$0xff]
  %v9629 = vld [vmem:[%s9497 + $0x418] sm:$0xff]
  %v9630 = vld [vmem:[%s9497 + $0x420] sm:$0xff]
  %v9631 = vld [vmem:[%s9497 + $0x428] sm:$0xff]
  %v9632 = vld [vmem:[%s9497 + $0x430] sm:$0xff]
  %v9633 = vld [vmem:[%s9497 + $0x438] sm:$0xff]
  %v9634 = vld [vmem:[%s9497 + $0x440] sm:$0xff]
  %v9635 = vld [vmem:[%s9497 + $0x448] sm:$0xff]
  %v9636 = vld [vmem:[%s9497 + $0x450] sm:$0xff]
  %v9637 = vld [vmem:[%s9497 + $0x458] sm:$0xff]
  %v9638 = vld [vmem:[%s9497 + $0x460] sm:$0xff]
  %v9639 = vld [vmem:[%s9497 + $0x468] sm:$0xff]
  %v9640 = vld [vmem:[%s9497 + $0x470] sm:$0xff]
  %v9641 = vld [vmem:[%s9497 + $0x478] sm:$0xff]
  %v9642 = vld [vmem:[%s9497 + $0x480] sm:$0xff]
  %v9643 = vld [vmem:[%s9497 + $0x488] sm:$0xff]
  %v9644 = vld [vmem:[%s9497 + $0x490] sm:$0xff]
  %v9645 = vld [vmem:[%s9497 + $0x498] sm:$0xff]
  %v9646 = vld [vmem:[%s9497 + $0x4a0] sm:$0xff]
  %v9647 = vld [vmem:[%s9497 + $0x4a8] sm:$0xff]
  %v9648 = vld [vmem:[%s9497 + $0x4b0] sm:$0xff]
  %v9649 = vld [vmem:[%s9497 + $0x4b8] sm:$0xff]
  %v9650 = vld [vmem:[%s9497 + $0x4c0] sm:$0xff]
  %v9651 = vld [vmem:[%s9497 + $0x4c8] sm:$0xff]
  %v9652 = vld [vmem:[%s9497 + $0x4d0] sm:$0xff]
  %v9653 = vld [vmem:[%s9497 + $0x4d8] sm:$0xff]
  %v9654 = vld [vmem:[%s9497 + $0x4e0] sm:$0xff]
  %v9655 = vld [vmem:[%s9497 + $0x4e8] sm:$0xff]
  %v9656 = vld [vmem:[%s9497 + $0x4f0] sm:$0xff]
  %v9657 = vld [vmem:[%s9497 + $0x4f8] sm:$0xff]
  %v9658 = vld [vmem:[%s9497 + $0x500] sm:$0xff]
  %v9659 = vld [vmem:[%s9497 + $0x508] sm:$0xff]
  %v9660 = vld [vmem:[%s9497 + $0x510] sm:$0xff]
  %v9661 = vld [vmem:[%s9497 + $0x518] sm:$0xff]
  %v9662 = vld [vmem:[%s9497 + $0x520] sm:$0xff]
  %v9663 = vld [vmem:[%s9497 + $0x528] sm:$0xff]
  %v9664 = vld [vmem:[%s9497 + $0x530] sm:$0xff]
  %v9665 = vld [vmem:[%s9497 + $0x538] sm:$0xff]
  %v9666 = vld [vmem:[%s9497 + $0x540] sm:$0xff]
  %v9667 = vld [vmem:[%s9497 + $0x548] sm:$0xff]
  %v9668 = vld [vmem:[%s9497 + $0x550] sm:$0xff]
  %v9669 = vld [vmem:[%s9497 + $0x558] sm:$0xff]
  %v9670 = vld [vmem:[%s9497 + $0x560] sm:$0xff]
  %v9671 = vld [vmem:[%s9497 + $0x568] sm:$0xff]
  %v9672 = vld [vmem:[%s9497 + $0x570] sm:$0xff]
  %v9673 = vld [vmem:[%s9497 + $0x578] sm:$0xff]
  %v9674 = vld [vmem:[%s9497 + $0x580] sm:$0xff]
  %v9675 = vld [vmem:[%s9497 + $0x588] sm:$0xff]
  %v9676 = vld [vmem:[%s9497 + $0x590] sm:$0xff]
  %v9677 = vld [vmem:[%s9497 + $0x598] sm:$0xff]
  %v9678 = vld [vmem:[%s9497 + $0x5a0] sm:$0xff]
  %v9679 = vld [vmem:[%s9497 + $0x5a8] sm:$0xff]
  %v9680 = vld [vmem:[%s9497 + $0x5b0] sm:$0xff]
  %v9681 = vld [vmem:[%s9497 + $0x5b8] sm:$0xff]
  %v9682 = vld [vmem:[%s9497 + $0x5c0] sm:$0xff]
  %v9683 = vld [vmem:[%s9497 + $0x5c8] sm:$0xff]
  %v9684 = vld [vmem:[%s9497 + $0x5d0] sm:$0xff]
  %v9685 = vld [vmem:[%s9497 + $0x5d8] sm:$0xff]
  %v9686 = vld [vmem:[%s9497 + $0x5e0] sm:$0xff]
  %v9687 = vld [vmem:[%s9497 + $0x5e8] sm:$0xff]
  %v9688 = vld [vmem:[%s9497 + $0x5f0] sm:$0xff]
  %v9689 = vld [vmem:[%s9497 + $0x5f8] sm:$0xff]
  %v9690 = vld [vmem:[%s9497 + $0x600] sm:$0xff]
  %v9691 = vld [vmem:[%s9497 + $0x608] sm:$0xff]
  %v9692 = vld [vmem:[%s9497 + $0x610] sm:$0xff]
  %v9693 = vld [vmem:[%s9497 + $0x618] sm:$0xff]
  %v9694 = vld [vmem:[%s9497 + $0x620] sm:$0xff]
  %v9695 = vld [vmem:[%s9497 + $0x628] sm:$0xff]
  %v9696 = vld [vmem:[%s9497 + $0x630] sm:$0xff]
  %v9697 = vld [vmem:[%s9497 + $0x638] sm:$0xff]
  %v9698 = vld [vmem:[%s9497 + $0x640] sm:$0xff]
  %v9699 = vld [vmem:[%s9497 + $0x648] sm:$0xff]
  %v9700 = vld [vmem:[%s9497 + $0x650] sm:$0xff]
  %v9701 = vld [vmem:[%s9497 + $0x658] sm:$0xff]
  %v9702 = vld [vmem:[%s9497 + $0x660] sm:$0xff]
  %v9703 = vld [vmem:[%s9497 + $0x668] sm:$0xff]
  %v9704 = vld [vmem:[%s9497 + $0x670] sm:$0xff]
  %v9705 = vld [vmem:[%s9497 + $0x678] sm:$0xff]
  %v9706 = vld [vmem:[%s9497 + $0x680] sm:$0xff]
  %v9707 = vld [vmem:[%s9497 + $0x688] sm:$0xff]
  %v9708 = vld [vmem:[%s9497 + $0x690] sm:$0xff]
  %v9709 = vld [vmem:[%s9497 + $0x698] sm:$0xff]
  %v9710 = vld [vmem:[%s9497 + $0x6a0] sm:$0xff]
  %v9711 = vld [vmem:[%s9497 + $0x6a8] sm:$0xff]
  %v9712 = vld [vmem:[%s9497 + $0x6b0] sm:$0xff]
  %v9713 = vld [vmem:[%s9497 + $0x6b8] sm:$0xff]
  %v9724 = vrot.slane %v9487, 2
  %v9725 = vrot.slane %v7952, 2
  %v9726 = vsel %vm156, %v9724, %v9725
  %v9727 = vrot.slane %v9488, 2
  %v9728 = vrot.slane %v7953, 2
  %v9729 = vsel %vm156, %v9727, %v9728
  %v9730 = vrot.slane %v9489, 2
  %v9731 = vrot.slane %v7954, 2
  %v9732 = vsel %vm156, %v9730, %v9731
  %v9733 = vrot.slane %v9490, 2
  %v9734 = vrot.slane %v7955, 2
  %v9735 = vsel %vm156, %v9733, %v9734
  %v9736 = vrot.slane %v9491, 2
  %v9737 = vrot.slane %v7956, 2
  %v9738 = vsel %vm156, %v9736, %v9737
  %v9739 = vrot.slane %v7957, 2
  %v9740 = vsel %vm156, %v9725, %v9739
  %v9741 = vrot.slane %v7958, 2
  %v9742 = vsel %vm156, %v9728, %v9741
  %v9743 = vrot.slane %v7959, 2
  %v9744 = vsel %vm156, %v9731, %v9743
  %v9745 = vrot.slane %v7960, 2
  %v9746 = vsel %vm156, %v9734, %v9745
  %v9747 = vrot.slane %v7961, 2
  %v9748 = vsel %vm156, %v9737, %v9747
  %v9749 = vrot.slane %v7962, 2
  %v9750 = vsel %vm156, %v9739, %v9749
  %v9751 = vrot.slane %v7963, 2
  %v9752 = vsel %vm156, %v9741, %v9751
  %v9753 = vrot.slane %v7964, 2
  %v9754 = vsel %vm156, %v9743, %v9753
  %v9755 = vrot.slane %v7965, 2
  %v9756 = vsel %vm156, %v9745, %v9755
  %v9757 = vrot.slane %v7966, 2
  %v9758 = vsel %vm156, %v9747, %v9757
  %v9759 = vrot.slane %v9492, 2
  %v9760 = vsel %vm156, %v9749, %v9759
  %v9761 = vrot.slane %v9493, 2
  %v9762 = vsel %vm156, %v9751, %v9761
  %v9763 = vrot.slane %v9494, 2
  %v9764 = vsel %vm156, %v9753, %v9763
  %v9765 = vrot.slane %v9495, 2
  %v9766 = vsel %vm156, %v9755, %v9765
  %v9767 = vrot.slane %v9496, 2
  %v9768 = vsel %vm156, %v9757, %v9767
  %v9789 = vsel %vm3132, %v9738, 0
  %v9791 = vsel %vm3132, %v9748, 0
  %v9793 = vsel %vm3132, %v9758, 0
  %v9795 = vsel %vm3132, %v9768, 0
  %v9797 = vsel %vm3132, %v9767, 0
  %9799 = vmatpush.msra.mxu0 %v9543
  %9800 = vmatpush.msra.mxu0 %v9540
  %9801 = vmatpush.msra.mxu0 %v9537
  %9802 = vmatpush.msra.mxu0 %v9534
  %9803 = vmatpush.msra.mxu0 %v9531
  %9804 = vmatpush.msra.mxu0 %v9528
  %9805 = vmatpush.msra.mxu0 %v9525
  %9806 = vmatpush.msra.mxu0 %v9522
  %9807 = vmatpush.msra.mxu0 %v9519
  %9808 = vmatpush.msra.mxu0 %v9516
  %9809 = vmatpush.msra.mxu0 %v9513
  %9810 = vmatpush.msra.mxu0 %v9510
  %9811 = vmatpush.msra.mxu0 %v9507
  %9812 = vmatpush.msra.mxu0 %v9504
  %9813 = vmatpush.msra.mxu0 %v9501
  %9814 = vmatpush.msra.mxu0 %v9498
  %9815 = vmatmul.f32.gmra.mxu0 %v9726
  %v9816 = vpop.f32.mrf.mxu0
  %v9817 = vadd.f32 0.0, %v9816
  %9818 = vmatmul.f32.gmra.mxu0 %v9740
  %v9819 = vpop.f32.mrf.mxu0
  %v9820 = vadd.f32 0.0, %v9819
  %9821 = vmatmul.f32.gmra.mxu0 %v9750
  %v9822 = vpop.f32.mrf.mxu0
  %v9823 = vadd.f32 0.0, %v9822
  %9824 = vmatmul.f32.gmra.mxu0 %v9760
  %v9825 = vpop.f32.mrf.mxu0
  %v9826 = vadd.f32 0.0, %v9825
  %9827 = vmatmul.f32.gmra.mxu0 %v9759
  %v9828 = vpop.f32.mrf.mxu0
  %v9829 = vadd.f32 0.0, %v9828
  %9830 = vdwg.mxu0
  %9831 = vmatpush.msra.mxu0 %v9591
  %9832 = vmatpush.msra.mxu0 %v9588
  %9833 = vmatpush.msra.mxu0 %v9585
  %9834 = vmatpush.msra.mxu0 %v9582
  %9835 = vmatpush.msra.mxu0 %v9579
  %9836 = vmatpush.msra.mxu0 %v9576
  %9837 = vmatpush.msra.mxu0 %v9573
  %9838 = vmatpush.msra.mxu0 %v9570
  %9839 = vmatpush.msra.mxu0 %v9567
  %9840 = vmatpush.msra.mxu0 %v9564
  %9841 = vmatpush.msra.mxu0 %v9561
  %9842 = vmatpush.msra.mxu0 %v9558
  %9843 = vmatpush.msra.mxu0 %v9555
  %9844 = vmatpush.msra.mxu0 %v9552
  %9845 = vmatpush.msra.mxu0 %v9549
  %9846 = vmatpush.msra.mxu0 %v9546
  %9847 = vmatmul.f32.gmra.mxu0 %v9729
  %v9848 = vpop.f32.mrf.mxu0
  %v9849 = vadd.f32 %v9817, %v9848
  %9850 = vmatmul.f32.gmra.mxu0 %v9742
  %v9851 = vpop.f32.mrf.mxu0
  %v9852 = vadd.f32 %v9820, %v9851
  %9853 = vmatmul.f32.gmra.mxu0 %v9752
  %v9854 = vpop.f32.mrf.mxu0
  %v9855 = vadd.f32 %v9823, %v9854
  %9856 = vmatmul.f32.gmra.mxu0 %v9762
  %v9857 = vpop.f32.mrf.mxu0
  %v9858 = vadd.f32 %v9826, %v9857
  %9859 = vmatmul.f32.gmra.mxu0 %v9761
  %v9860 = vpop.f32.mrf.mxu0
  %v9861 = vadd.f32 %v9829, %v9860
  %9862 = vdwg.mxu0
  %9863 = vmatpush.msra.mxu0 %v9639
  %9864 = vmatpush.msra.mxu0 %v9636
  %9865 = vmatpush.msra.mxu0 %v9633
  %9866 = vmatpush.msra.mxu0 %v9630
  %9867 = vmatpush.msra.mxu0 %v9627
  %9868 = vmatpush.msra.mxu0 %v9624
  %9869 = vmatpush.msra.mxu0 %v9621
  %9870 = vmatpush.msra.mxu0 %v9618
  %9871 = vmatpush.msra.mxu0 %v9615
  %9872 = vmatpush.msra.mxu0 %v9612
  %9873 = vmatpush.msra.mxu0 %v9609
  %9874 = vmatpush.msra.mxu0 %v9606
  %9875 = vmatpush.msra.mxu0 %v9603
  %9876 = vmatpush.msra.mxu0 %v9600
  %9877 = vmatpush.msra.mxu0 %v9597
  %9878 = vmatpush.msra.mxu0 %v9594
  %9879 = vmatmul.f32.gmra.mxu0 %v9732
  %v9880 = vpop.f32.mrf.mxu0
  %v9881 = vadd.f32 %v9849, %v9880
  %9882 = vmatmul.f32.gmra.mxu0 %v9744
  %v9883 = vpop.f32.mrf.mxu0
  %v9884 = vadd.f32 %v9852, %v9883
  %9885 = vmatmul.f32.gmra.mxu0 %v9754
  %v9886 = vpop.f32.mrf.mxu0
  %v9887 = vadd.f32 %v9855, %v9886
  %9888 = vmatmul.f32.gmra.mxu0 %v9764
  %v9889 = vpop.f32.mrf.mxu0
  %v9890 = vadd.f32 %v9858, %v9889
  %9891 = vmatmul.f32.gmra.mxu0 %v9763
  %v9892 = vpop.f32.mrf.mxu0
  %v9893 = vadd.f32 %v9861, %v9892
  %9894 = vdwg.mxu0
  %9895 = vmatpush.msra.mxu0 %v9687
  %9896 = vmatpush.msra.mxu0 %v9684
  %9897 = vmatpush.msra.mxu0 %v9681
  %9898 = vmatpush.msra.mxu0 %v9678
  %9899 = vmatpush.msra.mxu0 %v9675
  %9900 = vmatpush.msra.mxu0 %v9672
  %9901 = vmatpush.msra.mxu0 %v9669
  %9902 = vmatpush.msra.mxu0 %v9666
  %9903 = vmatpush.msra.mxu0 %v9663
  %9904 = vmatpush.msra.mxu0 %v9660
  %9905 = vmatpush.msra.mxu0 %v9657
  %9906 = vmatpush.msra.mxu0 %v9654
  %9907 = vmatpush.msra.mxu0 %v9651
  %9908 = vmatpush.msra.mxu0 %v9648
  %9909 = vmatpush.msra.mxu0 %v9645
  %9910 = vmatpush.msra.mxu0 %v9642
  %9911 = vmatmul.f32.gmra.mxu0 %v9735
  %v9912 = vpop.f32.mrf.mxu0
  %v9913 = vadd.f32 %v9881, %v9912
  %9914 = vmatmul.f32.gmra.mxu0 %v9746
  %v9915 = vpop.f32.mrf.mxu0
  %v9916 = vadd.f32 %v9884, %v9915
  %9917 = vmatmul.f32.gmra.mxu0 %v9756
  %v9918 = vpop.f32.mrf.mxu0
  %v9919 = vadd.f32 %v9887, %v9918
  %9920 = vmatmul.f32.gmra.mxu0 %v9766
  %v9921 = vpop.f32.mrf.mxu0
  %v9922 = vadd.f32 %v9890, %v9921
  %9923 = vmatmul.f32.gmra.mxu0 %v9765
  %v9924 = vpop.f32.mrf.mxu0
  %v9925 = vadd.f32 %v9893, %v9924
  %9926 = vdwg.mxu0
  %9927 = vmatpush.msra.mxu0 0.0
  %9928 = vmatpush.msra.mxu0 0.0
  %9929 = vmatpush.msra.mxu0 0.0
  %9930 = vmatpush.msra.mxu0 0.0
  %9931 = vmatpush.msra.mxu0 0.0
  %9932 = vmatpush.msra.mxu0 0.0
  %9933 = vmatpush.msra.mxu0 0.0
  %9934 = vmatpush.msra.mxu0 0.0
  %9935 = vmatpush.msra.mxu0 %v9711
  %9936 = vmatpush.msra.mxu0 %v9708
  %9937 = vmatpush.msra.mxu0 %v9705
  %9938 = vmatpush.msra.mxu0 %v9702
  %9939 = vmatpush.msra.mxu0 %v9699
  %9940 = vmatpush.msra.mxu0 %v9696
  %9941 = vmatpush.msra.mxu0 %v9693
  %9942 = vmatpush.msra.mxu0 %v9690
  %9943 = vmatmul.f32.gmra.mxu0 %v9789
  %v9944 = vpop.f32.mrf.mxu0
  %v9945 = vadd.f32 %v9913, %v9944
  %9946 = vmatmul.f32.gmra.mxu0 %v9791
  %v9947 = vpop.f32.mrf.mxu0
  %v9948 = vadd.f32 %v9916, %v9947
  %9949 = vmatmul.f32.gmra.mxu0 %v9793
  %v9950 = vpop.f32.mrf.mxu0
  %v9951 = vadd.f32 %v9919, %v9950
  %9952 = vmatmul.f32.gmra.mxu0 %v9795
  %v9953 = vpop.f32.mrf.mxu0
  %v9954 = vadd.f32 %v9922, %v9953
  %9955 = vmatmul.f32.gmra.mxu0 %v9797
  %v9956 = vpop.f32.mrf.mxu0
  %v9957 = vadd.f32 %v9925, %v9956
  %9958 = vdwg.mxu0
  %9959 = vmatpush.msra.mxu0 %v9544
  %9960 = vmatpush.msra.mxu0 %v9541
  %9961 = vmatpush.msra.mxu0 %v9538
  %9962 = vmatpush.msra.mxu0 %v9535
  %9963 = vmatpush.msra.mxu0 %v9532
  %9964 = vmatpush.msra.mxu0 %v9529
  %9965 = vmatpush.msra.mxu0 %v9526
  %9966 = vmatpush.msra.mxu0 %v9523
  %9967 = vmatpush.msra.mxu0 %v9520
  %9968 = vmatpush.msra.mxu0 %v9517
  %9969 = vmatpush.msra.mxu0 %v9514
  %9970 = vmatpush.msra.mxu0 %v9511
  %9971 = vmatpush.msra.mxu0 %v9508
  %9972 = vmatpush.msra.mxu0 %v9505
  %9973 = vmatpush.msra.mxu0 %v9502
  %9974 = vmatpush.msra.mxu0 %v9499
  %9975 = vmatmul.f32.gmra.mxu0 %v9726
  %v9976 = vpop.f32.mrf.mxu0
  %v9977 = vadd.f32 0.0, %v9976
  %9978 = vmatmul.f32.gmra.mxu0 %v9740
  %v9979 = vpop.f32.mrf.mxu0
  %v9980 = vadd.f32 0.0, %v9979
  %9981 = vmatmul.f32.gmra.mxu0 %v9750
  %v9982 = vpop.f32.mrf.mxu0
  %v9983 = vadd.f32 0.0, %v9982
  %9984 = vmatmul.f32.gmra.mxu0 %v9760
  %v9985 = vpop.f32.mrf.mxu0
  %v9986 = vadd.f32 0.0, %v9985
  %9987 = vmatmul.f32.gmra.mxu0 %v9759
  %v9988 = vpop.f32.mrf.mxu0
  %v9989 = vadd.f32 0.0, %v9988
  %9990 = vdwg.mxu0
  %9991 = vmatpush.msra.mxu0 %v9592
  %9992 = vmatpush.msra.mxu0 %v9589
  %9993 = vmatpush.msra.mxu0 %v9586
  %9994 = vmatpush.msra.mxu0 %v9583
  %9995 = vmatpush.msra.mxu0 %v9580
  %9996 = vmatpush.msra.mxu0 %v9577
  %9997 = vmatpush.msra.mxu0 %v9574
  %9998 = vmatpush.msra.mxu0 %v9571
  %9999 = vmatpush.msra.mxu0 %v9568
  %10000 = vmatpush.msra.mxu0 %v9565
  %10001 = vmatpush.msra.mxu0 %v9562
  %10002 = vmatpush.msra.mxu0 %v9559
  %10003 = vmatpush.msra.mxu0 %v9556
  %10004 = vmatpush.msra.mxu0 %v9553
  %10005 = vmatpush.msra.mxu0 %v9550
  %10006 = vmatpush.msra.mxu0 %v9547
  %10007 = vmatmul.f32.gmra.mxu0 %v9729
  %v10008 = vpop.f32.mrf.mxu0
  %v10009 = vadd.f32 %v9977, %v10008
  %10010 = vmatmul.f32.gmra.mxu0 %v9742
  %v10011 = vpop.f32.mrf.mxu0
  %v10012 = vadd.f32 %v9980, %v10011
  %10013 = vmatmul.f32.gmra.mxu0 %v9752
  %v10014 = vpop.f32.mrf.mxu0
  %v10015 = vadd.f32 %v9983, %v10014
  %10016 = vmatmul.f32.gmra.mxu0 %v9762
  %v10017 = vpop.f32.mrf.mxu0
  %v10018 = vadd.f32 %v9986, %v10017
  %10019 = vmatmul.f32.gmra.mxu0 %v9761
  %v10020 = vpop.f32.mrf.mxu0
  %v10021 = vadd.f32 %v9989, %v10020
  %10022 = vdwg.mxu0
  %10023 = vmatpush.msra.mxu0 %v9640
  %10024 = vmatpush.msra.mxu0 %v9637
  %10025 = vmatpush.msra.mxu0 %v9634
  %10026 = vmatpush.msra.mxu0 %v9631
  %10027 = vmatpush.msra.mxu0 %v9628
  %10028 = vmatpush.msra.mxu0 %v9625
  %10029 = vmatpush.msra.mxu0 %v9622
  %10030 = vmatpush.msra.mxu0 %v9619
  %10031 = vmatpush.msra.mxu0 %v9616
  %10032 = vmatpush.msra.mxu0 %v9613
  %10033 = vmatpush.msra.mxu0 %v9610
  %10034 = vmatpush.msra.mxu0 %v9607
  %10035 = vmatpush.msra.mxu0 %v9604
  %10036 = vmatpush.msra.mxu0 %v9601
  %10037 = vmatpush.msra.mxu0 %v9598
  %10038 = vmatpush.msra.mxu0 %v9595
  %10039 = vmatmul.f32.gmra.mxu0 %v9732
  %v10040 = vpop.f32.mrf.mxu0
  %v10041 = vadd.f32 %v10009, %v10040
  %10042 = vmatmul.f32.gmra.mxu0 %v9744
  %v10043 = vpop.f32.mrf.mxu0
  %v10044 = vadd.f32 %v10012, %v10043
  %10045 = vmatmul.f32.gmra.mxu0 %v9754
  %v10046 = vpop.f32.mrf.mxu0
  %v10047 = vadd.f32 %v10015, %v10046
  %10048 = vmatmul.f32.gmra.mxu0 %v9764
  %v10049 = vpop.f32.mrf.mxu0
  %v10050 = vadd.f32 %v10018, %v10049
  %10051 = vmatmul.f32.gmra.mxu0 %v9763
  %v10052 = vpop.f32.mrf.mxu0
  %v10053 = vadd.f32 %v10021, %v10052
  %10054 = vdwg.mxu0
  %10055 = vmatpush.msra.mxu0 %v9688
  %10056 = vmatpush.msra.mxu0 %v9685
  %10057 = vmatpush.msra.mxu0 %v9682
  %10058 = vmatpush.msra.mxu0 %v9679
  %10059 = vmatpush.msra.mxu0 %v9676
  %10060 = vmatpush.msra.mxu0 %v9673
  %10061 = vmatpush.msra.mxu0 %v9670
  %10062 = vmatpush.msra.mxu0 %v9667
  %10063 = vmatpush.msra.mxu0 %v9664
  %10064 = vmatpush.msra.mxu0 %v9661
  %10065 = vmatpush.msra.mxu0 %v9658
  %10066 = vmatpush.msra.mxu0 %v9655
  %10067 = vmatpush.msra.mxu0 %v9652
  %10068 = vmatpush.msra.mxu0 %v9649
  %10069 = vmatpush.msra.mxu0 %v9646
  %10070 = vmatpush.msra.mxu0 %v9643
  %10071 = vmatmul.f32.gmra.mxu0 %v9735
  %v10072 = vpop.f32.mrf.mxu0
  %v10073 = vadd.f32 %v10041, %v10072
  %10074 = vmatmul.f32.gmra.mxu0 %v9746
  %v10075 = vpop.f32.mrf.mxu0
  %v10076 = vadd.f32 %v10044, %v10075
  %10077 = vmatmul.f32.gmra.mxu0 %v9756
  %v10078 = vpop.f32.mrf.mxu0
  %v10079 = vadd.f32 %v10047, %v10078
  %10080 = vmatmul.f32.gmra.mxu0 %v9766
  %v10081 = vpop.f32.mrf.mxu0
  %v10082 = vadd.f32 %v10050, %v10081
  %10083 = vmatmul.f32.gmra.mxu0 %v9765
  %v10084 = vpop.f32.mrf.mxu0
  %v10085 = vadd.f32 %v10053, %v10084
  %10086 = vdwg.mxu0
  %10087 = vmatpush.msra.mxu0 0.0
  %10088 = vmatpush.msra.mxu0 0.0
  %10089 = vmatpush.msra.mxu0 0.0
  %10090 = vmatpush.msra.mxu0 0.0
  %10091 = vmatpush.msra.mxu0 0.0
  %10092 = vmatpush.msra.mxu0 0.0
  %10093 = vmatpush.msra.mxu0 0.0
  %10094 = vmatpush.msra.mxu0 0.0
  %10095 = vmatpush.msra.mxu0 %v9712
  %10096 = vmatpush.msra.mxu0 %v9709
  %10097 = vmatpush.msra.mxu0 %v9706
  %10098 = vmatpush.msra.mxu0 %v9703
  %10099 = vmatpush.msra.mxu0 %v9700
  %10100 = vmatpush.msra.mxu0 %v9697
  %10101 = vmatpush.msra.mxu0 %v9694
  %10102 = vmatpush.msra.mxu0 %v9691
  %10103 = vmatmul.f32.gmra.mxu0 %v9789
  %v10104 = vpop.f32.mrf.mxu0
  %v10105 = vadd.f32 %v10073, %v10104
  %10106 = vmatmul.f32.gmra.mxu0 %v9791
  %v10107 = vpop.f32.mrf.mxu0
  %v10108 = vadd.f32 %v10076, %v10107
  %10109 = vmatmul.f32.gmra.mxu0 %v9793
  %v10110 = vpop.f32.mrf.mxu0
  %v10111 = vadd.f32 %v10079, %v10110
  %10112 = vmatmul.f32.gmra.mxu0 %v9795
  %v10113 = vpop.f32.mrf.mxu0
  %v10114 = vadd.f32 %v10082, %v10113
  %10115 = vmatmul.f32.gmra.mxu0 %v9797
  %v10116 = vpop.f32.mrf.mxu0
  %v10117 = vadd.f32 %v10085, %v10116
  %10118 = vdwg.mxu0
  %10119 = vmatpush.msra.mxu0 %v9545
  %10120 = vmatpush.msra.mxu0 %v9542
  %10121 = vmatpush.msra.mxu0 %v9539
  %10122 = vmatpush.msra.mxu0 %v9536
  %10123 = vmatpush.msra.mxu0 %v9533
  %10124 = vmatpush.msra.mxu0 %v9530
  %10125 = vmatpush.msra.mxu0 %v9527
  %10126 = vmatpush.msra.mxu0 %v9524
  %10127 = vmatpush.msra.mxu0 %v9521
  %10128 = vmatpush.msra.mxu0 %v9518
  %10129 = vmatpush.msra.mxu0 %v9515
  %10130 = vmatpush.msra.mxu0 %v9512
  %10131 = vmatpush.msra.mxu0 %v9509
  %10132 = vmatpush.msra.mxu0 %v9506
  %10133 = vmatpush.msra.mxu0 %v9503
  %10134 = vmatpush.msra.mxu0 %v9500
  %10135 = vmatmul.f32.gmra.mxu0 %v9726
  %v10136 = vpop.f32.mrf.mxu0
  %v10137 = vadd.f32 0.0, %v10136
  %10138 = vmatmul.f32.gmra.mxu0 %v9740
  %v10139 = vpop.f32.mrf.mxu0
  %v10140 = vadd.f32 0.0, %v10139
  %10141 = vmatmul.f32.gmra.mxu0 %v9750
  %v10142 = vpop.f32.mrf.mxu0
  %v10143 = vadd.f32 0.0, %v10142
  %10144 = vmatmul.f32.gmra.mxu0 %v9760
  %v10145 = vpop.f32.mrf.mxu0
  %v10146 = vadd.f32 0.0, %v10145
  %10147 = vmatmul.f32.gmra.mxu0 %v9759
  %v10148 = vpop.f32.mrf.mxu0
  %v10149 = vadd.f32 0.0, %v10148
  %10150 = vdwg.mxu0
  %10151 = vmatpush.msra.mxu0 %v9593
  %10152 = vmatpush.msra.mxu0 %v9590
  %10153 = vmatpush.msra.mxu0 %v9587
  %10154 = vmatpush.msra.mxu0 %v9584
  %10155 = vmatpush.msra.mxu0 %v9581
  %10156 = vmatpush.msra.mxu0 %v9578
  %10157 = vmatpush.msra.mxu0 %v9575
  %10158 = vmatpush.msra.mxu0 %v9572
  %10159 = vmatpush.msra.mxu0 %v9569
  %10160 = vmatpush.msra.mxu0 %v9566
  %10161 = vmatpush.msra.mxu0 %v9563
  %10162 = vmatpush.msra.mxu0 %v9560
  %10163 = vmatpush.msra.mxu0 %v9557
  %10164 = vmatpush.msra.mxu0 %v9554
  %10165 = vmatpush.msra.mxu0 %v9551
  %10166 = vmatpush.msra.mxu0 %v9548
  %10167 = vmatmul.f32.gmra.mxu0 %v9729
  %v10168 = vpop.f32.mrf.mxu0
  %v10169 = vadd.f32 %v10137, %v10168
  %10170 = vmatmul.f32.gmra.mxu0 %v9742
  %v10171 = vpop.f32.mrf.mxu0
  %v10172 = vadd.f32 %v10140, %v10171
  %10173 = vmatmul.f32.gmra.mxu0 %v9752
  %v10174 = vpop.f32.mrf.mxu0
  %v10175 = vadd.f32 %v10143, %v10174
  %10176 = vmatmul.f32.gmra.mxu0 %v9762
  %v10177 = vpop.f32.mrf.mxu0
  %v10178 = vadd.f32 %v10146, %v10177
  %10179 = vmatmul.f32.gmra.mxu0 %v9761
  %v10180 = vpop.f32.mrf.mxu0
  %v10181 = vadd.f32 %v10149, %v10180
  %10182 = vdwg.mxu0
  %10183 = vmatpush.msra.mxu0 %v9641
  %10184 = vmatpush.msra.mxu0 %v9638
  %10185 = vmatpush.msra.mxu0 %v9635
  %10186 = vmatpush.msra.mxu0 %v9632
  %10187 = vmatpush.msra.mxu0 %v9629
  %10188 = vmatpush.msra.mxu0 %v9626
  %10189 = vmatpush.msra.mxu0 %v9623
  %10190 = vmatpush.msra.mxu0 %v9620
  %10191 = vmatpush.msra.mxu0 %v9617
  %10192 = vmatpush.msra.mxu0 %v9614
  %10193 = vmatpush.msra.mxu0 %v9611
  %10194 = vmatpush.msra.mxu0 %v9608
  %10195 = vmatpush.msra.mxu0 %v9605
  %10196 = vmatpush.msra.mxu0 %v9602
  %10197 = vmatpush.msra.mxu0 %v9599
  %10198 = vmatpush.msra.mxu0 %v9596
  %10199 = vmatmul.f32.gmra.mxu0 %v9732
  %v10200 = vpop.f32.mrf.mxu0
  %v10201 = vadd.f32 %v10169, %v10200
  %10202 = vmatmul.f32.gmra.mxu0 %v9744
  %v10203 = vpop.f32.mrf.mxu0
  %v10204 = vadd.f32 %v10172, %v10203
  %10205 = vmatmul.f32.gmra.mxu0 %v9754
  %v10206 = vpop.f32.mrf.mxu0
  %v10207 = vadd.f32 %v10175, %v10206
  %10208 = vmatmul.f32.gmra.mxu0 %v9764
  %v10209 = vpop.f32.mrf.mxu0
  %v10210 = vadd.f32 %v10178, %v10209
  %10211 = vmatmul.f32.gmra.mxu0 %v9763
  %v10212 = vpop.f32.mrf.mxu0
  %v10213 = vadd.f32 %v10181, %v10212
  %10214 = vdwg.mxu0
  %10215 = vmatpush.msra.mxu0 %v9689
  %10216 = vmatpush.msra.mxu0 %v9686
  %10217 = vmatpush.msra.mxu0 %v9683
  %10218 = vmatpush.msra.mxu0 %v9680
  %10219 = vmatpush.msra.mxu0 %v9677
  %10220 = vmatpush.msra.mxu0 %v9674
  %10221 = vmatpush.msra.mxu0 %v9671
  %10222 = vmatpush.msra.mxu0 %v9668
  %10223 = vmatpush.msra.mxu0 %v9665
  %10224 = vmatpush.msra.mxu0 %v9662
  %10225 = vmatpush.msra.mxu0 %v9659
  %10226 = vmatpush.msra.mxu0 %v9656
  %10227 = vmatpush.msra.mxu0 %v9653
  %10228 = vmatpush.msra.mxu0 %v9650
  %10229 = vmatpush.msra.mxu0 %v9647
  %10230 = vmatpush.msra.mxu0 %v9644
  %10231 = vmatmul.f32.gmra.mxu0 %v9735
  %v10232 = vpop.f32.mrf.mxu0
  %v10233 = vadd.f32 %v10201, %v10232
  %10234 = vmatmul.f32.gmra.mxu0 %v9746
  %v10235 = vpop.f32.mrf.mxu0
  %v10236 = vadd.f32 %v10204, %v10235
  %10237 = vmatmul.f32.gmra.mxu0 %v9756
  %v10238 = vpop.f32.mrf.mxu0
  %v10239 = vadd.f32 %v10207, %v10238
  %10240 = vmatmul.f32.gmra.mxu0 %v9766
  %v10241 = vpop.f32.mrf.mxu0
  %v10242 = vadd.f32 %v10210, %v10241
  %10243 = vmatmul.f32.gmra.mxu0 %v9765
  %v10244 = vpop.f32.mrf.mxu0
  %v10245 = vadd.f32 %v10213, %v10244
  %10246 = vdwg.mxu0
  %10247 = vmatpush.msra.mxu0 0.0
  %10248 = vmatpush.msra.mxu0 0.0
  %10249 = vmatpush.msra.mxu0 0.0
  %10250 = vmatpush.msra.mxu0 0.0
  %10251 = vmatpush.msra.mxu0 0.0
  %10252 = vmatpush.msra.mxu0 0.0
  %10253 = vmatpush.msra.mxu0 0.0
  %10254 = vmatpush.msra.mxu0 0.0
  %10255 = vmatpush.msra.mxu0 %v9713
  %10256 = vmatpush.msra.mxu0 %v9710
  %10257 = vmatpush.msra.mxu0 %v9707
  %10258 = vmatpush.msra.mxu0 %v9704
  %10259 = vmatpush.msra.mxu0 %v9701
  %10260 = vmatpush.msra.mxu0 %v9698
  %10261 = vmatpush.msra.mxu0 %v9695
  %10262 = vmatpush.msra.mxu0 %v9692
  %10263 = vmatmul.f32.gmra.mxu0 %v9789
  %v10264 = vpop.f32.mrf.mxu0
  %v10265 = vadd.f32 %v10233, %v10264
  %10266 = vmatmul.f32.gmra.mxu0 %v9791
  %v10267 = vpop.f32.mrf.mxu0
  %v10268 = vadd.f32 %v10236, %v10267
  %10269 = vmatmul.f32.gmra.mxu0 %v9793
  %v10270 = vpop.f32.mrf.mxu0
  %v10271 = vadd.f32 %v10239, %v10270
  %10272 = vmatmul.f32.gmra.mxu0 %v9795
  %v10273 = vpop.f32.mrf.mxu0
  %v10274 = vadd.f32 %v10242, %v10273
  %10275 = vmatmul.f32.gmra.mxu0 %v9797
  %v10276 = vpop.f32.mrf.mxu0
  %v10277 = vadd.f32 %v10245, %v10276
  %10278 = vdwg.mxu0
  %v10279 = vadd.f32 %v9153, %v9945
  %v10280 = vadd.f32 %v9313, %v10105
  %v10281 = vadd.f32 %v9473, %v10265
  %v10282 = vadd.f32 %v9156, %v9948
  %v10283 = vadd.f32 %v9316, %v10108
  %v10284 = vadd.f32 %v9476, %v10268
  %v10285 = vadd.f32 %v9159, %v9951
  %v10286 = vadd.f32 %v9319, %v10111
  %v10287 = vadd.f32 %v9479, %v10271
  %v10288 = vadd.f32 %v9162, %v9954
  %v10289 = vadd.f32 %v9322, %v10114
  %v10290 = vadd.f32 %v9482, %v10274
  %v10291 = vadd.f32 %v9165, %v9957
  %v10292 = vadd.f32 %v9325, %v10117
  %v10293 = vadd.f32 %v9485, %v10277
  %v10294 = vld [vmem:[%s8] sm:$0x7]
  %v10296 = vperm.slane %v10294, 0
  %v10297 = vperm.slane %v10294, 1
  %v10298 = vperm.slane %v10294, 2
  %v10302 = vadd.f32 %v10279, %v10296
  %v10303 = vadd.f32 %v10280, %v10297
  %v10304 = vadd.f32 %v10281, %v10298
  %v10305 = vadd.f32 %v10282, %v10296
  %v10306 = vadd.f32 %v10283, %v10297
  %v10307 = vadd.f32 %v10284, %v10298
  %v10308 = vadd.f32 %v10285, %v10296
  %v10309 = vadd.f32 %v10286, %v10297
  %v10310 = vadd.f32 %v10287, %v10298
  %v10311 = vadd.f32 %v10288, %v10296
  %v10312 = vadd.f32 %v10289, %v10297
  %v10313 = vadd.f32 %v10290, %v10298
  %v10314 = vadd.f32 %v10291, %v10296
  %v10315 = vadd.f32 %v10292, %v10297
  %v10316 = vadd.f32 %v10293, %v10298
  %v10317 = vmul.f32 %v10302, %v570
  %v10318 = vmul.f32 %v10303, %v570
  %v10319 = vmul.f32 %v10304, %v570
  %v10320 = vmul.f32 %v10305, %v575
  %v10321 = vmul.f32 %v10306, %v575
  %v10322 = vmul.f32 %v10307, %v575
  %v10323 = vmul.f32 %v10308, %v580
  %v10324 = vmul.f32 %v10309, %v580
  %v10325 = vmul.f32 %v10310, %v580
  %v10326 = vmul.f32 %v10311, %v585
  %v10327 = vmul.f32 %v10312, %v585
  %v10328 = vmul.f32 %v10313, %v585
  %v10329 = vmul.f32 %v10314, %v590
  %v10330 = vmul.f32 %v10315, %v590
  %v10331 = vmul.f32 %v10316, %v590
  %v10347 = vrot.slane %v10317, 7
  %v10348 = vrot.slane %v10318, 7
  %v10349 = vrot.slane %v10319, 7
  %v10350 = vrot.slane %v10320, 7
  %v10351 = vsel %vm667, %v10347, %v10350
  %v10352 = vrot.slane %v10321, 7
  %v10353 = vsel %vm667, %v10348, %v10352
  %v10354 = vrot.slane %v10322, 7
  %v10355 = vsel %vm667, %v10349, %v10354
  %v10356 = vrot.slane %v10323, 7
  %v10357 = vsel %vm667, %v10350, %v10356
  %v10358 = vrot.slane %v10324, 7
  %v10359 = vsel %vm667, %v10352, %v10358
  %v10360 = vrot.slane %v10325, 7
  %v10361 = vsel %vm667, %v10354, %v10360
  %v10362 = vrot.slane %v10326, 7
  %v10363 = vsel %vm667, %v10356, %v10362
  %v10364 = vrot.slane %v10327, 7
  %v10365 = vsel %vm667, %v10358, %v10364
  %v10366 = vrot.slane %v10328, 7
  %v10367 = vsel %vm667, %v10360, %v10366
  %v10368 = vrot.slane %v10329, 7
  %v10369 = vsel %vm667, %v10362, %v10368
  %v10370 = vrot.slane %v10330, 7
  %v10371 = vsel %vm667, %v10364, %v10370
  %v10372 = vrot.slane %v10331, 7
  %v10373 = vsel %vm667, %v10366, %v10372
  %10389 = vst [vmem:[#allocation3] sm:$0xfe] %v10347
  %10390 = vst [vmem:[#allocation3 + $0x8] sm:$0xfe] %v10348
  %10391 = vst.msk [vmem:[#allocation3 + $0x10] sm:$0xfe] %vm712, %v10349
  %10392 = vst [vmem:[#allocation3 + $0x28] sm:$0xff] %v10351
  %10393 = vst [vmem:[#allocation3 + $0x30] sm:$0xff] %v10353
  %10394 = vst.msk [vmem:[#allocation3 + $0x38] sm:$0xff] %vm716, %v10355
  %10395 = vst [vmem:[#allocation3 + $0x50] sm:$0xff] %v10357
  %10396 = vst [vmem:[#allocation3 + $0x58] sm:$0xff] %v10359
  %10397 = vst.msk [vmem:[#allocation3 + $0x60] sm:$0xff] %vm716, %v10361
  %10398 = vst [vmem:[#allocation3 + $0x78] sm:$0xff] %v10363
  %10399 = vst [vmem:[#allocation3 + $0x80] sm:$0xff] %v10365
  %10400 = vst.msk [vmem:[#allocation3 + $0x88] sm:$0xff] %vm716, %v10367
  %10401 = vst [vmem:[#allocation3 + $0xa0] sm:$0x1f] %v10369
  %10402 = vst [vmem:[#allocation3 + $0xa8] sm:$0x1f] %v10371
  %10403 = vst.msk [vmem:[#allocation3 + $0xb0] sm:$0x1f] %vm726, %v10373
  %v10404 = vld [vmem:[#allocation3] sm:$0xff]
  %v10405 = vld [vmem:[#allocation3 + $0x8] sm:$0xff]
  %v10406 = vld [vmem:[#allocation3 + $0x10] sm:$0xff]
  %v10407 = vld [vmem:[#allocation3 + $0x28] sm:$0xff]
  %v10408 = vld [vmem:[#allocation3 + $0x30] sm:$0xff]
  %v10409 = vld [vmem:[#allocation3 + $0x38] sm:$0xff]
  %v10410 = vld [vmem:[#allocation3 + $0x50] sm:$0xff]
  %v10411 = vld [vmem:[#allocation3 + $0x58] sm:$0xff]
  %v10412 = vld [vmem:[#allocation3 + $0x60] sm:$0xff]
  %v10413 = vld [vmem:[#allocation3 + $0x78] sm:$0xff]
  %v10414 = vld [vmem:[#allocation3 + $0x80] sm:$0xff]
  %v10415 = vld [vmem:[#allocation3 + $0x88] sm:$0xff]
  %v10416 = vld [vmem:[#allocation3 + $0xa0] sm:$0xf]
  %v10417 = vld [vmem:[#allocation3 + $0xa8] sm:$0xf]
  %v10418 = vld [vmem:[#allocation3 + $0xb0] sm:$0xf]
  %v10419 = vld [vmem:[%s9] sm:$0xff]
  %v10420 = vld [vmem:[%s9 + $0x8] sm:$0xff]
  %v10421 = vld [vmem:[%s9 + $0x10] sm:$0xff]
  %v10422 = vld [vmem:[%s9 + $0x18] sm:$0xff]
  %v10423 = vld [vmem:[%s9 + $0x20] sm:$0xff]
  %v10424 = vld [vmem:[%s9 + $0x28] sm:$0xff]
  %v10425 = vld [vmem:[%s9 + $0x30] sm:$0xff]
  %v10426 = vld [vmem:[%s9 + $0x38] sm:$0xff]
  %v10427 = vld [vmem:[%s9 + $0x40] sm:$0xff]
  %v10428 = vld [vmem:[%s9 + $0x48] sm:$0xff]
  %v10429 = vld [vmem:[%s9 + $0x50] sm:$0xff]
  %v10430 = vld [vmem:[%s9 + $0x58] sm:$0xff]
  %v10431 = vld [vmem:[%s9 + $0x60] sm:$0xff]
  %v10432 = vld [vmem:[%s9 + $0x68] sm:$0xff]
  %v10433 = vld [vmem:[%s9 + $0x70] sm:$0xff]
  %v10434 = vld [vmem:[%s9 + $0x78] sm:$0xff]
  %v10435 = vld [vmem:[%s9 + $0x80] sm:$0xff]
  %v10436 = vld [vmem:[%s9 + $0x88] sm:$0xff]
  %v10437 = vld [vmem:[%s9 + $0x90] sm:$0xff]
  %v10438 = vld [vmem:[%s9 + $0x98] sm:$0xff]
  %v10439 = vld [vmem:[%s9 + $0xa0] sm:$0xff]
  %v10440 = vld [vmem:[%s9 + $0xa8] sm:$0xff]
  %v10441 = vld [vmem:[%s9 + $0xb0] sm:$0xff]
  %v10442 = vld [vmem:[%s9 + $0xb8] sm:$0xff]
  %v10443 = vld [vmem:[%s9 + $0xc0] sm:$0xff]
  %v10444 = vld [vmem:[%s9 + $0xc8] sm:$0xff]
  %v10445 = vld [vmem:[%s9 + $0xd0] sm:$0xff]
  %v10446 = vld [vmem:[%s9 + $0xd8] sm:$0xff]
  %v10447 = vld [vmem:[%s9 + $0xe0] sm:$0xff]
  %v10448 = vld [vmem:[%s9 + $0xe8] sm:$0xff]
  %v10449 = vld [vmem:[%s9 + $0xf0] sm:$0xff]
  %v10450 = vld [vmem:[%s9 + $0xf8] sm:$0xff]
  %v10451 = vld [vmem:[%s9 + $0x100] sm:$0xff]
  %v10452 = vld [vmem:[%s9 + $0x108] sm:$0xff]
  %v10453 = vld [vmem:[%s9 + $0x110] sm:$0xff]
  %v10454 = vld [vmem:[%s9 + $0x118] sm:$0xff]
  %v10455 = vld [vmem:[#allocation3] sm:$0xfe]
  %v10456 = vld [vmem:[#allocation3 + $0x8] sm:$0xfe]
  %v10457 = vld [vmem:[#allocation3 + $0x10] sm:$0xfe]
  %v10458 = vld [vmem:[#allocation3 + $0xa0] sm:$0x1f]
  %v10459 = vld [vmem:[#allocation3 + $0xa8] sm:$0x1f]
  %v10460 = vld [vmem:[#allocation3 + $0xb0] sm:$0x1f]
  %s10461 = scalar_lea.vmem %s9, 288
  %v10462 = vld [vmem:[%s10461] sm:$0xff]
  %v10463 = vld [vmem:[%s10461 + $0x8] sm:$0xff]
  %v10464 = vld [vmem:[%s10461 + $0x10] sm:$0xff]
  %v10465 = vld [vmem:[%s10461 + $0x18] sm:$0xff]
  %v10466 = vld [vmem:[%s10461 + $0x20] sm:$0xff]
  %v10467 = vld [vmem:[%s10461 + $0x28] sm:$0xff]
  %v10468 = vld [vmem:[%s10461 + $0x30] sm:$0xff]
  %v10469 = vld [vmem:[%s10461 + $0x38] sm:$0xff]
  %v10470 = vld [vmem:[%s10461 + $0x40] sm:$0xff]
  %v10471 = vld [vmem:[%s10461 + $0x48] sm:$0xff]
  %v10472 = vld [vmem:[%s10461 + $0x50] sm:$0xff]
  %v10473 = vld [vmem:[%s10461 + $0x58] sm:$0xff]
  %v10474 = vld [vmem:[%s10461 + $0x60] sm:$0xff]
  %v10475 = vld [vmem:[%s10461 + $0x68] sm:$0xff]
  %v10476 = vld [vmem:[%s10461 + $0x70] sm:$0xff]
  %v10477 = vld [vmem:[%s10461 + $0x78] sm:$0xff]
  %v10478 = vld [vmem:[%s10461 + $0x80] sm:$0xff]
  %v10479 = vld [vmem:[%s10461 + $0x88] sm:$0xff]
  %v10480 = vld [vmem:[%s10461 + $0x90] sm:$0xff]
  %v10481 = vld [vmem:[%s10461 + $0x98] sm:$0xff]
  %v10482 = vld [vmem:[%s10461 + $0xa0] sm:$0xff]
  %v10483 = vld [vmem:[%s10461 + $0xa8] sm:$0xff]
  %v10484 = vld [vmem:[%s10461 + $0xb0] sm:$0xff]
  %v10485 = vld [vmem:[%s10461 + $0xb8] sm:$0xff]
  %v10486 = vld [vmem:[%s10461 + $0xc0] sm:$0xff]
  %v10487 = vld [vmem:[%s10461 + $0xc8] sm:$0xff]
  %v10488 = vld [vmem:[%s10461 + $0xd0] sm:$0xff]
  %v10489 = vld [vmem:[%s10461 + $0xd8] sm:$0xff]
  %v10490 = vld [vmem:[%s10461 + $0xe0] sm:$0xff]
  %v10491 = vld [vmem:[%s10461 + $0xe8] sm:$0xff]
  %v10492 = vld [vmem:[%s10461 + $0xf0] sm:$0xff]
  %v10493 = vld [vmem:[%s10461 + $0xf8] sm:$0xff]
  %v10494 = vld [vmem:[%s10461 + $0x100] sm:$0xff]
  %v10495 = vld [vmem:[%s10461 + $0x108] sm:$0xff]
  %v10496 = vld [vmem:[%s10461 + $0x110] sm:$0xff]
  %v10497 = vld [vmem:[%s10461 + $0x118] sm:$0xff]
  %v10513 = vrot.slane %v10455, 1
  %v10514 = vrot.slane %v10407, 1
  %v10515 = vsel %vm1125, %v10513, %v10514
  %v10516 = vrot.slane %v10456, 1
  %v10517 = vrot.slane %v10408, 1
  %v10518 = vsel %vm1125, %v10516, %v10517
  %v10519 = vrot.slane %v10457, 1
  %v10520 = vrot.slane %v10409, 1
  %v10521 = vsel %vm1125, %v10519, %v10520
  %v10522 = vrot.slane %v10410, 1
  %v10523 = vsel %vm1125, %v10514, %v10522
  %v10524 = vrot.slane %v10411, 1
  %v10525 = vsel %vm1125, %v10517, %v10524
  %v10526 = vrot.slane %v10412, 1
  %v10527 = vsel %vm1125, %v10520, %v10526
  %v10528 = vrot.slane %v10413, 1
  %v10529 = vsel %vm1125, %v10522, %v10528
  %v10530 = vrot.slane %v10414, 1
  %v10531 = vsel %vm1125, %v10524, %v10530
  %v10532 = vrot.slane %v10415, 1
  %v10533 = vsel %vm1125, %v10526, %v10532
  %v10534 = vrot.slane %v10458, 1
  %v10535 = vsel %vm1125, %v10528, %v10534
  %v10536 = vrot.slane %v10459, 1
  %v10537 = vsel %vm1125, %v10530, %v10536
  %v10538 = vrot.slane %v10460, 1
  %v10539 = vsel %vm1125, %v10532, %v10538
  %v10550 = vsel %vm716, %v10521, 0
  %v10552 = vsel %vm716, %v10527, 0
  %v10554 = vsel %vm716, %v10533, 0
  %v10556 = vsel %vm716, %v10539, 0
  %v10558 = vsel %vm716, %v10538, 0
  %10560 = vmatpush.msra.mxu0 %v10477
  %10561 = vmatpush.msra.mxu0 %v10476
  %10562 = vmatpush.msra.mxu0 %v10475
  %10563 = vmatpush.msra.mxu0 %v10474
  %10564 = vmatpush.msra.mxu0 %v10473
  %10565 = vmatpush.msra.mxu0 %v10472
  %10566 = vmatpush.msra.mxu0 %v10471
  %10567 = vmatpush.msra.mxu0 %v10470
  %10568 = vmatpush.msra.mxu0 %v10469
  %10569 = vmatpush.msra.mxu0 %v10468
  %10570 = vmatpush.msra.mxu0 %v10467
  %10571 = vmatpush.msra.mxu0 %v10466
  %10572 = vmatpush.msra.mxu0 %v10465
  %10573 = vmatpush.msra.mxu0 %v10464
  %10574 = vmatpush.msra.mxu0 %v10463
  %10575 = vmatpush.msra.mxu0 %v10462
  %10576 = vmatmul.f32.gmra.mxu0 %v10515
  %v10577 = vpop.f32.mrf.mxu0
  %v10578 = vadd.f32 0.0, %v10577
  %10579 = vmatmul.f32.gmra.mxu0 %v10523
  %v10580 = vpop.f32.mrf.mxu0
  %v10581 = vadd.f32 0.0, %v10580
  %10582 = vmatmul.f32.gmra.mxu0 %v10529
  %v10583 = vpop.f32.mrf.mxu0
  %v10584 = vadd.f32 0.0, %v10583
  %10585 = vmatmul.f32.gmra.mxu0 %v10535
  %v10586 = vpop.f32.mrf.mxu0
  %v10587 = vadd.f32 0.0, %v10586
  %10588 = vmatmul.f32.gmra.mxu0 %v10534
  %v10589 = vpop.f32.mrf.mxu0
  %v10590 = vadd.f32 0.0, %v10589
  %10591 = vdwg.mxu0
  %10592 = vmatpush.msra.mxu0 %v10493
  %10593 = vmatpush.msra.mxu0 %v10492
  %10594 = vmatpush.msra.mxu0 %v10491
  %10595 = vmatpush.msra.mxu0 %v10490
  %10596 = vmatpush.msra.mxu0 %v10489
  %10597 = vmatpush.msra.mxu0 %v10488
  %10598 = vmatpush.msra.mxu0 %v10487
  %10599 = vmatpush.msra.mxu0 %v10486
  %10600 = vmatpush.msra.mxu0 %v10485
  %10601 = vmatpush.msra.mxu0 %v10484
  %10602 = vmatpush.msra.mxu0 %v10483
  %10603 = vmatpush.msra.mxu0 %v10482
  %10604 = vmatpush.msra.mxu0 %v10481
  %10605 = vmatpush.msra.mxu0 %v10480
  %10606 = vmatpush.msra.mxu0 %v10479
  %10607 = vmatpush.msra.mxu0 %v10478
  %10608 = vmatmul.f32.gmra.mxu0 %v10518
  %v10609 = vpop.f32.mrf.mxu0
  %v10610 = vadd.f32 %v10578, %v10609
  %10611 = vmatmul.f32.gmra.mxu0 %v10525
  %v10612 = vpop.f32.mrf.mxu0
  %v10613 = vadd.f32 %v10581, %v10612
  %10614 = vmatmul.f32.gmra.mxu0 %v10531
  %v10615 = vpop.f32.mrf.mxu0
  %v10616 = vadd.f32 %v10584, %v10615
  %10617 = vmatmul.f32.gmra.mxu0 %v10537
  %v10618 = vpop.f32.mrf.mxu0
  %v10619 = vadd.f32 %v10587, %v10618
  %10620 = vmatmul.f32.gmra.mxu0 %v10536
  %v10621 = vpop.f32.mrf.mxu0
  %v10622 = vadd.f32 %v10590, %v10621
  %10623 = vdwg.mxu0
  %10624 = vmatpush.msra.mxu0 0.0
  %10625 = vmatpush.msra.mxu0 0.0
  %10626 = vmatpush.msra.mxu0 0.0
  %10627 = vmatpush.msra.mxu0 0.0
  %10628 = vmatpush.msra.mxu0 0.0
  %10629 = vmatpush.msra.mxu0 0.0
  %10630 = vmatpush.msra.mxu0 0.0
  %10631 = vmatpush.msra.mxu0 0.0
  %10632 = vmatpush.msra.mxu0 0.0
  %10633 = vmatpush.msra.mxu0 0.0
  %10634 = vmatpush.msra.mxu0 0.0
  %10635 = vmatpush.msra.mxu0 0.0
  %10636 = vmatpush.msra.mxu0 %v10497
  %10637 = vmatpush.msra.mxu0 %v10496
  %10638 = vmatpush.msra.mxu0 %v10495
  %10639 = vmatpush.msra.mxu0 %v10494
  %10640 = vmatmul.f32.gmra.mxu0 %v10550
  %v10641 = vpop.f32.mrf.mxu0
  %v10642 = vadd.f32 %v10610, %v10641
  %10643 = vmatmul.f32.gmra.mxu0 %v10552
  %v10644 = vpop.f32.mrf.mxu0
  %v10645 = vadd.f32 %v10613, %v10644
  %10646 = vmatmul.f32.gmra.mxu0 %v10554
  %v10647 = vpop.f32.mrf.mxu0
  %v10648 = vadd.f32 %v10616, %v10647
  %10649 = vmatmul.f32.gmra.mxu0 %v10556
  %v10650 = vpop.f32.mrf.mxu0
  %v10651 = vadd.f32 %v10619, %v10650
  %10652 = vmatmul.f32.gmra.mxu0 %v10558
  %v10653 = vpop.f32.mrf.mxu0
  %v10654 = vadd.f32 %v10622, %v10653
  %10655 = vdwg.mxu0
  %v10657 = vsel %vm716, %v10406, 0
  %v10659 = vsel %vm716, %v10409, 0
  %v10661 = vsel %vm716, %v10412, 0
  %v10663 = vsel %vm716, %v10415, 0
  %v10666 = vsel %vm716, %v10418, 0
  %10668 = vmatpush.msra.mxu0 %v10434
  %10669 = vmatpush.msra.mxu0 %v10433
  %10670 = vmatpush.msra.mxu0 %v10432
  %10671 = vmatpush.msra.mxu0 %v10431
  %10672 = vmatpush.msra.mxu0 %v10430
  %10673 = vmatpush.msra.mxu0 %v10429
  %10674 = vmatpush.msra.mxu0 %v10428
  %10675 = vmatpush.msra.mxu0 %v10427
  %10676 = vmatpush.msra.mxu0 %v10426
  %10677 = vmatpush.msra.mxu0 %v10425
  %10678 = vmatpush.msra.mxu0 %v10424
  %10679 = vmatpush.msra.mxu0 %v10423
  %10680 = vmatpush.msra.mxu0 %v10422
  %10681 = vmatpush.msra.mxu0 %v10421
  %10682 = vmatpush.msra.mxu0 %v10420
  %10683 = vmatpush.msra.mxu0 %v10419
  %10684 = vmatmul.f32.gmra.mxu0 %v10404
  %v10685 = vpop.f32.mrf.mxu0
  %v10686 = vadd.f32 %v10642, %v10685
  %10687 = vmatmul.f32.gmra.mxu0 %v10407
  %v10688 = vpop.f32.mrf.mxu0
  %v10689 = vadd.f32 %v10645, %v10688
  %10690 = vmatmul.f32.gmra.mxu0 %v10410
  %v10691 = vpop.f32.mrf.mxu0
  %v10692 = vadd.f32 %v10648, %v10691
  %10693 = vmatmul.f32.gmra.mxu0 %v10413
  %v10694 = vpop.f32.mrf.mxu0
  %v10695 = vadd.f32 %v10651, %v10694
  %10696 = vmatmul.f32.gmra.mxu0 %v10416
  %v10697 = vpop.f32.mrf.mxu0
  %v10698 = vadd.f32 %v10654, %v10697
  %10699 = vdwg.mxu0
  %10700 = vmatpush.msra.mxu0 %v10450
  %10701 = vmatpush.msra.mxu0 %v10449
  %10702 = vmatpush.msra.mxu0 %v10448
  %10703 = vmatpush.msra.mxu0 %v10447
  %10704 = vmatpush.msra.mxu0 %v10446
  %10705 = vmatpush.msra.mxu0 %v10445
  %10706 = vmatpush.msra.mxu0 %v10444
  %10707 = vmatpush.msra.mxu0 %v10443
  %10708 = vmatpush.msra.mxu0 %v10442
  %10709 = vmatpush.msra.mxu0 %v10441
  %10710 = vmatpush.msra.mxu0 %v10440
  %10711 = vmatpush.msra.mxu0 %v10439
  %10712 = vmatpush.msra.mxu0 %v10438
  %10713 = vmatpush.msra.mxu0 %v10437
  %10714 = vmatpush.msra.mxu0 %v10436
  %10715 = vmatpush.msra.mxu0 %v10435
  %10716 = vmatmul.f32.gmra.mxu0 %v10405
  %v10717 = vpop.f32.mrf.mxu0
  %v10718 = vadd.f32 %v10686, %v10717
  %10719 = vmatmul.f32.gmra.mxu0 %v10408
  %v10720 = vpop.f32.mrf.mxu0
  %v10721 = vadd.f32 %v10689, %v10720
  %10722 = vmatmul.f32.gmra.mxu0 %v10411
  %v10723 = vpop.f32.mrf.mxu0
  %v10724 = vadd.f32 %v10692, %v10723
  %10725 = vmatmul.f32.gmra.mxu0 %v10414
  %v10726 = vpop.f32.mrf.mxu0
  %v10727 = vadd.f32 %v10695, %v10726
  %10728 = vmatmul.f32.gmra.mxu0 %v10417
  %v10729 = vpop.f32.mrf.mxu0
  %v10730 = vadd.f32 %v10698, %v10729
  %10731 = vdwg.mxu0
  %10732 = vmatpush.msra.mxu0 0.0
  %10733 = vmatpush.msra.mxu0 0.0
  %10734 = vmatpush.msra.mxu0 0.0
  %10735 = vmatpush.msra.mxu0 0.0
  %10736 = vmatpush.msra.mxu0 0.0
  %10737 = vmatpush.msra.mxu0 0.0
  %10738 = vmatpush.msra.mxu0 0.0
  %10739 = vmatpush.msra.mxu0 0.0
  %10740 = vmatpush.msra.mxu0 0.0
  %10741 = vmatpush.msra.mxu0 0.0
  %10742 = vmatpush.msra.mxu0 0.0
  %10743 = vmatpush.msra.mxu0 0.0
  %10744 = vmatpush.msra.mxu0 %v10454
  %10745 = vmatpush.msra.mxu0 %v10453
  %10746 = vmatpush.msra.mxu0 %v10452
  %10747 = vmatpush.msra.mxu0 %v10451
  %10748 = vmatmul.f32.gmra.mxu0 %v10657
  %v10749 = vpop.f32.mrf.mxu0
  %v10750 = vadd.f32 %v10718, %v10749
  %10751 = vmatmul.f32.gmra.mxu0 %v10659
  %v10752 = vpop.f32.mrf.mxu0
  %v10753 = vadd.f32 %v10721, %v10752
  %10754 = vmatmul.f32.gmra.mxu0 %v10661
  %v10755 = vpop.f32.mrf.mxu0
  %v10756 = vadd.f32 %v10724, %v10755
  %10757 = vmatmul.f32.gmra.mxu0 %v10663
  %v10758 = vpop.f32.mrf.mxu0
  %v10759 = vadd.f32 %v10727, %v10758
  %10760 = vmatmul.f32.gmra.mxu0 %v10666
  %v10761 = vpop.f32.mrf.mxu0
  %v10762 = vadd.f32 %v10730, %v10761
  %10763 = vdwg.mxu0
  %v10764 = vld [vmem:[#allocation3] sm:$0xfc]
  %v10765 = vld [vmem:[#allocation3 + $0x8] sm:$0xfc]
  %v10766 = vld [vmem:[#allocation3 + $0x10] sm:$0xfc]
  %v10767 = vld [vmem:[#allocation3 + $0xa0] sm:$0x3f]
  %v10768 = vld [vmem:[#allocation3 + $0xa8] sm:$0x3f]
  %v10769 = vld [vmem:[#allocation3 + $0xb0] sm:$0x3f]
  %s10770 = scalar_lea.vmem %s9, 576
  %v10771 = vld [vmem:[%s10770] sm:$0xff]
  %v10772 = vld [vmem:[%s10770 + $0x8] sm:$0xff]
  %v10773 = vld [vmem:[%s10770 + $0x10] sm:$0xff]
  %v10774 = vld [vmem:[%s10770 + $0x18] sm:$0xff]
  %v10775 = vld [vmem:[%s10770 + $0x20] sm:$0xff]
  %v10776 = vld [vmem:[%s10770 + $0x28] sm:$0xff]
  %v10777 = vld [vmem:[%s10770 + $0x30] sm:$0xff]
  %v10778 = vld [vmem:[%s10770 + $0x38] sm:$0xff]
  %v10779 = vld [vmem:[%s10770 + $0x40] sm:$0xff]
  %v10780 = vld [vmem:[%s10770 + $0x48] sm:$0xff]
  %v10781 = vld [vmem:[%s10770 + $0x50] sm:$0xff]
  %v10782 = vld [vmem:[%s10770 + $0x58] sm:$0xff]
  %v10783 = vld [vmem:[%s10770 + $0x60] sm:$0xff]
  %v10784 = vld [vmem:[%s10770 + $0x68] sm:$0xff]
  %v10785 = vld [vmem:[%s10770 + $0x70] sm:$0xff]
  %v10786 = vld [vmem:[%s10770 + $0x78] sm:$0xff]
  %v10787 = vld [vmem:[%s10770 + $0x80] sm:$0xff]
  %v10788 = vld [vmem:[%s10770 + $0x88] sm:$0xff]
  %v10789 = vld [vmem:[%s10770 + $0x90] sm:$0xff]
  %v10790 = vld [vmem:[%s10770 + $0x98] sm:$0xff]
  %v10791 = vld [vmem:[%s10770 + $0xa0] sm:$0xff]
  %v10792 = vld [vmem:[%s10770 + $0xa8] sm:$0xff]
  %v10793 = vld [vmem:[%s10770 + $0xb0] sm:$0xff]
  %v10794 = vld [vmem:[%s10770 + $0xb8] sm:$0xff]
  %v10795 = vld [vmem:[%s10770 + $0xc0] sm:$0xff]
  %v10796 = vld [vmem:[%s10770 + $0xc8] sm:$0xff]
  %v10797 = vld [vmem:[%s10770 + $0xd0] sm:$0xff]
  %v10798 = vld [vmem:[%s10770 + $0xd8] sm:$0xff]
  %v10799 = vld [vmem:[%s10770 + $0xe0] sm:$0xff]
  %v10800 = vld [vmem:[%s10770 + $0xe8] sm:$0xff]
  %v10801 = vld [vmem:[%s10770 + $0xf0] sm:$0xff]
  %v10802 = vld [vmem:[%s10770 + $0xf8] sm:$0xff]
  %v10803 = vld [vmem:[%s10770 + $0x100] sm:$0xff]
  %v10804 = vld [vmem:[%s10770 + $0x108] sm:$0xff]
  %v10805 = vld [vmem:[%s10770 + $0x110] sm:$0xff]
  %v10806 = vld [vmem:[%s10770 + $0x118] sm:$0xff]
  %v10813 = vrot.slane %v10764, 2
  %v10814 = vrot.slane %v10407, 2
  %v10815 = vsel %vm156, %v10813, %v10814
  %v10816 = vrot.slane %v10765, 2
  %v10817 = vrot.slane %v10408, 2
  %v10818 = vsel %vm156, %v10816, %v10817
  %v10819 = vrot.slane %v10766, 2
  %v10820 = vrot.slane %v10409, 2
  %v10821 = vsel %vm156, %v10819, %v10820
  %v10822 = vrot.slane %v10410, 2
  %v10823 = vsel %vm156, %v10814, %v10822
  %v10824 = vrot.slane %v10411, 2
  %v10825 = vsel %vm156, %v10817, %v10824
  %v10826 = vrot.slane %v10412, 2
  %v10827 = vsel %vm156, %v10820, %v10826
  %v10828 = vrot.slane %v10413, 2
  %v10829 = vsel %vm156, %v10822, %v10828
  %v10830 = vrot.slane %v10414, 2
  %v10831 = vsel %vm156, %v10824, %v10830
  %v10832 = vrot.slane %v10415, 2
  %v10833 = vsel %vm156, %v10826, %v10832
  %v10834 = vrot.slane %v10767, 2
  %v10835 = vsel %vm156, %v10828, %v10834
  %v10836 = vrot.slane %v10768, 2
  %v10837 = vsel %vm156, %v10830, %v10836
  %v10838 = vrot.slane %v10769, 2
  %v10839 = vsel %vm156, %v10832, %v10838
  %v10850 = vsel %vm716, %v10821, 0
  %v10852 = vsel %vm716, %v10827, 0
  %v10854 = vsel %vm716, %v10833, 0
  %v10856 = vsel %vm716, %v10839, 0
  %v10858 = vsel %vm716, %v10838, 0
  %10860 = vmatpush.msra.mxu0 %v10786
  %10861 = vmatpush.msra.mxu0 %v10785
  %10862 = vmatpush.msra.mxu0 %v10784
  %10863 = vmatpush.msra.mxu0 %v10783
  %10864 = vmatpush.msra.mxu0 %v10782
  %10865 = vmatpush.msra.mxu0 %v10781
  %10866 = vmatpush.msra.mxu0 %v10780
  %10867 = vmatpush.msra.mxu0 %v10779
  %10868 = vmatpush.msra.mxu0 %v10778
  %10869 = vmatpush.msra.mxu0 %v10777
  %10870 = vmatpush.msra.mxu0 %v10776
  %10871 = vmatpush.msra.mxu0 %v10775
  %10872 = vmatpush.msra.mxu0 %v10774
  %10873 = vmatpush.msra.mxu0 %v10773
  %10874 = vmatpush.msra.mxu0 %v10772
  %10875 = vmatpush.msra.mxu0 %v10771
  %10876 = vmatmul.f32.gmra.mxu0 %v10815
  %v10877 = vpop.f32.mrf.mxu0
  %v10878 = vadd.f32 0.0, %v10877
  %10879 = vmatmul.f32.gmra.mxu0 %v10823
  %v10880 = vpop.f32.mrf.mxu0
  %v10881 = vadd.f32 0.0, %v10880
  %10882 = vmatmul.f32.gmra.mxu0 %v10829
  %v10883 = vpop.f32.mrf.mxu0
  %v10884 = vadd.f32 0.0, %v10883
  %10885 = vmatmul.f32.gmra.mxu0 %v10835
  %v10886 = vpop.f32.mrf.mxu0
  %v10887 = vadd.f32 0.0, %v10886
  %10888 = vmatmul.f32.gmra.mxu0 %v10834
  %v10889 = vpop.f32.mrf.mxu0
  %v10890 = vadd.f32 0.0, %v10889
  %10891 = vdwg.mxu0
  %10892 = vmatpush.msra.mxu0 %v10802
  %10893 = vmatpush.msra.mxu0 %v10801
  %10894 = vmatpush.msra.mxu0 %v10800
  %10895 = vmatpush.msra.mxu0 %v10799
  %10896 = vmatpush.msra.mxu0 %v10798
  %10897 = vmatpush.msra.mxu0 %v10797
  %10898 = vmatpush.msra.mxu0 %v10796
  %10899 = vmatpush.msra.mxu0 %v10795
  %10900 = vmatpush.msra.mxu0 %v10794
  %10901 = vmatpush.msra.mxu0 %v10793
  %10902 = vmatpush.msra.mxu0 %v10792
  %10903 = vmatpush.msra.mxu0 %v10791
  %10904 = vmatpush.msra.mxu0 %v10790
  %10905 = vmatpush.msra.mxu0 %v10789
  %10906 = vmatpush.msra.mxu0 %v10788
  %10907 = vmatpush.msra.mxu0 %v10787
  %10908 = vmatmul.f32.gmra.mxu0 %v10818
  %v10909 = vpop.f32.mrf.mxu0
  %v10910 = vadd.f32 %v10878, %v10909
  %10911 = vmatmul.f32.gmra.mxu0 %v10825
  %v10912 = vpop.f32.mrf.mxu0
  %v10913 = vadd.f32 %v10881, %v10912
  %10914 = vmatmul.f32.gmra.mxu0 %v10831
  %v10915 = vpop.f32.mrf.mxu0
  %v10916 = vadd.f32 %v10884, %v10915
  %10917 = vmatmul.f32.gmra.mxu0 %v10837
  %v10918 = vpop.f32.mrf.mxu0
  %v10919 = vadd.f32 %v10887, %v10918
  %10920 = vmatmul.f32.gmra.mxu0 %v10836
  %v10921 = vpop.f32.mrf.mxu0
  %v10922 = vadd.f32 %v10890, %v10921
  %10923 = vdwg.mxu0
  %10924 = vmatpush.msra.mxu0 0.0
  %10925 = vmatpush.msra.mxu0 0.0
  %10926 = vmatpush.msra.mxu0 0.0
  %10927 = vmatpush.msra.mxu0 0.0
  %10928 = vmatpush.msra.mxu0 0.0
  %10929 = vmatpush.msra.mxu0 0.0
  %10930 = vmatpush.msra.mxu0 0.0
  %10931 = vmatpush.msra.mxu0 0.0
  %10932 = vmatpush.msra.mxu0 0.0
  %10933 = vmatpush.msra.mxu0 0.0
  %10934 = vmatpush.msra.mxu0 0.0
  %10935 = vmatpush.msra.mxu0 0.0
  %10936 = vmatpush.msra.mxu0 %v10806
  %10937 = vmatpush.msra.mxu0 %v10805
  %10938 = vmatpush.msra.mxu0 %v10804
  %10939 = vmatpush.msra.mxu0 %v10803
  %10940 = vmatmul.f32.gmra.mxu0 %v10850
  %v10941 = vpop.f32.mrf.mxu0
  %v10942 = vadd.f32 %v10910, %v10941
  %10943 = vmatmul.f32.gmra.mxu0 %v10852
  %v10944 = vpop.f32.mrf.mxu0
  %v10945 = vadd.f32 %v10913, %v10944
  %10946 = vmatmul.f32.gmra.mxu0 %v10854
  %v10947 = vpop.f32.mrf.mxu0
  %v10948 = vadd.f32 %v10916, %v10947
  %10949 = vmatmul.f32.gmra.mxu0 %v10856
  %v10950 = vpop.f32.mrf.mxu0
  %v10951 = vadd.f32 %v10919, %v10950
  %10952 = vmatmul.f32.gmra.mxu0 %v10858
  %v10953 = vpop.f32.mrf.mxu0
  %v10954 = vadd.f32 %v10922, %v10953
  %10955 = vdwg.mxu0
  %v10956 = vadd.f32 %v10750, %v10942
  %v10957 = vadd.f32 %v10753, %v10945
  %v10958 = vadd.f32 %v10756, %v10948
  %v10959 = vadd.f32 %v10759, %v10951
  %v10960 = vadd.f32 %v10762, %v10954
  %v10961 = vld [vmem:[%s10] sm:$0x1]
  %v10963 = vperm.slane %v10961, 0
  %v10965 = vadd.f32 %v10956, %v10963
  %v10966 = vadd.f32 %v10957, %v10963
  %v10967 = vadd.f32 %v10958, %v10963
  %v10968 = vadd.f32 %v10959, %v10963
  %v10969 = vadd.f32 %v10960, %v10963
  %v10970 = vmul.f32 %v10965, %v570
  %v10971 = vmul.f32 %v10966, %v575
  %v10972 = vmul.f32 %v10967, %v580
  %v10973 = vmul.f32 %v10968, %v585
  %v10974 = vmul.f32 %v10969, %v590
  %v10975 = vsel %vm140, %v10970, 0.0
  %v10976 = vsel %vm140, %v10971, 0.0
  %v10977 = vadd.f32 %v10975, %v10976
  %v10978 = vsel %vm140, %v10972, 0.0
  %v10979 = vadd.f32 %v10977, %v10978
  %v10980 = vsel %vm140, %v10973, 0.0
  %v10981 = vadd.f32 %v10979, %v10980
  %vm10982 = vcmask 437248
  %v10983 = vsel %vm10982, %v10974, 0.0
  %v10984 = vadd.f32 %v10981, %v10983
  %v10985 = vrot.slane %v10984, 4
  %v10986 = vadd.f32 %v10984, %v10985
  %v10987 = vrot.slane %v10986, 2
  %v10988 = vadd.f32 %v10986, %v10987
  %v10989 = vrot.slane %v10988, 1
  %v10990 = vadd.f32 %v10988, %v10989
  %v10991 = vmul.f32 %v10970, %v10970
  %v10992 = vmul.f32 %v10971, %v10971
  %v10993 = vmul.f32 %v10972, %v10972
  %v10994 = vmul.f32 %v10973, %v10973
  %v10995 = vmul.f32 %v10974, %v10974
  %v10996 = vsel %vm140, %v10991, 0.0
  %v10997 = vsel %vm140, %v10992, 0.0
  %v10998 = vadd.f32 %v10996, %v10997
  %v10999 = vsel %vm140, %v10993, 0.0
  %v11000 = vadd.f32 %v10998, %v10999
  %v11001 = vsel %vm140, %v10994, 0.0
  %v11002 = vadd.f32 %v11000, %v11001
  %v11003 = vsel %vm10982, %v10995, 0.0
  %v11004 = vadd.f32 %v11002, %v11003
  %v11005 = vrot.slane %v11004, 4
  %v11006 = vadd.f32 %v11004, %v11005
  %v11007 = vrot.slane %v11006, 2
  %v11008 = vadd.f32 %v11006, %v11007
  %v11009 = vrot.slane %v11008, 1
  %v11010 = vadd.f32 %v11008, %v11009
  %v11011 = vld [vmem:[%s19] sm:$0xff]
  %v11012 = vld [vmem:[%s19 + $0x8] sm:$0xff]
  %v11013 = vld [vmem:[%s19 + $0x10] sm:$0xff]
  %v11014 = vld [vmem:[%s19 + $0x18] sm:$0xff]
  %v11015 = vld [vmem:[%s19 + $0x20] sm:$0xff]
  %v11016 = vld [vmem:[%s19 + $0x28] sm:$0xff]
  %v11017 = vld [vmem:[%s19 + $0x30] sm:$0x3f]
  %v11019 = vsel %vm140, %v10990, 0
  %v11022 = vsel %vm156, %v11017, 0
  %11024 = vmatpush.msra.mxu0 0.0
  %11025 = vmatpush.msra.mxu0 0.0
  %11026 = vmatpush.msra.mxu0 0.0
  %11027 = vmatpush.msra.mxu0 0.0
  %11028 = vmatpush.msra.mxu0 0.0
  %11029 = vmatpush.msra.mxu0 0.0
  %11030 = vmatpush.msra.mxu0 0.0
  %11031 = vmatpush.msra.mxu0 0.0
  %11032 = vmatpush.msra.mxu0 0.0
  %11033 = vmatpush.msra.mxu0 %v11022
  %11034 = vmatpush.msra.mxu0 %v11016
  %11035 = vmatpush.msra.mxu0 %v11015
  %11036 = vmatpush.msra.mxu0 %v11014
  %11037 = vmatpush.msra.mxu0 %v11013
  %11038 = vmatpush.msra.mxu0 %v11012
  %11039 = vmatpush.msra.mxu0 %v11011
  %11040 = vmatmul.f32.gmra.mxu0 %v11019
  %v11041 = vpop.f32.mrf.mxu0
  %v11042 = vadd.f32 0.0, %v11041
  %11043 = vdwg.mxu0
  %v11045 = vsel %vm140, %v11010, 0
  %11047 = vmatpush.msra.mxu0 0.0
  %11048 = vmatpush.msra.mxu0 0.0
  %11049 = vmatpush.msra.mxu0 0.0
  %11050 = vmatpush.msra.mxu0 0.0
  %11051 = vmatpush.msra.mxu0 0.0
  %11052 = vmatpush.msra.mxu0 0.0
  %11053 = vmatpush.msra.mxu0 0.0
  %11054 = vmatpush.msra.mxu0 0.0
  %11055 = vmatpush.msra.mxu0 0.0
  %11056 = vmatpush.msra.mxu0 %v11022
  %11057 = vmatpush.msra.mxu0 %v11016
  %11058 = vmatpush.msra.mxu0 %v11015
  %11059 = vmatpush.msra.mxu0 %v11014
  %11060 = vmatpush.msra.mxu0 %v11013
  %11061 = vmatpush.msra.mxu0 %v11012
  %11062 = vmatpush.msra.mxu0 %v11011
  %11063 = vmatmul.f32.gmra.mxu0 %v11045
  %v11064 = vpop.f32.mrf.mxu0
  %v11065 = vadd.f32 0.0, %v11064
  %11066 = vdwg.mxu0
  %v11067 = vmul.f32 %v11042, 0.001953125
  %v11068 = vmul.f32 %v11065, 0.001953125
  %v11069 = vmul.f32 %v11067, %v11067
  %v11070 = vsub.f32 %v11068, %v11069
  %v11071 = vld [vmem:[%s13] sm:$0x1]
  %v11072 = vadd.f32 %v11070, 1e-05
  %v11073 = vrsqrt.pop %v11072
  %v11074 = vmul.f32 %v11073, %v11072
  %v11075 = vmul.f32 %v11074, %v11073
  %v11076 = vmul.f32 0.5, %v11075
  %v11077 = vsub.f32 1.5, %v11076
  %v11078 = vmul.f32 %v11073, %v11077
  %vm11079 = vweird.f32 %v11072
  %vm11080 = vweird.f32 %v11073
  %vm11081 = vmor %vm11079, %vm11080
  %v11082 = vsel %vm11081, %v11073, %v11078
  %v11083 = vmul.f32 %v11071, %v11082
  %v11084 = vld [vmem:[%s14] sm:$0x1]
  %v11085 = vmul.f32 %v11067, %v11083
  %v11086 = vsub.f32 %v11084, %v11085
  %v11087 = vld [vmem:[%s20] sm:$0x7]
  %vm11088 = vcmask 23552
  %v11090 = vsel %vm11088, %v11083, 0
  %vm11092 = vcmask 1042432
  %v11094 = vsel %vm11092, %v11087, 0
  %11096 = vmatpush.msra.mxu0 0.0
  %11097 = vmatpush.msra.mxu0 0.0
  %11098 = vmatpush.msra.mxu0 0.0
  %11099 = vmatpush.msra.mxu0 0.0
  %11100 = vmatpush.msra.mxu0 0.0
  %11101 = vmatpush.msra.mxu0 0.0
  %11102 = vmatpush.msra.mxu0 0.0
  %11103 = vmatpush.msra.mxu0 0.0
  %11104 = vmatpush.msra.mxu0 0.0
  %11105 = vmatpush.msra.mxu0 0.0
  %11106 = vmatpush.msra.mxu0 0.0
  %11107 = vmatpush.msra.mxu0 0.0
  %11108 = vmatpush.msra.mxu0 0.0
  %11109 = vmatpush.msra.mxu0 0.0
  %11110 = vmatpush.msra.mxu0 0.0
  %11111 = vmatpush.msra.mxu0 %v11094
  %11112 = vmatmul.f32.gmra.mxu0 %v11090
  %v11113 = vpop.f32.mrf.mxu0
  %v11114 = vadd.f32 0.0, %v11113
  %11115 = vdwg.mxu0
  %v11117 = vsel %vm11088, %v11086, 0
  %11119 = vmatpush.msra.mxu0 0.0
  %11120 = vmatpush.msra.mxu0 0.0
  %11121 = vmatpush.msra.mxu0 0.0
  %11122 = vmatpush.msra.mxu0 0.0
  %11123 = vmatpush.msra.mxu0 0.0
  %11124 = vmatpush.msra.mxu0 0.0
  %11125 = vmatpush.msra.mxu0 0.0
  %11126 = vmatpush.msra.mxu0 0.0
  %11127 = vmatpush.msra.mxu0 0.0
  %11128 = vmatpush.msra.mxu0 0.0
  %11129 = vmatpush.msra.mxu0 0.0
  %11130 = vmatpush.msra.mxu0 0.0
  %11131 = vmatpush.msra.mxu0 0.0
  %11132 = vmatpush.msra.mxu0 0.0
  %11133 = vmatpush.msra.mxu0 0.0
  %11134 = vmatpush.msra.mxu0 %v11094
  %11135 = vmatmul.f32.gmra.mxu0 %v11117
  %v11136 = vpop.f32.mrf.mxu0
  %v11137 = vadd.f32 0.0, %v11136
  %11138 = vdwg.mxu0
  %v11139 = vperm.slane %v11114, 0
  %v11140 = vmul.f32 %v10970, %v11139
  %v11141 = vmul.f32 %v10971, %v11139
  %v11142 = vmul.f32 %v10972, %v11139
  %v11143 = vmul.f32 %v10973, %v11139
  %v11144 = vmul.f32 %v10974, %v11139
  %v11145 = vperm.slane %v11137, 0
  %v11146 = vadd.f32 %v11140, %v11145
  %v11147 = vadd.f32 %v11141, %v11145
  %v11148 = vadd.f32 %v11142, %v11145
  %v11149 = vadd.f32 %v11143, %v11145
  %v11150 = vadd.f32 %v11144, %v11145
  %v11151 = vmax.f32 %v11146, 0.0
  %v11152 = vmax.f32 %v11147, 0.0
  %v11153 = vmax.f32 %v11148, 0.0
  %v11154 = vmax.f32 %v11149, 0.0
  %v11155 = vmax.f32 %v11150, 0.0
  %11156 = vst.msk [vmem:[%s21] sm:$0xff] %vm140, %v11151
  %11157 = vst.msk [vmem:[%s21 + $0x8] sm:$0xff] %vm140, %v11152
  %11158 = vst.msk [vmem:[%s21 + $0x10] sm:$0xff] %vm140, %v11153
  %11159 = vst.msk [vmem:[%s21 + $0x18] sm:$0xff] %vm140, %v11154
  %11160 = vst.msk [vmem:[%s21 + $0x20] sm:$0xf] %vm10982, %v11155
  // Predicated region
  $region86: #{correction_net_pallas.1} parent=0 // pred_check
    _
  $region87: #{correction_net_pallas.1} parent=0 // pred_check_branch
    %11162 = sbr.rel (0) target = $region89
  $region88: #{correction_net_pallas.1} parent=0 // pred_region
    _
  $region89: #{correction_net_pallas.1} parent=0 // pred_fallthru
    _
  // Predicated region
  $region90: #{correction_net_pallas.1} parent=0 // pred_check
    _
  $region91: #{correction_net_pallas.1} parent=0 // pred_check_branch
    %11164 = sbr.rel (0) target = $region93
  $region92: #{correction_net_pallas.1} parent=0 // pred_region
    _
  $region93: #{correction_net_pallas.1} parent=0 // pred_fallthru
    _

</llo_original>
